<compile_context>
chip_gen: v6e
topology: v6e:2x2x1
jax: 0.10.0
libtpu: 0.0.40
codegen_flags: <defaults>
</compile_context>

<pallas_src>
import functools

import numpy as np
import jax
import jax.numpy as jnp
from jax.experimental import pallas as pl
from jax.experimental.pallas import tpu as pltpu

IMG_SIZE = (28, 28)
D = IMG_SIZE[0] * IMG_SIZE[1]          # 784 features after Fm.Flatten
SPLIT = D // 2                         # 392: GLOW coupling split
COND_DIM = 10                          # Ff.ConditionNode(10)
INTERNAL_WIDTH = 512                   # CONFIG.internal_width
CLAMP = 1.5                            # CONFIG.clamping
INIT_SCALE = 0.03                      # CONFIG.init_scale
N_BLOCKS = 4                           # CONFIG.n_blocks = 24; small for demo run


def _atan_f32(x):
    """float32 arctan: Cephes-style range reduction + minimax polynomial.

    Division-free: the two range-reduction reciprocals go to the EUP
    (pl.reciprocal approx), co-issuing with MXU/VPU work.
    """
    sgn = jnp.where(x < 0.0, -1.0, 1.0).astype(jnp.float32)
    ax = jnp.abs(x)
    big = ax > 2.414213562373095            # tan(3*pi/8)
    mid = ax > 0.4142135623730951           # tan(pi/8)
    inv_big = pl.reciprocal(jnp.where(big, ax, 1.0), approx=True)   # safe: ax>2.41 where used
    x_big = -inv_big
    inv_mid = pl.reciprocal(ax + 1.0, approx=True)                  # denom >= 1 everywhere
    x_mid = (ax - 1.0) * inv_mid
    xr = jnp.where(big, x_big, jnp.where(mid, x_mid, ax))
    y0 = jnp.where(big, jnp.float32(np.pi / 2),
                   jnp.where(mid, jnp.float32(np.pi / 4), jnp.float32(0.0)))
    z = xr * xr
    p = ((((8.05374449538e-2 * z - 1.38776856032e-1) * z
           + 1.99777106478e-1) * z - 3.33329491539e-1) * z * xr + xr)
    return sgn * (y0 + p)


def _cinn_kernel(z0_ref, cond_ref, permL_ref, permR_ref,
                 w1x_ref, w1c_ref, b1_ref,
                 w2_ref, b2_ref, w3_ref, b3_ref,
                 w4s_ref, b4s_ref, w4t_ref, b4t_ref,
                 z_ref, jac_ref,
                 a1, a2, jac_acc,
                 *, clamp, split):
    blk = pl.program_id(1)
    half = pl.program_id(2)
    last_blk = pl.num_programs(1) - 1

    # Load the flattened image into the resident VMEM state at the start of each
    # batch tile, and zero the log-det accumulator.
    @pl.when(jnp.logical_and(blk == 0, half == 0))
    def _init():
        z0 = z0_ref[...]
        a1[...] = z0[:, :split]
        a2[...] = z0[:, split:]
        jac_acc[...] = jnp.zeros_like(jac_acc)

    # Fm.PermuteRandom(seed=blk) at the start of every block, applied to the
    # VMEM-resident state as an exact one-hot matmul (P stored bf16, math f32).
    # P is pre-split by columns so x1 / x2 land directly in a1 / a2.
    @pl.when(half == 0)
    def _permute():
        s1 = a1[...]
        s2 = a2[...]
        pL = permL_ref[0].astype(jnp.float32)          # (D, split)
        pR = permR_ref[0].astype(jnp.float32)
        a1[...] = (jnp.dot(s1, pL[:split], preferred_element_type=jnp.float32) +
                   jnp.dot(s2, pL[split:], preferred_element_type=jnp.float32))
        a2[...] = (jnp.dot(s1, pR[:split], preferred_element_type=jnp.float32) +
                   jnp.dot(s2, pR[split:], preferred_element_type=jnp.float32))

    # GLOWCouplingBlock:
    #   half 0 ("coupling1"): subnet2([x2, c]) -> (s2, t2); y1 = exp(s2)*x1 + t2  (a1 <- y1)
    #   half 1 ("coupling2"): subnet1([y1, c]) -> (s1, t1); y2 = exp(s1)*x2 + t1  (a2 <- y2)
    m = (half == 0).astype(jnp.float32)                # scalar role selector
    v1 = a1[...]
    v2 = a2[...]
    active = m * v2 + (1.0 - m) * v1
    passive = m * v1 + (1.0 - m) * v2

    # 4-layer fully-connected subnet (Dropout p=0.0 == identity).  Weights stream
    # as bf16, matmul LHS cast to bf16, accumulation and element-wise math in f32.
    h = jnp.dot(active.astype(jnp.bfloat16), w1x_ref[0, 0],
                preferred_element_type=jnp.float32)
    h = h + jnp.dot(cond_ref[...].astype(jnp.bfloat16), w1c_ref[0, 0],
                    preferred_element_type=jnp.float32)
    h = jnp.maximum(h + b1_ref[0, 0], 0.0)
    h = jnp.maximum(jnp.dot(h.astype(jnp.bfloat16), w2_ref[0, 0],
                            preferred_element_type=jnp.float32) + b2_ref[0, 0], 0.0)
    h = jnp.maximum(jnp.dot(h.astype(jnp.bfloat16), w3_ref[0, 0],
                            preferred_element_type=jnp.float32) + b3_ref[0, 0], 0.0)
    hb = h.astype(jnp.bfloat16)
    s = jnp.dot(hb, w4s_ref[0, 0], preferred_element_type=jnp.float32) + b4s_ref[0, 0]
    t = jnp.dot(hb, w4t_ref[0, 0], preferred_element_type=jnp.float32) + b4t_ref[0, 0]

    log_e = (clamp * 0.636) * _atan_f32(s)             # FrEIA GLOW soft clamp
    y = jnp.exp(log_e) * passive + t
    jac_acc[...] = jac_acc[...] + jnp.sum(log_e, axis=1, keepdims=True)

    @pl.when(half == 0)
    def _store_y1():
        a1[...] = y

    @pl.when(half == 1)
    def _store_y2():
        a2[...] = y

    # Write the lane-dense (B, 784) output and the accumulated log-det exactly
    # once, after the last coupling half of the last block of this batch tile.
    @pl.when(jnp.logical_and(blk == last_blk, half == 1))
    def _finalize():
        z_ref[...] = jnp.concatenate([a1[...], a2[...]], axis=1)
        jac_ref[...] = jac_acc[...]


def _fused_cinn_call(z0, cond, params, clamp):
    B, d = z0.shape
    split = d // 2
    n_blocks = params["w1x"].shape[0]
    width = params["w2"].shape[-1]
    cdim = params["w1c"].shape[2]

    # Batch tiling: present up to 128 rows per MXU pass; "parallel" axis lets
    # v7x's two TensorCores split the batch (no-op on v5e/v6e).
    if B <= 128:
        bt = B
    else:
        assert B % 128 == 0, "batch must be a multiple of 128 when larger than 128"
        bt = 128
    n_bt = B // bt

    kernel = functools.partial(_cinn_kernel, clamp=clamp, split=split)

    batch_map = lambda i, b, h: (i, 0)
    perm_map = lambda i, b, h: (b, 0, 0)      # fetched once per block (same for both halves)
    wmap = lambda i, b, h: (b, h, 0, 0)       # one coupling half's weights per grid step

    grid = (n_bt, n_blocks, 2)

    in_specs = [
        pl.BlockSpec((bt, d), batch_map),             # flattened image
        pl.BlockSpec((bt, cdim), batch_map),          # one-hot condition
        pl.BlockSpec((1, d, split), perm_map),        # permutation matrix, cols [:392]
        pl.BlockSpec((1, d, split), perm_map),        # permutation matrix, cols [392:]
        pl.BlockSpec((1, 1, split, width), wmap),     # W1 rows for active half
        pl.BlockSpec((1, 1, cdim, width), wmap),      # W1 rows for condition
        pl.BlockSpec((1, 1, 1, width), wmap),         # b1
        pl.BlockSpec((1, 1, width, width), wmap),     # W2
        pl.BlockSpec((1, 1, 1, width), wmap),         # b2
        pl.BlockSpec((1, 1, width, width), wmap),     # W3
        pl.BlockSpec((1, 1, 1, width), wmap),         # b3
        pl.BlockSpec((1, 1, width, split), wmap),     # W4 (s columns)
        pl.BlockSpec((1, 1, 1, split), wmap),         # b4 (s)
        pl.BlockSpec((1, 1, width, split), wmap),     # W4 (t columns)
        pl.BlockSpec((1, 1, 1, split), wmap),         # b4 (t)
    ]
    out_specs = (
        pl.BlockSpec((bt, d), batch_map),             # z
        pl.BlockSpec((bt, 1), batch_map),             # per-sample log-det
    )
    scratch_shapes = [
        pltpu.VMEM((bt, split), jnp.float32),         # state half 1 (x1 / y1)
        pltpu.VMEM((bt, split), jnp.float32),         # state half 2 (x2 / y2)
        pltpu.VMEM((bt, 1), jnp.float32),             # log-det accumulator
    ]

    z, jac = pl.pallas_call(
        kernel,
        out_shape=(jax.ShapeDtypeStruct((B, d), jnp.float32),
                   jax.ShapeDtypeStruct((B, 1), jnp.float32)),
        grid_spec=pltpu.PrefetchScalarGridSpec(
            num_scalar_prefetch=0,
            grid=grid,
            in_specs=in_specs,
            out_specs=out_specs,
            scratch_shapes=scratch_shapes,
        ),
        compiler_params=pltpu.CompilerParams(
            dimension_semantics=("parallel", "arbitrary", "arbitrary"),
            vmem_limit_bytes=32 * 1024 * 1024,
        ),
    )(z0, cond,
      params["permL"], params["permR"],
      params["w1x"], params["w1c"], params["b1"],
      params["w2"], params["b2"],
      params["w3"], params["b3"],
      params["w4s"], params["b4s"],
      params["w4t"], params["b4t"])
    return z, jac[:, 0]


def cinn_forward(x, labels, params):
    """Equivalent of MNISTcINN_normal.forward(x, l, jac=True) -> (z, log_jac)."""
    B = x.shape[0]
    z0 = x.reshape(B, -1).astype(jnp.float32)                     # Fm.Flatten (NCHW, row-major)
    cond = jax.nn.one_hot(labels, COND_DIM, dtype=jnp.float32)    # one_hot(l)
    return _fused_cinn_call(z0, cond, params, CLAMP)


def cinn_forward_reference(x, labels, params, clamp=CLAMP):
    """Plain-JAX reference of the same FrEIA graph (same bf16 weight/LHS policy)."""
    B = x.shape[0]
    split = D // 2
    z = x.reshape(B, -1).astype(jnp.float32)
    cond = jax.nn.one_hot(labels, COND_DIM, dtype=jnp.float32)
    log_jac = jnp.zeros((B,), jnp.float32)
    n_blocks = params["w1x"].shape[0]

    def subnet(k, h, act):
        dot = lambda a, w: jnp.dot(a.astype(jnp.bfloat16), w,
                                   preferred_element_type=jnp.float32)
        v = dot(act, params["w1x"][k, h]) + dot(cond, params["w1c"][k, h]) + params["b1"][k, h]
        v = jnp.maximum(v, 0.0)
        v = jnp.maximum(dot(v, params["w2"][k, h]) + params["b2"][k, h], 0.0)
        v = jnp.maximum(dot(v, params["w3"][k, h]) + params["b3"][k, h], 0.0)
        s = dot(v, params["w4s"][k, h]) + params["b4s"][k, h]
        t = dot(v, params["w4t"][k, h]) + params["b4t"][k, h]
        return s, t

    for k in range(n_blocks):
        perm = params["perm"][k]
        zp = z[:, perm]
        x1, x2 = zp[:, :split], zp[:, split:]
        s2, t2 = subnet(k, 0, x2)
        log_e2 = clamp * 0.636 * jnp.arctan(s2)
        y1 = jnp.exp(log_e2) * x1 + t2
        s1, t1 = subnet(k, 1, y1)
        log_e1 = clamp * 0.636 * jnp.arctan(s1)
        y2 = jnp.exp(log_e1) * x2 + t1
        z = jnp.concatenate([y1, y2], axis=1)
        log_jac = log_jac + jnp.sum(log_e2, axis=1) + jnp.sum(log_e1, axis=1)
    return z, log_jac


def init_params(key, n_blocks=N_BLOCKS, d=D, cond_dim=COND_DIM,
                width=INTERNAL_WIDTH, init_scale=INIT_SCALE):
    """Trainable params are init_scale * N(0,1) (mirrors the module's init)."""
    split = d // 2

    # Fm.PermuteRandom {'seed': k}: exact one-hot permutation matrices, stored
    # bf16 (0/1 exact), pre-split into the two output-column halves.
    permL = np.zeros((n_blocks, d, split), np.float32)
    permR = np.zeros((n_blocks, d, split), np.float32)
    perm_idx = np.zeros((n_blocks, d), np.int32)
    for k in range(n_blocks):
        np.random.seed(k)
        perm = np.random.permutation(d)
        perm_idx[k] = perm
        pmat = np.zeros((d, d), np.float32)
        pmat[perm, np.arange(d)] = 1.0          # (z @ pmat)[:, j] == z[:, perm[j]]
        permL[k] = pmat[:, :split]
        permR[k] = pmat[:, split:]

    # Subnet weights indexed [block, half]; half 0 = subnet2 (coupling1),
    # half 1 = subnet1 (coupling2).  Weights stream as bf16, biases stay f32.
    ks = jax.random.split(key, 8)
    rnd = lambda k, shape: init_scale * jax.random.normal(k, shape, jnp.float32)
    w1 = rnd(ks[0], (n_blocks, 2, split + cond_dim, width))
    b1 = rnd(ks[1], (n_blocks, 2, 1, width))
    w2 = rnd(ks[2], (n_blocks, 2, width, width))
    b2 = rnd(ks[3], (n_blocks, 2, 1, width))
    w3 = rnd(ks[4], (n_blocks, 2, width, width))
    b3 = rnd(ks[5], (n_blocks, 2, 1, width))
    w4 = rnd(ks[6], (n_blocks, 2, width, 2 * split))
    b4 = rnd(ks[7], (n_blocks, 2, 1, 2 * split))

    return {
        "w1x": w1[:, :, :split, :].astype(jnp.bfloat16),   # rows for the active half
        "w1c": w1[:, :, split:, :].astype(jnp.bfloat16),   # rows for the condition
        "b1": b1,
        "w2": w2.astype(jnp.bfloat16), "b2": b2,
        "w3": w3.astype(jnp.bfloat16), "b3": b3,
        "w4s": w4[..., :split].astype(jnp.bfloat16), "b4s": b4[..., :split],
        "w4t": w4[..., split:].astype(jnp.bfloat16), "b4t": b4[..., split:],
        "permL": jnp.asarray(permL, jnp.bfloat16),
        "permR": jnp.asarray(permR, jnp.bfloat16),
        "perm": jnp.asarray(perm_idx),                     # reference / debug only
    }


if __name__ == "__main__":
    key = jax.random.PRNGKey(0)
    kx, kl, kp = jax.random.split(key, 3)

    B = 2
    x = jax.random.normal(kx, (B, 1, *IMG_SIZE), jnp.float32)   # NCHW like PyTorch
    labels = jax.random.randint(kl, (B,), 0, 10)
    params = init_params(kp)

    fwd = jax.jit(cinn_forward)
    z, log_jac = fwd(x, labels, params)
    jax.block_until_ready((z, log_jac))

    assert z.shape == (B, D) and z.dtype == jnp.float32
    assert log_jac.shape == (B,) and log_jac.dtype == jnp.float32
    assert bool(jnp.all(jnp.isfinite(z))) and bool(jnp.all(jnp.isfinite(log_jac)))

    # Cross-check against a plain-JAX reference of the same FrEIA graph.
    z_ref, jac_ref = jax.jit(cinn_forward_reference)(x, labels, params)
    jax.block_until_ready((z_ref, jac_ref))
    z_err = float(jnp.max(jnp.abs(z - z_ref)))
    j_err = float(jnp.max(jnp.abs(log_jac - jac_ref)))
    assert z_err < 5e-2, f"z mismatch: {z_err}"
    assert j_err < 2.0, f"log_jac mismatch: {j_err}"

    print("KERNEL_OK")
</pallas_src>

<mosaic_0001>
module attributes {stable_mosaic.version = 11 : i64} {
  func.func @_cinn_kernel(%arg0: i32, %arg1: i32, %arg2: i32, %arg3: memref<2x784xf32, #tpu.memory_space<vmem>>, %arg4: memref<2x10xf32, #tpu.memory_space<vmem>>, %arg5: memref<1x784x392xbf16, #tpu.memory_space<vmem>>, %arg6: memref<1x784x392xbf16, #tpu.memory_space<vmem>>, %arg7: memref<1x1x392x512xbf16, #tpu.memory_space<vmem>>, %arg8: memref<1x1x10x512xbf16, #tpu.memory_space<vmem>>, %arg9: memref<1x1x1x512xf32, #tpu.memory_space<vmem>>, %arg10: memref<1x1x512x512xbf16, #tpu.memory_space<vmem>>, %arg11: memref<1x1x1x512xf32, #tpu.memory_space<vmem>>, %arg12: memref<1x1x512x512xbf16, #tpu.memory_space<vmem>>, %arg13: memref<1x1x1x512xf32, #tpu.memory_space<vmem>>, %arg14: memref<1x1x512x392xbf16, #tpu.memory_space<vmem>>, %arg15: memref<1x1x1x392xf32, #tpu.memory_space<vmem>>, %arg16: memref<1x1x512x392xbf16, #tpu.memory_space<vmem>>, %arg17: memref<1x1x1x392xf32, #tpu.memory_space<vmem>>, %arg18: memref<2x784xf32, #tpu.memory_space<vmem>>, %arg19: memref<2x1xf32, #tpu.memory_space<vmem>>, %arg20: memref<2x392xf32, #tpu.memory_space<vmem>>, %arg21: memref<2x392xf32, #tpu.memory_space<vmem>>, %arg22: memref<2x1xf32, #tpu.memory_space<vmem>>) attributes {dimension_semantics = [#tpu.dimension_semantics<parallel>, #tpu.dimension_semantics<arbitrary>, #tpu.dimension_semantics<arbitrary>], iteration_bounds = array<i64: 1, 4, 2>, scalar_prefetch = 0 : i64, scratch_operands = 3 : i64, tpu.core_type = #tpu.core_type<tc>, window_params = [{transform_indices = @transform_0, window_bounds = array<i64: 2, 784>}, {transform_indices = @transform_1, window_bounds = array<i64: 2, 10>}, {transform_indices = @transform_2, window_bounds = array<i64: 1, 784, 392>}, {transform_indices = @transform_3, window_bounds = array<i64: 1, 784, 392>}, {transform_indices = @transform_4, window_bounds = array<i64: 1, 1, 392, 512>}, {transform_indices = @transform_5, window_bounds = array<i64: 1, 1, 10, 512>}, {transform_indices = @transform_6, window_bounds = array<i64: 1, 1, 1, 512>}, {transform_indices = @transform_7, window_bounds = array<i64: 1, 1, 512, 512>}, {transform_indices = @transform_8, window_bounds = array<i64: 1, 1, 1, 512>}, {transform_indices = @transform_9, window_bounds = array<i64: 1, 1, 512, 512>}, {transform_indices = @transform_10, window_bounds = array<i64: 1, 1, 1, 512>}, {transform_indices = @transform_11, window_bounds = array<i64: 1, 1, 512, 392>}, {transform_indices = @transform_12, window_bounds = array<i64: 1, 1, 1, 392>}, {transform_indices = @transform_13, window_bounds = array<i64: 1, 1, 512, 392>}, {transform_indices = @transform_14, window_bounds = array<i64: 1, 1, 1, 392>}, {transform_indices = @transform_15, window_bounds = array<i64: 2, 784>}, {transform_indices = @transform_16, window_bounds = array<i64: 2, 1>}]} {
    %c0_i32 = arith.constant 0 : i32
    %0 = arith.cmpi eq, %arg1, %c0_i32 : i32
    %c0_i32_0 = arith.constant 0 : i32
    %1 = arith.cmpi eq, %arg2, %c0_i32_0 : i32
    %2 = arith.andi %0, %1 : i1
    %3 = arith.extui %2 : i1 to i32
    %c0_i32_1 = arith.constant 0 : i32
    %4 = arith.cmpi ne, %3, %c0_i32_1 : i32
    scf.if %4 {
      %c0_91 = arith.constant 0 : index
      %c0_92 = arith.constant 0 : index
      %141 = vector.load %arg3[%c0_91, %c0_92] : memref<2x784xf32, #tpu.memory_space<vmem>>, vector<2x784xf32>
      %142 = vector.extract_strided_slice %141 {offsets = [0, 0], sizes = [2, 392], strides = [1, 1]} : vector<2x784xf32> to vector<2x392xf32>
      %c0_93 = arith.constant 0 : index
      %c0_94 = arith.constant 0 : index
      %143 = vector.load %arg20[%c0_93, %c0_94] : memref<2x392xf32, #tpu.memory_space<vmem>>, vector<2x392xf32>
      tpu.vector_store %arg20[%c0_93, %c0_94], %142 {strides = array<i32>} : memref<2x392xf32, #tpu.memory_space<vmem>>, vector<2x392xf32>,
      %144 = vector.extract_strided_slice %141 {offsets = [0, 392], sizes = [2, 392], strides = [1, 1]} : vector<2x784xf32> to vector<2x392xf32>
      %c0_95 = arith.constant 0 : index
      %c0_96 = arith.constant 0 : index
      %145 = vector.load %arg21[%c0_95, %c0_96] : memref<2x392xf32, #tpu.memory_space<vmem>>, vector<2x392xf32>
      tpu.vector_store %arg21[%c0_95, %c0_96], %144 {strides = array<i32>} : memref<2x392xf32, #tpu.memory_space<vmem>>, vector<2x392xf32>,
      %cst_97 = arith.constant 0.000000e+00 : f32
      %146 = vector.broadcast %cst_97 : f32 to vector<2x1xf32>
      %c0_98 = arith.constant 0 : index
      %c0_99 = arith.constant 0 : index
      %147 = vector.load %arg22[%c0_98, %c0_99] : memref<2x1xf32, #tpu.memory_space<vmem>>, vector<2x1xf32>
      tpu.vector_store %arg22[%c0_98, %c0_99], %146 {strides = array<i32>} : memref<2x1xf32, #tpu.memory_space<vmem>>, vector<2x1xf32>,
    } else {
    }
    %c0_i32_2 = arith.constant 0 : i32
    %5 = arith.cmpi eq, %arg2, %c0_i32_2 : i32
    %6 = arith.extui %5 : i1 to i32
    %c0_i32_3 = arith.constant 0 : i32
    %7 = arith.cmpi ne, %6, %c0_i32_3 : i32
    scf.if %7 {
      %c0_91 = arith.constant 0 : index
      %c0_92 = arith.constant 0 : index
      %141 = vector.load %arg20[%c0_91, %c0_92] : memref<2x392xf32, #tpu.memory_space<vmem>>, vector<2x392xf32>
      %c0_93 = arith.constant 0 : index
      %c0_94 = arith.constant 0 : index
      %142 = vector.load %arg21[%c0_93, %c0_94] : memref<2x392xf32, #tpu.memory_space<vmem>>, vector<2x392xf32>
      %c0_95 = arith.constant 0 : index
      %c0_96 = arith.constant 0 : index
      %c0_97 = arith.constant 0 : index
      %143 = vector.load %arg5[%c0_95, %c0_96, %c0_97] : memref<1x784x392xbf16, #tpu.memory_space<vmem>>, vector<1x784x392xbf16>
      %144 = vector.shape_cast %143 : vector<1x784x392xbf16> to vector<784x392xbf16>
      %145 = arith.extf %144 : vector<784x392xbf16> to vector<784x392xf32>
      %c0_98 = arith.constant 0 : index
      %c0_99 = arith.constant 0 : index
      %c0_100 = arith.constant 0 : index
      %146 = vector.load %arg6[%c0_98, %c0_99, %c0_100] : memref<1x784x392xbf16, #tpu.memory_space<vmem>>, vector<1x784x392xbf16>
      %147 = vector.shape_cast %146 : vector<1x784x392xbf16> to vector<784x392xbf16>
      %148 = arith.extf %147 : vector<784x392xbf16> to vector<784x392xf32>
      %149 = vector.extract_strided_slice %145 {offsets = [0, 0], sizes = [392, 392], strides = [1, 1]} : vector<784x392xf32> to vector<392x392xf32>
      %cst_101 = arith.constant dense<0.000000e+00> : vector<2x392xf32>
      %150 = tpu.matmul %141, %149, %cst_101 {dimension_numbers = #tpu.dot_dimension_numbers<[1], [0], [0], [1], [0, 0, 1, 1], [], []>} : vector<2x392xf32>, vector<392x392xf32>, vector<2x392xf32> -> vector<2x392xf32>
      %151 = vector.extract_strided_slice %145 {offsets = [392, 0], sizes = [392, 392], strides = [1, 1]} : vector<784x392xf32> to vector<392x392xf32>
      %cst_102 = arith.constant dense<0.000000e+00> : vector<2x392xf32>
      %152 = tpu.matmul %142, %151, %cst_102 {dimension_numbers = #tpu.dot_dimension_numbers<[1], [0], [0], [1], [0, 0, 1, 1], [], []>} : vector<2x392xf32>, vector<392x392xf32>, vector<2x392xf32> -> vector<2x392xf32>
      %153 = arith.addf %150, %152 : vector<2x392xf32>
      %c0_103 = arith.constant 0 : index
      %c0_104 = arith.constant 0 : index
      %154 = vector.load %arg20[%c0_103, %c0_104] : memref<2x392xf32, #tpu.memory_space<vmem>>, vector<2x392xf32>
      tpu.vector_store %arg20[%c0_103, %c0_104], %153 {strides = array<i32>} : memref<2x392xf32, #tpu.memory_space<vmem>>, vector<2x392xf32>,
      %155 = vector.extract_strided_slice %148 {offsets = [0, 0], sizes = [392, 392], strides = [1, 1]} : vector<784x392xf32> to vector<392x392xf32>
      %cst_105 = arith.constant dense<0.000000e+00> : vector<2x392xf32>
      %156 = tpu.matmul %141, %155, %cst_105 {dimension_numbers = #tpu.dot_dimension_numbers<[1], [0], [0], [1], [0, 0, 1, 1], [], []>} : vector<2x392xf32>, vector<392x392xf32>, vector<2x392xf32> -> vector<2x392xf32>
      %157 = vector.extract_strided_slice %148 {offsets = [392, 0], sizes = [392, 392], strides = [1, 1]} : vector<784x392xf32> to vector<392x392xf32>
      %cst_106 = arith.constant dense<0.000000e+00> : vector<2x392xf32>
      %158 = tpu.matmul %142, %157, %cst_106 {dimension_numbers = #tpu.dot_dimension_numbers<[1], [0], [0], [1], [0, 0, 1, 1], [], []>} : vector<2x392xf32>, vector<392x392xf32>, vector<2x392xf32> -> vector<2x392xf32>
      %159 = arith.addf %156, %158 : vector<2x392xf32>
      %c0_107 = arith.constant 0 : index
      %c0_108 = arith.constant 0 : index
      %160 = vector.load %arg21[%c0_107, %c0_108] : memref<2x392xf32, #tpu.memory_space<vmem>>, vector<2x392xf32>
      tpu.vector_store %arg21[%c0_107, %c0_108], %159 {strides = array<i32>} : memref<2x392xf32, #tpu.memory_space<vmem>>, vector<2x392xf32>,
    } else {
    }
    %c0_i32_4 = arith.constant 0 : i32
    %8 = arith.cmpi eq, %arg2, %c0_i32_4 : i32
    %9 = arith.extui %8 : i1 to i32
    %10 = arith.sitofp %9 : i32 to f32
    %c0 = arith.constant 0 : index
    %c0_5 = arith.constant 0 : index
    %11 = vector.load %arg20[%c0, %c0_5] : memref<2x392xf32, #tpu.memory_space<vmem>>, vector<2x392xf32>
    %c0_6 = arith.constant 0 : index
    %c0_7 = arith.constant 0 : index
    %12 = vector.load %arg21[%c0_6, %c0_7] : memref<2x392xf32, #tpu.memory_space<vmem>>, vector<2x392xf32>
    %13 = vector.broadcast %10 : f32 to vector<2x392xf32>
    %14 = arith.mulf %13, %12 : vector<2x392xf32>
    %cst = arith.constant 1.000000e+00 : f32
    %15 = arith.subf %cst, %10 : f32
    %16 = vector.broadcast %15 : f32 to vector<2x392xf32>
    %17 = arith.mulf %16, %11 : vector<2x392xf32>
    %18 = arith.addf %14, %17 : vector<2x392xf32>
    %19 = vector.broadcast %10 : f32 to vector<2x392xf32>
    %20 = arith.mulf %19, %11 : vector<2x392xf32>
    %cst_8 = arith.constant 1.000000e+00 : f32
    %21 = arith.subf %cst_8, %10 : f32
    %22 = vector.broadcast %21 : f32 to vector<2x392xf32>
    %23 = arith.mulf %22, %12 : vector<2x392xf32>
    %24 = arith.addf %20, %23 : vector<2x392xf32>
    %25 = arith.truncf %18 : vector<2x392xf32> to vector<2x392xbf16>
    %c0_9 = arith.constant 0 : index
    %c0_10 = arith.constant 0 : index
    %c0_11 = arith.constant 0 : index
    %c0_12 = arith.constant 0 : index
    %26 = vector.load %arg7[%c0_9, %c0_10, %c0_11, %c0_12] : memref<1x1x392x512xbf16, #tpu.memory_space<vmem>>, vector<1x1x392x512xbf16>
    %27 = vector.shape_cast %26 : vector<1x1x392x512xbf16> to vector<392x512xbf16>
    %cst_13 = arith.constant dense<0.000000e+00> : vector<2x512xf32>
    %28 = tpu.matmul %25, %27, %cst_13 {dimension_numbers = #tpu.dot_dimension_numbers<[1], [0], [0], [1], [0, 0, 1, 1], [], []>} : vector<2x392xbf16>, vector<392x512xbf16>, vector<2x512xf32> -> vector<2x512xf32>
    %c0_14 = arith.constant 0 : index
    %c0_15 = arith.constant 0 : index
    %29 = vector.load %arg4[%c0_14, %c0_15] : memref<2x10xf32, #tpu.memory_space<vmem>>, vector<2x10xf32>
    %30 = arith.truncf %29 : vector<2x10xf32> to vector<2x10xbf16>
    %c0_16 = arith.constant 0 : index
    %c0_17 = arith.constant 0 : index
    %c0_18 = arith.constant 0 : index
    %c0_19 = arith.constant 0 : index
    %31 = vector.load %arg8[%c0_16, %c0_17, %c0_18, %c0_19] : memref<1x1x10x512xbf16, #tpu.memory_space<vmem>>, vector<1x1x10x512xbf16>
    %32 = vector.shape_cast %31 : vector<1x1x10x512xbf16> to vector<10x512xbf16>
    %cst_20 = arith.constant dense<0.000000e+00> : vector<2x512xf32>
    %33 = tpu.matmul %30, %32, %cst_20 {dimension_numbers = #tpu.dot_dimension_numbers<[1], [0], [0], [1], [0, 0, 1, 1], [], []>} : vector<2x10xbf16>, vector<10x512xbf16>, vector<2x512xf32> -> vector<2x512xf32>
    %34 = arith.addf %28, %33 : vector<2x512xf32>
    %c0_21 = arith.constant 0 : index
    %c0_22 = arith.constant 0 : index
    %c0_23 = arith.constant 0 : index
    %c0_24 = arith.constant 0 : index
    %35 = vector.load %arg9[%c0_21, %c0_22, %c0_23, %c0_24] : memref<1x1x1x512xf32, #tpu.memory_space<vmem>>, vector<1x1x1x512xf32>
    %36 = vector.shape_cast %35 : vector<1x1x1x512xf32> to vector<1x512xf32>
    %37 = vector.broadcast %36 : vector<1x512xf32> to vector<2x512xf32>
    %38 = arith.addf %34, %37 : vector<2x512xf32>
    %cst_25 = arith.constant 0.000000e+00 : f32
    %39 = vector.broadcast %cst_25 : f32 to vector<2x512xf32>
    %40 = arith.maximumf %38, %39 : vector<2x512xf32>
    %41 = arith.truncf %40 : vector<2x512xf32> to vector<2x512xbf16>
    %c0_26 = arith.constant 0 : index
    %c0_27 = arith.constant 0 : index
    %c0_28 = arith.constant 0 : index
    %c0_29 = arith.constant 0 : index
    %42 = vector.load %arg10[%c0_26, %c0_27, %c0_28, %c0_29] : memref<1x1x512x512xbf16, #tpu.memory_space<vmem>>, vector<1x1x512x512xbf16>
    %43 = vector.shape_cast %42 : vector<1x1x512x512xbf16> to vector<512x512xbf16>
    %cst_30 = arith.constant dense<0.000000e+00> : vector<2x512xf32>
    %44 = tpu.matmul %41, %43, %cst_30 {dimension_numbers = #tpu.dot_dimension_numbers<[1], [0], [0], [1], [0, 0, 1, 1], [], []>} : vector<2x512xbf16>, vector<512x512xbf16>, vector<2x512xf32> -> vector<2x512xf32>
    %c0_31 = arith.constant 0 : index
    %c0_32 = arith.constant 0 : index
    %c0_33 = arith.constant 0 : index
    %c0_34 = arith.constant 0 : index
    %45 = vector.load %arg11[%c0_31, %c0_32, %c0_33, %c0_34] : memref<1x1x1x512xf32, #tpu.memory_space<vmem>>, vector<1x1x1x512xf32>
    %46 = vector.shape_cast %45 : vector<1x1x1x512xf32> to vector<1x512xf32>
    %47 = vector.broadcast %46 : vector<1x512xf32> to vector<2x512xf32>
    %48 = arith.addf %44, %47 : vector<2x512xf32>
    %cst_35 = arith.constant 0.000000e+00 : f32
    %49 = vector.broadcast %cst_35 : f32 to vector<2x512xf32>
    %50 = arith.maximumf %48, %49 : vector<2x512xf32>
    %51 = arith.truncf %50 : vector<2x512xf32> to vector<2x512xbf16>
    %c0_36 = arith.constant 0 : index
    %c0_37 = arith.constant 0 : index
    %c0_38 = arith.constant 0 : index
    %c0_39 = arith.constant 0 : index
    %52 = vector.load %arg12[%c0_36, %c0_37, %c0_38, %c0_39] : memref<1x1x512x512xbf16, #tpu.memory_space<vmem>>, vector<1x1x512x512xbf16>
    %53 = vector.shape_cast %52 : vector<1x1x512x512xbf16> to vector<512x512xbf16>
    %cst_40 = arith.constant dense<0.000000e+00> : vector<2x512xf32>
    %54 = tpu.matmul %51, %53, %cst_40 {dimension_numbers = #tpu.dot_dimension_numbers<[1], [0], [0], [1], [0, 0, 1, 1], [], []>} : vector<2x512xbf16>, vector<512x512xbf16>, vector<2x512xf32> -> vector<2x512xf32>
    %c0_41 = arith.constant 0 : index
    %c0_42 = arith.constant 0 : index
    %c0_43 = arith.constant 0 : index
    %c0_44 = arith.constant 0 : index
    %55 = vector.load %arg13[%c0_41, %c0_42, %c0_43, %c0_44] : memref<1x1x1x512xf32, #tpu.memory_space<vmem>>, vector<1x1x1x512xf32>
    %56 = vector.shape_cast %55 : vector<1x1x1x512xf32> to vector<1x512xf32>
    %57 = vector.broadcast %56 : vector<1x512xf32> to vector<2x512xf32>
    %58 = arith.addf %54, %57 : vector<2x512xf32>
    %cst_45 = arith.constant 0.000000e+00 : f32
    %59 = vector.broadcast %cst_45 : f32 to vector<2x512xf32>
    %60 = arith.maximumf %58, %59 : vector<2x512xf32>
    %61 = arith.truncf %60 : vector<2x512xf32> to vector<2x512xbf16>
    %c0_46 = arith.constant 0 : index
    %c0_47 = arith.constant 0 : index
    %c0_48 = arith.constant 0 : index
    %c0_49 = arith.constant 0 : index
    %62 = vector.load %arg14[%c0_46, %c0_47, %c0_48, %c0_49] : memref<1x1x512x392xbf16, #tpu.memory_space<vmem>>, vector<1x1x512x392xbf16>
    %63 = vector.shape_cast %62 : vector<1x1x512x392xbf16> to vector<512x392xbf16>
    %cst_50 = arith.constant dense<0.000000e+00> : vector<2x392xf32>
    %64 = tpu.matmul %61, %63, %cst_50 {dimension_numbers = #tpu.dot_dimension_numbers<[1], [0], [0], [1], [0, 0, 1, 1], [], []>} : vector<2x512xbf16>, vector<512x392xbf16>, vector<2x392xf32> -> vector<2x392xf32>
    %c0_51 = arith.constant 0 : index
    %c0_52 = arith.constant 0 : index
    %c0_53 = arith.constant 0 : index
    %c0_54 = arith.constant 0 : index
    %65 = vector.load %arg15[%c0_51, %c0_52, %c0_53, %c0_54] : memref<1x1x1x392xf32, #tpu.memory_space<vmem>>, vector<1x1x1x392xf32>
    %66 = vector.shape_cast %65 : vector<1x1x1x392xf32> to vector<1x392xf32>
    %67 = vector.broadcast %66 : vector<1x392xf32> to vector<2x392xf32>
    %68 = arith.addf %64, %67 : vector<2x392xf32>
    %c0_55 = arith.constant 0 : index
    %c0_56 = arith.constant 0 : index
    %c0_57 = arith.constant 0 : index
    %c0_58 = arith.constant 0 : index
    %69 = vector.load %arg16[%c0_55, %c0_56, %c0_57, %c0_58] : memref<1x1x512x392xbf16, #tpu.memory_space<vmem>>, vector<1x1x512x392xbf16>
    %70 = vector.shape_cast %69 : vector<1x1x512x392xbf16> to vector<512x392xbf16>
    %cst_59 = arith.constant dense<0.000000e+00> : vector<2x392xf32>
    %71 = tpu.matmul %61, %70, %cst_59 {dimension_numbers = #tpu.dot_dimension_numbers<[1], [0], [0], [1], [0, 0, 1, 1], [], []>} : vector<2x512xbf16>, vector<512x392xbf16>, vector<2x392xf32> -> vector<2x392xf32>
    %c0_60 = arith.constant 0 : index
    %c0_61 = arith.constant 0 : index
    %c0_62 = arith.constant 0 : index
    %c0_63 = arith.constant 0 : index
    %72 = vector.load %arg17[%c0_60, %c0_61, %c0_62, %c0_63] : memref<1x1x1x392xf32, #tpu.memory_space<vmem>>, vector<1x1x1x392xf32>
    %73 = vector.shape_cast %72 : vector<1x1x1x392xf32> to vector<1x392xf32>
    %74 = vector.broadcast %73 : vector<1x392xf32> to vector<2x392xf32>
    %75 = arith.addf %71, %74 : vector<2x392xf32>
    %cst_64 = arith.constant 0.000000e+00 : f32
    %76 = vector.broadcast %cst_64 : f32 to vector<2x392xf32>
    %77 = arith.cmpf olt, %68, %76 : vector<2x392xf32>
    %cst_65 = arith.constant -1.000000e+00 : f32
    %cst_66 = arith.constant 1.000000e+00 : f32
    %78 = vector.broadcast %cst_65 : f32 to vector<2x392xf32>
    %79 = vector.broadcast %cst_66 : f32 to vector<2x392xf32>
    %80 = arith.select %77, %78, %79 : vector<2x392xi1>, vector<2x392xf32>
    %81 = math.absf %68 : vector<2x392xf32>
    %cst_67 = arith.constant 2.41421366 : f32
    %82 = vector.broadcast %cst_67 : f32 to vector<2x392xf32>
    %83 = arith.cmpf ogt, %81, %82 : vector<2x392xf32>
    %cst_68 = arith.constant 0.414213568 : f32
    %84 = vector.broadcast %cst_68 : f32 to vector<2x392xf32>
    %85 = arith.cmpf ogt, %81, %84 : vector<2x392xf32>
    %cst_69 = arith.constant 1.000000e+00 : f32
    %86 = vector.broadcast %cst_69 : f32 to vector<2x392xf32>
    %87 = arith.select %83, %81, %86 : vector<2x392xi1>, vector<2x392xf32>
    %88 = tpu.reciprocal %87 {approx = true} : vector<2x392xf32> -> vector<2x392xf32>
    %cst_70 = arith.constant 0.000000e+00 : f32
    %89 = vector.broadcast %cst_70 : f32 to vector<2x392xf32>
    %90 = arith.subf %89, %88 : vector<2x392xf32>
    %cst_71 = arith.constant 1.000000e+00 : f32
    %91 = vector.broadcast %cst_71 : f32 to vector<2x392xf32>
    %92 = arith.addf %81, %91 : vector<2x392xf32>
    %93 = tpu.reciprocal %92 {approx = true} : vector<2x392xf32> -> vector<2x392xf32>
    %cst_72 = arith.constant 1.000000e+00 : f32
    %94 = vector.broadcast %cst_72 : f32 to vector<2x392xf32>
    %95 = arith.subf %81, %94 : vector<2x392xf32>
    %96 = arith.mulf %95, %93 : vector<2x392xf32>
    %97 = arith.select %85, %96, %81 : vector<2x392xi1>, vector<2x392xf32>
    %98 = arith.select %83, %90, %97 : vector<2x392xi1>, vector<2x392xf32>
    %cst_73 = arith.constant 0.785398185 : f32
    %cst_74 = arith.constant 0.000000e+00 : f32
    %99 = vector.broadcast %cst_73 : f32 to vector<2x392xf32>
    %100 = vector.broadcast %cst_74 : f32 to vector<2x392xf32>
    %101 = arith.select %85, %99, %100 : vector<2x392xi1>, vector<2x392xf32>
    %cst_75 = arith.constant 1.57079637 : f32
    %102 = vector.broadcast %cst_75 : f32 to vector<2x392xf32>
    %103 = arith.select %83, %102, %101 : vector<2x392xi1>, vector<2x392xf32>
    %104 = arith.mulf %98, %98 : vector<2x392xf32>
    %cst_76 = arith.constant 0.0805374458 : f32
    %105 = vector.broadcast %cst_76 : f32 to vector<2x392xf32>
    %106 = arith.mulf %105, %104 : vector<2x392xf32>
    %cst_77 = arith.constant 0.138776854 : f32
    %107 = vector.broadcast %cst_77 : f32 to vector<2x392xf32>
    %108 = arith.subf %106, %107 : vector<2x392xf32>
    %109 = arith.mulf %108, %104 : vector<2x392xf32>
    %cst_78 = arith.constant 0.199777111 : f32
    %110 = vector.broadcast %cst_78 : f32 to vector<2x392xf32>
    %111 = arith.addf %109, %110 : vector<2x392xf32>
    %112 = arith.mulf %111, %104 : vector<2x392xf32>
    %cst_79 = arith.constant 0.333329499 : f32
    %113 = vector.broadcast %cst_79 : f32 to vector<2x392xf32>
    %114 = arith.subf %112, %113 : vector<2x392xf32>
    %115 = arith.mulf %114, %104 : vector<2x392xf32>
    %116 = arith.mulf %115, %98 : vector<2x392xf32>
    %117 = arith.addf %116, %98 : vector<2x392xf32>
    %118 = arith.addf %103, %117 : vector<2x392xf32>
    %119 = arith.mulf %80, %118 : vector<2x392xf32>
    %cst_80 = arith.constant 0.953999996 : f32
    %120 = vector.broadcast %cst_80 : f32 to vector<2x392xf32>
    %121 = arith.mulf %120, %119 : vector<2x392xf32>
    %122 = math.exp %121 : vector<2x392xf32>
    %123 = arith.mulf %122, %24 : vector<2x392xf32>
    %124 = arith.addf %123, %75 : vector<2x392xf32>
    %c0_81 = arith.constant 0 : index
    %c0_82 = arith.constant 0 : index
    %125 = vector.load %arg22[%c0_81, %c0_82] : memref<2x1xf32, #tpu.memory_space<vmem>>, vector<2x1xf32>
    %cst_83 = arith.constant dense<0.000000e+00> : vector<2xf32>
    %126 = vector.multi_reduction <add>, %121, %cst_83 [1] : vector<2x392xf32> to vector<2xf32>
    %127 = vector.shape_cast %126 : vector<2xf32> to vector<2x1xf32>
    %128 = arith.addf %125, %127 : vector<2x1xf32>
    %c0_84 = arith.constant 0 : index
    %c0_85 = arith.constant 0 : index
    %129 = vector.load %arg22[%c0_84, %c0_85] : memref<2x1xf32, #tpu.memory_space<vmem>>, vector<2x1xf32>
    tpu.vector_store %arg22[%c0_84, %c0_85], %128 {strides = array<i32>} : memref<2x1xf32, #tpu.memory_space<vmem>>, vector<2x1xf32>,
    %c0_i32_86 = arith.constant 0 : i32
    %130 = arith.cmpi eq, %arg2, %c0_i32_86 : i32
    %131 = arith.extui %130 : i1 to i32
    %c0_i32_87 = arith.constant 0 : i32
    %132 = arith.cmpi ne, %131, %c0_i32_87 : i32
    scf.if %132 {
      %c0_91 = arith.constant 0 : index
      %c0_92 = arith.constant 0 : index
      %141 = vector.load %arg20[%c0_91, %c0_92] : memref<2x392xf32, #tpu.memory_space<vmem>>, vector<2x392xf32>
      tpu.vector_store %arg20[%c0_91, %c0_92], %124 {strides = array<i32>} : memref<2x392xf32, #tpu.memory_space<vmem>>, vector<2x392xf32>,
    } else {
    }
    %c1_i32 = arith.constant 1 : i32
    %133 = arith.cmpi eq, %arg2, %c1_i32 : i32
    %134 = arith.extui %133 : i1 to i32
    %c0_i32_88 = arith.constant 0 : i32
    %135 = arith.cmpi ne, %134, %c0_i32_88 : i32
    scf.if %135 {
      %c0_91 = arith.constant 0 : index
      %c0_92 = arith.constant 0 : index
      %141 = vector.load %arg21[%c0_91, %c0_92] : memref<2x392xf32, #tpu.memory_space<vmem>>, vector<2x392xf32>
      tpu.vector_store %arg21[%c0_91, %c0_92], %124 {strides = array<i32>} : memref<2x392xf32, #tpu.memory_space<vmem>>, vector<2x392xf32>,
    } else {
    }
    %c3_i32 = arith.constant 3 : i32
    %136 = arith.cmpi eq, %arg1, %c3_i32 : i32
    %c1_i32_89 = arith.constant 1 : i32
    %137 = arith.cmpi eq, %arg2, %c1_i32_89 : i32
    %138 = arith.andi %136, %137 : i1
    %139 = arith.extui %138 : i1 to i32
    %c0_i32_90 = arith.constant 0 : i32
    %140 = arith.cmpi ne, %139, %c0_i32_90 : i32
    scf.if %140 {
      %c0_91 = arith.constant 0 : index
      %c0_92 = arith.constant 0 : index
      %141 = vector.load %arg20[%c0_91, %c0_92] : memref<2x392xf32, #tpu.memory_space<vmem>>, vector<2x392xf32>
      %c0_93 = arith.constant 0 : index
      %c0_94 = arith.constant 0 : index
      %142 = vector.load %arg21[%c0_93, %c0_94] : memref<2x392xf32, #tpu.memory_space<vmem>>, vector<2x392xf32>
      %143 = tpu.concatenate %141, %142 in 1 : vector<2x392xf32>, vector<2x392xf32> -> vector<2x784xf32>
      %c0_95 = arith.constant 0 : index
      %c0_96 = arith.constant 0 : index
      %144 = vector.load %arg18[%c0_95, %c0_96] : memref<2x784xf32, #tpu.memory_space<vmem>>, vector<2x784xf32>
      tpu.vector_store %arg18[%c0_95, %c0_96], %143 {strides = array<i32>} : memref<2x784xf32, #tpu.memory_space<vmem>>, vector<2x784xf32>,
      %c0_97 = arith.constant 0 : index
      %c0_98 = arith.constant 0 : index
      %145 = vector.load %arg22[%c0_97, %c0_98] : memref<2x1xf32, #tpu.memory_space<vmem>>, vector<2x1xf32>
      %c0_99 = arith.constant 0 : index
      %c0_100 = arith.constant 0 : index
      %146 = vector.load %arg19[%c0_99, %c0_100] : memref<2x1xf32, #tpu.memory_space<vmem>>, vector<2x1xf32>
      tpu.vector_store %arg19[%c0_99, %c0_100], %145 {strides = array<i32>} : memref<2x1xf32, #tpu.memory_space<vmem>>, vector<2x1xf32>,
    } else {
    }
    return
  }
  func.func @transform_0(%arg0: i32, %arg1: i32, %arg2: i32) -> (i32, i32) {
    %c0_i32 = arith.constant 0 : i32
    %c0_i32_0 = arith.constant 0 : i32
    return %arg0, %c0_i32 : i32, i32
  }
  func.func @transform_1(%arg0: i32, %arg1: i32, %arg2: i32) -> (i32, i32) {
    %c0_i32 = arith.constant 0 : i32
    %c0_i32_0 = arith.constant 0 : i32
    return %arg0, %c0_i32 : i32, i32
  }
  func.func @transform_2(%arg0: i32, %arg1: i32, %arg2: i32) -> (i32, i32, i32) {
    %c0_i32 = arith.constant 0 : i32
    %c0_i32_0 = arith.constant 0 : i32
    %c0_i32_1 = arith.constant 0 : i32
    return %arg1, %c0_i32, %c0_i32_0 : i32, i32, i32
  }
  func.func @transform_3(%arg0: i32, %arg1: i32, %arg2: i32) -> (i32, i32, i32) {
    %c0_i32 = arith.constant 0 : i32
    %c0_i32_0 = arith.constant 0 : i32
    %c0_i32_1 = arith.constant 0 : i32
    return %arg1, %c0_i32, %c0_i32_0 : i32, i32, i32
  }
  func.func @transform_4(%arg0: i32, %arg1: i32, %arg2: i32) -> (i32, i32, i32, i32) {
    %c0_i32 = arith.constant 0 : i32
    %c0_i32_0 = arith.constant 0 : i32
    %c0_i32_1 = arith.constant 0 : i32
    return %arg1, %arg2, %c0_i32, %c0_i32_0 : i32, i32, i32, i32
  }
  func.func @transform_5(%arg0: i32, %arg1: i32, %arg2: i32) -> (i32, i32, i32, i32) {
    %c0_i32 = arith.constant 0 : i32
    %c0_i32_0 = arith.constant 0 : i32
    %c0_i32_1 = arith.constant 0 : i32
    return %arg1, %arg2, %c0_i32, %c0_i32_0 : i32, i32, i32, i32
  }
  func.func @transform_6(%arg0: i32, %arg1: i32, %arg2: i32) -> (i32, i32, i32, i32) {
    %c0_i32 = arith.constant 0 : i32
    %c0_i32_0 = arith.constant 0 : i32
    %c0_i32_1 = arith.constant 0 : i32
    return %arg1, %arg2, %c0_i32, %c0_i32_0 : i32, i32, i32, i32
  }
  func.func @transform_7(%arg0: i32, %arg1: i32, %arg2: i32) -> (i32, i32, i32, i32) {
    %c0_i32 = arith.constant 0 : i32
    %c0_i32_0 = arith.constant 0 : i32
    %c0_i32_1 = arith.constant 0 : i32
    return %arg1, %arg2, %c0_i32, %c0_i32_0 : i32, i32, i32, i32
  }
  func.func @transform_8(%arg0: i32, %arg1: i32, %arg2: i32) -> (i32, i32, i32, i32) {
    %c0_i32 = arith.constant 0 : i32
    %c0_i32_0 = arith.constant 0 : i32
    %c0_i32_1 = arith.constant 0 : i32
    return %arg1, %arg2, %c0_i32, %c0_i32_0 : i32, i32, i32, i32
  }
  func.func @transform_9(%arg0: i32, %arg1: i32, %arg2: i32) -> (i32, i32, i32, i32) {
    %c0_i32 = arith.constant 0 : i32
    %c0_i32_0 = arith.constant 0 : i32
    %c0_i32_1 = arith.constant 0 : i32
    return %arg1, %arg2, %c0_i32, %c0_i32_0 : i32, i32, i32, i32
  }
  func.func @transform_10(%arg0: i32, %arg1: i32, %arg2: i32) -> (i32, i32, i32, i32) {
    %c0_i32 = arith.constant 0 : i32
    %c0_i32_0 = arith.constant 0 : i32
    %c0_i32_1 = arith.constant 0 : i32
    return %arg1, %arg2, %c0_i32, %c0_i32_0 : i32, i32, i32, i32
  }
  func.func @transform_11(%arg0: i32, %arg1: i32, %arg2: i32) -> (i32, i32, i32, i32) {
    %c0_i32 = arith.constant 0 : i32
    %c0_i32_0 = arith.constant 0 : i32
    %c0_i32_1 = arith.constant 0 : i32
    return %arg1, %arg2, %c0_i32, %c0_i32_0 : i32, i32, i32, i32
  }
  func.func @transform_12(%arg0: i32, %arg1: i32, %arg2: i32) -> (i32, i32, i32, i32) {
    %c0_i32 = arith.constant 0 : i32
    %c0_i32_0 = arith.constant 0 : i32
    %c0_i32_1 = arith.constant 0 : i32
    return %arg1, %arg2, %c0_i32, %c0_i32_0 : i32, i32, i32, i32
  }
  func.func @transform_13(%arg0: i32, %arg1: i32, %arg2: i32) -> (i32, i32, i32, i32) {
    %c0_i32 = arith.constant 0 : i32
    %c0_i32_0 = arith.constant 0 : i32
    %c0_i32_1 = arith.constant 0 : i32
    return %arg1, %arg2, %c0_i32, %c0_i32_0 : i32, i32, i32, i32
  }
  func.func @transform_14(%arg0: i32, %arg1: i32, %arg2: i32) -> (i32, i32, i32, i32) {
    %c0_i32 = arith.constant 0 : i32
    %c0_i32_0 = arith.constant 0 : i32
    %c0_i32_1 = arith.constant 0 : i32
    return %arg1, %arg2, %c0_i32, %c0_i32_0 : i32, i32, i32, i32
  }
  func.func @transform_15(%arg0: i32, %arg1: i32, %arg2: i32) -> (i32, i32) {
    %c0_i32 = arith.constant 0 : i32
    %c0_i32_0 = arith.constant 0 : i32
    return %arg0, %c0_i32 : i32, i32
  }
  func.func @transform_16(%arg0: i32, %arg1: i32, %arg2: i32) -> (i32, i32) {
    %c0_i32 = arith.constant 0 : i32
    %c0_i32_0 = arith.constant 0 : i32
    return %arg0, %c0_i32 : i32, i32
  }
}

</mosaic_0001>

<llo_original>
// kernel: cinn_forward.1
$region0: #{cinn_forward.1}
  #allocation0 [shape = 'u32[]', space=smem, size = 0x4, offset = 0x4, fixed_abs, tag = 'smem constant byte address 0x4 - core index']
  #allocation1 [shape = 'u32[144,128]{1,0:T(1,128)}', space=vmem, size = 0x12000, scoped, tag = 'internal scratch']
  #allocation2 [shape = 'f32[2,392]{1,0:T(2,128)}', space=vmem, size = 0x1000, scoped, tag = 'scratch operand']
  #allocation3 [shape = 'f32[2,392]{1,0:T(2,128)}', space=vmem, size = 0x1000, scoped, tag = 'scratch operand']
  #allocation4 [shape = 'f32[2,1]{1,0:T(2,128)}', space=vmem, size = 0x400, scoped, tag = 'scratch operand']
  %s0 = inlined_call_operand.vmem [shape: f32[2,784], index: 0, kind: input, shape index: {}]
  %s1 = inlined_call_operand.vmem [shape: f32[2,10], index: 1, kind: input, shape index: {}]
  %s2 = inlined_call_operand.vmem [shape: bf16[4,784,392], index: 2, kind: input, shape index: {}]
  %s3 = inlined_call_operand.vmem [shape: bf16[4,784,392], index: 3, kind: input, shape index: {}]
  %s4 = inlined_call_operand.vmem [shape: bf16[4,2,392,512], index: 4, kind: input, shape index: {}]
  %s5 = inlined_call_operand.vmem [shape: bf16[4,2,10,512], index: 5, kind: input, shape index: {}]
  %s6 = inlined_call_operand.vmem [shape: f32[4,2,1,512], index: 6, kind: input, shape index: {}]
  %s7 = inlined_call_operand.vmem [shape: bf16[4,2,512,512], index: 7, kind: input, shape index: {}]
  %s8 = inlined_call_operand.vmem [shape: f32[4,2,1,512], index: 8, kind: input, shape index: {}]
  %s9 = inlined_call_operand.vmem [shape: bf16[4,2,512,512], index: 9, kind: input, shape index: {}]
  %s10 = inlined_call_operand.vmem [shape: f32[4,2,1,512], index: 10, kind: input, shape index: {}]
  %s11 = inlined_call_operand.vmem [shape: bf16[4,2,512,392], index: 11, kind: input, shape index: {}]
  %s12 = inlined_call_operand.vmem [shape: f32[4,2,1,392], index: 12, kind: input, shape index: {}]
  %s13 = inlined_call_operand.vmem [shape: bf16[4,2,512,392], index: 13, kind: input, shape index: {}]
  %s14 = inlined_call_operand.vmem [shape: f32[4,2,1,392], index: 14, kind: input, shape index: {}]
  %s15 = inlined_call_operand.hbm [shape: f32[2,784], index: 15, kind: output, shape index: {0}]
  %s16 = inlined_call_operand.vmem [shape: f32[2,1], index: 16, kind: output, shape index: {1}]
  %17 = xla_tuple %s15, %s16
  %s18 = sld [smem:[#allocation0]]
  $region121: #{cinn_forward.1} parent=0
    _
  %s20 = ssub.s32 1, %s18
  %s21 = scalar_select 0, %s20, %s18
  $region1: #{cinn_forward.1} parent=0
    #allocation5 [shape = 'u8[7168]{0}', space=vmem, size = 0x1c00, scoped, tag = 'output window, operand 0, single buffered']
    #allocation6 [shape = 's32[2]{0}', space=sflag, size = 0x8, scoped, tag = 'scoped memory for cinn_forward.1']
    %22 = vsyncpa [#allocation6], 0
    loop: start=0, step=1, limit=10
    $region2: #{cinn_forward.1} parent=1 // loop_pre_header
      _
    $region3: #{cinn_forward.1} parent=1 // loop_header
      %s24 = sphi 0, %s28
      %p25 = scmp.ge.s32.totalorder %s24, 10
      %s31 = sphi 0, %s50
      %s32 = sphi 0, %s46
      %s33 = sphi 0, %s42
      %s34 = sphi 0, %s31
      %s35 = sphi 0, %s32
      %s36 = sphi 0, %s33
      %s37 = sphi 0, %s34
      %s38 = sphi 0, %s35
      %s39 = sphi 0, %s36
      %s53 = sphi 0, %s55
      %s56 = sphi 0, %s53
      %s57 = sphi 0, %s56
      %s73 = sphi 0, %s57
      %s79 = sphi 0, %s81
      %s82 = sphi 0, %s79
      %s83 = sphi 0, %s82
      %s99 = sphi 0, %s83
      %s105 = sphi 0, %s107
      %s108 = sphi 0, %s105
      %s109 = sphi 0, %s108
      %s125 = sphi 0, %s109
      %s131 = sphi 0, %s133
      %s134 = sphi 0, %s131
      %s135 = sphi 0, %s134
      %s151 = sphi 0, %s135
      %s159 = sphi 0, %s161
      %s162 = sphi 0, %s159
      %s163 = sphi 0, %s162
      %s179 = sphi 0, %s163
      %s187 = sphi 0, %s189
      %s190 = sphi 0, %s187
      %s191 = sphi 0, %s190
      %s207 = sphi 0, %s191
      %s215 = sphi 0, %s217
      %s218 = sphi 0, %s215
      %s219 = sphi 0, %s218
      %s235 = sphi 0, %s219
      %s243 = sphi 0, %s245
      %s246 = sphi 0, %s243
      %s247 = sphi 0, %s246
      %s263 = sphi 0, %s247
      %s271 = sphi 0, %s273
      %s274 = sphi 0, %s271
      %s275 = sphi 0, %s274
      %s291 = sphi 0, %s275
      %s299 = sphi 0, %s301
      %s302 = sphi 0, %s299
      %s303 = sphi 0, %s302
      %s319 = sphi 0, %s303
      %s327 = sphi 0, %s329
      %s330 = sphi 0, %s327
      %s331 = sphi 0, %s330
      %s347 = sphi 0, %s331
      %s355 = sphi 0, %s357
      %s358 = sphi 0, %s355
      %s359 = sphi 0, %s358
      %s375 = sphi 0, %s359
      %s383 = sphi 0, %s385
      %s386 = sphi 0, %s383
      %s387 = sphi 0, %s386
      %s403 = sphi 0, %s387
      %s411 = sphi 0, %s413
      %s414 = sphi 0, %s411
      %s415 = sphi 0, %s414
      %s431 = sphi 0, %s415
      %s439 = sphi 0, %s441
      %s442 = sphi 0, %s439
      %s443 = sphi 0, %s442
      %s459 = sphi 0, %s443
      %s465 = sphi 0, %s467
      %s468 = sphi 0, %s465
      %s469 = sphi 0, %s468
      %s485 = sphi 0, %s469
      %s491 = sphi 0, %s493
      %s494 = sphi 0, %s491
      %s495 = sphi 0, %s494
      %s511 = sphi 0, %s495
    $region4: #{cinn_forward.1} parent=1 // loop_header_branch
      %27 = sbr.rel (%p25) target = $region8
    $region5: #{cinn_forward.1} parent=1 // loop_body
      %s29 = ssub.s32 %s24, 1
      %s30 = ssub.s32 %s24, 2
      %s40 = sadd.s32 1, %s33
      %p41 = scmp.ge.s32.totalorder %s40, 2
      %s42 = scalar_select %p41, 0, %s40
      %s43 = sadd.s32 1, %s32
      %s44 = scalar_select %p41, %s43, %s32
      %p45 = scmp.ge.s32.totalorder %s44, 4
      %s46 = scalar_select %p45, 0, %s44
      %s47 = sadd.s32 1, %s31
      %s48 = scalar_select %p45, %s47, %s31
      %p49 = scmp.ge.s32.totalorder %s48, 1
      %s50 = scalar_select %p49, 0, %s48
      %s51 = ssub.s32 %s31, %s50
      %p52 = scmp.eq.s32.totalorder %s51, 0
      %s54 = sadd.s32 %s53, 1
      %s55 = scalar_select %p52, %s53, %s54
      %p58 = pneg %p52
      %p59 = scmp.eq.s32.totalorder %s24, 7
      %p60 = por %p58, %p59
      %p61 = scmp.ne.s32.totalorder %s53, %s56
      %p62 = scmp.eq.s32.totalorder %s24, 0
      %p63 = por %p61, %p62
      %p64 = scmp.ne.s32.totalorder %s53, %s56
      %p65 = scmp.eq.s32.totalorder %s29, 7
      %p66 = por %p64, %p65
      %p67 = scmp.ne.s32.totalorder %s56, %s57
      %p68 = scmp.eq.s32.totalorder %s29, 0
      %p69 = por %p67, %p68
      %p70 = scmp.ne.s32.totalorder %s56, %s57
      %p71 = scmp.eq.s32.totalorder %s30, 7
      %p72 = por %p70, %p71
      %p74 = scmp.ne.s32.totalorder %s57, %s73
      %p75 = scmp.eq.s32.totalorder %s30, 0
      %p76 = por %p74, %p75
      %s77 = ssub.s32 %s31, %s50
      %p78 = scmp.eq.s32.totalorder %s77, 0
      %s80 = sadd.s32 %s79, 1
      %s81 = scalar_select %p78, %s79, %s80
      %p84 = pneg %p78
      %p85 = scmp.eq.s32.totalorder %s24, 7
      %p86 = por %p84, %p85
      %p87 = scmp.ne.s32.totalorder %s79, %s82
      %p88 = scmp.eq.s32.totalorder %s24, 0
      %p89 = por %p87, %p88
      %p90 = scmp.ne.s32.totalorder %s79, %s82
      %p91 = scmp.eq.s32.totalorder %s29, 7
      %p92 = por %p90, %p91
      %p93 = scmp.ne.s32.totalorder %s82, %s83
      %p94 = scmp.eq.s32.totalorder %s29, 0
      %p95 = por %p93, %p94
      %p96 = scmp.ne.s32.totalorder %s82, %s83
      %p97 = scmp.eq.s32.totalorder %s30, 7
      %p98 = por %p96, %p97
      %p100 = scmp.ne.s32.totalorder %s83, %s99
      %p101 = scmp.eq.s32.totalorder %s30, 0
      %p102 = por %p100, %p101
      %s103 = ssub.s32 %s32, %s46
      %p104 = scmp.eq.s32.totalorder %s103, 0
      %s106 = sadd.s32 %s105, 1
      %s107 = scalar_select %p104, %s105, %s106
      %p110 = pneg %p104
      %p111 = scmp.eq.s32.totalorder %s24, 7
      %p112 = por %p110, %p111
      %p113 = scmp.ne.s32.totalorder %s105, %s108
      %p114 = scmp.eq.s32.totalorder %s24, 0
      %p115 = por %p113, %p114
      %p116 = scmp.ne.s32.totalorder %s105, %s108
      %p117 = scmp.eq.s32.totalorder %s29, 7
      %p118 = por %p116, %p117
      %p119 = scmp.ne.s32.totalorder %s108, %s109
      %p120 = scmp.eq.s32.totalorder %s29, 0
      %p121 = por %p119, %p120
      %p122 = scmp.ne.s32.totalorder %s108, %s109
      %p123 = scmp.eq.s32.totalorder %s30, 7
      %p124 = por %p122, %p123
      %p126 = scmp.ne.s32.totalorder %s109, %s125
      %p127 = scmp.eq.s32.totalorder %s30, 0
      %p128 = por %p126, %p127
      %s129 = ssub.s32 %s32, %s46
      %p130 = scmp.eq.s32.totalorder %s129, 0
      %s132 = sadd.s32 %s131, 1
      %s133 = scalar_select %p130, %s131, %s132
      %p136 = pneg %p130
      %p137 = scmp.eq.s32.totalorder %s24, 7
      %p138 = por %p136, %p137
      %p139 = scmp.ne.s32.totalorder %s131, %s134
      %p140 = scmp.eq.s32.totalorder %s24, 0
      %p141 = por %p139, %p140
      %p142 = scmp.ne.s32.totalorder %s131, %s134
      %p143 = scmp.eq.s32.totalorder %s29, 7
      %p144 = por %p142, %p143
      %p145 = scmp.ne.s32.totalorder %s134, %s135
      %p146 = scmp.eq.s32.totalorder %s29, 0
      %p147 = por %p145, %p146
      %p148 = scmp.ne.s32.totalorder %s134, %s135
      %p149 = scmp.eq.s32.totalorder %s30, 7
      %p150 = por %p148, %p149
      %p152 = scmp.ne.s32.totalorder %s135, %s151
      %p153 = scmp.eq.s32.totalorder %s30, 0
      %p154 = por %p152, %p153
      %s155 = ssub.s32 %s32, %s46
      %s156 = ssub.s32 %s33, %s42
      %s157 = sor.u32 %s155, %s156
      %p158 = scmp.eq.s32.totalorder %s157, 0
      %s160 = sadd.s32 %s159, 1
      %s161 = scalar_select %p158, %s159, %s160
      %p164 = pneg %p158
      %p165 = scmp.eq.s32.totalorder %s24, 7
      %p166 = por %p164, %p165
      %p167 = scmp.ne.s32.totalorder %s159, %s162
      %p168 = scmp.eq.s32.totalorder %s24, 0
      %p169 = por %p167, %p168
      %p170 = scmp.ne.s32.totalorder %s159, %s162
      %p171 = scmp.eq.s32.totalorder %s29, 7
      %p172 = por %p170, %p171
      %p173 = scmp.ne.s32.totalorder %s162, %s163
      %p174 = scmp.eq.s32.totalorder %s29, 0
      %p175 = por %p173, %p174
      %p176 = scmp.ne.s32.totalorder %s162, %s163
      %p177 = scmp.eq.s32.totalorder %s30, 7
      %p178 = por %p176, %p177
      %p180 = scmp.ne.s32.totalorder %s163, %s179
      %p181 = scmp.eq.s32.totalorder %s30, 0
      %p182 = por %p180, %p181
      %s183 = ssub.s32 %s32, %s46
      %s184 = ssub.s32 %s33, %s42
      %s185 = sor.u32 %s183, %s184
      %p186 = scmp.eq.s32.totalorder %s185, 0
      %s188 = sadd.s32 %s187, 1
      %s189 = scalar_select %p186, %s187, %s188
      %p192 = pneg %p186
      %p193 = scmp.eq.s32.totalorder %s24, 7
      %p194 = por %p192, %p193
      %p195 = scmp.ne.s32.totalorder %s187, %s190
      %p196 = scmp.eq.s32.totalorder %s24, 0
      %p197 = por %p195, %p196
      %p198 = scmp.ne.s32.totalorder %s187, %s190
      %p199 = scmp.eq.s32.totalorder %s29, 7
      %p200 = por %p198, %p199
      %p201 = scmp.ne.s32.totalorder %s190, %s191
      %p202 = scmp.eq.s32.totalorder %s29, 0
      %p203 = por %p201, %p202
      %p204 = scmp.ne.s32.totalorder %s190, %s191
      %p205 = scmp.eq.s32.totalorder %s30, 7
      %p206 = por %p204, %p205
      %p208 = scmp.ne.s32.totalorder %s191, %s207
      %p209 = scmp.eq.s32.totalorder %s30, 0
      %p210 = por %p208, %p209
      %s211 = ssub.s32 %s32, %s46
      %s212 = ssub.s32 %s33, %s42
      %s213 = sor.u32 %s211, %s212
      %p214 = scmp.eq.s32.totalorder %s213, 0
      %s216 = sadd.s32 %s215, 1
      %s217 = scalar_select %p214, %s215, %s216
      %p220 = pneg %p214
      %p221 = scmp.eq.s32.totalorder %s24, 7
      %p222 = por %p220, %p221
      %p223 = scmp.ne.s32.totalorder %s215, %s218
      %p224 = scmp.eq.s32.totalorder %s24, 0
      %p225 = por %p223, %p224
      %p226 = scmp.ne.s32.totalorder %s215, %s218
      %p227 = scmp.eq.s32.totalorder %s29, 7
      %p228 = por %p226, %p227
      %p229 = scmp.ne.s32.totalorder %s218, %s219
      %p230 = scmp.eq.s32.totalorder %s29, 0
      %p231 = por %p229, %p230
      %p232 = scmp.ne.s32.totalorder %s218, %s219
      %p233 = scmp.eq.s32.totalorder %s30, 7
      %p234 = por %p232, %p233
      %p236 = scmp.ne.s32.totalorder %s219, %s235
      %p237 = scmp.eq.s32.totalorder %s30, 0
      %p238 = por %p236, %p237
      %s239 = ssub.s32 %s32, %s46
      %s240 = ssub.s32 %s33, %s42
      %s241 = sor.u32 %s239, %s240
      %p242 = scmp.eq.s32.totalorder %s241, 0
      %s244 = sadd.s32 %s243, 1
      %s245 = scalar_select %p242, %s243, %s244
      %p248 = pneg %p242
      %p249 = scmp.eq.s32.totalorder %s24, 7
      %p250 = por %p248, %p249
      %p251 = scmp.ne.s32.totalorder %s243, %s246
      %p252 = scmp.eq.s32.totalorder %s24, 0
      %p253 = por %p251, %p252
      %p254 = scmp.ne.s32.totalorder %s243, %s246
      %p255 = scmp.eq.s32.totalorder %s29, 7
      %p256 = por %p254, %p255
      %p257 = scmp.ne.s32.totalorder %s246, %s247
      %p258 = scmp.eq.s32.totalorder %s29, 0
      %p259 = por %p257, %p258
      %p260 = scmp.ne.s32.totalorder %s246, %s247
      %p261 = scmp.eq.s32.totalorder %s30, 7
      %p262 = por %p260, %p261
      %p264 = scmp.ne.s32.totalorder %s247, %s263
      %p265 = scmp.eq.s32.totalorder %s30, 0
      %p266 = por %p264, %p265
      %s267 = ssub.s32 %s32, %s46
      %s268 = ssub.s32 %s33, %s42
      %s269 = sor.u32 %s267, %s268
      %p270 = scmp.eq.s32.totalorder %s269, 0
      %s272 = sadd.s32 %s271, 1
      %s273 = scalar_select %p270, %s271, %s272
      %p276 = pneg %p270
      %p277 = scmp.eq.s32.totalorder %s24, 7
      %p278 = por %p276, %p277
      %p279 = scmp.ne.s32.totalorder %s271, %s274
      %p280 = scmp.eq.s32.totalorder %s24, 0
      %p281 = por %p279, %p280
      %p282 = scmp.ne.s32.totalorder %s271, %s274
      %p283 = scmp.eq.s32.totalorder %s29, 7
      %p284 = por %p282, %p283
      %p285 = scmp.ne.s32.totalorder %s274, %s275
      %p286 = scmp.eq.s32.totalorder %s29, 0
      %p287 = por %p285, %p286
      %p288 = scmp.ne.s32.totalorder %s274, %s275
      %p289 = scmp.eq.s32.totalorder %s30, 7
      %p290 = por %p288, %p289
      %p292 = scmp.ne.s32.totalorder %s275, %s291
      %p293 = scmp.eq.s32.totalorder %s30, 0
      %p294 = por %p292, %p293
      %s295 = ssub.s32 %s32, %s46
      %s296 = ssub.s32 %s33, %s42
      %s297 = sor.u32 %s295, %s296
      %p298 = scmp.eq.s32.totalorder %s297, 0
      %s300 = sadd.s32 %s299, 1
      %s301 = scalar_select %p298, %s299, %s300
      %p304 = pneg %p298
      %p305 = scmp.eq.s32.totalorder %s24, 7
      %p306 = por %p304, %p305
      %p307 = scmp.ne.s32.totalorder %s299, %s302
      %p308 = scmp.eq.s32.totalorder %s24, 0
      %p309 = por %p307, %p308
      %p310 = scmp.ne.s32.totalorder %s299, %s302
      %p311 = scmp.eq.s32.totalorder %s29, 7
      %p312 = por %p310, %p311
      %p313 = scmp.ne.s32.totalorder %s302, %s303
      %p314 = scmp.eq.s32.totalorder %s29, 0
      %p315 = por %p313, %p314
      %p316 = scmp.ne.s32.totalorder %s302, %s303
      %p317 = scmp.eq.s32.totalorder %s30, 7
      %p318 = por %p316, %p317
      %p320 = scmp.ne.s32.totalorder %s303, %s319
      %p321 = scmp.eq.s32.totalorder %s30, 0
      %p322 = por %p320, %p321
      %s323 = ssub.s32 %s32, %s46
      %s324 = ssub.s32 %s33, %s42
      %s325 = sor.u32 %s323, %s324
      %p326 = scmp.eq.s32.totalorder %s325, 0
      %s328 = sadd.s32 %s327, 1
      %s329 = scalar_select %p326, %s327, %s328
      %p332 = pneg %p326
      %p333 = scmp.eq.s32.totalorder %s24, 7
      %p334 = por %p332, %p333
      %p335 = scmp.ne.s32.totalorder %s327, %s330
      %p336 = scmp.eq.s32.totalorder %s24, 0
      %p337 = por %p335, %p336
      %p338 = scmp.ne.s32.totalorder %s327, %s330
      %p339 = scmp.eq.s32.totalorder %s29, 7
      %p340 = por %p338, %p339
      %p341 = scmp.ne.s32.totalorder %s330, %s331
      %p342 = scmp.eq.s32.totalorder %s29, 0
      %p343 = por %p341, %p342
      %p344 = scmp.ne.s32.totalorder %s330, %s331
      %p345 = scmp.eq.s32.totalorder %s30, 7
      %p346 = por %p344, %p345
      %p348 = scmp.ne.s32.totalorder %s331, %s347
      %p349 = scmp.eq.s32.totalorder %s30, 0
      %p350 = por %p348, %p349
      %s351 = ssub.s32 %s32, %s46
      %s352 = ssub.s32 %s33, %s42
      %s353 = sor.u32 %s351, %s352
      %p354 = scmp.eq.s32.totalorder %s353, 0
      %s356 = sadd.s32 %s355, 1
      %s357 = scalar_select %p354, %s355, %s356
      %p360 = pneg %p354
      %p361 = scmp.eq.s32.totalorder %s24, 7
      %p362 = por %p360, %p361
      %p363 = scmp.ne.s32.totalorder %s355, %s358
      %p364 = scmp.eq.s32.totalorder %s24, 0
      %p365 = por %p363, %p364
      %p366 = scmp.ne.s32.totalorder %s355, %s358
      %p367 = scmp.eq.s32.totalorder %s29, 7
      %p368 = por %p366, %p367
      %p369 = scmp.ne.s32.totalorder %s358, %s359
      %p370 = scmp.eq.s32.totalorder %s29, 0
      %p371 = por %p369, %p370
      %p372 = scmp.ne.s32.totalorder %s358, %s359
      %p373 = scmp.eq.s32.totalorder %s30, 7
      %p374 = por %p372, %p373
      %p376 = scmp.ne.s32.totalorder %s359, %s375
      %p377 = scmp.eq.s32.totalorder %s30, 0
      %p378 = por %p376, %p377
      %s379 = ssub.s32 %s32, %s46
      %s380 = ssub.s32 %s33, %s42
      %s381 = sor.u32 %s379, %s380
      %p382 = scmp.eq.s32.totalorder %s381, 0
      %s384 = sadd.s32 %s383, 1
      %s385 = scalar_select %p382, %s383, %s384
      %p388 = pneg %p382
      %p389 = scmp.eq.s32.totalorder %s24, 7
      %p390 = por %p388, %p389
      %p391 = scmp.ne.s32.totalorder %s383, %s386
      %p392 = scmp.eq.s32.totalorder %s24, 0
      %p393 = por %p391, %p392
      %p394 = scmp.ne.s32.totalorder %s383, %s386
      %p395 = scmp.eq.s32.totalorder %s29, 7
      %p396 = por %p394, %p395
      %p397 = scmp.ne.s32.totalorder %s386, %s387
      %p398 = scmp.eq.s32.totalorder %s29, 0
      %p399 = por %p397, %p398
      %p400 = scmp.ne.s32.totalorder %s386, %s387
      %p401 = scmp.eq.s32.totalorder %s30, 7
      %p402 = por %p400, %p401
      %p404 = scmp.ne.s32.totalorder %s387, %s403
      %p405 = scmp.eq.s32.totalorder %s30, 0
      %p406 = por %p404, %p405
      %s407 = ssub.s32 %s32, %s46
      %s408 = ssub.s32 %s33, %s42
      %s409 = sor.u32 %s407, %s408
      %p410 = scmp.eq.s32.totalorder %s409, 0
      %s412 = sadd.s32 %s411, 1
      %s413 = scalar_select %p410, %s411, %s412
      %p416 = pneg %p410
      %p417 = scmp.eq.s32.totalorder %s24, 7
      %p418 = por %p416, %p417
      %p419 = scmp.ne.s32.totalorder %s411, %s414
      %p420 = scmp.eq.s32.totalorder %s24, 0
      %p421 = por %p419, %p420
      %p422 = scmp.ne.s32.totalorder %s411, %s414
      %p423 = scmp.eq.s32.totalorder %s29, 7
      %p424 = por %p422, %p423
      %p425 = scmp.ne.s32.totalorder %s414, %s415
      %p426 = scmp.eq.s32.totalorder %s29, 0
      %p427 = por %p425, %p426
      %p428 = scmp.ne.s32.totalorder %s414, %s415
      %p429 = scmp.eq.s32.totalorder %s30, 7
      %p430 = por %p428, %p429
      %p432 = scmp.ne.s32.totalorder %s415, %s431
      %p433 = scmp.eq.s32.totalorder %s30, 0
      %p434 = por %p432, %p433
      %s435 = ssub.s32 %s32, %s46
      %s436 = ssub.s32 %s33, %s42
      %s437 = sor.u32 %s435, %s436
      %p438 = scmp.eq.s32.totalorder %s437, 0
      %s440 = sadd.s32 %s439, 1
      %s441 = scalar_select %p438, %s439, %s440
      %p444 = pneg %p438
      %p445 = scmp.eq.s32.totalorder %s24, 7
      %p446 = por %p444, %p445
      %p447 = scmp.ne.s32.totalorder %s439, %s442
      %p448 = scmp.eq.s32.totalorder %s24, 0
      %p449 = por %p447, %p448
      %p450 = scmp.ne.s32.totalorder %s439, %s442
      %p451 = scmp.eq.s32.totalorder %s29, 7
      %p452 = por %p450, %p451
      %p453 = scmp.ne.s32.totalorder %s442, %s443
      %p454 = scmp.eq.s32.totalorder %s29, 0
      %p455 = por %p453, %p454
      %p456 = scmp.ne.s32.totalorder %s442, %s443
      %p457 = scmp.eq.s32.totalorder %s30, 7
      %p458 = por %p456, %p457
      %p460 = scmp.ne.s32.totalorder %s443, %s459
      %p461 = scmp.eq.s32.totalorder %s30, 0
      %p462 = por %p460, %p461
      %s463 = ssub.s32 %s31, %s50
      %p464 = scmp.eq.s32.totalorder %s463, 0
      %s466 = sadd.s32 %s465, 1
      %s467 = scalar_select %p464, %s465, %s466
      %p470 = pneg %p464
      %p471 = scmp.eq.s32.totalorder %s24, 7
      %p472 = por %p470, %p471
      %p473 = scmp.ne.s32.totalorder %s465, %s468
      %p474 = scmp.eq.s32.totalorder %s24, 0
      %p475 = por %p473, %p474
      %p476 = scmp.ne.s32.totalorder %s465, %s468
      %p477 = scmp.eq.s32.totalorder %s29, 7
      %p478 = por %p476, %p477
      %p479 = scmp.ne.s32.totalorder %s468, %s469
      %p480 = scmp.eq.s32.totalorder %s29, 0
      %p481 = por %p479, %p480
      %p482 = scmp.ne.s32.totalorder %s468, %s469
      %p483 = scmp.eq.s32.totalorder %s30, 7
      %p484 = por %p482, %p483
      %p486 = scmp.ne.s32.totalorder %s469, %s485
      %p487 = scmp.eq.s32.totalorder %s30, 0
      %p488 = por %p486, %p487
      %s489 = ssub.s32 %s31, %s50
      %p490 = scmp.eq.s32.totalorder %s489, 0
      %s492 = sadd.s32 %s491, 1
      %s493 = scalar_select %p490, %s491, %s492
      %p496 = pneg %p490
      %p497 = scmp.eq.s32.totalorder %s24, 7
      %p498 = por %p496, %p497
      %p499 = scmp.ne.s32.totalorder %s491, %s494
      %p500 = scmp.eq.s32.totalorder %s24, 0
      %p501 = por %p499, %p500
      %p502 = scmp.ne.s32.totalorder %s491, %s494
      %p503 = scmp.eq.s32.totalorder %s29, 7
      %p504 = por %p502, %p503
      %p505 = scmp.ne.s32.totalorder %s494, %s495
      %p506 = scmp.eq.s32.totalorder %s29, 0
      %p507 = por %p505, %p506
      %p508 = scmp.ne.s32.totalorder %s494, %s495
      %p509 = scmp.eq.s32.totalorder %s30, 7
      %p510 = por %p508, %p509
      %p512 = scmp.ne.s32.totalorder %s495, %s511
      %p513 = scmp.eq.s32.totalorder %s30, 0
      %p514 = por %p512, %p513
      %p515 = scmp.le.s32.totalorder 1, %s24
      %p516 = scmp.lt.s32.totalorder %s24, 9
      %p517 = pnand %p515, %p516
      %p518 = pneg %p517
      // Predicated region
      $region9: #{cinn_forward.1} parent=5 // pred_check
        _
      $region10: #{cinn_forward.1} parent=5 // pred_check_branch
        %520 = sbr.rel (%p517) target = $region12
      $region11: #{cinn_forward.1} parent=5 // pred_region
        %s521 = ssub.s32 %s24, 1
        // Predicated region
        $region13: #{cinn_forward.1} parent=11 // pred_check
          %p522 = pneg %p69
        $region14: #{cinn_forward.1} parent=11 // pred_check_branch
          %524 = sbr.rel (%p522) target = $region16
        $region15: #{cinn_forward.1} parent=11 // pred_region
          %p525 = scmp.lt.s32.totalorder %s34, 0
          %s526 = scalar_select %p525, %s34, 0
          %s527 = smul.addr %s526, 7
          %s528 = smul.addr %s527, 2
          %s529 = scalar_lea.vmem %s0, %s528
        $region16: #{cinn_forward.1} parent=11 // pred_fallthru
          _
        // Predicated region
        $region17: #{cinn_forward.1} parent=11 // pred_check
          %p530 = pneg %p95
        $region18: #{cinn_forward.1} parent=11 // pred_check_branch
          %532 = sbr.rel (%p530) target = $region20
        $region19: #{cinn_forward.1} parent=11 // pred_region
          %p533 = scmp.lt.s32.totalorder %s34, 0
          %s534 = scalar_select %p533, %s34, 0
          %s535 = smul.addr %s534, 2
          %s536 = scalar_lea.vmem %s1, %s535
        $region20: #{cinn_forward.1} parent=11 // pred_fallthru
          _
      $region12: #{cinn_forward.1} parent=5 // pred_fallthru
        _
      %p537 = scmp.lt.s32.totalorder %s24, 8
      // Predicated region
      $region21: #{cinn_forward.1} parent=5 // pred_check
        %p538 = pneg %p537
      $region22: #{cinn_forward.1} parent=5 // pred_check_branch
        %540 = sbr.rel (%p538) target = $region24
      $region23: #{cinn_forward.1} parent=5 // pred_region
        // Predicated region
        $region25: #{cinn_forward.1} parent=23 // pred_check
          %p541 = pneg %p115
        $region26: #{cinn_forward.1} parent=23 // pred_check_branch
          %543 = sbr.rel (%p541) target = $region28
        $region27: #{cinn_forward.1} parent=23 // pred_region
          %p544 = scmp.lt.s32.totalorder %s32, 3
          %s545 = scalar_select %p544, %s32, 3
          %s546 = smul.addr %s545, 392
          %s547 = smul.addr %s546, 4
          %s548 = scalar_lea.vmem %s2, %s547
        $region28: #{cinn_forward.1} parent=23 // pred_fallthru
          _
        // Predicated region
        $region29: #{cinn_forward.1} parent=23 // pred_check
          %p549 = pneg %p141
        $region30: #{cinn_forward.1} parent=23 // pred_check_branch
          %551 = sbr.rel (%p549) target = $region32
        $region31: #{cinn_forward.1} parent=23 // pred_region
          %p552 = scmp.lt.s32.totalorder %s32, 3
          %s553 = scalar_select %p552, %s32, 3
          %s554 = smul.addr %s553, 392
          %s555 = smul.addr %s554, 4
          %s556 = scalar_lea.vmem %s3, %s555
        $region32: #{cinn_forward.1} parent=23 // pred_fallthru
          _
        // Predicated region
        $region33: #{cinn_forward.1} parent=23 // pred_check
          %p557 = pneg %p169
        $region34: #{cinn_forward.1} parent=23 // pred_check_branch
          %559 = sbr.rel (%p557) target = $region36
        $region35: #{cinn_forward.1} parent=23 // pred_region
          %p560 = scmp.lt.s32.totalorder %s32, 3
          %s561 = scalar_select %p560, %s32, 3
          %p562 = scmp.lt.s32.totalorder %s33, 1
          %s563 = scalar_select %p562, %s33, 1
          %s564 = smul.addr %s563, 196
          %s565 = smul.addr %s561, 392
          %s566 = sadd.s32 %s564, %s565
          %s567 = smul.addr %s566, 4
          %s568 = scalar_lea.vmem %s4, %s567
        $region36: #{cinn_forward.1} parent=23 // pred_fallthru
          _
        // Predicated region
        $region37: #{cinn_forward.1} parent=23 // pred_check
          %p569 = pneg %p197
        $region38: #{cinn_forward.1} parent=23 // pred_check_branch
          %571 = sbr.rel (%p569) target = $region40
        $region39: #{cinn_forward.1} parent=23 // pred_region
          %p572 = scmp.lt.s32.totalorder %s32, 3
          %s573 = scalar_select %p572, %s32, 3
          %p574 = scmp.lt.s32.totalorder %s33, 1
          %s575 = scalar_select %p574, %s33, 1
          %s576 = smul.addr %s575, 8
          %s577 = smul.addr %s573, 16
          %s578 = sadd.s32 %s576, %s577
          %s579 = smul.addr %s578, 4
          %s580 = scalar_lea.vmem %s5, %s579
        $region40: #{cinn_forward.1} parent=23 // pred_fallthru
          _
        // Predicated region
        $region41: #{cinn_forward.1} parent=23 // pred_check
          %p581 = pneg %p225
        $region42: #{cinn_forward.1} parent=23 // pred_check_branch
          %583 = sbr.rel (%p581) target = $region44
        $region43: #{cinn_forward.1} parent=23 // pred_region
          %p584 = scmp.lt.s32.totalorder %s32, 3
          %s585 = scalar_select %p584, %s32, 3
          %p586 = scmp.lt.s32.totalorder %s33, 1
          %s587 = scalar_select %p586, %s33, 1
          %s588 = smul.addr %s587, 4
          %s589 = smul.addr %s585, 8
          %s590 = sadd.s32 %s588, %s589
          %s591 = scalar_lea.vmem %s6, %s590
        $region44: #{cinn_forward.1} parent=23 // pred_fallthru
          _
        // Predicated region
        $region45: #{cinn_forward.1} parent=23 // pred_check
          %p592 = pneg %p253
        $region46: #{cinn_forward.1} parent=23 // pred_check_branch
          %594 = sbr.rel (%p592) target = $region48
        $region47: #{cinn_forward.1} parent=23 // pred_region
          %p595 = scmp.lt.s32.totalorder %s32, 3
          %s596 = scalar_select %p595, %s32, 3
          %p597 = scmp.lt.s32.totalorder %s33, 1
          %s598 = scalar_select %p597, %s33, 1
          %s599 = smul.addr %s598, 256
          %s600 = smul.addr %s596, 512
          %s601 = sadd.s32 %s599, %s600
          %s602 = smul.addr %s601, 4
          %s603 = scalar_lea.vmem %s7, %s602
        $region48: #{cinn_forward.1} parent=23 // pred_fallthru
          _
        // Predicated region
        $region49: #{cinn_forward.1} parent=23 // pred_check
          %p604 = pneg %p281
        $region50: #{cinn_forward.1} parent=23 // pred_check_branch
          %606 = sbr.rel (%p604) target = $region52
        $region51: #{cinn_forward.1} parent=23 // pred_region
          %p607 = scmp.lt.s32.totalorder %s32, 3
          %s608 = scalar_select %p607, %s32, 3
          %p609 = scmp.lt.s32.totalorder %s33, 1
          %s610 = scalar_select %p609, %s33, 1
          %s611 = smul.addr %s610, 4
          %s612 = smul.addr %s608, 8
          %s613 = sadd.s32 %s611, %s612
          %s614 = scalar_lea.vmem %s8, %s613
        $region52: #{cinn_forward.1} parent=23 // pred_fallthru
          _
        // Predicated region
        $region53: #{cinn_forward.1} parent=23 // pred_check
          %p615 = pneg %p309
        $region54: #{cinn_forward.1} parent=23 // pred_check_branch
          %617 = sbr.rel (%p615) target = $region56
        $region55: #{cinn_forward.1} parent=23 // pred_region
          %p618 = scmp.lt.s32.totalorder %s32, 3
          %s619 = scalar_select %p618, %s32, 3
          %p620 = scmp.lt.s32.totalorder %s33, 1
          %s621 = scalar_select %p620, %s33, 1
          %s622 = smul.addr %s621, 256
          %s623 = smul.addr %s619, 512
          %s624 = sadd.s32 %s622, %s623
          %s625 = smul.addr %s624, 4
          %s626 = scalar_lea.vmem %s9, %s625
        $region56: #{cinn_forward.1} parent=23 // pred_fallthru
          _
        // Predicated region
        $region57: #{cinn_forward.1} parent=23 // pred_check
          %p627 = pneg %p337
        $region58: #{cinn_forward.1} parent=23 // pred_check_branch
          %629 = sbr.rel (%p627) target = $region60
        $region59: #{cinn_forward.1} parent=23 // pred_region
          %p630 = scmp.lt.s32.totalorder %s32, 3
          %s631 = scalar_select %p630, %s32, 3
          %p632 = scmp.lt.s32.totalorder %s33, 1
          %s633 = scalar_select %p632, %s33, 1
          %s634 = smul.addr %s633, 4
          %s635 = smul.addr %s631, 8
          %s636 = sadd.s32 %s634, %s635
          %s637 = scalar_lea.vmem %s10, %s636
        $region60: #{cinn_forward.1} parent=23 // pred_fallthru
          _
        // Predicated region
        $region61: #{cinn_forward.1} parent=23 // pred_check
          %p638 = pneg %p365
        $region62: #{cinn_forward.1} parent=23 // pred_check_branch
          %640 = sbr.rel (%p638) target = $region64
        $region63: #{cinn_forward.1} parent=23 // pred_region
          %p641 = scmp.lt.s32.totalorder %s32, 3
          %s642 = scalar_select %p641, %s32, 3
          %p643 = scmp.lt.s32.totalorder %s33, 1
          %s644 = scalar_select %p643, %s33, 1
          %s645 = smul.addr %s644, 256
          %s646 = smul.addr %s642, 512
          %s647 = sadd.s32 %s645, %s646
          %s648 = smul.addr %s647, 4
          %s649 = scalar_lea.vmem %s11, %s648
        $region64: #{cinn_forward.1} parent=23 // pred_fallthru
          _
        // Predicated region
        $region65: #{cinn_forward.1} parent=23 // pred_check
          %p650 = pneg %p393
        $region66: #{cinn_forward.1} parent=23 // pred_check_branch
          %652 = sbr.rel (%p650) target = $region68
        $region67: #{cinn_forward.1} parent=23 // pred_region
          %p653 = scmp.lt.s32.totalorder %s32, 3
          %s654 = scalar_select %p653, %s32, 3
          %p655 = scmp.lt.s32.totalorder %s33, 1
          %s656 = scalar_select %p655, %s33, 1
          %s657 = smul.addr %s656, 4
          %s658 = smul.addr %s654, 8
          %s659 = sadd.s32 %s657, %s658
          %s660 = scalar_lea.vmem %s12, %s659
        $region68: #{cinn_forward.1} parent=23 // pred_fallthru
          _
        // Predicated region
        $region69: #{cinn_forward.1} parent=23 // pred_check
          %p661 = pneg %p421
        $region70: #{cinn_forward.1} parent=23 // pred_check_branch
          %663 = sbr.rel (%p661) target = $region72
        $region71: #{cinn_forward.1} parent=23 // pred_region
          %p664 = scmp.lt.s32.totalorder %s32, 3
          %s665 = scalar_select %p664, %s32, 3
          %p666 = scmp.lt.s32.totalorder %s33, 1
          %s667 = scalar_select %p666, %s33, 1
          %s668 = smul.addr %s667, 256
          %s669 = smul.addr %s665, 512
          %s670 = sadd.s32 %s668, %s669
          %s671 = smul.addr %s670, 4
          %s672 = scalar_lea.vmem %s13, %s671
        $region72: #{cinn_forward.1} parent=23 // pred_fallthru
          _
        // Predicated region
        $region73: #{cinn_forward.1} parent=23 // pred_check
          %p673 = pneg %p449
        $region74: #{cinn_forward.1} parent=23 // pred_check_branch
          %675 = sbr.rel (%p673) target = $region76
        $region75: #{cinn_forward.1} parent=23 // pred_region
          %p676 = scmp.lt.s32.totalorder %s32, 3
          %s677 = scalar_select %p676, %s32, 3
          %p678 = scmp.lt.s32.totalorder %s33, 1
          %s679 = scalar_select %p678, %s33, 1
          %s680 = smul.addr %s679, 4
          %s681 = smul.addr %s677, 8
          %s682 = sadd.s32 %s680, %s681
          %s683 = scalar_lea.vmem %s14, %s682
        $region76: #{cinn_forward.1} parent=23 // pred_fallthru
          _
      $region24: #{cinn_forward.1} parent=5 // pred_fallthru
        _
      %p684 = scmp.le.s32.totalorder 1, %s24
      %p685 = scmp.lt.s32.totalorder %s24, 9
      %p686 = pnand %p684, %p685
      %p687 = pneg %p686
      // Predicated region
      $region77: #{cinn_forward.1} parent=5 // pred_check
        _
      $region78: #{cinn_forward.1} parent=5 // pred_check_branch
        %689 = sbr.rel (%p686) target = $region80
      $region79: #{cinn_forward.1} parent=5 // pred_region
        %s690 = ssub.s32 %s24, 1
        %p691 = scmp.lt.s32.totalorder %s34, 0
        %s692 = scalar_select %p691, %s34, 0
        %s693 = smul.addr %s692, 7
        %s694 = smul.addr %s693, 2
        %s695 = scalar_lea.vmem %s0, %s694
        %p696 = pneg %p69
        %p697 = pneg %p66
        %p698 = scmp.lt.s32.totalorder %s34, 0
        %s699 = scalar_select %p698, %s34, 0
        %s700 = smul.addr %s699, 2
        %s701 = scalar_lea.vmem %s1, %s700
        %p702 = pneg %p95
        %p703 = pneg %p92
        %p704 = scmp.lt.s32.totalorder %s35, 3
        %s705 = scalar_select %p704, %s35, 3
        %s706 = smul.addr %s705, 392
        %s707 = smul.addr %s706, 4
        %s708 = scalar_lea.vmem %s2, %s707
        %p709 = pneg %p121
        %p710 = pneg %p118
        %p711 = scmp.lt.s32.totalorder %s35, 3
        %s712 = scalar_select %p711, %s35, 3
        %s713 = smul.addr %s712, 392
        %s714 = smul.addr %s713, 4
        %s715 = scalar_lea.vmem %s3, %s714
        %p716 = pneg %p147
        %p717 = pneg %p144
        %p718 = scmp.lt.s32.totalorder %s35, 3
        %s719 = scalar_select %p718, %s35, 3
        %p720 = scmp.lt.s32.totalorder %s36, 1
        %s721 = scalar_select %p720, %s36, 1
        %s722 = smul.addr %s721, 196
        %s723 = smul.addr %s719, 392
        %s724 = sadd.s32 %s722, %s723
        %s725 = smul.addr %s724, 4
        %s726 = scalar_lea.vmem %s4, %s725
        %p727 = pneg %p175
        %p728 = pneg %p172
        %p729 = scmp.lt.s32.totalorder %s35, 3
        %s730 = scalar_select %p729, %s35, 3
        %p731 = scmp.lt.s32.totalorder %s36, 1
        %s732 = scalar_select %p731, %s36, 1
        %s733 = smul.addr %s732, 8
        %s734 = smul.addr %s730, 16
        %s735 = sadd.s32 %s733, %s734
        %s736 = smul.addr %s735, 4
        %s737 = scalar_lea.vmem %s5, %s736
        %p738 = pneg %p203
        %p739 = pneg %p200
        %p740 = scmp.lt.s32.totalorder %s35, 3
        %s741 = scalar_select %p740, %s35, 3
        %p742 = scmp.lt.s32.totalorder %s36, 1
        %s743 = scalar_select %p742, %s36, 1
        %s744 = smul.addr %s743, 4
        %s745 = smul.addr %s741, 8
        %s746 = sadd.s32 %s744, %s745
        %s747 = scalar_lea.vmem %s6, %s746
        %p748 = pneg %p231
        %p749 = pneg %p228
        %p750 = scmp.lt.s32.totalorder %s35, 3
        %s751 = scalar_select %p750, %s35, 3
        %p752 = scmp.lt.s32.totalorder %s36, 1
        %s753 = scalar_select %p752, %s36, 1
        %s754 = smul.addr %s753, 256
        %s755 = smul.addr %s751, 512
        %s756 = sadd.s32 %s754, %s755
        %s757 = smul.addr %s756, 4
        %s758 = scalar_lea.vmem %s7, %s757
        %p759 = pneg %p259
        %p760 = pneg %p256
        %p761 = scmp.lt.s32.totalorder %s35, 3
        %s762 = scalar_select %p761, %s35, 3
        %p763 = scmp.lt.s32.totalorder %s36, 1
        %s764 = scalar_select %p763, %s36, 1
        %s765 = smul.addr %s764, 4
        %s766 = smul.addr %s762, 8
        %s767 = sadd.s32 %s765, %s766
        %s768 = scalar_lea.vmem %s8, %s767
        %p769 = pneg %p287
        %p770 = pneg %p284
        %p771 = scmp.lt.s32.totalorder %s35, 3
        %s772 = scalar_select %p771, %s35, 3
        %p773 = scmp.lt.s32.totalorder %s36, 1
        %s774 = scalar_select %p773, %s36, 1
        %s775 = smul.addr %s774, 256
        %s776 = smul.addr %s772, 512
        %s777 = sadd.s32 %s775, %s776
        %s778 = smul.addr %s777, 4
        %s779 = scalar_lea.vmem %s9, %s778
        %p780 = pneg %p315
        %p781 = pneg %p312
        %p782 = scmp.lt.s32.totalorder %s35, 3
        %s783 = scalar_select %p782, %s35, 3
        %p784 = scmp.lt.s32.totalorder %s36, 1
        %s785 = scalar_select %p784, %s36, 1
        %s786 = smul.addr %s785, 4
        %s787 = smul.addr %s783, 8
        %s788 = sadd.s32 %s786, %s787
        %s789 = scalar_lea.vmem %s10, %s788
        %p790 = pneg %p343
        %p791 = pneg %p340
        %p792 = scmp.lt.s32.totalorder %s35, 3
        %s793 = scalar_select %p792, %s35, 3
        %p794 = scmp.lt.s32.totalorder %s36, 1
        %s795 = scalar_select %p794, %s36, 1
        %s796 = smul.addr %s795, 256
        %s797 = smul.addr %s793, 512
        %s798 = sadd.s32 %s796, %s797
        %s799 = smul.addr %s798, 4
        %s800 = scalar_lea.vmem %s11, %s799
        %p801 = pneg %p371
        %p802 = pneg %p368
        %p803 = scmp.lt.s32.totalorder %s35, 3
        %s804 = scalar_select %p803, %s35, 3
        %p805 = scmp.lt.s32.totalorder %s36, 1
        %s806 = scalar_select %p805, %s36, 1
        %s807 = smul.addr %s806, 4
        %s808 = smul.addr %s804, 8
        %s809 = sadd.s32 %s807, %s808
        %s810 = scalar_lea.vmem %s12, %s809
        %p811 = pneg %p399
        %p812 = pneg %p396
        %p813 = scmp.lt.s32.totalorder %s35, 3
        %s814 = scalar_select %p813, %s35, 3
        %p815 = scmp.lt.s32.totalorder %s36, 1
        %s816 = scalar_select %p815, %s36, 1
        %s817 = smul.addr %s816, 256
        %s818 = smul.addr %s814, 512
        %s819 = sadd.s32 %s817, %s818
        %s820 = smul.addr %s819, 4
        %s821 = scalar_lea.vmem %s13, %s820
        %p822 = pneg %p427
        %p823 = pneg %p424
        %p824 = scmp.lt.s32.totalorder %s35, 3
        %s825 = scalar_select %p824, %s35, 3
        %p826 = scmp.lt.s32.totalorder %s36, 1
        %s827 = scalar_select %p826, %s36, 1
        %s828 = smul.addr %s827, 4
        %s829 = smul.addr %s825, 8
        %s830 = sadd.s32 %s828, %s829
        %s831 = scalar_lea.vmem %s14, %s830
        %p832 = pneg %p455
        %p833 = pneg %p452
        %p834 = pneg %p481
        %p835 = pneg %p478
        %p836 = pneg %p507
        %p837 = pneg %p504
        %p838 = scmp.lt.s32.totalorder %s34, 0
        %s839 = scalar_select %p838, %s34, 0
        %s840 = smul.addr %s839, 2
        %s841 = scalar_lea.vmem %s16, %s840
        %p842 = scmp.lt.s32.totalorder %s34, 0
        %s843 = scalar_select %p842, %s34, 0
        %s844 = smul.addr %s843, 7
        %s845 = smul.addr %s844, 2
        %s846 = scalar_lea.vmem %s0, %s845
        %p847 = scmp.lt.s32.totalorder %s34, 0
        %s848 = scalar_select %p847, %s34, 0
        %s849 = smul.addr %s848, 2
        %s850 = scalar_lea.vmem %s1, %s849
        %p851 = scmp.lt.s32.totalorder %s35, 3
        %s852 = scalar_select %p851, %s35, 3
        %s853 = smul.addr %s852, 392
        %s854 = smul.addr %s853, 4
        %s855 = scalar_lea.vmem %s2, %s854
        %p856 = scmp.lt.s32.totalorder %s35, 3
        %s857 = scalar_select %p856, %s35, 3
        %s858 = smul.addr %s857, 392
        %s859 = smul.addr %s858, 4
        %s860 = scalar_lea.vmem %s3, %s859
        %p861 = scmp.lt.s32.totalorder %s35, 3
        %s862 = scalar_select %p861, %s35, 3
        %p863 = scmp.lt.s32.totalorder %s36, 1
        %s864 = scalar_select %p863, %s36, 1
        %s865 = smul.addr %s864, 196
        %s866 = smul.addr %s862, 392
        %s867 = sadd.s32 %s865, %s866
        %s868 = smul.addr %s867, 4
        %s869 = scalar_lea.vmem %s4, %s868
        %p870 = scmp.lt.s32.totalorder %s35, 3
        %s871 = scalar_select %p870, %s35, 3
        %p872 = scmp.lt.s32.totalorder %s36, 1
        %s873 = scalar_select %p872, %s36, 1
        %s874 = smul.addr %s873, 8
        %s875 = smul.addr %s871, 16
        %s876 = sadd.s32 %s874, %s875
        %s877 = smul.addr %s876, 4
        %s878 = scalar_lea.vmem %s5, %s877
        %p879 = scmp.lt.s32.totalorder %s35, 3
        %s880 = scalar_select %p879, %s35, 3
        %p881 = scmp.lt.s32.totalorder %s36, 1
        %s882 = scalar_select %p881, %s36, 1
        %s883 = smul.addr %s882, 4
        %s884 = smul.addr %s880, 8
        %s885 = sadd.s32 %s883, %s884
        %s886 = scalar_lea.vmem %s6, %s885
        %p887 = scmp.lt.s32.totalorder %s35, 3
        %s888 = scalar_select %p887, %s35, 3
        %p889 = scmp.lt.s32.totalorder %s36, 1
        %s890 = scalar_select %p889, %s36, 1
        %s891 = smul.addr %s890, 256
        %s892 = smul.addr %s888, 512
        %s893 = sadd.s32 %s891, %s892
        %s894 = smul.addr %s893, 4
        %s895 = scalar_lea.vmem %s7, %s894
        %p896 = scmp.lt.s32.totalorder %s35, 3
        %s897 = scalar_select %p896, %s35, 3
        %p898 = scmp.lt.s32.totalorder %s36, 1
        %s899 = scalar_select %p898, %s36, 1
        %s900 = smul.addr %s899, 4
        %s901 = smul.addr %s897, 8
        %s902 = sadd.s32 %s900, %s901
        %s903 = scalar_lea.vmem %s8, %s902
        %p904 = scmp.lt.s32.totalorder %s35, 3
        %s905 = scalar_select %p904, %s35, 3
        %p906 = scmp.lt.s32.totalorder %s36, 1
        %s907 = scalar_select %p906, %s36, 1
        %s908 = smul.addr %s907, 256
        %s909 = smul.addr %s905, 512
        %s910 = sadd.s32 %s908, %s909
        %s911 = smul.addr %s910, 4
        %s912 = scalar_lea.vmem %s9, %s911
        %p913 = scmp.lt.s32.totalorder %s35, 3
        %s914 = scalar_select %p913, %s35, 3
        %p915 = scmp.lt.s32.totalorder %s36, 1
        %s916 = scalar_select %p915, %s36, 1
        %s917 = smul.addr %s916, 4
        %s918 = smul.addr %s914, 8
        %s919 = sadd.s32 %s917, %s918
        %s920 = scalar_lea.vmem %s10, %s919
        %p921 = scmp.lt.s32.totalorder %s35, 3
        %s922 = scalar_select %p921, %s35, 3
        %p923 = scmp.lt.s32.totalorder %s36, 1
        %s924 = scalar_select %p923, %s36, 1
        %s925 = smul.addr %s924, 256
        %s926 = smul.addr %s922, 512
        %s927 = sadd.s32 %s925, %s926
        %s928 = smul.addr %s927, 4
        %s929 = scalar_lea.vmem %s11, %s928
        %p930 = scmp.lt.s32.totalorder %s35, 3
        %s931 = scalar_select %p930, %s35, 3
        %p932 = scmp.lt.s32.totalorder %s36, 1
        %s933 = scalar_select %p932, %s36, 1
        %s934 = smul.addr %s933, 4
        %s935 = smul.addr %s931, 8
        %s936 = sadd.s32 %s934, %s935
        %s937 = scalar_lea.vmem %s12, %s936
        %p938 = scmp.lt.s32.totalorder %s35, 3
        %s939 = scalar_select %p938, %s35, 3
        %p940 = scmp.lt.s32.totalorder %s36, 1
        %s941 = scalar_select %p940, %s36, 1
        %s942 = smul.addr %s941, 256
        %s943 = smul.addr %s939, 512
        %s944 = sadd.s32 %s942, %s943
        %s945 = smul.addr %s944, 4
        %s946 = scalar_lea.vmem %s13, %s945
        %p947 = scmp.lt.s32.totalorder %s35, 3
        %s948 = scalar_select %p947, %s35, 3
        %p949 = scmp.lt.s32.totalorder %s36, 1
        %s950 = scalar_select %p949, %s36, 1
        %s951 = smul.addr %s950, 4
        %s952 = smul.addr %s948, 8
        %s953 = sadd.s32 %s951, %s952
        %s954 = scalar_lea.vmem %s14, %s953
        %p955 = scmp.lt.s32.totalorder %s34, 0
        %s956 = scalar_select %p955, %s34, 0
        %s957 = smul.addr %s956, 2
        %s958 = scalar_lea.vmem %s16, %s957
        %p960 = scmp.eq.s32.totalorder %s35, 0
        %p961 = scmp.eq.s32.totalorder %s36, 0
        %p962 = pnand %p960, %p961
        %p963 = pneg %p962
        // Predicated region
        $region81: #{cinn_forward.1} parent=79 // pred_check
          _
        $region82: #{cinn_forward.1} parent=79 // pred_check_branch
          %965 = sbr.rel (%p962) target = $region84
        $region83: #{cinn_forward.1} parent=79 // pred_region
          %v966 = vld [vmem:[%s846] sm:$0xff]
          %v967 = vld [vmem:[%s846 + $0x8] sm:$0x3f]
          %vm968 = vcmask 1041408
          %vm969 = vcmask 1043458
          %vm970 = vmor %vm969, %vm968
          %vm971 = vcmask 1045508
          %vm972 = vmor %vm971, %vm970
          %vm973 = vcmask 64518
          %vm974 = vmor %vm973, %vm972
          %975 = vst.msk [vmem:[#allocation2] sm:$0xff] %vm974, %v966
          %978 = vrot.lane.b32.xlu0 %v966, 120
          %v979 = vpop.permute.xlu0 %978
          %980 = vrot.lane.b32.xlu0 %v967, 120
          %v981 = vpop.permute.xlu0 %980
          %v982 = vrot.slane %v979, 6
          %v983 = vrot.slane %v981, 6
          %v984 = vsel %vm968, %v982, %v983
          %vm985 = vcmask 982016
          %v986 = vsel %vm985, %v984, %v981
          %988 = vst.msk [vmem:[#allocation3] sm:$0xff] %vm974, %v986
          %vm989 = vcmask 1024
          %990 = vst.msk [vmem:[#allocation4] sm:$0x3] %vm989, 0.0
        $region84: #{cinn_forward.1} parent=79 // pred_fallthru
          _
        // Predicated region
        $region85: #{cinn_forward.1} parent=79 // pred_check
          %p991 = pneg %p961
        $region86: #{cinn_forward.1} parent=79 // pred_check_branch
          %993 = sbr.rel (%p991) target = $region88
        $region87: #{cinn_forward.1} parent=79 // pred_region
          %v994 = vld [vmem:[#allocation2] sm:$0xff]
          %v995 = vld [vmem:[#allocation3] sm:$0xff]
          %v996 = vld [vmem:[%s855] sm:$0xff]
          %v997 = vld [vmem:[%s855 + $0x8] sm:$0xff]
          %v998 = vld [vmem:[%s855 + $0x10] sm:$0xff]
          %v999 = vld [vmem:[%s855 + $0x18] sm:$0xff]
          %v1000 = vld [vmem:[%s855 + $0x20] sm:$0xff]
          %v1001 = vld [vmem:[%s855 + $0x28] sm:$0xff]
          %v1002 = vld [vmem:[%s855 + $0x30] sm:$0xff]
          %v1003 = vld [vmem:[%s855 + $0x38] sm:$0xff]
          %v1004 = vld [vmem:[%s855 + $0x40] sm:$0xff]
          %v1005 = vld [vmem:[%s855 + $0x48] sm:$0xff]
          %v1006 = vld [vmem:[%s855 + $0x50] sm:$0xff]
          %v1007 = vld [vmem:[%s855 + $0x58] sm:$0xff]
          %v1008 = vld [vmem:[%s855 + $0x60] sm:$0xff]
          %v1009 = vld [vmem:[%s855 + $0x68] sm:$0xff]
          %v1010 = vld [vmem:[%s855 + $0x70] sm:$0xff]
          %v1011 = vld [vmem:[%s855 + $0x78] sm:$0xff]
          %v1012 = vld [vmem:[%s855 + $0x80] sm:$0xff]
          %v1013 = vld [vmem:[%s855 + $0x88] sm:$0xff]
          %v1014 = vld [vmem:[%s855 + $0x90] sm:$0xff]
          %v1015 = vld [vmem:[%s855 + $0x98] sm:$0xff]
          %v1016 = vld [vmem:[%s855 + $0xa0] sm:$0xff]
          %v1017 = vld [vmem:[%s855 + $0xa8] sm:$0xff]
          %v1018 = vld [vmem:[%s855 + $0xb0] sm:$0xff]
          %v1019 = vld [vmem:[%s855 + $0xb8] sm:$0xff]
          %v1020 = vld [vmem:[%s855 + $0xc0] sm:$0xff]
          %v1021 = vld [vmem:[%s855 + $0xc8] sm:$0xff]
          %v1022 = vld [vmem:[%s855 + $0xd0] sm:$0xff]
          %v1023 = vld [vmem:[%s855 + $0xd8] sm:$0xff]
          %v1024 = vld [vmem:[%s855 + $0xe0] sm:$0xff]
          %v1025 = vld [vmem:[%s855 + $0xe8] sm:$0xff]
          %v1026 = vld [vmem:[%s855 + $0xf0] sm:$0xff]
          %v1027 = vld [vmem:[%s855 + $0xf8] sm:$0xff]
          %v1028 = vld [vmem:[%s855 + $0x100] sm:$0xff]
          %v1029 = vld [vmem:[%s855 + $0x108] sm:$0xff]
          %v1030 = vld [vmem:[%s855 + $0x110] sm:$0xff]
          %v1031 = vld [vmem:[%s855 + $0x118] sm:$0xff]
          %v1032 = vld [vmem:[%s855 + $0x120] sm:$0xff]
          %v1033 = vld [vmem:[%s855 + $0x128] sm:$0xff]
          %v1034 = vld [vmem:[%s855 + $0x130] sm:$0xff]
          %v1035 = vld [vmem:[%s855 + $0x138] sm:$0xff]
          %v1036 = vld [vmem:[%s855 + $0x140] sm:$0xff]
          %v1037 = vld [vmem:[%s855 + $0x148] sm:$0xff]
          %v1038 = vld [vmem:[%s855 + $0x150] sm:$0xff]
          %v1039 = vld [vmem:[%s855 + $0x158] sm:$0xff]
          %v1040 = vld [vmem:[%s855 + $0x160] sm:$0xff]
          %v1041 = vld [vmem:[%s855 + $0x168] sm:$0xff]
          %v1042 = vld [vmem:[%s855 + $0x170] sm:$0xff]
          %v1043 = vld [vmem:[%s855 + $0x178] sm:$0xff]
          %v1044 = vld [vmem:[%s855 + $0x180] sm:$0xff]
          %v1045 = vld [vmem:[%s855 + $0x188] sm:$0xff]
          %v1046 = vld [vmem:[%s855 + $0x190] sm:$0xff]
          %v1047 = vld [vmem:[%s855 + $0x198] sm:$0xff]
          %v1048 = vld [vmem:[%s855 + $0x1a0] sm:$0xff]
          %v1049 = vld [vmem:[%s855 + $0x1a8] sm:$0xff]
          %v1050 = vld [vmem:[%s855 + $0x1b0] sm:$0xff]
          %v1051 = vld [vmem:[%s855 + $0x1b8] sm:$0xff]
          %v1052 = vld [vmem:[%s855 + $0x1c0] sm:$0xff]
          %v1053 = vld [vmem:[%s855 + $0x1c8] sm:$0xff]
          %v1054 = vld [vmem:[%s855 + $0x1d0] sm:$0xff]
          %v1055 = vld [vmem:[%s855 + $0x1d8] sm:$0xff]
          %v1056 = vld [vmem:[%s855 + $0x1e0] sm:$0xff]
          %v1057 = vld [vmem:[%s855 + $0x1e8] sm:$0xff]
          %v1058 = vld [vmem:[%s855 + $0x1f0] sm:$0xff]
          %v1059 = vld [vmem:[%s855 + $0x1f8] sm:$0xff]
          %v1060 = vld [vmem:[%s855 + $0x200] sm:$0xff]
          %v1061 = vld [vmem:[%s855 + $0x208] sm:$0xff]
          %v1062 = vld [vmem:[%s855 + $0x210] sm:$0xff]
          %v1063 = vld [vmem:[%s855 + $0x218] sm:$0xff]
          %v1064 = vld [vmem:[%s855 + $0x220] sm:$0xff]
          %v1065 = vld [vmem:[%s855 + $0x228] sm:$0xff]
          %v1066 = vld [vmem:[%s855 + $0x230] sm:$0xff]
          %v1067 = vld [vmem:[%s855 + $0x238] sm:$0xff]
          %v1068 = vld [vmem:[%s855 + $0x240] sm:$0xff]
          %v1069 = vld [vmem:[%s855 + $0x248] sm:$0xff]
          %v1070 = vld [vmem:[%s855 + $0x250] sm:$0xff]
          %v1071 = vld [vmem:[%s855 + $0x258] sm:$0xff]
          %v1072 = vld [vmem:[%s855 + $0x260] sm:$0xff]
          %v1073 = vld [vmem:[%s855 + $0x268] sm:$0xff]
          %v1074 = vld [vmem:[%s855 + $0x270] sm:$0xff]
          %v1075 = vld [vmem:[%s855 + $0x278] sm:$0xff]
          %v1076 = vld [vmem:[%s855 + $0x280] sm:$0xff]
          %v1077 = vld [vmem:[%s855 + $0x288] sm:$0xff]
          %v1078 = vld [vmem:[%s855 + $0x290] sm:$0xff]
          %v1079 = vld [vmem:[%s855 + $0x298] sm:$0xff]
          %v1080 = vld [vmem:[%s855 + $0x2a0] sm:$0xff]
          %v1081 = vld [vmem:[%s855 + $0x2a8] sm:$0xff]
          %v1082 = vld [vmem:[%s855 + $0x2b0] sm:$0xff]
          %v1083 = vld [vmem:[%s855 + $0x2b8] sm:$0xff]
          %v1084 = vld [vmem:[%s855 + $0x2c0] sm:$0xff]
          %v1085 = vld [vmem:[%s855 + $0x2c8] sm:$0xff]
          %v1086 = vld [vmem:[%s855 + $0x2d0] sm:$0xff]
          %v1087 = vld [vmem:[%s855 + $0x2d8] sm:$0xff]
          %v1088 = vld [vmem:[%s855 + $0x2e0] sm:$0xff]
          %v1089 = vld [vmem:[%s855 + $0x2e8] sm:$0xff]
          %v1090 = vld [vmem:[%s855 + $0x2f0] sm:$0xff]
          %v1091 = vld [vmem:[%s855 + $0x2f8] sm:$0xff]
          %v1092 = vld [vmem:[%s855 + $0x300] sm:$0xff]
          %v1093 = vld [vmem:[%s855 + $0x308] sm:$0xff]
          %v1094 = vld [vmem:[%s855 + $0x310] sm:$0xff]
          %v1095 = vld [vmem:[%s855 + $0x318] sm:$0xff]
          %v1096 = vld [vmem:[%s855 + $0x320] sm:$0xff]
          %v1097 = vld [vmem:[%s855 + $0x328] sm:$0xff]
          %v1098 = vld [vmem:[%s855 + $0x330] sm:$0xff]
          %v1099 = vld [vmem:[%s855 + $0x338] sm:$0xff]
          %v1100 = vld [vmem:[%s855 + $0x340] sm:$0xff]
          %v1101 = vld [vmem:[%s855 + $0x348] sm:$0xff]
          %v1102 = vld [vmem:[%s855 + $0x350] sm:$0xff]
          %v1103 = vld [vmem:[%s855 + $0x358] sm:$0xff]
          %v1104 = vld [vmem:[%s855 + $0x360] sm:$0xff]
          %v1105 = vld [vmem:[%s855 + $0x368] sm:$0xff]
          %v1106 = vld [vmem:[%s855 + $0x370] sm:$0xff]
          %v1107 = vld [vmem:[%s855 + $0x378] sm:$0xff]
          %v1108 = vld [vmem:[%s855 + $0x380] sm:$0xff]
          %v1109 = vld [vmem:[%s855 + $0x388] sm:$0xff]
          %v1110 = vld [vmem:[%s855 + $0x390] sm:$0xff]
          %v1111 = vld [vmem:[%s855 + $0x398] sm:$0xff]
          %v1112 = vld [vmem:[%s855 + $0x3a0] sm:$0xff]
          %v1113 = vld [vmem:[%s855 + $0x3a8] sm:$0xff]
          %v1114 = vld [vmem:[%s855 + $0x3b0] sm:$0xff]
          %v1115 = vld [vmem:[%s855 + $0x3b8] sm:$0xff]
          %v1116 = vld [vmem:[%s855 + $0x3c0] sm:$0xff]
          %v1117 = vld [vmem:[%s855 + $0x3c8] sm:$0xff]
          %v1118 = vld [vmem:[%s855 + $0x3d0] sm:$0xff]
          %v1119 = vld [vmem:[%s855 + $0x3d8] sm:$0xff]
          %v1120 = vld [vmem:[%s855 + $0x3e0] sm:$0xff]
          %v1121 = vld [vmem:[%s855 + $0x3e8] sm:$0xff]
          %v1122 = vld [vmem:[%s855 + $0x3f0] sm:$0xff]
          %v1123 = vld [vmem:[%s855 + $0x3f8] sm:$0xff]
          %v1124 = vld [vmem:[%s855 + $0x400] sm:$0xff]
          %v1125 = vld [vmem:[%s855 + $0x408] sm:$0xff]
          %v1126 = vld [vmem:[%s855 + $0x410] sm:$0xff]
          %v1127 = vld [vmem:[%s855 + $0x418] sm:$0xff]
          %v1128 = vld [vmem:[%s855 + $0x420] sm:$0xff]
          %v1129 = vld [vmem:[%s855 + $0x428] sm:$0xff]
          %v1130 = vld [vmem:[%s855 + $0x430] sm:$0xff]
          %v1131 = vld [vmem:[%s855 + $0x438] sm:$0xff]
          %v1132 = vld [vmem:[%s855 + $0x440] sm:$0xff]
          %v1133 = vld [vmem:[%s855 + $0x448] sm:$0xff]
          %v1134 = vld [vmem:[%s855 + $0x450] sm:$0xff]
          %v1135 = vld [vmem:[%s855 + $0x458] sm:$0xff]
          %v1136 = vld [vmem:[%s855 + $0x460] sm:$0xff]
          %v1137 = vld [vmem:[%s855 + $0x468] sm:$0xff]
          %v1138 = vld [vmem:[%s855 + $0x470] sm:$0xff]
          %v1139 = vld [vmem:[%s855 + $0x478] sm:$0xff]
          %v1140 = vld [vmem:[%s855 + $0x480] sm:$0xff]
          %v1141 = vld [vmem:[%s855 + $0x488] sm:$0xff]
          %v1142 = vld [vmem:[%s855 + $0x490] sm:$0xff]
          %v1143 = vld [vmem:[%s855 + $0x498] sm:$0xff]
          %v1144 = vld [vmem:[%s855 + $0x4a0] sm:$0xff]
          %v1145 = vld [vmem:[%s855 + $0x4a8] sm:$0xff]
          %v1146 = vld [vmem:[%s855 + $0x4b0] sm:$0xff]
          %v1147 = vld [vmem:[%s855 + $0x4b8] sm:$0xff]
          %v1148 = vld [vmem:[%s855 + $0x4c0] sm:$0xff]
          %v1149 = vld [vmem:[%s855 + $0x4c8] sm:$0xff]
          %v1150 = vld [vmem:[%s855 + $0x4d0] sm:$0xff]
          %v1151 = vld [vmem:[%s855 + $0x4d8] sm:$0xff]
          %v1152 = vld [vmem:[%s855 + $0x4e0] sm:$0xff]
          %v1153 = vld [vmem:[%s855 + $0x4e8] sm:$0xff]
          %v1154 = vld [vmem:[%s855 + $0x4f0] sm:$0xff]
          %v1155 = vld [vmem:[%s855 + $0x4f8] sm:$0xff]
          %v1156 = vld [vmem:[%s855 + $0x500] sm:$0xff]
          %v1157 = vld [vmem:[%s855 + $0x508] sm:$0xff]
          %v1158 = vld [vmem:[%s855 + $0x510] sm:$0xff]
          %v1159 = vld [vmem:[%s855 + $0x518] sm:$0xff]
          %v1160 = vld [vmem:[%s855 + $0x520] sm:$0xff]
          %v1161 = vld [vmem:[%s855 + $0x528] sm:$0xff]
          %v1162 = vld [vmem:[%s855 + $0x530] sm:$0xff]
          %v1163 = vld [vmem:[%s855 + $0x538] sm:$0xff]
          %v1164 = vld [vmem:[%s855 + $0x540] sm:$0xff]
          %v1165 = vld [vmem:[%s855 + $0x548] sm:$0xff]
          %v1166 = vld [vmem:[%s855 + $0x550] sm:$0xff]
          %v1167 = vld [vmem:[%s855 + $0x558] sm:$0xff]
          %v1168 = vld [vmem:[%s855 + $0x560] sm:$0xff]
          %v1169 = vld [vmem:[%s855 + $0x568] sm:$0xff]
          %v1170 = vld [vmem:[%s855 + $0x570] sm:$0xff]
          %v1171 = vld [vmem:[%s855 + $0x578] sm:$0xff]
          %v1172 = vld [vmem:[%s855 + $0x580] sm:$0xff]
          %v1173 = vld [vmem:[%s855 + $0x588] sm:$0xff]
          %v1174 = vld [vmem:[%s855 + $0x590] sm:$0xff]
          %v1175 = vld [vmem:[%s855 + $0x598] sm:$0xff]
          %v1176 = vld [vmem:[%s855 + $0x5a0] sm:$0xff]
          %v1177 = vld [vmem:[%s855 + $0x5a8] sm:$0xff]
          %v1178 = vld [vmem:[%s855 + $0x5b0] sm:$0xff]
          %v1179 = vld [vmem:[%s855 + $0x5b8] sm:$0xff]
          %v1180 = vld [vmem:[%s855 + $0x5c0] sm:$0xff]
          %v1181 = vld [vmem:[%s855 + $0x5c8] sm:$0xff]
          %v1182 = vld [vmem:[%s855 + $0x5d0] sm:$0xff]
          %v1183 = vld [vmem:[%s855 + $0x5d8] sm:$0xff]
          %v1184 = vld [vmem:[%s855 + $0x5e0] sm:$0xff]
          %v1185 = vld [vmem:[%s855 + $0x5e8] sm:$0xff]
          %v1186 = vld [vmem:[%s855 + $0x5f0] sm:$0xff]
          %v1187 = vld [vmem:[%s855 + $0x5f8] sm:$0xff]
          %v1188 = vld [vmem:[%s855 + $0x600] sm:$0xff]
          %v1189 = vld [vmem:[%s855 + $0x608] sm:$0xff]
          %v1190 = vld [vmem:[%s855 + $0x610] sm:$0xff]
          %v1191 = vld [vmem:[%s855 + $0x618] sm:$0xff]
          %v1192 = vunpack.c.l.bf16 %v996
          %v1193 = vunpack.c.h.bf16 %v996
          %v1194 = vunpack.c.l.bf16 %v997
          %v1195 = vunpack.c.h.bf16 %v997
          %v1196 = vunpack.c.l.bf16 %v998
          %v1197 = vunpack.c.h.bf16 %v998
          %v1198 = vunpack.c.l.bf16 %v999
          %v1199 = vunpack.c.h.bf16 %v999
          %v1200 = vunpack.c.l.bf16 %v1000
          %v1201 = vunpack.c.h.bf16 %v1000
          %v1202 = vunpack.c.l.bf16 %v1001
          %v1203 = vunpack.c.h.bf16 %v1001
          %v1204 = vunpack.c.l.bf16 %v1002
          %v1205 = vunpack.c.h.bf16 %v1002
          %v1206 = vunpack.c.l.bf16 %v1003
          %v1207 = vunpack.c.h.bf16 %v1003
          %v1208 = vunpack.c.l.bf16 %v1004
          %v1209 = vunpack.c.h.bf16 %v1004
          %v1210 = vunpack.c.l.bf16 %v1005
          %v1211 = vunpack.c.h.bf16 %v1005
          %v1212 = vunpack.c.l.bf16 %v1006
          %v1213 = vunpack.c.h.bf16 %v1006
          %v1214 = vunpack.c.l.bf16 %v1007
          %v1215 = vunpack.c.h.bf16 %v1007
          %v1216 = vunpack.c.l.bf16 %v1008
          %v1217 = vunpack.c.h.bf16 %v1008
          %v1218 = vunpack.c.l.bf16 %v1009
          %v1219 = vunpack.c.h.bf16 %v1009
          %v1220 = vunpack.c.l.bf16 %v1010
          %v1221 = vunpack.c.h.bf16 %v1010
          %v1222 = vunpack.c.l.bf16 %v1011
          %v1223 = vunpack.c.h.bf16 %v1011
          %v1224 = vunpack.c.l.bf16 %v1012
          %v1225 = vunpack.c.h.bf16 %v1012
          %v1226 = vunpack.c.l.bf16 %v1013
          %v1227 = vunpack.c.h.bf16 %v1013
          %v1228 = vunpack.c.l.bf16 %v1014
          %v1229 = vunpack.c.h.bf16 %v1014
          %v1230 = vunpack.c.l.bf16 %v1015
          %v1231 = vunpack.c.h.bf16 %v1015
          %v1232 = vunpack.c.l.bf16 %v1016
          %v1233 = vunpack.c.h.bf16 %v1016
          %v1234 = vunpack.c.l.bf16 %v1017
          %v1235 = vunpack.c.h.bf16 %v1017
          %v1236 = vunpack.c.l.bf16 %v1018
          %v1237 = vunpack.c.h.bf16 %v1018
          %v1238 = vunpack.c.l.bf16 %v1019
          %v1239 = vunpack.c.h.bf16 %v1019
          %v1240 = vunpack.c.l.bf16 %v1020
          %v1241 = vunpack.c.h.bf16 %v1020
          %v1242 = vunpack.c.l.bf16 %v1021
          %v1243 = vunpack.c.h.bf16 %v1021
          %v1244 = vunpack.c.l.bf16 %v1022
          %v1245 = vunpack.c.h.bf16 %v1022
          %v1246 = vunpack.c.l.bf16 %v1023
          %v1247 = vunpack.c.h.bf16 %v1023
          %v1248 = vunpack.c.l.bf16 %v1024
          %v1249 = vunpack.c.h.bf16 %v1024
          %v1250 = vunpack.c.l.bf16 %v1025
          %v1251 = vunpack.c.h.bf16 %v1025
          %v1252 = vunpack.c.l.bf16 %v1026
          %v1253 = vunpack.c.h.bf16 %v1026
          %v1254 = vunpack.c.l.bf16 %v1027
          %v1255 = vunpack.c.h.bf16 %v1027
          %v1256 = vunpack.c.l.bf16 %v1028
          %v1257 = vunpack.c.h.bf16 %v1028
          %v1258 = vunpack.c.l.bf16 %v1029
          %v1259 = vunpack.c.h.bf16 %v1029
          %v1260 = vunpack.c.l.bf16 %v1030
          %v1261 = vunpack.c.h.bf16 %v1030
          %v1262 = vunpack.c.l.bf16 %v1031
          %v1263 = vunpack.c.h.bf16 %v1031
          %v1264 = vunpack.c.l.bf16 %v1032
          %v1265 = vunpack.c.h.bf16 %v1032
          %v1266 = vunpack.c.l.bf16 %v1033
          %v1267 = vunpack.c.h.bf16 %v1033
          %v1268 = vunpack.c.l.bf16 %v1034
          %v1269 = vunpack.c.h.bf16 %v1034
          %v1270 = vunpack.c.l.bf16 %v1035
          %v1271 = vunpack.c.h.bf16 %v1035
          %v1272 = vunpack.c.l.bf16 %v1036
          %v1273 = vunpack.c.h.bf16 %v1036
          %v1274 = vunpack.c.l.bf16 %v1037
          %v1275 = vunpack.c.h.bf16 %v1037
          %v1276 = vunpack.c.l.bf16 %v1038
          %v1277 = vunpack.c.h.bf16 %v1038
          %v1278 = vunpack.c.l.bf16 %v1039
          %v1279 = vunpack.c.h.bf16 %v1039
          %v1280 = vunpack.c.l.bf16 %v1040
          %v1281 = vunpack.c.h.bf16 %v1040
          %v1282 = vunpack.c.l.bf16 %v1041
          %v1283 = vunpack.c.h.bf16 %v1041
          %v1284 = vunpack.c.l.bf16 %v1042
          %v1285 = vunpack.c.h.bf16 %v1042
          %v1286 = vunpack.c.l.bf16 %v1043
          %v1287 = vunpack.c.h.bf16 %v1043
          %v1288 = vunpack.c.l.bf16 %v1044
          %v1289 = vunpack.c.h.bf16 %v1044
          %v1290 = vunpack.c.l.bf16 %v1045
          %v1291 = vunpack.c.h.bf16 %v1045
          %v1292 = vunpack.c.l.bf16 %v1046
          %v1293 = vunpack.c.h.bf16 %v1046
          %v1294 = vunpack.c.l.bf16 %v1047
          %v1295 = vunpack.c.h.bf16 %v1047
          %v1296 = vunpack.c.l.bf16 %v1048
          %v1297 = vunpack.c.h.bf16 %v1048
          %v1298 = vunpack.c.l.bf16 %v1049
          %v1299 = vunpack.c.h.bf16 %v1049
          %v1300 = vunpack.c.l.bf16 %v1050
          %v1301 = vunpack.c.h.bf16 %v1050
          %v1302 = vunpack.c.l.bf16 %v1051
          %v1303 = vunpack.c.h.bf16 %v1051
          %v1304 = vunpack.c.l.bf16 %v1052
          %v1305 = vunpack.c.h.bf16 %v1052
          %v1306 = vunpack.c.l.bf16 %v1053
          %v1307 = vunpack.c.h.bf16 %v1053
          %v1308 = vunpack.c.l.bf16 %v1054
          %v1309 = vunpack.c.h.bf16 %v1054
          %v1310 = vunpack.c.l.bf16 %v1055
          %v1311 = vunpack.c.h.bf16 %v1055
          %v1312 = vunpack.c.l.bf16 %v1056
          %v1313 = vunpack.c.h.bf16 %v1056
          %v1314 = vunpack.c.l.bf16 %v1057
          %v1315 = vunpack.c.h.bf16 %v1057
          %v1316 = vunpack.c.l.bf16 %v1058
          %v1317 = vunpack.c.h.bf16 %v1058
          %v1318 = vunpack.c.l.bf16 %v1059
          %v1319 = vunpack.c.h.bf16 %v1059
          %v1320 = vunpack.c.l.bf16 %v1060
          %v1321 = vunpack.c.h.bf16 %v1060
          %v1322 = vunpack.c.l.bf16 %v1061
          %v1323 = vunpack.c.h.bf16 %v1061
          %v1324 = vunpack.c.l.bf16 %v1062
          %v1325 = vunpack.c.h.bf16 %v1062
          %v1326 = vunpack.c.l.bf16 %v1063
          %v1327 = vunpack.c.h.bf16 %v1063
          %v1328 = vunpack.c.l.bf16 %v1064
          %v1329 = vunpack.c.h.bf16 %v1064
          %v1330 = vunpack.c.l.bf16 %v1065
          %v1331 = vunpack.c.h.bf16 %v1065
          %v1332 = vunpack.c.l.bf16 %v1066
          %v1333 = vunpack.c.h.bf16 %v1066
          %v1334 = vunpack.c.l.bf16 %v1067
          %v1335 = vunpack.c.h.bf16 %v1067
          %v1336 = vunpack.c.l.bf16 %v1068
          %v1337 = vunpack.c.h.bf16 %v1068
          %v1338 = vunpack.c.l.bf16 %v1069
          %v1339 = vunpack.c.h.bf16 %v1069
          %v1340 = vunpack.c.l.bf16 %v1070
          %v1341 = vunpack.c.h.bf16 %v1070
          %v1342 = vunpack.c.l.bf16 %v1071
          %v1343 = vunpack.c.h.bf16 %v1071
          %v1344 = vunpack.c.l.bf16 %v1072
          %v1345 = vunpack.c.h.bf16 %v1072
          %v1346 = vunpack.c.l.bf16 %v1073
          %v1347 = vunpack.c.h.bf16 %v1073
          %v1348 = vunpack.c.l.bf16 %v1074
          %v1349 = vunpack.c.h.bf16 %v1074
          %v1350 = vunpack.c.l.bf16 %v1075
          %v1351 = vunpack.c.h.bf16 %v1075
          %v1352 = vunpack.c.l.bf16 %v1076
          %v1353 = vunpack.c.h.bf16 %v1076
          %v1354 = vunpack.c.l.bf16 %v1077
          %v1355 = vunpack.c.h.bf16 %v1077
          %v1356 = vunpack.c.l.bf16 %v1078
          %v1357 = vunpack.c.h.bf16 %v1078
          %v1358 = vunpack.c.l.bf16 %v1079
          %v1359 = vunpack.c.h.bf16 %v1079
          %v1360 = vunpack.c.l.bf16 %v1080
          %v1361 = vunpack.c.h.bf16 %v1080
          %v1362 = vunpack.c.l.bf16 %v1081
          %v1363 = vunpack.c.h.bf16 %v1081
          %v1364 = vunpack.c.l.bf16 %v1082
          %v1365 = vunpack.c.h.bf16 %v1082
          %v1366 = vunpack.c.l.bf16 %v1083
          %v1367 = vunpack.c.h.bf16 %v1083
          %v1368 = vunpack.c.l.bf16 %v1084
          %v1369 = vunpack.c.h.bf16 %v1084
          %v1370 = vunpack.c.l.bf16 %v1085
          %v1371 = vunpack.c.h.bf16 %v1085
          %v1372 = vunpack.c.l.bf16 %v1086
          %v1373 = vunpack.c.h.bf16 %v1086
          %v1374 = vunpack.c.l.bf16 %v1087
          %v1375 = vunpack.c.h.bf16 %v1087
          %v1376 = vunpack.c.l.bf16 %v1088
          %v1377 = vunpack.c.h.bf16 %v1088
          %v1378 = vunpack.c.l.bf16 %v1089
          %v1379 = vunpack.c.h.bf16 %v1089
          %v1380 = vunpack.c.l.bf16 %v1090
          %v1381 = vunpack.c.h.bf16 %v1090
          %v1382 = vunpack.c.l.bf16 %v1091
          %v1383 = vunpack.c.h.bf16 %v1091
          %v1384 = vunpack.c.l.bf16 %v1092
          %v1385 = vunpack.c.h.bf16 %v1092
          %v1386 = vunpack.c.l.bf16 %v1093
          %v1387 = vunpack.c.h.bf16 %v1093
          %v1388 = vunpack.c.l.bf16 %v1094
          %v1389 = vunpack.c.h.bf16 %v1094
          %v1390 = vunpack.c.l.bf16 %v1095
          %v1391 = vunpack.c.h.bf16 %v1095
          %v1392 = vunpack.c.l.bf16 %v1096
          %v1393 = vunpack.c.h.bf16 %v1096
          %v1394 = vunpack.c.l.bf16 %v1097
          %v1395 = vunpack.c.h.bf16 %v1097
          %v1396 = vunpack.c.l.bf16 %v1098
          %v1397 = vunpack.c.h.bf16 %v1098
          %v1398 = vunpack.c.l.bf16 %v1099
          %v1399 = vunpack.c.h.bf16 %v1099
          %v1400 = vunpack.c.l.bf16 %v1100
          %v1401 = vunpack.c.h.bf16 %v1100
          %v1402 = vunpack.c.l.bf16 %v1101
          %v1403 = vunpack.c.h.bf16 %v1101
          %v1404 = vunpack.c.l.bf16 %v1102
          %v1405 = vunpack.c.h.bf16 %v1102
          %v1406 = vunpack.c.l.bf16 %v1103
          %v1407 = vunpack.c.h.bf16 %v1103
          %v1408 = vunpack.c.l.bf16 %v1104
          %v1409 = vunpack.c.h.bf16 %v1104
          %v1410 = vunpack.c.l.bf16 %v1105
          %v1411 = vunpack.c.h.bf16 %v1105
          %v1412 = vunpack.c.l.bf16 %v1106
          %v1413 = vunpack.c.h.bf16 %v1106
          %v1414 = vunpack.c.l.bf16 %v1107
          %v1415 = vunpack.c.h.bf16 %v1107
          %v1416 = vunpack.c.l.bf16 %v1108
          %v1417 = vunpack.c.h.bf16 %v1108
          %v1418 = vunpack.c.l.bf16 %v1109
          %v1419 = vunpack.c.h.bf16 %v1109
          %v1420 = vunpack.c.l.bf16 %v1110
          %v1421 = vunpack.c.h.bf16 %v1110
          %v1422 = vunpack.c.l.bf16 %v1111
          %v1423 = vunpack.c.h.bf16 %v1111
          %v1424 = vunpack.c.l.bf16 %v1112
          %v1425 = vunpack.c.h.bf16 %v1112
          %v1426 = vunpack.c.l.bf16 %v1113
          %v1427 = vunpack.c.h.bf16 %v1113
          %v1428 = vunpack.c.l.bf16 %v1114
          %v1429 = vunpack.c.h.bf16 %v1114
          %v1430 = vunpack.c.l.bf16 %v1115
          %v1431 = vunpack.c.h.bf16 %v1115
          %v1432 = vunpack.c.l.bf16 %v1116
          %v1433 = vunpack.c.h.bf16 %v1116
          %v1434 = vunpack.c.l.bf16 %v1117
          %v1435 = vunpack.c.h.bf16 %v1117
          %v1436 = vunpack.c.l.bf16 %v1118
          %v1437 = vunpack.c.h.bf16 %v1118
          %v1438 = vunpack.c.l.bf16 %v1119
          %v1439 = vunpack.c.h.bf16 %v1119
          %v1440 = vunpack.c.l.bf16 %v1120
          %v1441 = vunpack.c.h.bf16 %v1120
          %v1442 = vunpack.c.l.bf16 %v1121
          %v1443 = vunpack.c.h.bf16 %v1121
          %v1444 = vunpack.c.l.bf16 %v1122
          %v1445 = vunpack.c.h.bf16 %v1122
          %v1446 = vunpack.c.l.bf16 %v1123
          %v1447 = vunpack.c.h.bf16 %v1123
          %v1448 = vunpack.c.l.bf16 %v1124
          %v1449 = vunpack.c.h.bf16 %v1124
          %v1450 = vunpack.c.l.bf16 %v1125
          %v1451 = vunpack.c.h.bf16 %v1125
          %v1452 = vunpack.c.l.bf16 %v1126
          %v1453 = vunpack.c.h.bf16 %v1126
          %v1454 = vunpack.c.l.bf16 %v1127
          %v1455 = vunpack.c.h.bf16 %v1127
          %v1456 = vunpack.c.l.bf16 %v1128
          %v1457 = vunpack.c.h.bf16 %v1128
          %v1458 = vunpack.c.l.bf16 %v1129
          %v1459 = vunpack.c.h.bf16 %v1129
          %v1460 = vunpack.c.l.bf16 %v1130
          %v1461 = vunpack.c.h.bf16 %v1130
          %v1462 = vunpack.c.l.bf16 %v1131
          %v1463 = vunpack.c.h.bf16 %v1131
          %v1464 = vunpack.c.l.bf16 %v1132
          %v1465 = vunpack.c.h.bf16 %v1132
          %v1466 = vunpack.c.l.bf16 %v1133
          %v1467 = vunpack.c.h.bf16 %v1133
          %v1468 = vunpack.c.l.bf16 %v1134
          %v1469 = vunpack.c.h.bf16 %v1134
          %v1470 = vunpack.c.l.bf16 %v1135
          %v1471 = vunpack.c.h.bf16 %v1135
          %v1472 = vunpack.c.l.bf16 %v1136
          %v1473 = vunpack.c.h.bf16 %v1136
          %v1474 = vunpack.c.l.bf16 %v1137
          %v1475 = vunpack.c.h.bf16 %v1137
          %v1476 = vunpack.c.l.bf16 %v1138
          %v1477 = vunpack.c.h.bf16 %v1138
          %v1478 = vunpack.c.l.bf16 %v1139
          %v1479 = vunpack.c.h.bf16 %v1139
          %v1480 = vunpack.c.l.bf16 %v1140
          %v1481 = vunpack.c.h.bf16 %v1140
          %v1482 = vunpack.c.l.bf16 %v1141
          %v1483 = vunpack.c.h.bf16 %v1141
          %v1484 = vunpack.c.l.bf16 %v1142
          %v1485 = vunpack.c.h.bf16 %v1142
          %v1486 = vunpack.c.l.bf16 %v1143
          %v1487 = vunpack.c.h.bf16 %v1143
          %v1488 = vunpack.c.l.bf16 %v1144
          %v1489 = vunpack.c.h.bf16 %v1144
          %v1490 = vunpack.c.l.bf16 %v1145
          %v1491 = vunpack.c.h.bf16 %v1145
          %v1492 = vunpack.c.l.bf16 %v1146
          %v1493 = vunpack.c.h.bf16 %v1146
          %v1494 = vunpack.c.l.bf16 %v1147
          %v1495 = vunpack.c.h.bf16 %v1147
          %v1496 = vunpack.c.l.bf16 %v1148
          %v1497 = vunpack.c.h.bf16 %v1148
          %v1498 = vunpack.c.l.bf16 %v1149
          %v1499 = vunpack.c.h.bf16 %v1149
          %v1500 = vunpack.c.l.bf16 %v1150
          %v1501 = vunpack.c.h.bf16 %v1150
          %v1502 = vunpack.c.l.bf16 %v1151
          %v1503 = vunpack.c.h.bf16 %v1151
          %v1504 = vunpack.c.l.bf16 %v1152
          %v1505 = vunpack.c.h.bf16 %v1152
          %v1506 = vunpack.c.l.bf16 %v1153
          %v1507 = vunpack.c.h.bf16 %v1153
          %v1508 = vunpack.c.l.bf16 %v1154
          %v1509 = vunpack.c.h.bf16 %v1154
          %v1510 = vunpack.c.l.bf16 %v1155
          %v1511 = vunpack.c.h.bf16 %v1155
          %v1512 = vunpack.c.l.bf16 %v1156
          %v1513 = vunpack.c.h.bf16 %v1156
          %v1514 = vunpack.c.l.bf16 %v1157
          %v1515 = vunpack.c.h.bf16 %v1157
          %v1516 = vunpack.c.l.bf16 %v1158
          %v1517 = vunpack.c.h.bf16 %v1158
          %v1518 = vunpack.c.l.bf16 %v1159
          %v1519 = vunpack.c.h.bf16 %v1159
          %v1520 = vunpack.c.l.bf16 %v1160
          %v1521 = vunpack.c.h.bf16 %v1160
          %v1522 = vunpack.c.l.bf16 %v1161
          %v1523 = vunpack.c.h.bf16 %v1161
          %v1524 = vunpack.c.l.bf16 %v1162
          %v1525 = vunpack.c.h.bf16 %v1162
          %v1526 = vunpack.c.l.bf16 %v1163
          %v1527 = vunpack.c.h.bf16 %v1163
          %v1528 = vunpack.c.l.bf16 %v1164
          %v1529 = vunpack.c.h.bf16 %v1164
          %v1530 = vunpack.c.l.bf16 %v1165
          %v1531 = vunpack.c.h.bf16 %v1165
          %v1532 = vunpack.c.l.bf16 %v1166
          %v1533 = vunpack.c.h.bf16 %v1166
          %v1534 = vunpack.c.l.bf16 %v1167
          %v1535 = vunpack.c.h.bf16 %v1167
          %v1536 = vunpack.c.l.bf16 %v1168
          %v1537 = vunpack.c.h.bf16 %v1168
          %v1538 = vunpack.c.l.bf16 %v1169
          %v1539 = vunpack.c.h.bf16 %v1169
          %v1540 = vunpack.c.l.bf16 %v1170
          %v1541 = vunpack.c.h.bf16 %v1170
          %v1542 = vunpack.c.l.bf16 %v1171
          %v1543 = vunpack.c.h.bf16 %v1171
          %v1544 = vunpack.c.l.bf16 %v1172
          %v1545 = vunpack.c.h.bf16 %v1172
          %v1546 = vunpack.c.l.bf16 %v1173
          %v1547 = vunpack.c.h.bf16 %v1173
          %v1548 = vunpack.c.l.bf16 %v1174
          %v1549 = vunpack.c.h.bf16 %v1174
          %v1550 = vunpack.c.l.bf16 %v1175
          %v1551 = vunpack.c.h.bf16 %v1175
          %v1552 = vunpack.c.l.bf16 %v1176
          %v1553 = vunpack.c.h.bf16 %v1176
          %v1554 = vunpack.c.l.bf16 %v1177
          %v1555 = vunpack.c.h.bf16 %v1177
          %v1556 = vunpack.c.l.bf16 %v1178
          %v1557 = vunpack.c.h.bf16 %v1178
          %v1558 = vunpack.c.l.bf16 %v1179
          %v1559 = vunpack.c.h.bf16 %v1179
          %v1560 = vunpack.c.l.bf16 %v1180
          %v1561 = vunpack.c.h.bf16 %v1180
          %v1562 = vunpack.c.l.bf16 %v1181
          %v1563 = vunpack.c.h.bf16 %v1181
          %v1564 = vunpack.c.l.bf16 %v1182
          %v1565 = vunpack.c.h.bf16 %v1182
          %v1566 = vunpack.c.l.bf16 %v1183
          %v1567 = vunpack.c.h.bf16 %v1183
          %v1568 = vunpack.c.l.bf16 %v1184
          %v1569 = vunpack.c.h.bf16 %v1184
          %v1570 = vunpack.c.l.bf16 %v1185
          %v1571 = vunpack.c.h.bf16 %v1185
          %v1572 = vunpack.c.l.bf16 %v1186
          %v1573 = vunpack.c.h.bf16 %v1186
          %v1574 = vunpack.c.l.bf16 %v1187
          %v1575 = vunpack.c.h.bf16 %v1187
          %v1576 = vunpack.c.l.bf16 %v1188
          %v1577 = vunpack.c.h.bf16 %v1188
          %v1578 = vunpack.c.l.bf16 %v1189
          %v1579 = vunpack.c.h.bf16 %v1189
          %v1580 = vunpack.c.l.bf16 %v1190
          %v1581 = vunpack.c.h.bf16 %v1190
          %v1582 = vunpack.c.l.bf16 %v1191
          %v1583 = vunpack.c.h.bf16 %v1191
          %v1584 = vld [vmem:[%s860] sm:$0xff]
          %v1585 = vld [vmem:[%s860 + $0x8] sm:$0xff]
          %v1586 = vld [vmem:[%s860 + $0x10] sm:$0xff]
          %v1587 = vld [vmem:[%s860 + $0x18] sm:$0xff]
          %v1588 = vld [vmem:[%s860 + $0x20] sm:$0xff]
          %v1589 = vld [vmem:[%s860 + $0x28] sm:$0xff]
          %v1590 = vld [vmem:[%s860 + $0x30] sm:$0xff]
          %v1591 = vld [vmem:[%s860 + $0x38] sm:$0xff]
          %v1592 = vld [vmem:[%s860 + $0x40] sm:$0xff]
          %v1593 = vld [vmem:[%s860 + $0x48] sm:$0xff]
          %v1594 = vld [vmem:[%s860 + $0x50] sm:$0xff]
          %v1595 = vld [vmem:[%s860 + $0x58] sm:$0xff]
          %v1596 = vld [vmem:[%s860 + $0x60] sm:$0xff]
          %v1597 = vld [vmem:[%s860 + $0x68] sm:$0xff]
          %v1598 = vld [vmem:[%s860 + $0x70] sm:$0xff]
          %v1599 = vld [vmem:[%s860 + $0x78] sm:$0xff]
          %v1600 = vld [vmem:[%s860 + $0x80] sm:$0xff]
          %v1601 = vld [vmem:[%s860 + $0x88] sm:$0xff]
          %v1602 = vld [vmem:[%s860 + $0x90] sm:$0xff]
          %v1603 = vld [vmem:[%s860 + $0x98] sm:$0xff]
          %v1604 = vld [vmem:[%s860 + $0xa0] sm:$0xff]
          %v1605 = vld [vmem:[%s860 + $0xa8] sm:$0xff]
          %v1606 = vld [vmem:[%s860 + $0xb0] sm:$0xff]
          %v1607 = vld [vmem:[%s860 + $0xb8] sm:$0xff]
          %v1608 = vld [vmem:[%s860 + $0xc0] sm:$0xff]
          %v1609 = vld [vmem:[%s860 + $0xc8] sm:$0xff]
          %v1610 = vld [vmem:[%s860 + $0xd0] sm:$0xff]
          %v1611 = vld [vmem:[%s860 + $0xd8] sm:$0xff]
          %v1612 = vld [vmem:[%s860 + $0xe0] sm:$0xff]
          %v1613 = vld [vmem:[%s860 + $0xe8] sm:$0xff]
          %v1614 = vld [vmem:[%s860 + $0xf0] sm:$0xff]
          %v1615 = vld [vmem:[%s860 + $0xf8] sm:$0xff]
          %v1616 = vld [vmem:[%s860 + $0x100] sm:$0xff]
          %v1617 = vld [vmem:[%s860 + $0x108] sm:$0xff]
          %v1618 = vld [vmem:[%s860 + $0x110] sm:$0xff]
          %v1619 = vld [vmem:[%s860 + $0x118] sm:$0xff]
          %v1620 = vld [vmem:[%s860 + $0x120] sm:$0xff]
          %v1621 = vld [vmem:[%s860 + $0x128] sm:$0xff]
          %v1622 = vld [vmem:[%s860 + $0x130] sm:$0xff]
          %v1623 = vld [vmem:[%s860 + $0x138] sm:$0xff]
          %v1624 = vld [vmem:[%s860 + $0x140] sm:$0xff]
          %v1625 = vld [vmem:[%s860 + $0x148] sm:$0xff]
          %v1626 = vld [vmem:[%s860 + $0x150] sm:$0xff]
          %v1627 = vld [vmem:[%s860 + $0x158] sm:$0xff]
          %v1628 = vld [vmem:[%s860 + $0x160] sm:$0xff]
          %v1629 = vld [vmem:[%s860 + $0x168] sm:$0xff]
          %v1630 = vld [vmem:[%s860 + $0x170] sm:$0xff]
          %v1631 = vld [vmem:[%s860 + $0x178] sm:$0xff]
          %v1632 = vld [vmem:[%s860 + $0x180] sm:$0xff]
          %v1633 = vld [vmem:[%s860 + $0x188] sm:$0xff]
          %v1634 = vld [vmem:[%s860 + $0x190] sm:$0xff]
          %v1635 = vld [vmem:[%s860 + $0x198] sm:$0xff]
          %v1636 = vld [vmem:[%s860 + $0x1a0] sm:$0xff]
          %v1637 = vld [vmem:[%s860 + $0x1a8] sm:$0xff]
          %v1638 = vld [vmem:[%s860 + $0x1b0] sm:$0xff]
          %v1639 = vld [vmem:[%s860 + $0x1b8] sm:$0xff]
          %v1640 = vld [vmem:[%s860 + $0x1c0] sm:$0xff]
          %v1641 = vld [vmem:[%s860 + $0x1c8] sm:$0xff]
          %v1642 = vld [vmem:[%s860 + $0x1d0] sm:$0xff]
          %v1643 = vld [vmem:[%s860 + $0x1d8] sm:$0xff]
          %v1644 = vld [vmem:[%s860 + $0x1e0] sm:$0xff]
          %v1645 = vld [vmem:[%s860 + $0x1e8] sm:$0xff]
          %v1646 = vld [vmem:[%s860 + $0x1f0] sm:$0xff]
          %v1647 = vld [vmem:[%s860 + $0x1f8] sm:$0xff]
          %v1648 = vld [vmem:[%s860 + $0x200] sm:$0xff]
          %v1649 = vld [vmem:[%s860 + $0x208] sm:$0xff]
          %v1650 = vld [vmem:[%s860 + $0x210] sm:$0xff]
          %v1651 = vld [vmem:[%s860 + $0x218] sm:$0xff]
          %v1652 = vld [vmem:[%s860 + $0x220] sm:$0xff]
          %v1653 = vld [vmem:[%s860 + $0x228] sm:$0xff]
          %v1654 = vld [vmem:[%s860 + $0x230] sm:$0xff]
          %v1655 = vld [vmem:[%s860 + $0x238] sm:$0xff]
          %v1656 = vld [vmem:[%s860 + $0x240] sm:$0xff]
          %v1657 = vld [vmem:[%s860 + $0x248] sm:$0xff]
          %v1658 = vld [vmem:[%s860 + $0x250] sm:$0xff]
          %v1659 = vld [vmem:[%s860 + $0x258] sm:$0xff]
          %v1660 = vld [vmem:[%s860 + $0x260] sm:$0xff]
          %v1661 = vld [vmem:[%s860 + $0x268] sm:$0xff]
          %v1662 = vld [vmem:[%s860 + $0x270] sm:$0xff]
          %v1663 = vld [vmem:[%s860 + $0x278] sm:$0xff]
          %v1664 = vld [vmem:[%s860 + $0x280] sm:$0xff]
          %v1665 = vld [vmem:[%s860 + $0x288] sm:$0xff]
          %v1666 = vld [vmem:[%s860 + $0x290] sm:$0xff]
          %v1667 = vld [vmem:[%s860 + $0x298] sm:$0xff]
          %v1668 = vld [vmem:[%s860 + $0x2a0] sm:$0xff]
          %v1669 = vld [vmem:[%s860 + $0x2a8] sm:$0xff]
          %v1670 = vld [vmem:[%s860 + $0x2b0] sm:$0xff]
          %v1671 = vld [vmem:[%s860 + $0x2b8] sm:$0xff]
          %v1672 = vld [vmem:[%s860 + $0x2c0] sm:$0xff]
          %v1673 = vld [vmem:[%s860 + $0x2c8] sm:$0xff]
          %v1674 = vld [vmem:[%s860 + $0x2d0] sm:$0xff]
          %v1675 = vld [vmem:[%s860 + $0x2d8] sm:$0xff]
          %v1676 = vld [vmem:[%s860 + $0x2e0] sm:$0xff]
          %v1677 = vld [vmem:[%s860 + $0x2e8] sm:$0xff]
          %v1678 = vld [vmem:[%s860 + $0x2f0] sm:$0xff]
          %v1679 = vld [vmem:[%s860 + $0x2f8] sm:$0xff]
          %v1680 = vld [vmem:[%s860 + $0x300] sm:$0xff]
          %v1681 = vld [vmem:[%s860 + $0x308] sm:$0xff]
          %v1682 = vld [vmem:[%s860 + $0x310] sm:$0xff]
          %v1683 = vld [vmem:[%s860 + $0x318] sm:$0xff]
          %v1684 = vld [vmem:[%s860 + $0x320] sm:$0xff]
          %v1685 = vld [vmem:[%s860 + $0x328] sm:$0xff]
          %v1686 = vld [vmem:[%s860 + $0x330] sm:$0xff]
          %v1687 = vld [vmem:[%s860 + $0x338] sm:$0xff]
          %v1688 = vld [vmem:[%s860 + $0x340] sm:$0xff]
          %v1689 = vld [vmem:[%s860 + $0x348] sm:$0xff]
          %v1690 = vld [vmem:[%s860 + $0x350] sm:$0xff]
          %v1691 = vld [vmem:[%s860 + $0x358] sm:$0xff]
          %v1692 = vld [vmem:[%s860 + $0x360] sm:$0xff]
          %v1693 = vld [vmem:[%s860 + $0x368] sm:$0xff]
          %v1694 = vld [vmem:[%s860 + $0x370] sm:$0xff]
          %v1695 = vld [vmem:[%s860 + $0x378] sm:$0xff]
          %v1696 = vld [vmem:[%s860 + $0x380] sm:$0xff]
          %v1697 = vld [vmem:[%s860 + $0x388] sm:$0xff]
          %v1698 = vld [vmem:[%s860 + $0x390] sm:$0xff]
          %v1699 = vld [vmem:[%s860 + $0x398] sm:$0xff]
          %v1700 = vld [vmem:[%s860 + $0x3a0] sm:$0xff]
          %v1701 = vld [vmem:[%s860 + $0x3a8] sm:$0xff]
          %v1702 = vld [vmem:[%s860 + $0x3b0] sm:$0xff]
          %v1703 = vld [vmem:[%s860 + $0x3b8] sm:$0xff]
          %v1704 = vld [vmem:[%s860 + $0x3c0] sm:$0xff]
          %v1705 = vld [vmem:[%s860 + $0x3c8] sm:$0xff]
          %v1706 = vld [vmem:[%s860 + $0x3d0] sm:$0xff]
          %v1707 = vld [vmem:[%s860 + $0x3d8] sm:$0xff]
          %v1708 = vld [vmem:[%s860 + $0x3e0] sm:$0xff]
          %v1709 = vld [vmem:[%s860 + $0x3e8] sm:$0xff]
          %v1710 = vld [vmem:[%s860 + $0x3f0] sm:$0xff]
          %v1711 = vld [vmem:[%s860 + $0x3f8] sm:$0xff]
          %v1712 = vld [vmem:[%s860 + $0x400] sm:$0xff]
          %v1713 = vld [vmem:[%s860 + $0x408] sm:$0xff]
          %v1714 = vld [vmem:[%s860 + $0x410] sm:$0xff]
          %v1715 = vld [vmem:[%s860 + $0x418] sm:$0xff]
          %v1716 = vld [vmem:[%s860 + $0x420] sm:$0xff]
          %v1717 = vld [vmem:[%s860 + $0x428] sm:$0xff]
          %v1718 = vld [vmem:[%s860 + $0x430] sm:$0xff]
          %v1719 = vld [vmem:[%s860 + $0x438] sm:$0xff]
          %v1720 = vld [vmem:[%s860 + $0x440] sm:$0xff]
          %v1721 = vld [vmem:[%s860 + $0x448] sm:$0xff]
          %v1722 = vld [vmem:[%s860 + $0x450] sm:$0xff]
          %v1723 = vld [vmem:[%s860 + $0x458] sm:$0xff]
          %v1724 = vld [vmem:[%s860 + $0x460] sm:$0xff]
          %v1725 = vld [vmem:[%s860 + $0x468] sm:$0xff]
          %v1726 = vld [vmem:[%s860 + $0x470] sm:$0xff]
          %v1727 = vld [vmem:[%s860 + $0x478] sm:$0xff]
          %v1728 = vld [vmem:[%s860 + $0x480] sm:$0xff]
          %v1729 = vld [vmem:[%s860 + $0x488] sm:$0xff]
          %v1730 = vld [vmem:[%s860 + $0x490] sm:$0xff]
          %v1731 = vld [vmem:[%s860 + $0x498] sm:$0xff]
          %v1732 = vld [vmem:[%s860 + $0x4a0] sm:$0xff]
          %v1733 = vld [vmem:[%s860 + $0x4a8] sm:$0xff]
          %v1734 = vld [vmem:[%s860 + $0x4b0] sm:$0xff]
          %v1735 = vld [vmem:[%s860 + $0x4b8] sm:$0xff]
          %v1736 = vld [vmem:[%s860 + $0x4c0] sm:$0xff]
          %v1737 = vld [vmem:[%s860 + $0x4c8] sm:$0xff]
          %v1738 = vld [vmem:[%s860 + $0x4d0] sm:$0xff]
          %v1739 = vld [vmem:[%s860 + $0x4d8] sm:$0xff]
          %v1740 = vld [vmem:[%s860 + $0x4e0] sm:$0xff]
          %v1741 = vld [vmem:[%s860 + $0x4e8] sm:$0xff]
          %v1742 = vld [vmem:[%s860 + $0x4f0] sm:$0xff]
          %v1743 = vld [vmem:[%s860 + $0x4f8] sm:$0xff]
          %v1744 = vld [vmem:[%s860 + $0x500] sm:$0xff]
          %v1745 = vld [vmem:[%s860 + $0x508] sm:$0xff]
          %v1746 = vld [vmem:[%s860 + $0x510] sm:$0xff]
          %v1747 = vld [vmem:[%s860 + $0x518] sm:$0xff]
          %v1748 = vld [vmem:[%s860 + $0x520] sm:$0xff]
          %v1749 = vld [vmem:[%s860 + $0x528] sm:$0xff]
          %v1750 = vld [vmem:[%s860 + $0x530] sm:$0xff]
          %v1751 = vld [vmem:[%s860 + $0x538] sm:$0xff]
          %v1752 = vld [vmem:[%s860 + $0x540] sm:$0xff]
          %v1753 = vld [vmem:[%s860 + $0x548] sm:$0xff]
          %v1754 = vld [vmem:[%s860 + $0x550] sm:$0xff]
          %v1755 = vld [vmem:[%s860 + $0x558] sm:$0xff]
          %v1756 = vld [vmem:[%s860 + $0x560] sm:$0xff]
          %v1757 = vld [vmem:[%s860 + $0x568] sm:$0xff]
          %v1758 = vld [vmem:[%s860 + $0x570] sm:$0xff]
          %v1759 = vld [vmem:[%s860 + $0x578] sm:$0xff]
          %v1760 = vld [vmem:[%s860 + $0x580] sm:$0xff]
          %v1761 = vld [vmem:[%s860 + $0x588] sm:$0xff]
          %v1762 = vld [vmem:[%s860 + $0x590] sm:$0xff]
          %v1763 = vld [vmem:[%s860 + $0x598] sm:$0xff]
          %v1764 = vld [vmem:[%s860 + $0x5a0] sm:$0xff]
          %v1765 = vld [vmem:[%s860 + $0x5a8] sm:$0xff]
          %v1766 = vld [vmem:[%s860 + $0x5b0] sm:$0xff]
          %v1767 = vld [vmem:[%s860 + $0x5b8] sm:$0xff]
          %v1768 = vld [vmem:[%s860 + $0x5c0] sm:$0xff]
          %v1769 = vld [vmem:[%s860 + $0x5c8] sm:$0xff]
          %v1770 = vld [vmem:[%s860 + $0x5d0] sm:$0xff]
          %v1771 = vld [vmem:[%s860 + $0x5d8] sm:$0xff]
          %v1772 = vld [vmem:[%s860 + $0x5e0] sm:$0xff]
          %v1773 = vld [vmem:[%s860 + $0x5e8] sm:$0xff]
          %v1774 = vld [vmem:[%s860 + $0x5f0] sm:$0xff]
          %v1775 = vld [vmem:[%s860 + $0x5f8] sm:$0xff]
          %v1776 = vld [vmem:[%s860 + $0x600] sm:$0xff]
          %v1777 = vld [vmem:[%s860 + $0x608] sm:$0xff]
          %v1778 = vld [vmem:[%s860 + $0x610] sm:$0xff]
          %v1779 = vld [vmem:[%s860 + $0x618] sm:$0xff]
          %v1780 = vunpack.c.l.bf16 %v1584
          %v1781 = vunpack.c.h.bf16 %v1584
          %v1782 = vunpack.c.l.bf16 %v1585
          %v1783 = vunpack.c.h.bf16 %v1585
          %v1784 = vunpack.c.l.bf16 %v1586
          %v1785 = vunpack.c.h.bf16 %v1586
          %v1786 = vunpack.c.l.bf16 %v1587
          %v1787 = vunpack.c.h.bf16 %v1587
          %v1788 = vunpack.c.l.bf16 %v1588
          %v1789 = vunpack.c.h.bf16 %v1588
          %v1790 = vunpack.c.l.bf16 %v1589
          %v1791 = vunpack.c.h.bf16 %v1589
          %v1792 = vunpack.c.l.bf16 %v1590
          %v1793 = vunpack.c.h.bf16 %v1590
          %v1794 = vunpack.c.l.bf16 %v1591
          %v1795 = vunpack.c.h.bf16 %v1591
          %v1796 = vunpack.c.l.bf16 %v1592
          %v1797 = vunpack.c.h.bf16 %v1592
          %v1798 = vunpack.c.l.bf16 %v1593
          %v1799 = vunpack.c.h.bf16 %v1593
          %v1800 = vunpack.c.l.bf16 %v1594
          %v1801 = vunpack.c.h.bf16 %v1594
          %v1802 = vunpack.c.l.bf16 %v1595
          %v1803 = vunpack.c.h.bf16 %v1595
          %v1804 = vunpack.c.l.bf16 %v1596
          %v1805 = vunpack.c.h.bf16 %v1596
          %v1806 = vunpack.c.l.bf16 %v1597
          %v1807 = vunpack.c.h.bf16 %v1597
          %v1808 = vunpack.c.l.bf16 %v1598
          %v1809 = vunpack.c.h.bf16 %v1598
          %v1810 = vunpack.c.l.bf16 %v1599
          %v1811 = vunpack.c.h.bf16 %v1599
          %v1812 = vunpack.c.l.bf16 %v1600
          %v1813 = vunpack.c.h.bf16 %v1600
          %v1814 = vunpack.c.l.bf16 %v1601
          %v1815 = vunpack.c.h.bf16 %v1601
          %v1816 = vunpack.c.l.bf16 %v1602
          %v1817 = vunpack.c.h.bf16 %v1602
          %v1818 = vunpack.c.l.bf16 %v1603
          %v1819 = vunpack.c.h.bf16 %v1603
          %v1820 = vunpack.c.l.bf16 %v1604
          %v1821 = vunpack.c.h.bf16 %v1604
          %v1822 = vunpack.c.l.bf16 %v1605
          %v1823 = vunpack.c.h.bf16 %v1605
          %v1824 = vunpack.c.l.bf16 %v1606
          %v1825 = vunpack.c.h.bf16 %v1606
          %v1826 = vunpack.c.l.bf16 %v1607
          %v1827 = vunpack.c.h.bf16 %v1607
          %v1828 = vunpack.c.l.bf16 %v1608
          %v1829 = vunpack.c.h.bf16 %v1608
          %v1830 = vunpack.c.l.bf16 %v1609
          %v1831 = vunpack.c.h.bf16 %v1609
          %v1832 = vunpack.c.l.bf16 %v1610
          %v1833 = vunpack.c.h.bf16 %v1610
          %v1834 = vunpack.c.l.bf16 %v1611
          %v1835 = vunpack.c.h.bf16 %v1611
          %v1836 = vunpack.c.l.bf16 %v1612
          %v1837 = vunpack.c.h.bf16 %v1612
          %v1838 = vunpack.c.l.bf16 %v1613
          %v1839 = vunpack.c.h.bf16 %v1613
          %v1840 = vunpack.c.l.bf16 %v1614
          %v1841 = vunpack.c.h.bf16 %v1614
          %v1842 = vunpack.c.l.bf16 %v1615
          %v1843 = vunpack.c.h.bf16 %v1615
          %v1844 = vunpack.c.l.bf16 %v1616
          %v1845 = vunpack.c.h.bf16 %v1616
          %v1846 = vunpack.c.l.bf16 %v1617
          %v1847 = vunpack.c.h.bf16 %v1617
          %v1848 = vunpack.c.l.bf16 %v1618
          %v1849 = vunpack.c.h.bf16 %v1618
          %v1850 = vunpack.c.l.bf16 %v1619
          %v1851 = vunpack.c.h.bf16 %v1619
          %v1852 = vunpack.c.l.bf16 %v1620
          %v1853 = vunpack.c.h.bf16 %v1620
          %v1854 = vunpack.c.l.bf16 %v1621
          %v1855 = vunpack.c.h.bf16 %v1621
          %v1856 = vunpack.c.l.bf16 %v1622
          %v1857 = vunpack.c.h.bf16 %v1622
          %v1858 = vunpack.c.l.bf16 %v1623
          %v1859 = vunpack.c.h.bf16 %v1623
          %v1860 = vunpack.c.l.bf16 %v1624
          %v1861 = vunpack.c.h.bf16 %v1624
          %v1862 = vunpack.c.l.bf16 %v1625
          %v1863 = vunpack.c.h.bf16 %v1625
          %v1864 = vunpack.c.l.bf16 %v1626
          %v1865 = vunpack.c.h.bf16 %v1626
          %v1866 = vunpack.c.l.bf16 %v1627
          %v1867 = vunpack.c.h.bf16 %v1627
          %v1868 = vunpack.c.l.bf16 %v1628
          %v1869 = vunpack.c.h.bf16 %v1628
          %v1870 = vunpack.c.l.bf16 %v1629
          %v1871 = vunpack.c.h.bf16 %v1629
          %v1872 = vunpack.c.l.bf16 %v1630
          %v1873 = vunpack.c.h.bf16 %v1630
          %v1874 = vunpack.c.l.bf16 %v1631
          %v1875 = vunpack.c.h.bf16 %v1631
          %v1876 = vunpack.c.l.bf16 %v1632
          %v1877 = vunpack.c.h.bf16 %v1632
          %v1878 = vunpack.c.l.bf16 %v1633
          %v1879 = vunpack.c.h.bf16 %v1633
          %v1880 = vunpack.c.l.bf16 %v1634
          %v1881 = vunpack.c.h.bf16 %v1634
          %v1882 = vunpack.c.l.bf16 %v1635
          %v1883 = vunpack.c.h.bf16 %v1635
          %v1884 = vunpack.c.l.bf16 %v1636
          %v1885 = vunpack.c.h.bf16 %v1636
          %v1886 = vunpack.c.l.bf16 %v1637
          %v1887 = vunpack.c.h.bf16 %v1637
          %v1888 = vunpack.c.l.bf16 %v1638
          %v1889 = vunpack.c.h.bf16 %v1638
          %v1890 = vunpack.c.l.bf16 %v1639
          %v1891 = vunpack.c.h.bf16 %v1639
          %v1892 = vunpack.c.l.bf16 %v1640
          %v1893 = vunpack.c.h.bf16 %v1640
          %v1894 = vunpack.c.l.bf16 %v1641
          %v1895 = vunpack.c.h.bf16 %v1641
          %v1896 = vunpack.c.l.bf16 %v1642
          %v1897 = vunpack.c.h.bf16 %v1642
          %v1898 = vunpack.c.l.bf16 %v1643
          %v1899 = vunpack.c.h.bf16 %v1643
          %v1900 = vunpack.c.l.bf16 %v1644
          %v1901 = vunpack.c.h.bf16 %v1644
          %v1902 = vunpack.c.l.bf16 %v1645
          %v1903 = vunpack.c.h.bf16 %v1645
          %v1904 = vunpack.c.l.bf16 %v1646
          %v1905 = vunpack.c.h.bf16 %v1646
          %v1906 = vunpack.c.l.bf16 %v1647
          %v1907 = vunpack.c.h.bf16 %v1647
          %v1908 = vunpack.c.l.bf16 %v1648
          %v1909 = vunpack.c.h.bf16 %v1648
          %v1910 = vunpack.c.l.bf16 %v1649
          %v1911 = vunpack.c.h.bf16 %v1649
          %v1912 = vunpack.c.l.bf16 %v1650
          %v1913 = vunpack.c.h.bf16 %v1650
          %v1914 = vunpack.c.l.bf16 %v1651
          %v1915 = vunpack.c.h.bf16 %v1651
          %v1916 = vunpack.c.l.bf16 %v1652
          %v1917 = vunpack.c.h.bf16 %v1652
          %v1918 = vunpack.c.l.bf16 %v1653
          %v1919 = vunpack.c.h.bf16 %v1653
          %v1920 = vunpack.c.l.bf16 %v1654
          %v1921 = vunpack.c.h.bf16 %v1654
          %v1922 = vunpack.c.l.bf16 %v1655
          %v1923 = vunpack.c.h.bf16 %v1655
          %v1924 = vunpack.c.l.bf16 %v1656
          %v1925 = vunpack.c.h.bf16 %v1656
          %v1926 = vunpack.c.l.bf16 %v1657
          %v1927 = vunpack.c.h.bf16 %v1657
          %v1928 = vunpack.c.l.bf16 %v1658
          %v1929 = vunpack.c.h.bf16 %v1658
          %v1930 = vunpack.c.l.bf16 %v1659
          %v1931 = vunpack.c.h.bf16 %v1659
          %v1932 = vunpack.c.l.bf16 %v1660
          %v1933 = vunpack.c.h.bf16 %v1660
          %v1934 = vunpack.c.l.bf16 %v1661
          %v1935 = vunpack.c.h.bf16 %v1661
          %v1936 = vunpack.c.l.bf16 %v1662
          %v1937 = vunpack.c.h.bf16 %v1662
          %v1938 = vunpack.c.l.bf16 %v1663
          %v1939 = vunpack.c.h.bf16 %v1663
          %v1940 = vunpack.c.l.bf16 %v1664
          %v1941 = vunpack.c.h.bf16 %v1664
          %v1942 = vunpack.c.l.bf16 %v1665
          %v1943 = vunpack.c.h.bf16 %v1665
          %v1944 = vunpack.c.l.bf16 %v1666
          %v1945 = vunpack.c.h.bf16 %v1666
          %v1946 = vunpack.c.l.bf16 %v1667
          %v1947 = vunpack.c.h.bf16 %v1667
          %v1948 = vunpack.c.l.bf16 %v1668
          %v1949 = vunpack.c.h.bf16 %v1668
          %v1950 = vunpack.c.l.bf16 %v1669
          %v1951 = vunpack.c.h.bf16 %v1669
          %v1952 = vunpack.c.l.bf16 %v1670
          %v1953 = vunpack.c.h.bf16 %v1670
          %v1954 = vunpack.c.l.bf16 %v1671
          %v1955 = vunpack.c.h.bf16 %v1671
          %v1956 = vunpack.c.l.bf16 %v1672
          %v1957 = vunpack.c.h.bf16 %v1672
          %v1958 = vunpack.c.l.bf16 %v1673
          %v1959 = vunpack.c.h.bf16 %v1673
          %v1960 = vunpack.c.l.bf16 %v1674
          %v1961 = vunpack.c.h.bf16 %v1674
          %v1962 = vunpack.c.l.bf16 %v1675
          %v1963 = vunpack.c.h.bf16 %v1675
          %v1964 = vunpack.c.l.bf16 %v1676
          %v1965 = vunpack.c.h.bf16 %v1676
          %v1966 = vunpack.c.l.bf16 %v1677
          %v1967 = vunpack.c.h.bf16 %v1677
          %v1968 = vunpack.c.l.bf16 %v1678
          %v1969 = vunpack.c.h.bf16 %v1678
          %v1970 = vunpack.c.l.bf16 %v1679
          %v1971 = vunpack.c.h.bf16 %v1679
          %v1972 = vunpack.c.l.bf16 %v1680
          %v1973 = vunpack.c.h.bf16 %v1680
          %v1974 = vunpack.c.l.bf16 %v1681
          %v1975 = vunpack.c.h.bf16 %v1681
          %v1976 = vunpack.c.l.bf16 %v1682
          %v1977 = vunpack.c.h.bf16 %v1682
          %v1978 = vunpack.c.l.bf16 %v1683
          %v1979 = vunpack.c.h.bf16 %v1683
          %v1980 = vunpack.c.l.bf16 %v1684
          %v1981 = vunpack.c.h.bf16 %v1684
          %v1982 = vunpack.c.l.bf16 %v1685
          %v1983 = vunpack.c.h.bf16 %v1685
          %v1984 = vunpack.c.l.bf16 %v1686
          %v1985 = vunpack.c.h.bf16 %v1686
          %v1986 = vunpack.c.l.bf16 %v1687
          %v1987 = vunpack.c.h.bf16 %v1687
          %v1988 = vunpack.c.l.bf16 %v1688
          %v1989 = vunpack.c.h.bf16 %v1688
          %v1990 = vunpack.c.l.bf16 %v1689
          %v1991 = vunpack.c.h.bf16 %v1689
          %v1992 = vunpack.c.l.bf16 %v1690
          %v1993 = vunpack.c.h.bf16 %v1690
          %v1994 = vunpack.c.l.bf16 %v1691
          %v1995 = vunpack.c.h.bf16 %v1691
          %v1996 = vunpack.c.l.bf16 %v1692
          %v1997 = vunpack.c.h.bf16 %v1692
          %v1998 = vunpack.c.l.bf16 %v1693
          %v1999 = vunpack.c.h.bf16 %v1693
          %v2000 = vunpack.c.l.bf16 %v1694
          %v2001 = vunpack.c.h.bf16 %v1694
          %v2002 = vunpack.c.l.bf16 %v1695
          %v2003 = vunpack.c.h.bf16 %v1695
          %v2004 = vunpack.c.l.bf16 %v1696
          %v2005 = vunpack.c.h.bf16 %v1696
          %v2006 = vunpack.c.l.bf16 %v1697
          %v2007 = vunpack.c.h.bf16 %v1697
          %v2008 = vunpack.c.l.bf16 %v1698
          %v2009 = vunpack.c.h.bf16 %v1698
          %v2010 = vunpack.c.l.bf16 %v1699
          %v2011 = vunpack.c.h.bf16 %v1699
          %v2012 = vunpack.c.l.bf16 %v1700
          %v2013 = vunpack.c.h.bf16 %v1700
          %v2014 = vunpack.c.l.bf16 %v1701
          %v2015 = vunpack.c.h.bf16 %v1701
          %v2016 = vunpack.c.l.bf16 %v1702
          %v2017 = vunpack.c.h.bf16 %v1702
          %v2018 = vunpack.c.l.bf16 %v1703
          %v2019 = vunpack.c.h.bf16 %v1703
          %v2020 = vunpack.c.l.bf16 %v1704
          %v2021 = vunpack.c.h.bf16 %v1704
          %v2022 = vunpack.c.l.bf16 %v1705
          %v2023 = vunpack.c.h.bf16 %v1705
          %v2024 = vunpack.c.l.bf16 %v1706
          %v2025 = vunpack.c.h.bf16 %v1706
          %v2026 = vunpack.c.l.bf16 %v1707
          %v2027 = vunpack.c.h.bf16 %v1707
          %v2028 = vunpack.c.l.bf16 %v1708
          %v2029 = vunpack.c.h.bf16 %v1708
          %v2030 = vunpack.c.l.bf16 %v1709
          %v2031 = vunpack.c.h.bf16 %v1709
          %v2032 = vunpack.c.l.bf16 %v1710
          %v2033 = vunpack.c.h.bf16 %v1710
          %v2034 = vunpack.c.l.bf16 %v1711
          %v2035 = vunpack.c.h.bf16 %v1711
          %v2036 = vunpack.c.l.bf16 %v1712
          %v2037 = vunpack.c.h.bf16 %v1712
          %v2038 = vunpack.c.l.bf16 %v1713
          %v2039 = vunpack.c.h.bf16 %v1713
          %v2040 = vunpack.c.l.bf16 %v1714
          %v2041 = vunpack.c.h.bf16 %v1714
          %v2042 = vunpack.c.l.bf16 %v1715
          %v2043 = vunpack.c.h.bf16 %v1715
          %v2044 = vunpack.c.l.bf16 %v1716
          %v2045 = vunpack.c.h.bf16 %v1716
          %v2046 = vunpack.c.l.bf16 %v1717
          %v2047 = vunpack.c.h.bf16 %v1717
          %v2048 = vunpack.c.l.bf16 %v1718
          %v2049 = vunpack.c.h.bf16 %v1718
          %v2050 = vunpack.c.l.bf16 %v1719
          %v2051 = vunpack.c.h.bf16 %v1719
          %v2052 = vunpack.c.l.bf16 %v1720
          %v2053 = vunpack.c.h.bf16 %v1720
          %v2054 = vunpack.c.l.bf16 %v1721
          %v2055 = vunpack.c.h.bf16 %v1721
          %v2056 = vunpack.c.l.bf16 %v1722
          %v2057 = vunpack.c.h.bf16 %v1722
          %v2058 = vunpack.c.l.bf16 %v1723
          %v2059 = vunpack.c.h.bf16 %v1723
          %v2060 = vunpack.c.l.bf16 %v1724
          %v2061 = vunpack.c.h.bf16 %v1724
          %v2062 = vunpack.c.l.bf16 %v1725
          %v2063 = vunpack.c.h.bf16 %v1725
          %v2064 = vunpack.c.l.bf16 %v1726
          %v2065 = vunpack.c.h.bf16 %v1726
          %v2066 = vunpack.c.l.bf16 %v1727
          %v2067 = vunpack.c.h.bf16 %v1727
          %v2068 = vunpack.c.l.bf16 %v1728
          %v2069 = vunpack.c.h.bf16 %v1728
          %v2070 = vunpack.c.l.bf16 %v1729
          %v2071 = vunpack.c.h.bf16 %v1729
          %v2072 = vunpack.c.l.bf16 %v1730
          %v2073 = vunpack.c.h.bf16 %v1730
          %v2074 = vunpack.c.l.bf16 %v1731
          %v2075 = vunpack.c.h.bf16 %v1731
          %v2076 = vunpack.c.l.bf16 %v1732
          %v2077 = vunpack.c.h.bf16 %v1732
          %v2078 = vunpack.c.l.bf16 %v1733
          %v2079 = vunpack.c.h.bf16 %v1733
          %v2080 = vunpack.c.l.bf16 %v1734
          %v2081 = vunpack.c.h.bf16 %v1734
          %v2082 = vunpack.c.l.bf16 %v1735
          %v2083 = vunpack.c.h.bf16 %v1735
          %v2084 = vunpack.c.l.bf16 %v1736
          %v2085 = vunpack.c.h.bf16 %v1736
          %v2086 = vunpack.c.l.bf16 %v1737
          %v2087 = vunpack.c.h.bf16 %v1737
          %v2088 = vunpack.c.l.bf16 %v1738
          %v2089 = vunpack.c.h.bf16 %v1738
          %v2090 = vunpack.c.l.bf16 %v1739
          %v2091 = vunpack.c.h.bf16 %v1739
          %v2092 = vunpack.c.l.bf16 %v1740
          %v2093 = vunpack.c.h.bf16 %v1740
          %v2094 = vunpack.c.l.bf16 %v1741
          %v2095 = vunpack.c.h.bf16 %v1741
          %v2096 = vunpack.c.l.bf16 %v1742
          %v2097 = vunpack.c.h.bf16 %v1742
          %v2098 = vunpack.c.l.bf16 %v1743
          %v2099 = vunpack.c.h.bf16 %v1743
          %v2100 = vunpack.c.l.bf16 %v1744
          %v2101 = vunpack.c.h.bf16 %v1744
          %v2102 = vunpack.c.l.bf16 %v1745
          %v2103 = vunpack.c.h.bf16 %v1745
          %v2104 = vunpack.c.l.bf16 %v1746
          %v2105 = vunpack.c.h.bf16 %v1746
          %v2106 = vunpack.c.l.bf16 %v1747
          %v2107 = vunpack.c.h.bf16 %v1747
          %v2108 = vunpack.c.l.bf16 %v1748
          %v2109 = vunpack.c.h.bf16 %v1748
          %v2110 = vunpack.c.l.bf16 %v1749
          %v2111 = vunpack.c.h.bf16 %v1749
          %v2112 = vunpack.c.l.bf16 %v1750
          %v2113 = vunpack.c.h.bf16 %v1750
          %v2114 = vunpack.c.l.bf16 %v1751
          %v2115 = vunpack.c.h.bf16 %v1751
          %v2116 = vunpack.c.l.bf16 %v1752
          %v2117 = vunpack.c.h.bf16 %v1752
          %v2118 = vunpack.c.l.bf16 %v1753
          %v2119 = vunpack.c.h.bf16 %v1753
          %v2120 = vunpack.c.l.bf16 %v1754
          %v2121 = vunpack.c.h.bf16 %v1754
          %v2122 = vunpack.c.l.bf16 %v1755
          %v2123 = vunpack.c.h.bf16 %v1755
          %v2124 = vunpack.c.l.bf16 %v1756
          %v2125 = vunpack.c.h.bf16 %v1756
          %v2126 = vunpack.c.l.bf16 %v1757
          %v2127 = vunpack.c.h.bf16 %v1757
          %v2128 = vunpack.c.l.bf16 %v1758
          %v2129 = vunpack.c.h.bf16 %v1758
          %v2130 = vunpack.c.l.bf16 %v1759
          %v2131 = vunpack.c.h.bf16 %v1759
          %v2132 = vunpack.c.l.bf16 %v1760
          %v2133 = vunpack.c.h.bf16 %v1760
          %v2134 = vunpack.c.l.bf16 %v1761
          %v2135 = vunpack.c.h.bf16 %v1761
          %v2136 = vunpack.c.l.bf16 %v1762
          %v2137 = vunpack.c.h.bf16 %v1762
          %v2138 = vunpack.c.l.bf16 %v1763
          %v2139 = vunpack.c.h.bf16 %v1763
          %v2140 = vunpack.c.l.bf16 %v1764
          %v2141 = vunpack.c.h.bf16 %v1764
          %v2142 = vunpack.c.l.bf16 %v1765
          %v2143 = vunpack.c.h.bf16 %v1765
          %v2144 = vunpack.c.l.bf16 %v1766
          %v2145 = vunpack.c.h.bf16 %v1766
          %v2146 = vunpack.c.l.bf16 %v1767
          %v2147 = vunpack.c.h.bf16 %v1767
          %v2148 = vunpack.c.l.bf16 %v1768
          %v2149 = vunpack.c.h.bf16 %v1768
          %v2150 = vunpack.c.l.bf16 %v1769
          %v2151 = vunpack.c.h.bf16 %v1769
          %v2152 = vunpack.c.l.bf16 %v1770
          %v2153 = vunpack.c.h.bf16 %v1770
          %v2154 = vunpack.c.l.bf16 %v1771
          %v2155 = vunpack.c.h.bf16 %v1771
          %v2156 = vunpack.c.l.bf16 %v1772
          %v2157 = vunpack.c.h.bf16 %v1772
          %v2158 = vunpack.c.l.bf16 %v1773
          %v2159 = vunpack.c.h.bf16 %v1773
          %v2160 = vunpack.c.l.bf16 %v1774
          %v2161 = vunpack.c.h.bf16 %v1774
          %v2162 = vunpack.c.l.bf16 %v1775
          %v2163 = vunpack.c.h.bf16 %v1775
          %v2164 = vunpack.c.l.bf16 %v1776
          %v2165 = vunpack.c.h.bf16 %v1776
          %v2166 = vunpack.c.l.bf16 %v1777
          %v2167 = vunpack.c.h.bf16 %v1777
          %v2168 = vunpack.c.l.bf16 %v1778
          %v2169 = vunpack.c.h.bf16 %v1778
          %v2170 = vunpack.c.l.bf16 %v1779
          %v2171 = vunpack.c.h.bf16 %v1779
          %v2173 = vcombine.high %v995, %v995
          %v2175 = vunpack.c.l.s4 1983009808
          %v2176 = vunpack.c.0.s8 %v2175
          %v2177 = vlaneseq
          %v2178 = vshrl.u32 %v2177, 7
          %v2179 = vsub.s32 %v2176, %v2178
          %v2180 = vrot.slane %v995, %v2179
          %v2182 = vunpack.c.l.s4 1983009808
          %v2183 = vunpack.c.0.s8 %v2182
          %v2184 = vlaneseq
          %v2185 = vshrl.u32 %v2184, 7
          %v2186 = vsub.s32 %v2183, %v2185
          %v2187 = vrot.slane %v2173, %v2186
          %v2188 = vcombine.high %v2180, %v2180
          %v2189 = vcombine.high %v2187, %v2187
          %vm2193 = vcmask 64512
          %v2194 = vsel %vm2193, %v2189, 0
          %2196 = vmatprep.subr.mxu0 %v1449
          %2197 = vmatpush1.msra.mxu0 %v1448
          %2198 = vmatprep.subr.mxu0 %v1445
          %2199 = vmatpush1.msra.mxu0 %v1444
          %2200 = vmatprep.subr.mxu0 %v1441
          %2201 = vmatpush1.msra.mxu0 %v1440
          %2202 = vmatprep.subr.mxu0 %v1437
          %2203 = vmatpush1.msra.mxu0 %v1436
          %2204 = vmatprep.subr.mxu0 %v1433
          %2205 = vmatpush1.msra.mxu0 %v1432
          %2206 = vmatprep.subr.mxu0 %v1429
          %2207 = vmatpush1.msra.mxu0 %v1428
          %2208 = vmatprep.subr.mxu0 %v1425
          %2209 = vmatpush1.msra.mxu0 %v1424
          %2210 = vmatprep.subr.mxu0 %v1421
          %2211 = vmatpush1.msra.mxu0 %v1420
          %2212 = vmatprep.subr.mxu0 %v1417
          %2213 = vmatpush1.msra.mxu0 %v1416
          %2214 = vmatprep.subr.mxu0 %v1413
          %2215 = vmatpush1.msra.mxu0 %v1412
          %2216 = vmatprep.subr.mxu0 %v1409
          %2217 = vmatpush1.msra.mxu0 %v1408
          %2218 = vmatprep.subr.mxu0 %v1405
          %2219 = vmatpush1.msra.mxu0 %v1404
          %2220 = vmatprep.subr.mxu0 %v1401
          %2221 = vmatpush1.msra.mxu0 %v1400
          %2222 = vmatprep.subr.mxu0 %v1397
          %2223 = vmatpush1.msra.mxu0 %v1396
          %2224 = vmatprep.subr.mxu0 %v1393
          %2225 = vmatpush1.msra.mxu0 %v1392
          %2226 = vmatprep.subr.mxu0 %v1389
          %2227 = vmatpush1.msra.mxu0 %v1388
          %2228 = vmatprep.subr.mxu0 %v1513
          %2229 = vmatpush2.msra.mxu0 %v1512
          %2230 = vmatprep.subr.mxu0 %v1509
          %2231 = vmatpush2.msra.mxu0 %v1508
          %2232 = vmatprep.subr.mxu0 %v1505
          %2233 = vmatpush2.msra.mxu0 %v1504
          %2234 = vmatprep.subr.mxu0 %v1501
          %2235 = vmatpush2.msra.mxu0 %v1500
          %2236 = vmatprep.subr.mxu0 %v1497
          %2237 = vmatpush2.msra.mxu0 %v1496
          %2238 = vmatprep.subr.mxu0 %v1493
          %2239 = vmatpush2.msra.mxu0 %v1492
          %2240 = vmatprep.subr.mxu0 %v1489
          %2241 = vmatpush2.msra.mxu0 %v1488
          %2242 = vmatprep.subr.mxu0 %v1485
          %2243 = vmatpush2.msra.mxu0 %v1484
          %2244 = vmatprep.subr.mxu0 %v1481
          %2245 = vmatpush2.msra.mxu0 %v1480
          %2246 = vmatprep.subr.mxu0 %v1477
          %2247 = vmatpush2.msra.mxu0 %v1476
          %2248 = vmatprep.subr.mxu0 %v1473
          %2249 = vmatpush2.msra.mxu0 %v1472
          %2250 = vmatprep.subr.mxu0 %v1469
          %2251 = vmatpush2.msra.mxu0 %v1468
          %2252 = vmatprep.subr.mxu0 %v1465
          %2253 = vmatpush2.msra.mxu0 %v1464
          %2254 = vmatprep.subr.mxu0 %v1461
          %2255 = vmatpush2.msra.mxu0 %v1460
          %2256 = vmatprep.subr.mxu0 %v1457
          %2257 = vmatpush2.msra.mxu0 %v1456
          %2258 = vmatprep.subr.mxu0 %v1453
          %2259 = vmatpush2.msra.mxu0 %v1452
          %2260 = vmatprep.mubr.f32.mxu0 %v2188
          %2261 = vmatmul.mubr.f32.gmra.mxu0 %v2180
          %v2262 = vpop.f32.mrf.mxu0
          %v2263 = vadd.f32 0.0, %v2262
          %v2264 = vpop.f32.mrf.mxu0
          %v2265 = vadd.f32 0.0, %v2264
          %2266 = vdwg.mxu0
          %2267 = vmatprep.subr.mxu0 %v1577
          %2268 = vmatpush1.msra.mxu0 %v1576
          %2269 = vmatprep.subr.mxu0 %v1573
          %2270 = vmatpush1.msra.mxu0 %v1572
          %2271 = vmatprep.subr.mxu0 %v1569
          %2272 = vmatpush1.msra.mxu0 %v1568
          %2273 = vmatprep.subr.mxu0 %v1565
          %2274 = vmatpush1.msra.mxu0 %v1564
          %2275 = vmatprep.subr.mxu0 %v1561
          %2276 = vmatpush1.msra.mxu0 %v1560
          %2277 = vmatprep.subr.mxu0 %v1557
          %2278 = vmatpush1.msra.mxu0 %v1556
          %2279 = vmatprep.subr.mxu0 %v1553
          %2280 = vmatpush1.msra.mxu0 %v1552
          %2281 = vmatprep.subr.mxu0 %v1549
          %2282 = vmatpush1.msra.mxu0 %v1548
          %2283 = vmatprep.subr.mxu0 %v1545
          %2284 = vmatpush1.msra.mxu0 %v1544
          %2285 = vmatprep.subr.mxu0 %v1541
          %2286 = vmatpush1.msra.mxu0 %v1540
          %2287 = vmatprep.subr.mxu0 %v1537
          %2288 = vmatpush1.msra.mxu0 %v1536
          %2289 = vmatprep.subr.mxu0 %v1533
          %2290 = vmatpush1.msra.mxu0 %v1532
          %2291 = vmatprep.subr.mxu0 %v1529
          %2292 = vmatpush1.msra.mxu0 %v1528
          %2293 = vmatprep.subr.mxu0 %v1525
          %2294 = vmatpush1.msra.mxu0 %v1524
          %2295 = vmatprep.subr.mxu0 %v1521
          %2296 = vmatpush1.msra.mxu0 %v1520
          %2297 = vmatprep.subr.mxu0 %v1517
          %2298 = vmatpush1.msra.mxu0 %v1516
          %2299 = vmatprep.subr.mxu0 0.0
          %2300 = vmatpush2.msra.mxu0 0.0
          %2301 = vmatprep.subr.mxu0 0.0
          %2302 = vmatpush2.msra.mxu0 0.0
          %2303 = vmatprep.subr.mxu0 0.0
          %2304 = vmatpush2.msra.mxu0 0.0
          %2305 = vmatprep.subr.mxu0 0.0
          %2306 = vmatpush2.msra.mxu0 0.0
          %2307 = vmatprep.subr.mxu0 0.0
          %2308 = vmatpush2.msra.mxu0 0.0
          %2309 = vmatprep.subr.mxu0 0.0
          %2310 = vmatpush2.msra.mxu0 0.0
          %2311 = vmatprep.subr.mxu0 0.0
          %2312 = vmatpush2.msra.mxu0 0.0
          %2313 = vmatprep.subr.mxu0 0.0
          %2314 = vmatpush2.msra.mxu0 0.0
          %2315 = vmatprep.subr.mxu0 0.0
          %2316 = vmatpush2.msra.mxu0 0.0
          %2317 = vmatprep.subr.mxu0 0.0
          %2318 = vmatpush2.msra.mxu0 0.0
          %2319 = vmatprep.subr.mxu0 0.0
          %2320 = vmatpush2.msra.mxu0 0.0
          %2321 = vmatprep.subr.mxu0 0.0
          %2322 = vmatpush2.msra.mxu0 0.0
          %2323 = vmatprep.subr.mxu0 0.0
          %2324 = vmatpush2.msra.mxu0 0.0
          %2325 = vmatprep.subr.mxu0 0.0
          %2326 = vmatpush2.msra.mxu0 0.0
          %2327 = vmatprep.subr.mxu0 0.0
          %2328 = vmatpush2.msra.mxu0 0.0
          %2329 = vmatprep.subr.mxu0 %v1581
          %2330 = vmatpush2.msra.mxu0 %v1580
          %2331 = vmatprep.mubr.f32.mxu0 %v2194
          %2332 = vmatmul.mubr.f32.gmra.mxu0 %v2187
          %v2333 = vpop.f32.mrf.mxu0
          %v2334 = vadd.f32 %v2263, %v2333
          %v2335 = vpop.f32.mrf.mxu0
          %v2336 = vadd.f32 %v2265, %v2335
          %2337 = vdwg.mxu0
          %2338 = vmatprep.subr.mxu0 %v1451
          %2339 = vmatpush1.msra.mxu0 %v1450
          %2340 = vmatprep.subr.mxu0 %v1447
          %2341 = vmatpush1.msra.mxu0 %v1446
          %2342 = vmatprep.subr.mxu0 %v1443
          %2343 = vmatpush1.msra.mxu0 %v1442
          %2344 = vmatprep.subr.mxu0 %v1439
          %2345 = vmatpush1.msra.mxu0 %v1438
          %2346 = vmatprep.subr.mxu0 %v1435
          %2347 = vmatpush1.msra.mxu0 %v1434
          %2348 = vmatprep.subr.mxu0 %v1431
          %2349 = vmatpush1.msra.mxu0 %v1430
          %2350 = vmatprep.subr.mxu0 %v1427
          %2351 = vmatpush1.msra.mxu0 %v1426
          %2352 = vmatprep.subr.mxu0 %v1423
          %2353 = vmatpush1.msra.mxu0 %v1422
          %2354 = vmatprep.subr.mxu0 %v1419
          %2355 = vmatpush1.msra.mxu0 %v1418
          %2356 = vmatprep.subr.mxu0 %v1415
          %2357 = vmatpush1.msra.mxu0 %v1414
          %2358 = vmatprep.subr.mxu0 %v1411
          %2359 = vmatpush1.msra.mxu0 %v1410
          %2360 = vmatprep.subr.mxu0 %v1407
          %2361 = vmatpush1.msra.mxu0 %v1406
          %2362 = vmatprep.subr.mxu0 %v1403
          %2363 = vmatpush1.msra.mxu0 %v1402
          %2364 = vmatprep.subr.mxu0 %v1399
          %2365 = vmatpush1.msra.mxu0 %v1398
          %2366 = vmatprep.subr.mxu0 %v1395
          %2367 = vmatpush1.msra.mxu0 %v1394
          %2368 = vmatprep.subr.mxu0 %v1391
          %2369 = vmatpush1.msra.mxu0 %v1390
          %2370 = vmatprep.subr.mxu0 %v1515
          %2371 = vmatpush2.msra.mxu0 %v1514
          %2372 = vmatprep.subr.mxu0 %v1511
          %2373 = vmatpush2.msra.mxu0 %v1510
          %2374 = vmatprep.subr.mxu0 %v1507
          %2375 = vmatpush2.msra.mxu0 %v1506
          %2376 = vmatprep.subr.mxu0 %v1503
          %2377 = vmatpush2.msra.mxu0 %v1502
          %2378 = vmatprep.subr.mxu0 %v1499
          %2379 = vmatpush2.msra.mxu0 %v1498
          %2380 = vmatprep.subr.mxu0 %v1495
          %2381 = vmatpush2.msra.mxu0 %v1494
          %2382 = vmatprep.subr.mxu0 %v1491
          %2383 = vmatpush2.msra.mxu0 %v1490
          %2384 = vmatprep.subr.mxu0 %v1487
          %2385 = vmatpush2.msra.mxu0 %v1486
          %2386 = vmatprep.subr.mxu0 %v1483
          %2387 = vmatpush2.msra.mxu0 %v1482
          %2388 = vmatprep.subr.mxu0 %v1479
          %2389 = vmatpush2.msra.mxu0 %v1478
          %2390 = vmatprep.subr.mxu0 %v1475
          %2391 = vmatpush2.msra.mxu0 %v1474
          %2392 = vmatprep.subr.mxu0 %v1471
          %2393 = vmatpush2.msra.mxu0 %v1470
          %2394 = vmatprep.subr.mxu0 %v1467
          %2395 = vmatpush2.msra.mxu0 %v1466
          %2396 = vmatprep.subr.mxu0 %v1463
          %2397 = vmatpush2.msra.mxu0 %v1462
          %2398 = vmatprep.subr.mxu0 %v1459
          %2399 = vmatpush2.msra.mxu0 %v1458
          %2400 = vmatprep.subr.mxu0 %v1455
          %2401 = vmatpush2.msra.mxu0 %v1454
          %2402 = vmatprep.mubr.f32.mxu0 %v2188
          %2403 = vmatmul.mubr.f32.gmra.mxu0 %v2180
          %v2404 = vpop.f32.mrf.mxu0
          %v2405 = vadd.f32 0.0, %v2404
          %v2406 = vpop.f32.mrf.mxu0
          %v2407 = vadd.f32 0.0, %v2406
          %2408 = vdwg.mxu0
          %2409 = vmatprep.subr.mxu0 %v1579
          %2410 = vmatpush1.msra.mxu0 %v1578
          %2411 = vmatprep.subr.mxu0 %v1575
          %2412 = vmatpush1.msra.mxu0 %v1574
          %2413 = vmatprep.subr.mxu0 %v1571
          %2414 = vmatpush1.msra.mxu0 %v1570
          %2415 = vmatprep.subr.mxu0 %v1567
          %2416 = vmatpush1.msra.mxu0 %v1566
          %2417 = vmatprep.subr.mxu0 %v1563
          %2418 = vmatpush1.msra.mxu0 %v1562
          %2419 = vmatprep.subr.mxu0 %v1559
          %2420 = vmatpush1.msra.mxu0 %v1558
          %2421 = vmatprep.subr.mxu0 %v1555
          %2422 = vmatpush1.msra.mxu0 %v1554
          %2423 = vmatprep.subr.mxu0 %v1551
          %2424 = vmatpush1.msra.mxu0 %v1550
          %2425 = vmatprep.subr.mxu0 %v1547
          %2426 = vmatpush1.msra.mxu0 %v1546
          %2427 = vmatprep.subr.mxu0 %v1543
          %2428 = vmatpush1.msra.mxu0 %v1542
          %2429 = vmatprep.subr.mxu0 %v1539
          %2430 = vmatpush1.msra.mxu0 %v1538
          %2431 = vmatprep.subr.mxu0 %v1535
          %2432 = vmatpush1.msra.mxu0 %v1534
          %2433 = vmatprep.subr.mxu0 %v1531
          %2434 = vmatpush1.msra.mxu0 %v1530
          %2435 = vmatprep.subr.mxu0 %v1527
          %2436 = vmatpush1.msra.mxu0 %v1526
          %2437 = vmatprep.subr.mxu0 %v1523
          %2438 = vmatpush1.msra.mxu0 %v1522
          %2439 = vmatprep.subr.mxu0 %v1519
          %2440 = vmatpush1.msra.mxu0 %v1518
          %2441 = vmatprep.subr.mxu0 0.0
          %2442 = vmatpush2.msra.mxu0 0.0
          %2443 = vmatprep.subr.mxu0 0.0
          %2444 = vmatpush2.msra.mxu0 0.0
          %2445 = vmatprep.subr.mxu0 0.0
          %2446 = vmatpush2.msra.mxu0 0.0
          %2447 = vmatprep.subr.mxu0 0.0
          %2448 = vmatpush2.msra.mxu0 0.0
          %2449 = vmatprep.subr.mxu0 0.0
          %2450 = vmatpush2.msra.mxu0 0.0
          %2451 = vmatprep.subr.mxu0 0.0
          %2452 = vmatpush2.msra.mxu0 0.0
          %2453 = vmatprep.subr.mxu0 0.0
          %2454 = vmatpush2.msra.mxu0 0.0
          %2455 = vmatprep.subr.mxu0 0.0
          %2456 = vmatpush2.msra.mxu0 0.0
          %2457 = vmatprep.subr.mxu0 0.0
          %2458 = vmatpush2.msra.mxu0 0.0
          %2459 = vmatprep.subr.mxu0 0.0
          %2460 = vmatpush2.msra.mxu0 0.0
          %2461 = vmatprep.subr.mxu0 0.0
          %2462 = vmatpush2.msra.mxu0 0.0
          %2463 = vmatprep.subr.mxu0 0.0
          %2464 = vmatpush2.msra.mxu0 0.0
          %2465 = vmatprep.subr.mxu0 0.0
          %2466 = vmatpush2.msra.mxu0 0.0
          %2467 = vmatprep.subr.mxu0 0.0
          %2468 = vmatpush2.msra.mxu0 0.0
          %2469 = vmatprep.subr.mxu0 0.0
          %2470 = vmatpush2.msra.mxu0 0.0
          %2471 = vmatprep.subr.mxu0 %v1583
          %2472 = vmatpush2.msra.mxu0 %v1582
          %2473 = vmatprep.mubr.f32.mxu0 %v2194
          %2474 = vmatmul.mubr.f32.gmra.mxu0 %v2187
          %v2475 = vpop.f32.mrf.mxu0
          %v2476 = vadd.f32 %v2405, %v2475
          %v2477 = vpop.f32.mrf.mxu0
          %v2478 = vadd.f32 %v2407, %v2477
          %2479 = vdwg.mxu0
          %v2481 = vcombine.high %v994, %v994
          %v2483 = vunpack.c.l.s4 1983009808
          %v2484 = vunpack.c.0.s8 %v2483
          %v2485 = vlaneseq
          %v2486 = vshrl.u32 %v2485, 7
          %v2487 = vsub.s32 %v2484, %v2486
          %v2488 = vrot.slane %v994, %v2487
          %v2490 = vunpack.c.l.s4 1983009808
          %v2491 = vunpack.c.0.s8 %v2490
          %v2492 = vlaneseq
          %v2493 = vshrl.u32 %v2492, 7
          %v2494 = vsub.s32 %v2491, %v2493
          %v2495 = vrot.slane %v2481, %v2494
          %v2496 = vcombine.high %v2488, %v2488
          %v2497 = vcombine.high %v2495, %v2495
          %v2501 = vsel %vm2193, %v2497, 0
          %2503 = vmatprep.subr.mxu0 %v1253
          %2504 = vmatpush1.msra.mxu0 %v1252
          %2505 = vmatprep.subr.mxu0 %v1249
          %2506 = vmatpush1.msra.mxu0 %v1248
          %2507 = vmatprep.subr.mxu0 %v1245
          %2508 = vmatpush1.msra.mxu0 %v1244
          %2509 = vmatprep.subr.mxu0 %v1241
          %2510 = vmatpush1.msra.mxu0 %v1240
          %2511 = vmatprep.subr.mxu0 %v1237
          %2512 = vmatpush1.msra.mxu0 %v1236
          %2513 = vmatprep.subr.mxu0 %v1233
          %2514 = vmatpush1.msra.mxu0 %v1232
          %2515 = vmatprep.subr.mxu0 %v1229
          %2516 = vmatpush1.msra.mxu0 %v1228
          %2517 = vmatprep.subr.mxu0 %v1225
          %2518 = vmatpush1.msra.mxu0 %v1224
          %2519 = vmatprep.subr.mxu0 %v1221
          %2520 = vmatpush1.msra.mxu0 %v1220
          %2521 = vmatprep.subr.mxu0 %v1217
          %2522 = vmatpush1.msra.mxu0 %v1216
          %2523 = vmatprep.subr.mxu0 %v1213
          %2524 = vmatpush1.msra.mxu0 %v1212
          %2525 = vmatprep.subr.mxu0 %v1209
          %2526 = vmatpush1.msra.mxu0 %v1208
          %2527 = vmatprep.subr.mxu0 %v1205
          %2528 = vmatpush1.msra.mxu0 %v1204
          %2529 = vmatprep.subr.mxu0 %v1201
          %2530 = vmatpush1.msra.mxu0 %v1200
          %2531 = vmatprep.subr.mxu0 %v1197
          %2532 = vmatpush1.msra.mxu0 %v1196
          %2533 = vmatprep.subr.mxu0 %v1193
          %2534 = vmatpush1.msra.mxu0 %v1192
          %2535 = vmatprep.subr.mxu0 %v1317
          %2536 = vmatpush2.msra.mxu0 %v1316
          %2537 = vmatprep.subr.mxu0 %v1313
          %2538 = vmatpush2.msra.mxu0 %v1312
          %2539 = vmatprep.subr.mxu0 %v1309
          %2540 = vmatpush2.msra.mxu0 %v1308
          %2541 = vmatprep.subr.mxu0 %v1305
          %2542 = vmatpush2.msra.mxu0 %v1304
          %2543 = vmatprep.subr.mxu0 %v1301
          %2544 = vmatpush2.msra.mxu0 %v1300
          %2545 = vmatprep.subr.mxu0 %v1297
          %2546 = vmatpush2.msra.mxu0 %v1296
          %2547 = vmatprep.subr.mxu0 %v1293
          %2548 = vmatpush2.msra.mxu0 %v1292
          %2549 = vmatprep.subr.mxu0 %v1289
          %2550 = vmatpush2.msra.mxu0 %v1288
          %2551 = vmatprep.subr.mxu0 %v1285
          %2552 = vmatpush2.msra.mxu0 %v1284
          %2553 = vmatprep.subr.mxu0 %v1281
          %2554 = vmatpush2.msra.mxu0 %v1280
          %2555 = vmatprep.subr.mxu0 %v1277
          %2556 = vmatpush2.msra.mxu0 %v1276
          %2557 = vmatprep.subr.mxu0 %v1273
          %2558 = vmatpush2.msra.mxu0 %v1272
          %2559 = vmatprep.subr.mxu0 %v1269
          %2560 = vmatpush2.msra.mxu0 %v1268
          %2561 = vmatprep.subr.mxu0 %v1265
          %2562 = vmatpush2.msra.mxu0 %v1264
          %2563 = vmatprep.subr.mxu0 %v1261
          %2564 = vmatpush2.msra.mxu0 %v1260
          %2565 = vmatprep.subr.mxu0 %v1257
          %2566 = vmatpush2.msra.mxu0 %v1256
          %2567 = vmatprep.mubr.f32.mxu0 %v2496
          %2568 = vmatmul.mubr.f32.gmra.mxu0 %v2488
          %v2569 = vpop.f32.mrf.mxu0
          %v2570 = vadd.f32 %v2334, %v2569
          %v2571 = vpop.f32.mrf.mxu0
          %v2572 = vadd.f32 %v2336, %v2571
          %2573 = vdwg.mxu0
          %2574 = vmatprep.subr.mxu0 %v1381
          %2575 = vmatpush1.msra.mxu0 %v1380
          %2576 = vmatprep.subr.mxu0 %v1377
          %2577 = vmatpush1.msra.mxu0 %v1376
          %2578 = vmatprep.subr.mxu0 %v1373
          %2579 = vmatpush1.msra.mxu0 %v1372
          %2580 = vmatprep.subr.mxu0 %v1369
          %2581 = vmatpush1.msra.mxu0 %v1368
          %2582 = vmatprep.subr.mxu0 %v1365
          %2583 = vmatpush1.msra.mxu0 %v1364
          %2584 = vmatprep.subr.mxu0 %v1361
          %2585 = vmatpush1.msra.mxu0 %v1360
          %2586 = vmatprep.subr.mxu0 %v1357
          %2587 = vmatpush1.msra.mxu0 %v1356
          %2588 = vmatprep.subr.mxu0 %v1353
          %2589 = vmatpush1.msra.mxu0 %v1352
          %2590 = vmatprep.subr.mxu0 %v1349
          %2591 = vmatpush1.msra.mxu0 %v1348
          %2592 = vmatprep.subr.mxu0 %v1345
          %2593 = vmatpush1.msra.mxu0 %v1344
          %2594 = vmatprep.subr.mxu0 %v1341
          %2595 = vmatpush1.msra.mxu0 %v1340
          %2596 = vmatprep.subr.mxu0 %v1337
          %2597 = vmatpush1.msra.mxu0 %v1336
          %2598 = vmatprep.subr.mxu0 %v1333
          %2599 = vmatpush1.msra.mxu0 %v1332
          %2600 = vmatprep.subr.mxu0 %v1329
          %2601 = vmatpush1.msra.mxu0 %v1328
          %2602 = vmatprep.subr.mxu0 %v1325
          %2603 = vmatpush1.msra.mxu0 %v1324
          %2604 = vmatprep.subr.mxu0 %v1321
          %2605 = vmatpush1.msra.mxu0 %v1320
          %2606 = vmatprep.subr.mxu0 0.0
          %2607 = vmatpush2.msra.mxu0 0.0
          %2608 = vmatprep.subr.mxu0 0.0
          %2609 = vmatpush2.msra.mxu0 0.0
          %2610 = vmatprep.subr.mxu0 0.0
          %2611 = vmatpush2.msra.mxu0 0.0
          %2612 = vmatprep.subr.mxu0 0.0
          %2613 = vmatpush2.msra.mxu0 0.0
          %2614 = vmatprep.subr.mxu0 0.0
          %2615 = vmatpush2.msra.mxu0 0.0
          %2616 = vmatprep.subr.mxu0 0.0
          %2617 = vmatpush2.msra.mxu0 0.0
          %2618 = vmatprep.subr.mxu0 0.0
          %2619 = vmatpush2.msra.mxu0 0.0
          %2620 = vmatprep.subr.mxu0 0.0
          %2621 = vmatpush2.msra.mxu0 0.0
          %2622 = vmatprep.subr.mxu0 0.0
          %2623 = vmatpush2.msra.mxu0 0.0
          %2624 = vmatprep.subr.mxu0 0.0
          %2625 = vmatpush2.msra.mxu0 0.0
          %2626 = vmatprep.subr.mxu0 0.0
          %2627 = vmatpush2.msra.mxu0 0.0
          %2628 = vmatprep.subr.mxu0 0.0
          %2629 = vmatpush2.msra.mxu0 0.0
          %2630 = vmatprep.subr.mxu0 0.0
          %2631 = vmatpush2.msra.mxu0 0.0
          %2632 = vmatprep.subr.mxu0 0.0
          %2633 = vmatpush2.msra.mxu0 0.0
          %2634 = vmatprep.subr.mxu0 0.0
          %2635 = vmatpush2.msra.mxu0 0.0
          %2636 = vmatprep.subr.mxu0 %v1385
          %2637 = vmatpush2.msra.mxu0 %v1384
          %2638 = vmatprep.mubr.f32.mxu0 %v2501
          %2639 = vmatmul.mubr.f32.gmra.mxu0 %v2495
          %v2640 = vpop.f32.mrf.mxu0
          %v2641 = vadd.f32 %v2570, %v2640
          %v2642 = vpop.f32.mrf.mxu0
          %v2643 = vadd.f32 %v2572, %v2642
          %2644 = vdwg.mxu0
          %2645 = vmatprep.subr.mxu0 %v1255
          %2646 = vmatpush1.msra.mxu0 %v1254
          %2647 = vmatprep.subr.mxu0 %v1251
          %2648 = vmatpush1.msra.mxu0 %v1250
          %2649 = vmatprep.subr.mxu0 %v1247
          %2650 = vmatpush1.msra.mxu0 %v1246
          %2651 = vmatprep.subr.mxu0 %v1243
          %2652 = vmatpush1.msra.mxu0 %v1242
          %2653 = vmatprep.subr.mxu0 %v1239
          %2654 = vmatpush1.msra.mxu0 %v1238
          %2655 = vmatprep.subr.mxu0 %v1235
          %2656 = vmatpush1.msra.mxu0 %v1234
          %2657 = vmatprep.subr.mxu0 %v1231
          %2658 = vmatpush1.msra.mxu0 %v1230
          %2659 = vmatprep.subr.mxu0 %v1227
          %2660 = vmatpush1.msra.mxu0 %v1226
          %2661 = vmatprep.subr.mxu0 %v1223
          %2662 = vmatpush1.msra.mxu0 %v1222
          %2663 = vmatprep.subr.mxu0 %v1219
          %2664 = vmatpush1.msra.mxu0 %v1218
          %2665 = vmatprep.subr.mxu0 %v1215
          %2666 = vmatpush1.msra.mxu0 %v1214
          %2667 = vmatprep.subr.mxu0 %v1211
          %2668 = vmatpush1.msra.mxu0 %v1210
          %2669 = vmatprep.subr.mxu0 %v1207
          %2670 = vmatpush1.msra.mxu0 %v1206
          %2671 = vmatprep.subr.mxu0 %v1203
          %2672 = vmatpush1.msra.mxu0 %v1202
          %2673 = vmatprep.subr.mxu0 %v1199
          %2674 = vmatpush1.msra.mxu0 %v1198
          %2675 = vmatprep.subr.mxu0 %v1195
          %2676 = vmatpush1.msra.mxu0 %v1194
          %2677 = vmatprep.subr.mxu0 %v1319
          %2678 = vmatpush2.msra.mxu0 %v1318
          %2679 = vmatprep.subr.mxu0 %v1315
          %2680 = vmatpush2.msra.mxu0 %v1314
          %2681 = vmatprep.subr.mxu0 %v1311
          %2682 = vmatpush2.msra.mxu0 %v1310
          %2683 = vmatprep.subr.mxu0 %v1307
          %2684 = vmatpush2.msra.mxu0 %v1306
          %2685 = vmatprep.subr.mxu0 %v1303
          %2686 = vmatpush2.msra.mxu0 %v1302
          %2687 = vmatprep.subr.mxu0 %v1299
          %2688 = vmatpush2.msra.mxu0 %v1298
          %2689 = vmatprep.subr.mxu0 %v1295
          %2690 = vmatpush2.msra.mxu0 %v1294
          %2691 = vmatprep.subr.mxu0 %v1291
          %2692 = vmatpush2.msra.mxu0 %v1290
          %2693 = vmatprep.subr.mxu0 %v1287
          %2694 = vmatpush2.msra.mxu0 %v1286
          %2695 = vmatprep.subr.mxu0 %v1283
          %2696 = vmatpush2.msra.mxu0 %v1282
          %2697 = vmatprep.subr.mxu0 %v1279
          %2698 = vmatpush2.msra.mxu0 %v1278
          %2699 = vmatprep.subr.mxu0 %v1275
          %2700 = vmatpush2.msra.mxu0 %v1274
          %2701 = vmatprep.subr.mxu0 %v1271
          %2702 = vmatpush2.msra.mxu0 %v1270
          %2703 = vmatprep.subr.mxu0 %v1267
          %2704 = vmatpush2.msra.mxu0 %v1266
          %2705 = vmatprep.subr.mxu0 %v1263
          %2706 = vmatpush2.msra.mxu0 %v1262
          %2707 = vmatprep.subr.mxu0 %v1259
          %2708 = vmatpush2.msra.mxu0 %v1258
          %2709 = vmatprep.mubr.f32.mxu0 %v2496
          %2710 = vmatmul.mubr.f32.gmra.mxu0 %v2488
          %v2711 = vpop.f32.mrf.mxu0
          %v2712 = vadd.f32 %v2476, %v2711
          %v2713 = vpop.f32.mrf.mxu0
          %v2714 = vadd.f32 %v2478, %v2713
          %2715 = vdwg.mxu0
          %2716 = vmatprep.subr.mxu0 %v1383
          %2717 = vmatpush1.msra.mxu0 %v1382
          %2718 = vmatprep.subr.mxu0 %v1379
          %2719 = vmatpush1.msra.mxu0 %v1378
          %2720 = vmatprep.subr.mxu0 %v1375
          %2721 = vmatpush1.msra.mxu0 %v1374
          %2722 = vmatprep.subr.mxu0 %v1371
          %2723 = vmatpush1.msra.mxu0 %v1370
          %2724 = vmatprep.subr.mxu0 %v1367
          %2725 = vmatpush1.msra.mxu0 %v1366
          %2726 = vmatprep.subr.mxu0 %v1363
          %2727 = vmatpush1.msra.mxu0 %v1362
          %2728 = vmatprep.subr.mxu0 %v1359
          %2729 = vmatpush1.msra.mxu0 %v1358
          %2730 = vmatprep.subr.mxu0 %v1355
          %2731 = vmatpush1.msra.mxu0 %v1354
          %2732 = vmatprep.subr.mxu0 %v1351
          %2733 = vmatpush1.msra.mxu0 %v1350
          %2734 = vmatprep.subr.mxu0 %v1347
          %2735 = vmatpush1.msra.mxu0 %v1346
          %2736 = vmatprep.subr.mxu0 %v1343
          %2737 = vmatpush1.msra.mxu0 %v1342
          %2738 = vmatprep.subr.mxu0 %v1339
          %2739 = vmatpush1.msra.mxu0 %v1338
          %2740 = vmatprep.subr.mxu0 %v1335
          %2741 = vmatpush1.msra.mxu0 %v1334
          %2742 = vmatprep.subr.mxu0 %v1331
          %2743 = vmatpush1.msra.mxu0 %v1330
          %2744 = vmatprep.subr.mxu0 %v1327
          %2745 = vmatpush1.msra.mxu0 %v1326
          %2746 = vmatprep.subr.mxu0 %v1323
          %2747 = vmatpush1.msra.mxu0 %v1322
          %2748 = vmatprep.subr.mxu0 0.0
          %2749 = vmatpush2.msra.mxu0 0.0
          %2750 = vmatprep.subr.mxu0 0.0
          %2751 = vmatpush2.msra.mxu0 0.0
          %2752 = vmatprep.subr.mxu0 0.0
          %2753 = vmatpush2.msra.mxu0 0.0
          %2754 = vmatprep.subr.mxu0 0.0
          %2755 = vmatpush2.msra.mxu0 0.0
          %2756 = vmatprep.subr.mxu0 0.0
          %2757 = vmatpush2.msra.mxu0 0.0
          %2758 = vmatprep.subr.mxu0 0.0
          %2759 = vmatpush2.msra.mxu0 0.0
          %2760 = vmatprep.subr.mxu0 0.0
          %2761 = vmatpush2.msra.mxu0 0.0
          %2762 = vmatprep.subr.mxu0 0.0
          %2763 = vmatpush2.msra.mxu0 0.0
          %2764 = vmatprep.subr.mxu0 0.0
          %2765 = vmatpush2.msra.mxu0 0.0
          %2766 = vmatprep.subr.mxu0 0.0
          %2767 = vmatpush2.msra.mxu0 0.0
          %2768 = vmatprep.subr.mxu0 0.0
          %2769 = vmatpush2.msra.mxu0 0.0
          %2770 = vmatprep.subr.mxu0 0.0
          %2771 = vmatpush2.msra.mxu0 0.0
          %2772 = vmatprep.subr.mxu0 0.0
          %2773 = vmatpush2.msra.mxu0 0.0
          %2774 = vmatprep.subr.mxu0 0.0
          %2775 = vmatpush2.msra.mxu0 0.0
          %2776 = vmatprep.subr.mxu0 0.0
          %2777 = vmatpush2.msra.mxu0 0.0
          %2778 = vmatprep.subr.mxu0 %v1387
          %2779 = vmatpush2.msra.mxu0 %v1386
          %2780 = vmatprep.mubr.f32.mxu0 %v2501
          %2781 = vmatmul.mubr.f32.gmra.mxu0 %v2495
          %v2782 = vpop.f32.mrf.mxu0
          %v2783 = vadd.f32 %v2712, %v2782
          %v2784 = vpop.f32.mrf.mxu0
          %v2785 = vadd.f32 %v2714, %v2784
          %2786 = vdwg.mxu0
          %v2791 = vcombine.low %v2641, %v2643
          %v2792 = vcombine.low %v2783, %v2785
          %v2794 = vunpack.c.l.s4 1983009808
          %v2795 = vunpack.c.0.s8 %v2794
          %v2796 = vlaneseq
          %v2797 = vshrl.u32 %v2796, 7
          %v2798 = vsub.s32 %v2795, %v2797
          %v2799 = vrot.slane %v2791, %v2798
          %v2801 = vunpack.c.l.s4 1983009808
          %v2802 = vunpack.c.0.s8 %v2801
          %v2803 = vlaneseq
          %v2804 = vshrl.u32 %v2803, 7
          %v2805 = vsub.s32 %v2802, %v2804
          %v2806 = vrot.slane %v2792, %v2805
          %v2807 = vcombine.low %v2799, %v2806
          %vm2809 = vcmask 1041408
          %vm2810 = vcmask 1043458
          %vm2811 = vmor %vm2810, %vm2809
          %vm2812 = vcmask 1045508
          %vm2813 = vmor %vm2812, %vm2811
          %vm2814 = vcmask 64518
          %vm2815 = vmor %vm2814, %vm2813
          %2816 = vst.msk [vmem:[#allocation2] sm:$0xff] %vm2815, %v2807
          %2817 = vmatprep.subr.mxu0 %v2037
          %2818 = vmatpush1.msra.mxu0 %v2036
          %2819 = vmatprep.subr.mxu0 %v2033
          %2820 = vmatpush1.msra.mxu0 %v2032
          %2821 = vmatprep.subr.mxu0 %v2029
          %2822 = vmatpush1.msra.mxu0 %v2028
          %2823 = vmatprep.subr.mxu0 %v2025
          %2824 = vmatpush1.msra.mxu0 %v2024
          %2825 = vmatprep.subr.mxu0 %v2021
          %2826 = vmatpush1.msra.mxu0 %v2020
          %2827 = vmatprep.subr.mxu0 %v2017
          %2828 = vmatpush1.msra.mxu0 %v2016
          %2829 = vmatprep.subr.mxu0 %v2013
          %2830 = vmatpush1.msra.mxu0 %v2012
          %2831 = vmatprep.subr.mxu0 %v2009
          %2832 = vmatpush1.msra.mxu0 %v2008
          %2833 = vmatprep.subr.mxu0 %v2005
          %2834 = vmatpush1.msra.mxu0 %v2004
          %2835 = vmatprep.subr.mxu0 %v2001
          %2836 = vmatpush1.msra.mxu0 %v2000
          %2837 = vmatprep.subr.mxu0 %v1997
          %2838 = vmatpush1.msra.mxu0 %v1996
          %2839 = vmatprep.subr.mxu0 %v1993
          %2840 = vmatpush1.msra.mxu0 %v1992
          %2841 = vmatprep.subr.mxu0 %v1989
          %2842 = vmatpush1.msra.mxu0 %v1988
          %2843 = vmatprep.subr.mxu0 %v1985
          %2844 = vmatpush1.msra.mxu0 %v1984
          %2845 = vmatprep.subr.mxu0 %v1981
          %2846 = vmatpush1.msra.mxu0 %v1980
          %2847 = vmatprep.subr.mxu0 %v1977
          %2848 = vmatpush1.msra.mxu0 %v1976
          %2849 = vmatprep.subr.mxu0 %v2101
          %2850 = vmatpush2.msra.mxu0 %v2100
          %2851 = vmatprep.subr.mxu0 %v2097
          %2852 = vmatpush2.msra.mxu0 %v2096
          %2853 = vmatprep.subr.mxu0 %v2093
          %2854 = vmatpush2.msra.mxu0 %v2092
          %2855 = vmatprep.subr.mxu0 %v2089
          %2856 = vmatpush2.msra.mxu0 %v2088
          %2857 = vmatprep.subr.mxu0 %v2085
          %2858 = vmatpush2.msra.mxu0 %v2084
          %2859 = vmatprep.subr.mxu0 %v2081
          %2860 = vmatpush2.msra.mxu0 %v2080
          %2861 = vmatprep.subr.mxu0 %v2077
          %2862 = vmatpush2.msra.mxu0 %v2076
          %2863 = vmatprep.subr.mxu0 %v2073
          %2864 = vmatpush2.msra.mxu0 %v2072
          %2865 = vmatprep.subr.mxu0 %v2069
          %2866 = vmatpush2.msra.mxu0 %v2068
          %2867 = vmatprep.subr.mxu0 %v2065
          %2868 = vmatpush2.msra.mxu0 %v2064
          %2869 = vmatprep.subr.mxu0 %v2061
          %2870 = vmatpush2.msra.mxu0 %v2060
          %2871 = vmatprep.subr.mxu0 %v2057
          %2872 = vmatpush2.msra.mxu0 %v2056
          %2873 = vmatprep.subr.mxu0 %v2053
          %2874 = vmatpush2.msra.mxu0 %v2052
          %2875 = vmatprep.subr.mxu0 %v2049
          %2876 = vmatpush2.msra.mxu0 %v2048
          %2877 = vmatprep.subr.mxu0 %v2045
          %2878 = vmatpush2.msra.mxu0 %v2044
          %2879 = vmatprep.subr.mxu0 %v2041
          %2880 = vmatpush2.msra.mxu0 %v2040
          %2881 = vmatprep.mubr.f32.mxu0 %v2188
          %2882 = vmatmul.mubr.f32.gmra.mxu0 %v2180
          %v2883 = vpop.f32.mrf.mxu0
          %v2884 = vadd.f32 0.0, %v2883
          %v2885 = vpop.f32.mrf.mxu0
          %v2886 = vadd.f32 0.0, %v2885
          %2887 = vdwg.mxu0
          %2888 = vmatprep.subr.mxu0 %v2165
          %2889 = vmatpush1.msra.mxu0 %v2164
          %2890 = vmatprep.subr.mxu0 %v2161
          %2891 = vmatpush1.msra.mxu0 %v2160
          %2892 = vmatprep.subr.mxu0 %v2157
          %2893 = vmatpush1.msra.mxu0 %v2156
          %2894 = vmatprep.subr.mxu0 %v2153
          %2895 = vmatpush1.msra.mxu0 %v2152
          %2896 = vmatprep.subr.mxu0 %v2149
          %2897 = vmatpush1.msra.mxu0 %v2148
          %2898 = vmatprep.subr.mxu0 %v2145
          %2899 = vmatpush1.msra.mxu0 %v2144
          %2900 = vmatprep.subr.mxu0 %v2141
          %2901 = vmatpush1.msra.mxu0 %v2140
          %2902 = vmatprep.subr.mxu0 %v2137
          %2903 = vmatpush1.msra.mxu0 %v2136
          %2904 = vmatprep.subr.mxu0 %v2133
          %2905 = vmatpush1.msra.mxu0 %v2132
          %2906 = vmatprep.subr.mxu0 %v2129
          %2907 = vmatpush1.msra.mxu0 %v2128
          %2908 = vmatprep.subr.mxu0 %v2125
          %2909 = vmatpush1.msra.mxu0 %v2124
          %2910 = vmatprep.subr.mxu0 %v2121
          %2911 = vmatpush1.msra.mxu0 %v2120
          %2912 = vmatprep.subr.mxu0 %v2117
          %2913 = vmatpush1.msra.mxu0 %v2116
          %2914 = vmatprep.subr.mxu0 %v2113
          %2915 = vmatpush1.msra.mxu0 %v2112
          %2916 = vmatprep.subr.mxu0 %v2109
          %2917 = vmatpush1.msra.mxu0 %v2108
          %2918 = vmatprep.subr.mxu0 %v2105
          %2919 = vmatpush1.msra.mxu0 %v2104
          %2920 = vmatprep.subr.mxu0 0.0
          %2921 = vmatpush2.msra.mxu0 0.0
          %2922 = vmatprep.subr.mxu0 0.0
          %2923 = vmatpush2.msra.mxu0 0.0
          %2924 = vmatprep.subr.mxu0 0.0
          %2925 = vmatpush2.msra.mxu0 0.0
          %2926 = vmatprep.subr.mxu0 0.0
          %2927 = vmatpush2.msra.mxu0 0.0
          %2928 = vmatprep.subr.mxu0 0.0
          %2929 = vmatpush2.msra.mxu0 0.0
          %2930 = vmatprep.subr.mxu0 0.0
          %2931 = vmatpush2.msra.mxu0 0.0
          %2932 = vmatprep.subr.mxu0 0.0
          %2933 = vmatpush2.msra.mxu0 0.0
          %2934 = vmatprep.subr.mxu0 0.0
          %2935 = vmatpush2.msra.mxu0 0.0
          %2936 = vmatprep.subr.mxu0 0.0
          %2937 = vmatpush2.msra.mxu0 0.0
          %2938 = vmatprep.subr.mxu0 0.0
          %2939 = vmatpush2.msra.mxu0 0.0
          %2940 = vmatprep.subr.mxu0 0.0
          %2941 = vmatpush2.msra.mxu0 0.0
          %2942 = vmatprep.subr.mxu0 0.0
          %2943 = vmatpush2.msra.mxu0 0.0
          %2944 = vmatprep.subr.mxu0 0.0
          %2945 = vmatpush2.msra.mxu0 0.0
          %2946 = vmatprep.subr.mxu0 0.0
          %2947 = vmatpush2.msra.mxu0 0.0
          %2948 = vmatprep.subr.mxu0 0.0
          %2949 = vmatpush2.msra.mxu0 0.0
          %2950 = vmatprep.subr.mxu0 %v2169
          %2951 = vmatpush2.msra.mxu0 %v2168
          %2952 = vmatprep.mubr.f32.mxu0 %v2194
          %2953 = vmatmul.mubr.f32.gmra.mxu0 %v2187
          %v2954 = vpop.f32.mrf.mxu0
          %v2955 = vadd.f32 %v2884, %v2954
          %v2956 = vpop.f32.mrf.mxu0
          %v2957 = vadd.f32 %v2886, %v2956
          %2958 = vdwg.mxu0
          %2959 = vmatprep.subr.mxu0 %v2039
          %2960 = vmatpush1.msra.mxu0 %v2038
          %2961 = vmatprep.subr.mxu0 %v2035
          %2962 = vmatpush1.msra.mxu0 %v2034
          %2963 = vmatprep.subr.mxu0 %v2031
          %2964 = vmatpush1.msra.mxu0 %v2030
          %2965 = vmatprep.subr.mxu0 %v2027
          %2966 = vmatpush1.msra.mxu0 %v2026
          %2967 = vmatprep.subr.mxu0 %v2023
          %2968 = vmatpush1.msra.mxu0 %v2022
          %2969 = vmatprep.subr.mxu0 %v2019
          %2970 = vmatpush1.msra.mxu0 %v2018
          %2971 = vmatprep.subr.mxu0 %v2015
          %2972 = vmatpush1.msra.mxu0 %v2014
          %2973 = vmatprep.subr.mxu0 %v2011
          %2974 = vmatpush1.msra.mxu0 %v2010
          %2975 = vmatprep.subr.mxu0 %v2007
          %2976 = vmatpush1.msra.mxu0 %v2006
          %2977 = vmatprep.subr.mxu0 %v2003
          %2978 = vmatpush1.msra.mxu0 %v2002
          %2979 = vmatprep.subr.mxu0 %v1999
          %2980 = vmatpush1.msra.mxu0 %v1998
          %2981 = vmatprep.subr.mxu0 %v1995
          %2982 = vmatpush1.msra.mxu0 %v1994
          %2983 = vmatprep.subr.mxu0 %v1991
          %2984 = vmatpush1.msra.mxu0 %v1990
          %2985 = vmatprep.subr.mxu0 %v1987
          %2986 = vmatpush1.msra.mxu0 %v1986
          %2987 = vmatprep.subr.mxu0 %v1983
          %2988 = vmatpush1.msra.mxu0 %v1982
          %2989 = vmatprep.subr.mxu0 %v1979
          %2990 = vmatpush1.msra.mxu0 %v1978
          %2991 = vmatprep.subr.mxu0 %v2103
          %2992 = vmatpush2.msra.mxu0 %v2102
          %2993 = vmatprep.subr.mxu0 %v2099
          %2994 = vmatpush2.msra.mxu0 %v2098
          %2995 = vmatprep.subr.mxu0 %v2095
          %2996 = vmatpush2.msra.mxu0 %v2094
          %2997 = vmatprep.subr.mxu0 %v2091
          %2998 = vmatpush2.msra.mxu0 %v2090
          %2999 = vmatprep.subr.mxu0 %v2087
          %3000 = vmatpush2.msra.mxu0 %v2086
          %3001 = vmatprep.subr.mxu0 %v2083
          %3002 = vmatpush2.msra.mxu0 %v2082
          %3003 = vmatprep.subr.mxu0 %v2079
          %3004 = vmatpush2.msra.mxu0 %v2078
          %3005 = vmatprep.subr.mxu0 %v2075
          %3006 = vmatpush2.msra.mxu0 %v2074
          %3007 = vmatprep.subr.mxu0 %v2071
          %3008 = vmatpush2.msra.mxu0 %v2070
          %3009 = vmatprep.subr.mxu0 %v2067
          %3010 = vmatpush2.msra.mxu0 %v2066
          %3011 = vmatprep.subr.mxu0 %v2063
          %3012 = vmatpush2.msra.mxu0 %v2062
          %3013 = vmatprep.subr.mxu0 %v2059
          %3014 = vmatpush2.msra.mxu0 %v2058
          %3015 = vmatprep.subr.mxu0 %v2055
          %3016 = vmatpush2.msra.mxu0 %v2054
          %3017 = vmatprep.subr.mxu0 %v2051
          %3018 = vmatpush2.msra.mxu0 %v2050
          %3019 = vmatprep.subr.mxu0 %v2047
          %3020 = vmatpush2.msra.mxu0 %v2046
          %3021 = vmatprep.subr.mxu0 %v2043
          %3022 = vmatpush2.msra.mxu0 %v2042
          %3023 = vmatprep.mubr.f32.mxu0 %v2188
          %3024 = vmatmul.mubr.f32.gmra.mxu0 %v2180
          %v3025 = vpop.f32.mrf.mxu0
          %v3026 = vadd.f32 0.0, %v3025
          %v3027 = vpop.f32.mrf.mxu0
          %v3028 = vadd.f32 0.0, %v3027
          %3029 = vdwg.mxu0
          %3030 = vmatprep.subr.mxu0 %v2167
          %3031 = vmatpush1.msra.mxu0 %v2166
          %3032 = vmatprep.subr.mxu0 %v2163
          %3033 = vmatpush1.msra.mxu0 %v2162
          %3034 = vmatprep.subr.mxu0 %v2159
          %3035 = vmatpush1.msra.mxu0 %v2158
          %3036 = vmatprep.subr.mxu0 %v2155
          %3037 = vmatpush1.msra.mxu0 %v2154
          %3038 = vmatprep.subr.mxu0 %v2151
          %3039 = vmatpush1.msra.mxu0 %v2150
          %3040 = vmatprep.subr.mxu0 %v2147
          %3041 = vmatpush1.msra.mxu0 %v2146
          %3042 = vmatprep.subr.mxu0 %v2143
          %3043 = vmatpush1.msra.mxu0 %v2142
          %3044 = vmatprep.subr.mxu0 %v2139
          %3045 = vmatpush1.msra.mxu0 %v2138
          %3046 = vmatprep.subr.mxu0 %v2135
          %3047 = vmatpush1.msra.mxu0 %v2134
          %3048 = vmatprep.subr.mxu0 %v2131
          %3049 = vmatpush1.msra.mxu0 %v2130
          %3050 = vmatprep.subr.mxu0 %v2127
          %3051 = vmatpush1.msra.mxu0 %v2126
          %3052 = vmatprep.subr.mxu0 %v2123
          %3053 = vmatpush1.msra.mxu0 %v2122
          %3054 = vmatprep.subr.mxu0 %v2119
          %3055 = vmatpush1.msra.mxu0 %v2118
          %3056 = vmatprep.subr.mxu0 %v2115
          %3057 = vmatpush1.msra.mxu0 %v2114
          %3058 = vmatprep.subr.mxu0 %v2111
          %3059 = vmatpush1.msra.mxu0 %v2110
          %3060 = vmatprep.subr.mxu0 %v2107
          %3061 = vmatpush1.msra.mxu0 %v2106
          %3062 = vmatprep.subr.mxu0 0.0
          %3063 = vmatpush2.msra.mxu0 0.0
          %3064 = vmatprep.subr.mxu0 0.0
          %3065 = vmatpush2.msra.mxu0 0.0
          %3066 = vmatprep.subr.mxu0 0.0
          %3067 = vmatpush2.msra.mxu0 0.0
          %3068 = vmatprep.subr.mxu0 0.0
          %3069 = vmatpush2.msra.mxu0 0.0
          %3070 = vmatprep.subr.mxu0 0.0
          %3071 = vmatpush2.msra.mxu0 0.0
          %3072 = vmatprep.subr.mxu0 0.0
          %3073 = vmatpush2.msra.mxu0 0.0
          %3074 = vmatprep.subr.mxu0 0.0
          %3075 = vmatpush2.msra.mxu0 0.0
          %3076 = vmatprep.subr.mxu0 0.0
          %3077 = vmatpush2.msra.mxu0 0.0
          %3078 = vmatprep.subr.mxu0 0.0
          %3079 = vmatpush2.msra.mxu0 0.0
          %3080 = vmatprep.subr.mxu0 0.0
          %3081 = vmatpush2.msra.mxu0 0.0
          %3082 = vmatprep.subr.mxu0 0.0
          %3083 = vmatpush2.msra.mxu0 0.0
          %3084 = vmatprep.subr.mxu0 0.0
          %3085 = vmatpush2.msra.mxu0 0.0
          %3086 = vmatprep.subr.mxu0 0.0
          %3087 = vmatpush2.msra.mxu0 0.0
          %3088 = vmatprep.subr.mxu0 0.0
          %3089 = vmatpush2.msra.mxu0 0.0
          %3090 = vmatprep.subr.mxu0 0.0
          %3091 = vmatpush2.msra.mxu0 0.0
          %3092 = vmatprep.subr.mxu0 %v2171
          %3093 = vmatpush2.msra.mxu0 %v2170
          %3094 = vmatprep.mubr.f32.mxu0 %v2194
          %3095 = vmatmul.mubr.f32.gmra.mxu0 %v2187
          %v3096 = vpop.f32.mrf.mxu0
          %v3097 = vadd.f32 %v3026, %v3096
          %v3098 = vpop.f32.mrf.mxu0
          %v3099 = vadd.f32 %v3028, %v3098
          %3100 = vdwg.mxu0
          %3101 = vmatprep.subr.mxu0 %v1841
          %3102 = vmatpush1.msra.mxu0 %v1840
          %3103 = vmatprep.subr.mxu0 %v1837
          %3104 = vmatpush1.msra.mxu0 %v1836
          %3105 = vmatprep.subr.mxu0 %v1833
          %3106 = vmatpush1.msra.mxu0 %v1832
          %3107 = vmatprep.subr.mxu0 %v1829
          %3108 = vmatpush1.msra.mxu0 %v1828
          %3109 = vmatprep.subr.mxu0 %v1825
          %3110 = vmatpush1.msra.mxu0 %v1824
          %3111 = vmatprep.subr.mxu0 %v1821
          %3112 = vmatpush1.msra.mxu0 %v1820
          %3113 = vmatprep.subr.mxu0 %v1817
          %3114 = vmatpush1.msra.mxu0 %v1816
          %3115 = vmatprep.subr.mxu0 %v1813
          %3116 = vmatpush1.msra.mxu0 %v1812
          %3117 = vmatprep.subr.mxu0 %v1809
          %3118 = vmatpush1.msra.mxu0 %v1808
          %3119 = vmatprep.subr.mxu0 %v1805
          %3120 = vmatpush1.msra.mxu0 %v1804
          %3121 = vmatprep.subr.mxu0 %v1801
          %3122 = vmatpush1.msra.mxu0 %v1800
          %3123 = vmatprep.subr.mxu0 %v1797
          %3124 = vmatpush1.msra.mxu0 %v1796
          %3125 = vmatprep.subr.mxu0 %v1793
          %3126 = vmatpush1.msra.mxu0 %v1792
          %3127 = vmatprep.subr.mxu0 %v1789
          %3128 = vmatpush1.msra.mxu0 %v1788
          %3129 = vmatprep.subr.mxu0 %v1785
          %3130 = vmatpush1.msra.mxu0 %v1784
          %3131 = vmatprep.subr.mxu0 %v1781
          %3132 = vmatpush1.msra.mxu0 %v1780
          %3133 = vmatprep.subr.mxu0 %v1905
          %3134 = vmatpush2.msra.mxu0 %v1904
          %3135 = vmatprep.subr.mxu0 %v1901
          %3136 = vmatpush2.msra.mxu0 %v1900
          %3137 = vmatprep.subr.mxu0 %v1897
          %3138 = vmatpush2.msra.mxu0 %v1896
          %3139 = vmatprep.subr.mxu0 %v1893
          %3140 = vmatpush2.msra.mxu0 %v1892
          %3141 = vmatprep.subr.mxu0 %v1889
          %3142 = vmatpush2.msra.mxu0 %v1888
          %3143 = vmatprep.subr.mxu0 %v1885
          %3144 = vmatpush2.msra.mxu0 %v1884
          %3145 = vmatprep.subr.mxu0 %v1881
          %3146 = vmatpush2.msra.mxu0 %v1880
          %3147 = vmatprep.subr.mxu0 %v1877
          %3148 = vmatpush2.msra.mxu0 %v1876
          %3149 = vmatprep.subr.mxu0 %v1873
          %3150 = vmatpush2.msra.mxu0 %v1872
          %3151 = vmatprep.subr.mxu0 %v1869
          %3152 = vmatpush2.msra.mxu0 %v1868
          %3153 = vmatprep.subr.mxu0 %v1865
          %3154 = vmatpush2.msra.mxu0 %v1864
          %3155 = vmatprep.subr.mxu0 %v1861
          %3156 = vmatpush2.msra.mxu0 %v1860
          %3157 = vmatprep.subr.mxu0 %v1857
          %3158 = vmatpush2.msra.mxu0 %v1856
          %3159 = vmatprep.subr.mxu0 %v1853
          %3160 = vmatpush2.msra.mxu0 %v1852
          %3161 = vmatprep.subr.mxu0 %v1849
          %3162 = vmatpush2.msra.mxu0 %v1848
          %3163 = vmatprep.subr.mxu0 %v1845
          %3164 = vmatpush2.msra.mxu0 %v1844
          %3165 = vmatprep.mubr.f32.mxu0 %v2496
          %3166 = vmatmul.mubr.f32.gmra.mxu0 %v2488
          %v3167 = vpop.f32.mrf.mxu0
          %v3168 = vadd.f32 %v2955, %v3167
          %v3169 = vpop.f32.mrf.mxu0
          %v3170 = vadd.f32 %v2957, %v3169
          %3171 = vdwg.mxu0
          %3172 = vmatprep.subr.mxu0 %v1969
          %3173 = vmatpush1.msra.mxu0 %v1968
          %3174 = vmatprep.subr.mxu0 %v1965
          %3175 = vmatpush1.msra.mxu0 %v1964
          %3176 = vmatprep.subr.mxu0 %v1961
          %3177 = vmatpush1.msra.mxu0 %v1960
          %3178 = vmatprep.subr.mxu0 %v1957
          %3179 = vmatpush1.msra.mxu0 %v1956
          %3180 = vmatprep.subr.mxu0 %v1953
          %3181 = vmatpush1.msra.mxu0 %v1952
          %3182 = vmatprep.subr.mxu0 %v1949
          %3183 = vmatpush1.msra.mxu0 %v1948
          %3184 = vmatprep.subr.mxu0 %v1945
          %3185 = vmatpush1.msra.mxu0 %v1944
          %3186 = vmatprep.subr.mxu0 %v1941
          %3187 = vmatpush1.msra.mxu0 %v1940
          %3188 = vmatprep.subr.mxu0 %v1937
          %3189 = vmatpush1.msra.mxu0 %v1936
          %3190 = vmatprep.subr.mxu0 %v1933
          %3191 = vmatpush1.msra.mxu0 %v1932
          %3192 = vmatprep.subr.mxu0 %v1929
          %3193 = vmatpush1.msra.mxu0 %v1928
          %3194 = vmatprep.subr.mxu0 %v1925
          %3195 = vmatpush1.msra.mxu0 %v1924
          %3196 = vmatprep.subr.mxu0 %v1921
          %3197 = vmatpush1.msra.mxu0 %v1920
          %3198 = vmatprep.subr.mxu0 %v1917
          %3199 = vmatpush1.msra.mxu0 %v1916
          %3200 = vmatprep.subr.mxu0 %v1913
          %3201 = vmatpush1.msra.mxu0 %v1912
          %3202 = vmatprep.subr.mxu0 %v1909
          %3203 = vmatpush1.msra.mxu0 %v1908
          %3204 = vmatprep.subr.mxu0 0.0
          %3205 = vmatpush2.msra.mxu0 0.0
          %3206 = vmatprep.subr.mxu0 0.0
          %3207 = vmatpush2.msra.mxu0 0.0
          %3208 = vmatprep.subr.mxu0 0.0
          %3209 = vmatpush2.msra.mxu0 0.0
          %3210 = vmatprep.subr.mxu0 0.0
          %3211 = vmatpush2.msra.mxu0 0.0
          %3212 = vmatprep.subr.mxu0 0.0
          %3213 = vmatpush2.msra.mxu0 0.0
          %3214 = vmatprep.subr.mxu0 0.0
          %3215 = vmatpush2.msra.mxu0 0.0
          %3216 = vmatprep.subr.mxu0 0.0
          %3217 = vmatpush2.msra.mxu0 0.0
          %3218 = vmatprep.subr.mxu0 0.0
          %3219 = vmatpush2.msra.mxu0 0.0
          %3220 = vmatprep.subr.mxu0 0.0
          %3221 = vmatpush2.msra.mxu0 0.0
          %3222 = vmatprep.subr.mxu0 0.0
          %3223 = vmatpush2.msra.mxu0 0.0
          %3224 = vmatprep.subr.mxu0 0.0
          %3225 = vmatpush2.msra.mxu0 0.0
          %3226 = vmatprep.subr.mxu0 0.0
          %3227 = vmatpush2.msra.mxu0 0.0
          %3228 = vmatprep.subr.mxu0 0.0
          %3229 = vmatpush2.msra.mxu0 0.0
          %3230 = vmatprep.subr.mxu0 0.0
          %3231 = vmatpush2.msra.mxu0 0.0
          %3232 = vmatprep.subr.mxu0 0.0
          %3233 = vmatpush2.msra.mxu0 0.0
          %3234 = vmatprep.subr.mxu0 %v1973
          %3235 = vmatpush2.msra.mxu0 %v1972
          %3236 = vmatprep.mubr.f32.mxu0 %v2501
          %3237 = vmatmul.mubr.f32.gmra.mxu0 %v2495
          %v3238 = vpop.f32.mrf.mxu0
          %v3239 = vadd.f32 %v3168, %v3238
          %v3240 = vpop.f32.mrf.mxu0
          %v3241 = vadd.f32 %v3170, %v3240
          %3242 = vdwg.mxu0
          %3243 = vmatprep.subr.mxu0 %v1843
          %3244 = vmatpush1.msra.mxu0 %v1842
          %3245 = vmatprep.subr.mxu0 %v1839
          %3246 = vmatpush1.msra.mxu0 %v1838
          %3247 = vmatprep.subr.mxu0 %v1835
          %3248 = vmatpush1.msra.mxu0 %v1834
          %3249 = vmatprep.subr.mxu0 %v1831
          %3250 = vmatpush1.msra.mxu0 %v1830
          %3251 = vmatprep.subr.mxu0 %v1827
          %3252 = vmatpush1.msra.mxu0 %v1826
          %3253 = vmatprep.subr.mxu0 %v1823
          %3254 = vmatpush1.msra.mxu0 %v1822
          %3255 = vmatprep.subr.mxu0 %v1819
          %3256 = vmatpush1.msra.mxu0 %v1818
          %3257 = vmatprep.subr.mxu0 %v1815
          %3258 = vmatpush1.msra.mxu0 %v1814
          %3259 = vmatprep.subr.mxu0 %v1811
          %3260 = vmatpush1.msra.mxu0 %v1810
          %3261 = vmatprep.subr.mxu0 %v1807
          %3262 = vmatpush1.msra.mxu0 %v1806
          %3263 = vmatprep.subr.mxu0 %v1803
          %3264 = vmatpush1.msra.mxu0 %v1802
          %3265 = vmatprep.subr.mxu0 %v1799
          %3266 = vmatpush1.msra.mxu0 %v1798
          %3267 = vmatprep.subr.mxu0 %v1795
          %3268 = vmatpush1.msra.mxu0 %v1794
          %3269 = vmatprep.subr.mxu0 %v1791
          %3270 = vmatpush1.msra.mxu0 %v1790
          %3271 = vmatprep.subr.mxu0 %v1787
          %3272 = vmatpush1.msra.mxu0 %v1786
          %3273 = vmatprep.subr.mxu0 %v1783
          %3274 = vmatpush1.msra.mxu0 %v1782
          %3275 = vmatprep.subr.mxu0 %v1907
          %3276 = vmatpush2.msra.mxu0 %v1906
          %3277 = vmatprep.subr.mxu0 %v1903
          %3278 = vmatpush2.msra.mxu0 %v1902
          %3279 = vmatprep.subr.mxu0 %v1899
          %3280 = vmatpush2.msra.mxu0 %v1898
          %3281 = vmatprep.subr.mxu0 %v1895
          %3282 = vmatpush2.msra.mxu0 %v1894
          %3283 = vmatprep.subr.mxu0 %v1891
          %3284 = vmatpush2.msra.mxu0 %v1890
          %3285 = vmatprep.subr.mxu0 %v1887
          %3286 = vmatpush2.msra.mxu0 %v1886
          %3287 = vmatprep.subr.mxu0 %v1883
          %3288 = vmatpush2.msra.mxu0 %v1882
          %3289 = vmatprep.subr.mxu0 %v1879
          %3290 = vmatpush2.msra.mxu0 %v1878
          %3291 = vmatprep.subr.mxu0 %v1875
          %3292 = vmatpush2.msra.mxu0 %v1874
          %3293 = vmatprep.subr.mxu0 %v1871
          %3294 = vmatpush2.msra.mxu0 %v1870
          %3295 = vmatprep.subr.mxu0 %v1867
          %3296 = vmatpush2.msra.mxu0 %v1866
          %3297 = vmatprep.subr.mxu0 %v1863
          %3298 = vmatpush2.msra.mxu0 %v1862
          %3299 = vmatprep.subr.mxu0 %v1859
          %3300 = vmatpush2.msra.mxu0 %v1858
          %3301 = vmatprep.subr.mxu0 %v1855
          %3302 = vmatpush2.msra.mxu0 %v1854
          %3303 = vmatprep.subr.mxu0 %v1851
          %3304 = vmatpush2.msra.mxu0 %v1850
          %3305 = vmatprep.subr.mxu0 %v1847
          %3306 = vmatpush2.msra.mxu0 %v1846
          %3307 = vmatprep.mubr.f32.mxu0 %v2496
          %3308 = vmatmul.mubr.f32.gmra.mxu0 %v2488
          %v3309 = vpop.f32.mrf.mxu0
          %v3310 = vadd.f32 %v3097, %v3309
          %v3311 = vpop.f32.mrf.mxu0
          %v3312 = vadd.f32 %v3099, %v3311
          %3313 = vdwg.mxu0
          %3314 = vmatprep.subr.mxu0 %v1971
          %3315 = vmatpush1.msra.mxu0 %v1970
          %3316 = vmatprep.subr.mxu0 %v1967
          %3317 = vmatpush1.msra.mxu0 %v1966
          %3318 = vmatprep.subr.mxu0 %v1963
          %3319 = vmatpush1.msra.mxu0 %v1962
          %3320 = vmatprep.subr.mxu0 %v1959
          %3321 = vmatpush1.msra.mxu0 %v1958
          %3322 = vmatprep.subr.mxu0 %v1955
          %3323 = vmatpush1.msra.mxu0 %v1954
          %3324 = vmatprep.subr.mxu0 %v1951
          %3325 = vmatpush1.msra.mxu0 %v1950
          %3326 = vmatprep.subr.mxu0 %v1947
          %3327 = vmatpush1.msra.mxu0 %v1946
          %3328 = vmatprep.subr.mxu0 %v1943
          %3329 = vmatpush1.msra.mxu0 %v1942
          %3330 = vmatprep.subr.mxu0 %v1939
          %3331 = vmatpush1.msra.mxu0 %v1938
          %3332 = vmatprep.subr.mxu0 %v1935
          %3333 = vmatpush1.msra.mxu0 %v1934
          %3334 = vmatprep.subr.mxu0 %v1931
          %3335 = vmatpush1.msra.mxu0 %v1930
          %3336 = vmatprep.subr.mxu0 %v1927
          %3337 = vmatpush1.msra.mxu0 %v1926
          %3338 = vmatprep.subr.mxu0 %v1923
          %3339 = vmatpush1.msra.mxu0 %v1922
          %3340 = vmatprep.subr.mxu0 %v1919
          %3341 = vmatpush1.msra.mxu0 %v1918
          %3342 = vmatprep.subr.mxu0 %v1915
          %3343 = vmatpush1.msra.mxu0 %v1914
          %3344 = vmatprep.subr.mxu0 %v1911
          %3345 = vmatpush1.msra.mxu0 %v1910
          %3346 = vmatprep.subr.mxu0 0.0
          %3347 = vmatpush2.msra.mxu0 0.0
          %3348 = vmatprep.subr.mxu0 0.0
          %3349 = vmatpush2.msra.mxu0 0.0
          %3350 = vmatprep.subr.mxu0 0.0
          %3351 = vmatpush2.msra.mxu0 0.0
          %3352 = vmatprep.subr.mxu0 0.0
          %3353 = vmatpush2.msra.mxu0 0.0
          %3354 = vmatprep.subr.mxu0 0.0
          %3355 = vmatpush2.msra.mxu0 0.0
          %3356 = vmatprep.subr.mxu0 0.0
          %3357 = vmatpush2.msra.mxu0 0.0
          %3358 = vmatprep.subr.mxu0 0.0
          %3359 = vmatpush2.msra.mxu0 0.0
          %3360 = vmatprep.subr.mxu0 0.0
          %3361 = vmatpush2.msra.mxu0 0.0
          %3362 = vmatprep.subr.mxu0 0.0
          %3363 = vmatpush2.msra.mxu0 0.0
          %3364 = vmatprep.subr.mxu0 0.0
          %3365 = vmatpush2.msra.mxu0 0.0
          %3366 = vmatprep.subr.mxu0 0.0
          %3367 = vmatpush2.msra.mxu0 0.0
          %3368 = vmatprep.subr.mxu0 0.0
          %3369 = vmatpush2.msra.mxu0 0.0
          %3370 = vmatprep.subr.mxu0 0.0
          %3371 = vmatpush2.msra.mxu0 0.0
          %3372 = vmatprep.subr.mxu0 0.0
          %3373 = vmatpush2.msra.mxu0 0.0
          %3374 = vmatprep.subr.mxu0 0.0
          %3375 = vmatpush2.msra.mxu0 0.0
          %3376 = vmatprep.subr.mxu0 %v1975
          %3377 = vmatpush2.msra.mxu0 %v1974
          %3378 = vmatprep.mubr.f32.mxu0 %v2501
          %3379 = vmatmul.mubr.f32.gmra.mxu0 %v2495
          %v3380 = vpop.f32.mrf.mxu0
          %v3381 = vadd.f32 %v3310, %v3380
          %v3382 = vpop.f32.mrf.mxu0
          %v3383 = vadd.f32 %v3312, %v3382
          %3384 = vdwg.mxu0
          %v3389 = vcombine.low %v3239, %v3241
          %v3390 = vcombine.low %v3381, %v3383
          %v3392 = vunpack.c.l.s4 1983009808
          %v3393 = vunpack.c.0.s8 %v3392
          %v3394 = vlaneseq
          %v3395 = vshrl.u32 %v3394, 7
          %v3396 = vsub.s32 %v3393, %v3395
          %v3397 = vrot.slane %v3389, %v3396
          %v3399 = vunpack.c.l.s4 1983009808
          %v3400 = vunpack.c.0.s8 %v3399
          %v3401 = vlaneseq
          %v3402 = vshrl.u32 %v3401, 7
          %v3403 = vsub.s32 %v3400, %v3402
          %v3404 = vrot.slane %v3390, %v3403
          %v3405 = vcombine.low %v3397, %v3404
          %3407 = vst.msk [vmem:[#allocation3] sm:$0xff] %vm2815, %v3405
        $region88: #{cinn_forward.1} parent=79 // pred_fallthru
          _
        %s3408 = scalar_select %p961, 1, 0
        %s3409 = scvt.s32.f32 %s3408
        %v3410 = vld [vmem:[#allocation2] sm:$0xff]
        %v3411 = vld [vmem:[#allocation3] sm:$0xff]
        %v3412 = vstv %s3409
        %v3413 = vmul.f32 %v3412, %v3411
        %s3414 = ssub.f32 1.0, %s3409
        %v3415 = vstv %s3414
        %v3416 = vmul.f32 %v3415, %v3410
        %v3417 = vadd.f32 %v3413, %v3416
        %v3418 = vmul.f32 %v3412, %v3410
        %v3419 = vmul.f32 %v3415, %v3411
        %v3420 = vadd.f32 %v3418, %v3419
        %v3422 = vcombine.high %v3417, %v3417
        %v3424 = vunpack.c.l.s4 1983009808
        %v3425 = vunpack.c.0.s8 %v3424
        %v3426 = vlaneseq
        %v3427 = vshrl.u32 %v3426, 7
        %v3428 = vsub.s32 %v3425, %v3427
        %v3429 = vrot.slane %v3417, %v3428
        %v3431 = vunpack.c.l.s4 1983009808
        %v3432 = vunpack.c.0.s8 %v3431
        %v3433 = vlaneseq
        %v3434 = vshrl.u32 %v3433, 7
        %v3435 = vsub.s32 %v3432, %v3434
        %v3436 = vrot.slane %v3422, %v3435
        %v3437 = vcombine.high %v3429, %v3429
        %v3438 = vcombine.high %v3436, %v3436
        %v3443 = vpack.c.bf16 %v3429, %v3429
        %v3444 = vpack.c.bf16 %v3437, %v3437
        %v3445 = vpack.c.bf16 %v3436, %v3436
        %v3446 = vpack.c.bf16 %v3438, %v3438
        %v3447 = vld [vmem:[%s869] sm:$0xff]
        %v3448 = vld [vmem:[%s869 + $0x8] sm:$0xff]
        %v3449 = vld [vmem:[%s869 + $0x10] sm:$0xff]
        %v3450 = vld [vmem:[%s869 + $0x18] sm:$0xff]
        %v3451 = vld [vmem:[%s869 + $0x20] sm:$0xff]
        %v3452 = vld [vmem:[%s869 + $0x28] sm:$0xff]
        %v3453 = vld [vmem:[%s869 + $0x30] sm:$0xff]
        %v3454 = vld [vmem:[%s869 + $0x38] sm:$0xff]
        %v3455 = vld [vmem:[%s869 + $0x40] sm:$0xff]
        %v3456 = vld [vmem:[%s869 + $0x48] sm:$0xff]
        %v3457 = vld [vmem:[%s869 + $0x50] sm:$0xff]
        %v3458 = vld [vmem:[%s869 + $0x58] sm:$0xff]
        %v3459 = vld [vmem:[%s869 + $0x60] sm:$0xff]
        %v3460 = vld [vmem:[%s869 + $0x68] sm:$0xff]
        %v3461 = vld [vmem:[%s869 + $0x70] sm:$0xff]
        %v3462 = vld [vmem:[%s869 + $0x78] sm:$0xff]
        %v3463 = vld [vmem:[%s869 + $0x80] sm:$0xff]
        %v3464 = vld [vmem:[%s869 + $0x88] sm:$0xff]
        %v3465 = vld [vmem:[%s869 + $0x90] sm:$0xff]
        %v3466 = vld [vmem:[%s869 + $0x98] sm:$0xff]
        %v3467 = vld [vmem:[%s869 + $0xa0] sm:$0xff]
        %v3468 = vld [vmem:[%s869 + $0xa8] sm:$0xff]
        %v3469 = vld [vmem:[%s869 + $0xb0] sm:$0xff]
        %v3470 = vld [vmem:[%s869 + $0xb8] sm:$0xff]
        %v3471 = vld [vmem:[%s869 + $0xc0] sm:$0xff]
        %v3472 = vld [vmem:[%s869 + $0xc8] sm:$0xff]
        %v3473 = vld [vmem:[%s869 + $0xd0] sm:$0xff]
        %v3474 = vld [vmem:[%s869 + $0xd8] sm:$0xff]
        %v3475 = vld [vmem:[%s869 + $0xe0] sm:$0xff]
        %v3476 = vld [vmem:[%s869 + $0xe8] sm:$0xff]
        %v3477 = vld [vmem:[%s869 + $0xf0] sm:$0xff]
        %v3478 = vld [vmem:[%s869 + $0xf8] sm:$0xff]
        %v3479 = vld [vmem:[%s869 + $0x100] sm:$0xff]
        %v3480 = vld [vmem:[%s869 + $0x108] sm:$0xff]
        %v3481 = vld [vmem:[%s869 + $0x110] sm:$0xff]
        %v3482 = vld [vmem:[%s869 + $0x118] sm:$0xff]
        %v3483 = vld [vmem:[%s869 + $0x120] sm:$0xff]
        %v3484 = vld [vmem:[%s869 + $0x128] sm:$0xff]
        %v3485 = vld [vmem:[%s869 + $0x130] sm:$0xff]
        %v3486 = vld [vmem:[%s869 + $0x138] sm:$0xff]
        %v3487 = vld [vmem:[%s869 + $0x140] sm:$0xff]
        %v3488 = vld [vmem:[%s869 + $0x148] sm:$0xff]
        %v3489 = vld [vmem:[%s869 + $0x150] sm:$0xff]
        %v3490 = vld [vmem:[%s869 + $0x158] sm:$0xff]
        %v3491 = vld [vmem:[%s869 + $0x160] sm:$0xff]
        %v3492 = vld [vmem:[%s869 + $0x168] sm:$0xff]
        %v3493 = vld [vmem:[%s869 + $0x170] sm:$0xff]
        %v3494 = vld [vmem:[%s869 + $0x178] sm:$0xff]
        %v3495 = vld [vmem:[%s869 + $0x180] sm:$0xff]
        %v3496 = vld [vmem:[%s869 + $0x188] sm:$0xff]
        %v3497 = vld [vmem:[%s869 + $0x190] sm:$0xff]
        %v3498 = vld [vmem:[%s869 + $0x198] sm:$0xff]
        %v3499 = vld [vmem:[%s869 + $0x1a0] sm:$0xff]
        %v3500 = vld [vmem:[%s869 + $0x1a8] sm:$0xff]
        %v3501 = vld [vmem:[%s869 + $0x1b0] sm:$0xff]
        %v3502 = vld [vmem:[%s869 + $0x1b8] sm:$0xff]
        %v3503 = vld [vmem:[%s869 + $0x1c0] sm:$0xff]
        %v3504 = vld [vmem:[%s869 + $0x1c8] sm:$0xff]
        %v3505 = vld [vmem:[%s869 + $0x1d0] sm:$0xff]
        %v3506 = vld [vmem:[%s869 + $0x1d8] sm:$0xff]
        %v3507 = vld [vmem:[%s869 + $0x1e0] sm:$0xff]
        %v3508 = vld [vmem:[%s869 + $0x1e8] sm:$0xff]
        %v3509 = vld [vmem:[%s869 + $0x1f0] sm:$0xff]
        %v3510 = vld [vmem:[%s869 + $0x1f8] sm:$0xff]
        %v3511 = vld [vmem:[%s869 + $0x200] sm:$0xff]
        %v3512 = vld [vmem:[%s869 + $0x208] sm:$0xff]
        %v3513 = vld [vmem:[%s869 + $0x210] sm:$0xff]
        %v3514 = vld [vmem:[%s869 + $0x218] sm:$0xff]
        %v3515 = vld [vmem:[%s869 + $0x220] sm:$0xff]
        %v3516 = vld [vmem:[%s869 + $0x228] sm:$0xff]
        %v3517 = vld [vmem:[%s869 + $0x230] sm:$0xff]
        %v3518 = vld [vmem:[%s869 + $0x238] sm:$0xff]
        %v3519 = vld [vmem:[%s869 + $0x240] sm:$0xff]
        %v3520 = vld [vmem:[%s869 + $0x248] sm:$0xff]
        %v3521 = vld [vmem:[%s869 + $0x250] sm:$0xff]
        %v3522 = vld [vmem:[%s869 + $0x258] sm:$0xff]
        %v3523 = vld [vmem:[%s869 + $0x260] sm:$0xff]
        %v3524 = vld [vmem:[%s869 + $0x268] sm:$0xff]
        %v3525 = vld [vmem:[%s869 + $0x270] sm:$0xff]
        %v3526 = vld [vmem:[%s869 + $0x278] sm:$0xff]
        %v3527 = vld [vmem:[%s869 + $0x280] sm:$0xff]
        %v3528 = vld [vmem:[%s869 + $0x288] sm:$0xff]
        %v3529 = vld [vmem:[%s869 + $0x290] sm:$0xff]
        %v3530 = vld [vmem:[%s869 + $0x298] sm:$0xff]
        %v3531 = vld [vmem:[%s869 + $0x2a0] sm:$0xff]
        %v3532 = vld [vmem:[%s869 + $0x2a8] sm:$0xff]
        %v3533 = vld [vmem:[%s869 + $0x2b0] sm:$0xff]
        %v3534 = vld [vmem:[%s869 + $0x2b8] sm:$0xff]
        %v3535 = vld [vmem:[%s869 + $0x2c0] sm:$0xff]
        %v3536 = vld [vmem:[%s869 + $0x2c8] sm:$0xff]
        %v3537 = vld [vmem:[%s869 + $0x2d0] sm:$0xff]
        %v3538 = vld [vmem:[%s869 + $0x2d8] sm:$0xff]
        %v3539 = vld [vmem:[%s869 + $0x2e0] sm:$0xff]
        %v3540 = vld [vmem:[%s869 + $0x2e8] sm:$0xff]
        %v3541 = vld [vmem:[%s869 + $0x2f0] sm:$0xff]
        %v3542 = vld [vmem:[%s869 + $0x2f8] sm:$0xff]
        %v3543 = vld [vmem:[%s869 + $0x300] sm:$0xff]
        %v3544 = vld [vmem:[%s869 + $0x308] sm:$0xff]
        %v3545 = vld [vmem:[%s850] sm:$0x3]
        %v3546 = vpack.c.bf16 %v3545, %v3545
        %v3547 = vld [vmem:[%s878] sm:$0xff]
        %v3548 = vld [vmem:[%s878 + $0x8] sm:$0xff]
        %v3549 = vld [vmem:[%s878 + $0x10] sm:$0x11]
        %v3550 = vld [vmem:[%s878 + $0x18] sm:$0x11]
        %v3555 = vunpack.c.l.b16 %v3547
        %v3556 = vunpack.c.h.b16 %v3547
        %v3557 = vunpack.c.l.b16 %v3548
        %v3558 = vunpack.c.h.b16 %v3548
        %v3559 = vunpack.c.l.b16 %v3549
        %v3560 = vunpack.c.h.b16 %v3549
        %v3561 = vunpack.c.l.b16 %v3550
        %v3562 = vunpack.c.h.b16 %v3550
        %v3563 = vpack.c.b16 %v3559, %v3555
        %v3564 = vpack.c.b16 %v3560, %v3556
        %v3565 = vpack.c.b16 %v3561, %v3557
        %v3566 = vpack.c.b16 %v3562, %v3558
        %vm3567 = vcmask 80896
        %v3569 = vsel %vm3567, %v3546, 0
        %vm3571 = vcmask 1044480
        %v3573 = vsel %vm3571, %v3563, 0
        %v3576 = vsel %vm3571, %v3564, 0
        %v3579 = vsel %vm3571, %v3565, 0
        %v3582 = vsel %vm3571, %v3566, 0
        %3584 = vmatprep.subr.bf16.mxu0 0
        %3585 = vmatpush1.bf16.msra.mxu0 0
        %3586 = vmatprep.subr.bf16.mxu0 0
        %3587 = vmatpush1.bf16.msra.mxu0 0
        %3588 = vmatprep.subr.bf16.mxu0 0
        %3589 = vmatpush1.bf16.msra.mxu0 0
        %3590 = vmatprep.subr.bf16.mxu0 0
        %3591 = vmatpush1.bf16.msra.mxu0 0
        %3592 = vmatprep.subr.bf16.mxu0 0
        %3593 = vmatpush1.bf16.msra.mxu0 0
        %3594 = vmatprep.subr.bf16.mxu0 0
        %3595 = vmatpush1.bf16.msra.mxu0 0
        %3596 = vmatprep.subr.bf16.mxu0 0
        %3597 = vmatpush1.bf16.msra.mxu0 0
        %3598 = vmatprep.subr.bf16.mxu0 %v3576
        %3599 = vmatpush1.bf16.msra.mxu0 %v3573
        %3600 = vmatprep.subr.bf16.mxu0 0
        %3601 = vmatpush2.bf16.msra.mxu0 0
        %3602 = vmatprep.subr.bf16.mxu0 0
        %3603 = vmatpush2.bf16.msra.mxu0 0
        %3604 = vmatprep.subr.bf16.mxu0 0
        %3605 = vmatpush2.bf16.msra.mxu0 0
        %3606 = vmatprep.subr.bf16.mxu0 0
        %3607 = vmatpush2.bf16.msra.mxu0 0
        %3608 = vmatprep.subr.bf16.mxu0 0
        %3609 = vmatpush2.bf16.msra.mxu0 0
        %3610 = vmatprep.subr.bf16.mxu0 0
        %3611 = vmatpush2.bf16.msra.mxu0 0
        %3612 = vmatprep.subr.bf16.mxu0 0
        %3613 = vmatpush2.bf16.msra.mxu0 0
        %3614 = vmatprep.subr.bf16.mxu0 0
        %3615 = vmatpush2.bf16.msra.mxu0 0
        %3616 = vmatprep.mubr.bf16.mxu0 0
        %3617 = vmatmul.mubr.bf16.gmra.mxu0 %v3569
        %v3618 = vpop.f32.mrf.mxu0
        %v3619 = vadd.f32 0.0, %v3618
        %v3620 = vpop.f32.mrf.mxu0
        %v3621 = vadd.f32 0.0, %v3620
        %v3622 = vpop.f32.mrf.mxu0
        %v3623 = vpop.f32.mrf.mxu0
        %3624 = vdwg.mxu0
        %3625 = vmatprep.subr.bf16.mxu0 0
        %3626 = vmatpush1.bf16.msra.mxu0 0
        %3627 = vmatprep.subr.bf16.mxu0 0
        %3628 = vmatpush1.bf16.msra.mxu0 0
        %3629 = vmatprep.subr.bf16.mxu0 0
        %3630 = vmatpush1.bf16.msra.mxu0 0
        %3631 = vmatprep.subr.bf16.mxu0 0
        %3632 = vmatpush1.bf16.msra.mxu0 0
        %3633 = vmatprep.subr.bf16.mxu0 0
        %3634 = vmatpush1.bf16.msra.mxu0 0
        %3635 = vmatprep.subr.bf16.mxu0 0
        %3636 = vmatpush1.bf16.msra.mxu0 0
        %3637 = vmatprep.subr.bf16.mxu0 0
        %3638 = vmatpush1.bf16.msra.mxu0 0
        %3639 = vmatprep.subr.bf16.mxu0 %v3582
        %3640 = vmatpush1.bf16.msra.mxu0 %v3579
        %3641 = vmatprep.subr.bf16.mxu0 0
        %3642 = vmatpush2.bf16.msra.mxu0 0
        %3643 = vmatprep.subr.bf16.mxu0 0
        %3644 = vmatpush2.bf16.msra.mxu0 0
        %3645 = vmatprep.subr.bf16.mxu0 0
        %3646 = vmatpush2.bf16.msra.mxu0 0
        %3647 = vmatprep.subr.bf16.mxu0 0
        %3648 = vmatpush2.bf16.msra.mxu0 0
        %3649 = vmatprep.subr.bf16.mxu0 0
        %3650 = vmatpush2.bf16.msra.mxu0 0
        %3651 = vmatprep.subr.bf16.mxu0 0
        %3652 = vmatpush2.bf16.msra.mxu0 0
        %3653 = vmatprep.subr.bf16.mxu0 0
        %3654 = vmatpush2.bf16.msra.mxu0 0
        %3655 = vmatprep.subr.bf16.mxu0 0
        %3656 = vmatpush2.bf16.msra.mxu0 0
        %3657 = vmatprep.mubr.bf16.mxu0 0
        %3658 = vmatmul.mubr.bf16.gmra.mxu0 %v3569
        %v3659 = vpop.f32.mrf.mxu0
        %v3660 = vadd.f32 0.0, %v3659
        %v3661 = vpop.f32.mrf.mxu0
        %v3662 = vadd.f32 0.0, %v3661
        %v3663 = vpop.f32.mrf.mxu0
        %v3664 = vpop.f32.mrf.mxu0
        %3665 = vdwg.mxu0
        %v3764 = vunpack.c.l.b16 %v3447
        %v3765 = vunpack.c.h.b16 %v3447
        %v3766 = vunpack.c.l.b16 %v3448
        %v3767 = vunpack.c.h.b16 %v3448
        %v3768 = vunpack.c.l.b16 %v3449
        %v3769 = vunpack.c.h.b16 %v3449
        %v3770 = vunpack.c.l.b16 %v3450
        %v3771 = vunpack.c.h.b16 %v3450
        %v3772 = vunpack.c.l.b16 %v3451
        %v3773 = vunpack.c.h.b16 %v3451
        %v3774 = vunpack.c.l.b16 %v3452
        %v3775 = vunpack.c.h.b16 %v3452
        %v3776 = vunpack.c.l.b16 %v3453
        %v3777 = vunpack.c.h.b16 %v3453
        %v3778 = vunpack.c.l.b16 %v3454
        %v3779 = vunpack.c.h.b16 %v3454
        %v3780 = vunpack.c.l.b16 %v3455
        %v3781 = vunpack.c.h.b16 %v3455
        %v3782 = vunpack.c.l.b16 %v3456
        %v3783 = vunpack.c.h.b16 %v3456
        %v3784 = vunpack.c.l.b16 %v3457
        %v3785 = vunpack.c.h.b16 %v3457
        %v3786 = vunpack.c.l.b16 %v3458
        %v3787 = vunpack.c.h.b16 %v3458
        %v3788 = vunpack.c.l.b16 %v3459
        %v3789 = vunpack.c.h.b16 %v3459
        %v3790 = vunpack.c.l.b16 %v3460
        %v3791 = vunpack.c.h.b16 %v3460
        %v3792 = vunpack.c.l.b16 %v3461
        %v3793 = vunpack.c.h.b16 %v3461
        %v3794 = vunpack.c.l.b16 %v3462
        %v3795 = vunpack.c.h.b16 %v3462
        %v3796 = vunpack.c.l.b16 %v3463
        %v3797 = vunpack.c.h.b16 %v3463
        %v3798 = vunpack.c.l.b16 %v3464
        %v3799 = vunpack.c.h.b16 %v3464
        %v3800 = vunpack.c.l.b16 %v3465
        %v3801 = vunpack.c.h.b16 %v3465
        %v3802 = vunpack.c.l.b16 %v3466
        %v3803 = vunpack.c.h.b16 %v3466
        %v3804 = vunpack.c.l.b16 %v3467
        %v3805 = vunpack.c.h.b16 %v3467
        %v3806 = vunpack.c.l.b16 %v3468
        %v3807 = vunpack.c.h.b16 %v3468
        %v3808 = vunpack.c.l.b16 %v3469
        %v3809 = vunpack.c.h.b16 %v3469
        %v3810 = vunpack.c.l.b16 %v3470
        %v3811 = vunpack.c.h.b16 %v3470
        %v3812 = vunpack.c.l.b16 %v3471
        %v3813 = vunpack.c.h.b16 %v3471
        %v3814 = vunpack.c.l.b16 %v3472
        %v3815 = vunpack.c.h.b16 %v3472
        %v3816 = vunpack.c.l.b16 %v3473
        %v3817 = vunpack.c.h.b16 %v3473
        %v3818 = vunpack.c.l.b16 %v3474
        %v3819 = vunpack.c.h.b16 %v3474
        %v3820 = vunpack.c.l.b16 %v3475
        %v3821 = vunpack.c.h.b16 %v3475
        %v3822 = vunpack.c.l.b16 %v3476
        %v3823 = vunpack.c.h.b16 %v3476
        %v3824 = vunpack.c.l.b16 %v3477
        %v3825 = vunpack.c.h.b16 %v3477
        %v3826 = vunpack.c.l.b16 %v3478
        %v3827 = vunpack.c.h.b16 %v3478
        %v3828 = vunpack.c.l.b16 %v3479
        %v3829 = vunpack.c.h.b16 %v3479
        %v3830 = vunpack.c.l.b16 %v3480
        %v3831 = vunpack.c.h.b16 %v3480
        %v3832 = vunpack.c.l.b16 %v3481
        %v3833 = vunpack.c.h.b16 %v3481
        %v3834 = vunpack.c.l.b16 %v3482
        %v3835 = vunpack.c.h.b16 %v3482
        %v3836 = vunpack.c.l.b16 %v3483
        %v3837 = vunpack.c.h.b16 %v3483
        %v3838 = vunpack.c.l.b16 %v3484
        %v3839 = vunpack.c.h.b16 %v3484
        %v3840 = vunpack.c.l.b16 %v3485
        %v3841 = vunpack.c.h.b16 %v3485
        %v3842 = vunpack.c.l.b16 %v3486
        %v3843 = vunpack.c.h.b16 %v3486
        %v3844 = vunpack.c.l.b16 %v3487
        %v3845 = vunpack.c.h.b16 %v3487
        %v3846 = vunpack.c.l.b16 %v3488
        %v3847 = vunpack.c.h.b16 %v3488
        %v3848 = vunpack.c.l.b16 %v3489
        %v3849 = vunpack.c.h.b16 %v3489
        %v3850 = vunpack.c.l.b16 %v3490
        %v3851 = vunpack.c.h.b16 %v3490
        %v3852 = vunpack.c.l.b16 %v3491
        %v3853 = vunpack.c.h.b16 %v3491
        %v3854 = vunpack.c.l.b16 %v3492
        %v3855 = vunpack.c.h.b16 %v3492
        %v3856 = vunpack.c.l.b16 %v3493
        %v3857 = vunpack.c.h.b16 %v3493
        %v3858 = vunpack.c.l.b16 %v3494
        %v3859 = vunpack.c.h.b16 %v3494
        %v3860 = vunpack.c.l.b16 %v3495
        %v3861 = vunpack.c.h.b16 %v3495
        %v3862 = vunpack.c.l.b16 %v3496
        %v3863 = vunpack.c.h.b16 %v3496
        %v3864 = vunpack.c.l.b16 %v3497
        %v3865 = vunpack.c.h.b16 %v3497
        %v3866 = vunpack.c.l.b16 %v3498
        %v3867 = vunpack.c.h.b16 %v3498
        %v3868 = vunpack.c.l.b16 %v3499
        %v3869 = vunpack.c.h.b16 %v3499
        %v3870 = vunpack.c.l.b16 %v3500
        %v3871 = vunpack.c.h.b16 %v3500
        %v3872 = vunpack.c.l.b16 %v3501
        %v3873 = vunpack.c.h.b16 %v3501
        %v3874 = vunpack.c.l.b16 %v3502
        %v3875 = vunpack.c.h.b16 %v3502
        %v3876 = vunpack.c.l.b16 %v3503
        %v3877 = vunpack.c.h.b16 %v3503
        %v3878 = vunpack.c.l.b16 %v3504
        %v3879 = vunpack.c.h.b16 %v3504
        %v3880 = vunpack.c.l.b16 %v3505
        %v3881 = vunpack.c.h.b16 %v3505
        %v3882 = vunpack.c.l.b16 %v3506
        %v3883 = vunpack.c.h.b16 %v3506
        %v3884 = vunpack.c.l.b16 %v3507
        %v3885 = vunpack.c.h.b16 %v3507
        %v3886 = vunpack.c.l.b16 %v3508
        %v3887 = vunpack.c.h.b16 %v3508
        %v3888 = vunpack.c.l.b16 %v3509
        %v3889 = vunpack.c.h.b16 %v3509
        %v3890 = vunpack.c.l.b16 %v3510
        %v3891 = vunpack.c.h.b16 %v3510
        %v3892 = vunpack.c.l.b16 %v3511
        %v3893 = vunpack.c.h.b16 %v3511
        %v3894 = vunpack.c.l.b16 %v3512
        %v3895 = vunpack.c.h.b16 %v3512
        %v3896 = vunpack.c.l.b16 %v3513
        %v3897 = vunpack.c.h.b16 %v3513
        %v3898 = vunpack.c.l.b16 %v3514
        %v3899 = vunpack.c.h.b16 %v3514
        %v3900 = vunpack.c.l.b16 %v3515
        %v3901 = vunpack.c.h.b16 %v3515
        %v3902 = vunpack.c.l.b16 %v3516
        %v3903 = vunpack.c.h.b16 %v3516
        %v3904 = vunpack.c.l.b16 %v3517
        %v3905 = vunpack.c.h.b16 %v3517
        %v3906 = vunpack.c.l.b16 %v3518
        %v3907 = vunpack.c.h.b16 %v3518
        %v3908 = vunpack.c.l.b16 %v3519
        %v3909 = vunpack.c.h.b16 %v3519
        %v3910 = vunpack.c.l.b16 %v3520
        %v3911 = vunpack.c.h.b16 %v3520
        %v3912 = vunpack.c.l.b16 %v3521
        %v3913 = vunpack.c.h.b16 %v3521
        %v3914 = vunpack.c.l.b16 %v3522
        %v3915 = vunpack.c.h.b16 %v3522
        %v3916 = vunpack.c.l.b16 %v3523
        %v3917 = vunpack.c.h.b16 %v3523
        %v3918 = vunpack.c.l.b16 %v3524
        %v3919 = vunpack.c.h.b16 %v3524
        %v3920 = vunpack.c.l.b16 %v3525
        %v3921 = vunpack.c.h.b16 %v3525
        %v3922 = vunpack.c.l.b16 %v3526
        %v3923 = vunpack.c.h.b16 %v3526
        %v3924 = vunpack.c.l.b16 %v3527
        %v3925 = vunpack.c.h.b16 %v3527
        %v3926 = vunpack.c.l.b16 %v3528
        %v3927 = vunpack.c.h.b16 %v3528
        %v3928 = vunpack.c.l.b16 %v3529
        %v3929 = vunpack.c.h.b16 %v3529
        %v3930 = vunpack.c.l.b16 %v3530
        %v3931 = vunpack.c.h.b16 %v3530
        %v3932 = vunpack.c.l.b16 %v3531
        %v3933 = vunpack.c.h.b16 %v3531
        %v3934 = vunpack.c.l.b16 %v3532
        %v3935 = vunpack.c.h.b16 %v3532
        %v3936 = vunpack.c.l.b16 %v3533
        %v3937 = vunpack.c.h.b16 %v3533
        %v3938 = vunpack.c.l.b16 %v3534
        %v3939 = vunpack.c.h.b16 %v3534
        %v3940 = vunpack.c.l.b16 %v3535
        %v3941 = vunpack.c.h.b16 %v3535
        %v3942 = vunpack.c.l.b16 %v3536
        %v3943 = vunpack.c.h.b16 %v3536
        %v3944 = vunpack.c.l.b16 %v3537
        %v3945 = vunpack.c.h.b16 %v3537
        %v3946 = vunpack.c.l.b16 %v3538
        %v3947 = vunpack.c.h.b16 %v3538
        %v3948 = vunpack.c.l.b16 %v3539
        %v3949 = vunpack.c.h.b16 %v3539
        %v3950 = vunpack.c.l.b16 %v3540
        %v3951 = vunpack.c.h.b16 %v3540
        %v3952 = vunpack.c.l.b16 %v3541
        %v3953 = vunpack.c.h.b16 %v3541
        %v3954 = vunpack.c.l.b16 %v3542
        %v3955 = vunpack.c.h.b16 %v3542
        %v3956 = vunpack.c.l.b16 %v3543
        %v3957 = vunpack.c.h.b16 %v3543
        %v3958 = vunpack.c.l.b16 %v3544
        %v3959 = vunpack.c.h.b16 %v3544
        %v3960 = vpack.c.b16 %v3768, %v3764
        %v3961 = vpack.c.b16 %v3769, %v3765
        %v3962 = vpack.c.b16 %v3770, %v3766
        %v3963 = vpack.c.b16 %v3771, %v3767
        %v3964 = vpack.c.b16 %v3776, %v3772
        %v3965 = vpack.c.b16 %v3777, %v3773
        %v3966 = vpack.c.b16 %v3778, %v3774
        %v3967 = vpack.c.b16 %v3779, %v3775
        %v3968 = vpack.c.b16 %v3784, %v3780
        %v3969 = vpack.c.b16 %v3785, %v3781
        %v3970 = vpack.c.b16 %v3786, %v3782
        %v3971 = vpack.c.b16 %v3787, %v3783
        %v3972 = vpack.c.b16 %v3792, %v3788
        %v3973 = vpack.c.b16 %v3793, %v3789
        %v3974 = vpack.c.b16 %v3794, %v3790
        %v3975 = vpack.c.b16 %v3795, %v3791
        %v3976 = vpack.c.b16 %v3800, %v3796
        %v3977 = vpack.c.b16 %v3801, %v3797
        %v3978 = vpack.c.b16 %v3802, %v3798
        %v3979 = vpack.c.b16 %v3803, %v3799
        %v3980 = vpack.c.b16 %v3808, %v3804
        %v3981 = vpack.c.b16 %v3809, %v3805
        %v3982 = vpack.c.b16 %v3810, %v3806
        %v3983 = vpack.c.b16 %v3811, %v3807
        %v3984 = vpack.c.b16 %v3816, %v3812
        %v3985 = vpack.c.b16 %v3817, %v3813
        %v3986 = vpack.c.b16 %v3818, %v3814
        %v3987 = vpack.c.b16 %v3819, %v3815
        %v3988 = vpack.c.b16 %v3824, %v3820
        %v3989 = vpack.c.b16 %v3825, %v3821
        %v3990 = vpack.c.b16 %v3826, %v3822
        %v3991 = vpack.c.b16 %v3827, %v3823
        %v3992 = vpack.c.b16 %v3832, %v3828
        %v3993 = vpack.c.b16 %v3833, %v3829
        %v3994 = vpack.c.b16 %v3834, %v3830
        %v3995 = vpack.c.b16 %v3835, %v3831
        %v3996 = vpack.c.b16 %v3840, %v3836
        %v3997 = vpack.c.b16 %v3841, %v3837
        %v3998 = vpack.c.b16 %v3842, %v3838
        %v3999 = vpack.c.b16 %v3843, %v3839
        %v4000 = vpack.c.b16 %v3848, %v3844
        %v4001 = vpack.c.b16 %v3849, %v3845
        %v4002 = vpack.c.b16 %v3850, %v3846
        %v4003 = vpack.c.b16 %v3851, %v3847
        %v4004 = vpack.c.b16 %v3856, %v3852
        %v4005 = vpack.c.b16 %v3857, %v3853
        %v4006 = vpack.c.b16 %v3858, %v3854
        %v4007 = vpack.c.b16 %v3859, %v3855
        %v4008 = vpack.c.b16 %v3864, %v3860
        %v4009 = vpack.c.b16 %v3865, %v3861
        %v4010 = vpack.c.b16 %v3866, %v3862
        %v4011 = vpack.c.b16 %v3867, %v3863
        %v4012 = vpack.c.b16 %v3872, %v3868
        %v4013 = vpack.c.b16 %v3873, %v3869
        %v4014 = vpack.c.b16 %v3874, %v3870
        %v4015 = vpack.c.b16 %v3875, %v3871
        %v4016 = vpack.c.b16 %v3880, %v3876
        %v4017 = vpack.c.b16 %v3881, %v3877
        %v4018 = vpack.c.b16 %v3882, %v3878
        %v4019 = vpack.c.b16 %v3883, %v3879
        %v4020 = vpack.c.b16 %v3888, %v3884
        %v4021 = vpack.c.b16 %v3889, %v3885
        %v4022 = vpack.c.b16 %v3890, %v3886
        %v4023 = vpack.c.b16 %v3891, %v3887
        %v4024 = vpack.c.b16 %v3896, %v3892
        %v4025 = vpack.c.b16 %v3897, %v3893
        %v4026 = vpack.c.b16 %v3898, %v3894
        %v4027 = vpack.c.b16 %v3899, %v3895
        %v4028 = vpack.c.b16 %v3904, %v3900
        %v4029 = vpack.c.b16 %v3905, %v3901
        %v4030 = vpack.c.b16 %v3906, %v3902
        %v4031 = vpack.c.b16 %v3907, %v3903
        %v4032 = vpack.c.b16 %v3912, %v3908
        %v4033 = vpack.c.b16 %v3913, %v3909
        %v4034 = vpack.c.b16 %v3914, %v3910
        %v4035 = vpack.c.b16 %v3915, %v3911
        %v4036 = vpack.c.b16 %v3920, %v3916
        %v4037 = vpack.c.b16 %v3921, %v3917
        %v4038 = vpack.c.b16 %v3922, %v3918
        %v4039 = vpack.c.b16 %v3923, %v3919
        %v4040 = vpack.c.b16 %v3928, %v3924
        %v4041 = vpack.c.b16 %v3929, %v3925
        %v4042 = vpack.c.b16 %v3930, %v3926
        %v4043 = vpack.c.b16 %v3931, %v3927
        %v4044 = vpack.c.b16 %v3936, %v3932
        %v4045 = vpack.c.b16 %v3937, %v3933
        %v4046 = vpack.c.b16 %v3938, %v3934
        %v4047 = vpack.c.b16 %v3939, %v3935
        %v4048 = vpack.c.b16 %v3944, %v3940
        %v4049 = vpack.c.b16 %v3945, %v3941
        %v4050 = vpack.c.b16 %v3946, %v3942
        %v4051 = vpack.c.b16 %v3947, %v3943
        %v4052 = vpack.c.b16 %v3952, %v3948
        %v4053 = vpack.c.b16 %v3953, %v3949
        %v4054 = vpack.c.b16 %v3954, %v3950
        %v4055 = vpack.c.b16 %v3955, %v3951
        %v4056 = vpack.c.b16 %v3956, %v3956
        %v4057 = vpack.c.b16 %v3957, %v3957
        %v4058 = vpack.c.b16 %v3958, %v3958
        %v4059 = vpack.c.b16 %v3959, %v3959
        %vm4156 = vcmask 64512
        %v4158 = vsel %vm4156, %v3446, 0
        %vm4160 = vcmask 1043456
        %v4162 = vsel %vm4160, %v4056, 0
        %v4165 = vsel %vm4160, %v4057, 0
        %v4168 = vsel %vm4160, %v4058, 0
        %v4171 = vsel %vm4160, %v4059, 0
        %4173 = vmatprep.subr.bf16.mxu0 %v3989
        %4174 = vmatpush1.bf16.msra.mxu0 %v3988
        %4175 = vmatprep.subr.bf16.mxu0 %v3985
        %4176 = vmatpush1.bf16.msra.mxu0 %v3984
        %4177 = vmatprep.subr.bf16.mxu0 %v3981
        %4178 = vmatpush1.bf16.msra.mxu0 %v3980
        %4179 = vmatprep.subr.bf16.mxu0 %v3977
        %4180 = vmatpush1.bf16.msra.mxu0 %v3976
        %4181 = vmatprep.subr.bf16.mxu0 %v3973
        %4182 = vmatpush1.bf16.msra.mxu0 %v3972
        %4183 = vmatprep.subr.bf16.mxu0 %v3969
        %4184 = vmatpush1.bf16.msra.mxu0 %v3968
        %4185 = vmatprep.subr.bf16.mxu0 %v3965
        %4186 = vmatpush1.bf16.msra.mxu0 %v3964
        %4187 = vmatprep.subr.bf16.mxu0 %v3961
        %4188 = vmatpush1.bf16.msra.mxu0 %v3960
        %4189 = vmatprep.subr.bf16.mxu0 %v4021
        %4190 = vmatpush2.bf16.msra.mxu0 %v4020
        %4191 = vmatprep.subr.bf16.mxu0 %v4017
        %4192 = vmatpush2.bf16.msra.mxu0 %v4016
        %4193 = vmatprep.subr.bf16.mxu0 %v4013
        %4194 = vmatpush2.bf16.msra.mxu0 %v4012
        %4195 = vmatprep.subr.bf16.mxu0 %v4009
        %4196 = vmatpush2.bf16.msra.mxu0 %v4008
        %4197 = vmatprep.subr.bf16.mxu0 %v4005
        %4198 = vmatpush2.bf16.msra.mxu0 %v4004
        %4199 = vmatprep.subr.bf16.mxu0 %v4001
        %4200 = vmatpush2.bf16.msra.mxu0 %v4000
        %4201 = vmatprep.subr.bf16.mxu0 %v3997
        %4202 = vmatpush2.bf16.msra.mxu0 %v3996
        %4203 = vmatprep.subr.bf16.mxu0 %v3993
        %4204 = vmatpush2.bf16.msra.mxu0 %v3992
        %4205 = vmatprep.mubr.bf16.mxu0 %v3444
        %4206 = vmatmul.mubr.bf16.gmra.mxu0 %v3443
        %v4207 = vpop.f32.mrf.mxu0
        %v4208 = vadd.f32 %v3619, %v4207
        %v4209 = vpop.f32.mrf.mxu0
        %v4210 = vadd.f32 %v3621, %v4209
        %v4211 = vpop.f32.mrf.mxu0
        %v4212 = vpop.f32.mrf.mxu0
        %4213 = vdwg.mxu0
        %4214 = vmatprep.subr.bf16.mxu0 %v4053
        %4215 = vmatpush1.bf16.msra.mxu0 %v4052
        %4216 = vmatprep.subr.bf16.mxu0 %v4049
        %4217 = vmatpush1.bf16.msra.mxu0 %v4048
        %4218 = vmatprep.subr.bf16.mxu0 %v4045
        %4219 = vmatpush1.bf16.msra.mxu0 %v4044
        %4220 = vmatprep.subr.bf16.mxu0 %v4041
        %4221 = vmatpush1.bf16.msra.mxu0 %v4040
        %4222 = vmatprep.subr.bf16.mxu0 %v4037
        %4223 = vmatpush1.bf16.msra.mxu0 %v4036
        %4224 = vmatprep.subr.bf16.mxu0 %v4033
        %4225 = vmatpush1.bf16.msra.mxu0 %v4032
        %4226 = vmatprep.subr.bf16.mxu0 %v4029
        %4227 = vmatpush1.bf16.msra.mxu0 %v4028
        %4228 = vmatprep.subr.bf16.mxu0 %v4025
        %4229 = vmatpush1.bf16.msra.mxu0 %v4024
        %4230 = vmatprep.subr.bf16.mxu0 0
        %4231 = vmatpush2.bf16.msra.mxu0 0
        %4232 = vmatprep.subr.bf16.mxu0 0
        %4233 = vmatpush2.bf16.msra.mxu0 0
        %4234 = vmatprep.subr.bf16.mxu0 0
        %4235 = vmatpush2.bf16.msra.mxu0 0
        %4236 = vmatprep.subr.bf16.mxu0 0
        %4237 = vmatpush2.bf16.msra.mxu0 0
        %4238 = vmatprep.subr.bf16.mxu0 0
        %4239 = vmatpush2.bf16.msra.mxu0 0
        %4240 = vmatprep.subr.bf16.mxu0 0
        %4241 = vmatpush2.bf16.msra.mxu0 0
        %4242 = vmatprep.subr.bf16.mxu0 0
        %4243 = vmatpush2.bf16.msra.mxu0 0
        %4244 = vmatprep.subr.bf16.mxu0 %v4165
        %4245 = vmatpush2.bf16.msra.mxu0 %v4162
        %4246 = vmatprep.mubr.bf16.mxu0 %v4158
        %4247 = vmatmul.mubr.bf16.gmra.mxu0 %v3445
        %v4248 = vpop.f32.mrf.mxu0
        %v4249 = vadd.f32 %v4208, %v4248
        %v4250 = vpop.f32.mrf.mxu0
        %v4251 = vadd.f32 %v4210, %v4250
        %v4252 = vpop.f32.mrf.mxu0
        %v4253 = vpop.f32.mrf.mxu0
        %4254 = vdwg.mxu0
        %4255 = vmatprep.subr.bf16.mxu0 %v3991
        %4256 = vmatpush1.bf16.msra.mxu0 %v3990
        %4257 = vmatprep.subr.bf16.mxu0 %v3987
        %4258 = vmatpush1.bf16.msra.mxu0 %v3986
        %4259 = vmatprep.subr.bf16.mxu0 %v3983
        %4260 = vmatpush1.bf16.msra.mxu0 %v3982
        %4261 = vmatprep.subr.bf16.mxu0 %v3979
        %4262 = vmatpush1.bf16.msra.mxu0 %v3978
        %4263 = vmatprep.subr.bf16.mxu0 %v3975
        %4264 = vmatpush1.bf16.msra.mxu0 %v3974
        %4265 = vmatprep.subr.bf16.mxu0 %v3971
        %4266 = vmatpush1.bf16.msra.mxu0 %v3970
        %4267 = vmatprep.subr.bf16.mxu0 %v3967
        %4268 = vmatpush1.bf16.msra.mxu0 %v3966
        %4269 = vmatprep.subr.bf16.mxu0 %v3963
        %4270 = vmatpush1.bf16.msra.mxu0 %v3962
        %4271 = vmatprep.subr.bf16.mxu0 %v4023
        %4272 = vmatpush2.bf16.msra.mxu0 %v4022
        %4273 = vmatprep.subr.bf16.mxu0 %v4019
        %4274 = vmatpush2.bf16.msra.mxu0 %v4018
        %4275 = vmatprep.subr.bf16.mxu0 %v4015
        %4276 = vmatpush2.bf16.msra.mxu0 %v4014
        %4277 = vmatprep.subr.bf16.mxu0 %v4011
        %4278 = vmatpush2.bf16.msra.mxu0 %v4010
        %4279 = vmatprep.subr.bf16.mxu0 %v4007
        %4280 = vmatpush2.bf16.msra.mxu0 %v4006
        %4281 = vmatprep.subr.bf16.mxu0 %v4003
        %4282 = vmatpush2.bf16.msra.mxu0 %v4002
        %4283 = vmatprep.subr.bf16.mxu0 %v3999
        %4284 = vmatpush2.bf16.msra.mxu0 %v3998
        %4285 = vmatprep.subr.bf16.mxu0 %v3995
        %4286 = vmatpush2.bf16.msra.mxu0 %v3994
        %4287 = vmatprep.mubr.bf16.mxu0 %v3444
        %4288 = vmatmul.mubr.bf16.gmra.mxu0 %v3443
        %v4289 = vpop.f32.mrf.mxu0
        %v4290 = vadd.f32 %v3660, %v4289
        %v4291 = vpop.f32.mrf.mxu0
        %v4292 = vadd.f32 %v3662, %v4291
        %v4293 = vpop.f32.mrf.mxu0
        %v4294 = vpop.f32.mrf.mxu0
        %4295 = vdwg.mxu0
        %4296 = vmatprep.subr.bf16.mxu0 %v4055
        %4297 = vmatpush1.bf16.msra.mxu0 %v4054
        %4298 = vmatprep.subr.bf16.mxu0 %v4051
        %4299 = vmatpush1.bf16.msra.mxu0 %v4050
        %4300 = vmatprep.subr.bf16.mxu0 %v4047
        %4301 = vmatpush1.bf16.msra.mxu0 %v4046
        %4302 = vmatprep.subr.bf16.mxu0 %v4043
        %4303 = vmatpush1.bf16.msra.mxu0 %v4042
        %4304 = vmatprep.subr.bf16.mxu0 %v4039
        %4305 = vmatpush1.bf16.msra.mxu0 %v4038
        %4306 = vmatprep.subr.bf16.mxu0 %v4035
        %4307 = vmatpush1.bf16.msra.mxu0 %v4034
        %4308 = vmatprep.subr.bf16.mxu0 %v4031
        %4309 = vmatpush1.bf16.msra.mxu0 %v4030
        %4310 = vmatprep.subr.bf16.mxu0 %v4027
        %4311 = vmatpush1.bf16.msra.mxu0 %v4026
        %4312 = vmatprep.subr.bf16.mxu0 0
        %4313 = vmatpush2.bf16.msra.mxu0 0
        %4314 = vmatprep.subr.bf16.mxu0 0
        %4315 = vmatpush2.bf16.msra.mxu0 0
        %4316 = vmatprep.subr.bf16.mxu0 0
        %4317 = vmatpush2.bf16.msra.mxu0 0
        %4318 = vmatprep.subr.bf16.mxu0 0
        %4319 = vmatpush2.bf16.msra.mxu0 0
        %4320 = vmatprep.subr.bf16.mxu0 0
        %4321 = vmatpush2.bf16.msra.mxu0 0
        %4322 = vmatprep.subr.bf16.mxu0 0
        %4323 = vmatpush2.bf16.msra.mxu0 0
        %4324 = vmatprep.subr.bf16.mxu0 0
        %4325 = vmatpush2.bf16.msra.mxu0 0
        %4326 = vmatprep.subr.bf16.mxu0 %v4171
        %4327 = vmatpush2.bf16.msra.mxu0 %v4168
        %4328 = vmatprep.mubr.bf16.mxu0 %v4158
        %4329 = vmatmul.mubr.bf16.gmra.mxu0 %v3445
        %v4330 = vpop.f32.mrf.mxu0
        %v4331 = vadd.f32 %v4290, %v4330
        %v4332 = vpop.f32.mrf.mxu0
        %v4333 = vadd.f32 %v4292, %v4332
        %v4334 = vpop.f32.mrf.mxu0
        %v4335 = vpop.f32.mrf.mxu0
        %4336 = vdwg.mxu0
        %v4337 = vld [vmem:[%s886] sm:$0xf]
        %v4339 = vlaneseq
        %v4340 = vshrl.u32 %v4339, 7
        %v4341 = vsub.s32 0, %v4340
        %v4342 = vrot.slane %v4337, %v4341
        %v4343 = vlaneseq
        %v4344 = vshrl.u32 %v4343, 7
        %v4345 = vsub.s32 1, %v4344
        %v4346 = vrot.slane %v4337, %v4345
        %v4347 = vlaneseq
        %v4348 = vshrl.u32 %v4347, 7
        %v4349 = vsub.s32 2, %v4348
        %v4350 = vrot.slane %v4337, %v4349
        %v4351 = vlaneseq
        %v4352 = vshrl.u32 %v4351, 7
        %v4353 = vsub.s32 3, %v4352
        %v4354 = vrot.slane %v4337, %v4353
        %v4359 = vadd.f32 %v4249, %v4342
        %v4360 = vadd.f32 %v4251, %v4346
        %v4361 = vadd.f32 %v4331, %v4350
        %v4362 = vadd.f32 %v4333, %v4354
        %v4363 = vmax.f32 %v4359, 0.0
        %v4364 = vmax.f32 %v4360, 0.0
        %v4365 = vmax.f32 %v4361, 0.0
        %v4366 = vmax.f32 %v4362, 0.0
        %v4367 = vpack.c.bf16 %v4363, %v4363
        %v4368 = vpack.c.bf16 %v4364, %v4364
        %v4369 = vpack.c.bf16 %v4365, %v4365
        %v4370 = vpack.c.bf16 %v4366, %v4366
        %v4371 = vld [vmem:[%s895] sm:$0xff]
        %v4372 = vld [vmem:[%s895 + $0x8] sm:$0xff]
        %v4373 = vld [vmem:[%s895 + $0x10] sm:$0xff]
        %v4374 = vld [vmem:[%s895 + $0x18] sm:$0xff]
        %v4375 = vld [vmem:[%s895 + $0x20] sm:$0xff]
        %v4376 = vld [vmem:[%s895 + $0x28] sm:$0xff]
        %v4377 = vld [vmem:[%s895 + $0x30] sm:$0xff]
        %v4378 = vld [vmem:[%s895 + $0x38] sm:$0xff]
        %v4379 = vld [vmem:[%s895 + $0x40] sm:$0xff]
        %v4380 = vld [vmem:[%s895 + $0x48] sm:$0xff]
        %v4381 = vld [vmem:[%s895 + $0x50] sm:$0xff]
        %v4382 = vld [vmem:[%s895 + $0x58] sm:$0xff]
        %v4383 = vld [vmem:[%s895 + $0x60] sm:$0xff]
        %v4384 = vld [vmem:[%s895 + $0x68] sm:$0xff]
        %v4385 = vld [vmem:[%s895 + $0x70] sm:$0xff]
        %v4386 = vld [vmem:[%s895 + $0x78] sm:$0xff]
        %v4387 = vld [vmem:[%s895 + $0x80] sm:$0xff]
        %v4388 = vld [vmem:[%s895 + $0x88] sm:$0xff]
        %v4389 = vld [vmem:[%s895 + $0x90] sm:$0xff]
        %v4390 = vld [vmem:[%s895 + $0x98] sm:$0xff]
        %v4391 = vld [vmem:[%s895 + $0xa0] sm:$0xff]
        %v4392 = vld [vmem:[%s895 + $0xa8] sm:$0xff]
        %v4393 = vld [vmem:[%s895 + $0xb0] sm:$0xff]
        %v4394 = vld [vmem:[%s895 + $0xb8] sm:$0xff]
        %v4395 = vld [vmem:[%s895 + $0xc0] sm:$0xff]
        %v4396 = vld [vmem:[%s895 + $0xc8] sm:$0xff]
        %v4397 = vld [vmem:[%s895 + $0xd0] sm:$0xff]
        %v4398 = vld [vmem:[%s895 + $0xd8] sm:$0xff]
        %v4399 = vld [vmem:[%s895 + $0xe0] sm:$0xff]
        %v4400 = vld [vmem:[%s895 + $0xe8] sm:$0xff]
        %v4401 = vld [vmem:[%s895 + $0xf0] sm:$0xff]
        %v4402 = vld [vmem:[%s895 + $0xf8] sm:$0xff]
        %v4403 = vld [vmem:[%s895 + $0x100] sm:$0xff]
        %v4404 = vld [vmem:[%s895 + $0x108] sm:$0xff]
        %v4405 = vld [vmem:[%s895 + $0x110] sm:$0xff]
        %v4406 = vld [vmem:[%s895 + $0x118] sm:$0xff]
        %v4407 = vld [vmem:[%s895 + $0x120] sm:$0xff]
        %v4408 = vld [vmem:[%s895 + $0x128] sm:$0xff]
        %v4409 = vld [vmem:[%s895 + $0x130] sm:$0xff]
        %v4410 = vld [vmem:[%s895 + $0x138] sm:$0xff]
        %v4411 = vld [vmem:[%s895 + $0x140] sm:$0xff]
        %v4412 = vld [vmem:[%s895 + $0x148] sm:$0xff]
        %v4413 = vld [vmem:[%s895 + $0x150] sm:$0xff]
        %v4414 = vld [vmem:[%s895 + $0x158] sm:$0xff]
        %v4415 = vld [vmem:[%s895 + $0x160] sm:$0xff]
        %v4416 = vld [vmem:[%s895 + $0x168] sm:$0xff]
        %v4417 = vld [vmem:[%s895 + $0x170] sm:$0xff]
        %v4418 = vld [vmem:[%s895 + $0x178] sm:$0xff]
        %v4419 = vld [vmem:[%s895 + $0x180] sm:$0xff]
        %v4420 = vld [vmem:[%s895 + $0x188] sm:$0xff]
        %v4421 = vld [vmem:[%s895 + $0x190] sm:$0xff]
        %v4422 = vld [vmem:[%s895 + $0x198] sm:$0xff]
        %v4423 = vld [vmem:[%s895 + $0x1a0] sm:$0xff]
        %v4424 = vld [vmem:[%s895 + $0x1a8] sm:$0xff]
        %v4425 = vld [vmem:[%s895 + $0x1b0] sm:$0xff]
        %v4426 = vld [vmem:[%s895 + $0x1b8] sm:$0xff]
        %v4427 = vld [vmem:[%s895 + $0x1c0] sm:$0xff]
        %v4428 = vld [vmem:[%s895 + $0x1c8] sm:$0xff]
        %v4429 = vld [vmem:[%s895 + $0x1d0] sm:$0xff]
        %v4430 = vld [vmem:[%s895 + $0x1d8] sm:$0xff]
        %v4431 = vld [vmem:[%s895 + $0x1e0] sm:$0xff]
        %v4432 = vld [vmem:[%s895 + $0x1e8] sm:$0xff]
        %v4433 = vld [vmem:[%s895 + $0x1f0] sm:$0xff]
        %v4434 = vld [vmem:[%s895 + $0x1f8] sm:$0xff]
        %v4435 = vld [vmem:[%s895 + $0x200] sm:$0xff]
        %v4436 = vld [vmem:[%s895 + $0x208] sm:$0xff]
        %v4437 = vld [vmem:[%s895 + $0x210] sm:$0xff]
        %v4438 = vld [vmem:[%s895 + $0x218] sm:$0xff]
        %v4439 = vld [vmem:[%s895 + $0x220] sm:$0xff]
        %v4440 = vld [vmem:[%s895 + $0x228] sm:$0xff]
        %v4441 = vld [vmem:[%s895 + $0x230] sm:$0xff]
        %v4442 = vld [vmem:[%s895 + $0x238] sm:$0xff]
        %v4443 = vld [vmem:[%s895 + $0x240] sm:$0xff]
        %v4444 = vld [vmem:[%s895 + $0x248] sm:$0xff]
        %v4445 = vld [vmem:[%s895 + $0x250] sm:$0xff]
        %v4446 = vld [vmem:[%s895 + $0x258] sm:$0xff]
        %v4447 = vld [vmem:[%s895 + $0x260] sm:$0xff]
        %v4448 = vld [vmem:[%s895 + $0x268] sm:$0xff]
        %v4449 = vld [vmem:[%s895 + $0x270] sm:$0xff]
        %v4450 = vld [vmem:[%s895 + $0x278] sm:$0xff]
        %v4451 = vld [vmem:[%s895 + $0x280] sm:$0xff]
        %v4452 = vld [vmem:[%s895 + $0x288] sm:$0xff]
        %v4453 = vld [vmem:[%s895 + $0x290] sm:$0xff]
        %v4454 = vld [vmem:[%s895 + $0x298] sm:$0xff]
        %v4455 = vld [vmem:[%s895 + $0x2a0] sm:$0xff]
        %v4456 = vld [vmem:[%s895 + $0x2a8] sm:$0xff]
        %v4457 = vld [vmem:[%s895 + $0x2b0] sm:$0xff]
        %v4458 = vld [vmem:[%s895 + $0x2b8] sm:$0xff]
        %v4459 = vld [vmem:[%s895 + $0x2c0] sm:$0xff]
        %v4460 = vld [vmem:[%s895 + $0x2c8] sm:$0xff]
        %v4461 = vld [vmem:[%s895 + $0x2d0] sm:$0xff]
        %v4462 = vld [vmem:[%s895 + $0x2d8] sm:$0xff]
        %v4463 = vld [vmem:[%s895 + $0x2e0] sm:$0xff]
        %v4464 = vld [vmem:[%s895 + $0x2e8] sm:$0xff]
        %v4465 = vld [vmem:[%s895 + $0x2f0] sm:$0xff]
        %v4466 = vld [vmem:[%s895 + $0x2f8] sm:$0xff]
        %v4467 = vld [vmem:[%s895 + $0x300] sm:$0xff]
        %v4468 = vld [vmem:[%s895 + $0x308] sm:$0xff]
        %v4469 = vld [vmem:[%s895 + $0x310] sm:$0xff]
        %v4470 = vld [vmem:[%s895 + $0x318] sm:$0xff]
        %v4471 = vld [vmem:[%s895 + $0x320] sm:$0xff]
        %v4472 = vld [vmem:[%s895 + $0x328] sm:$0xff]
        %v4473 = vld [vmem:[%s895 + $0x330] sm:$0xff]
        %v4474 = vld [vmem:[%s895 + $0x338] sm:$0xff]
        %v4475 = vld [vmem:[%s895 + $0x340] sm:$0xff]
        %v4476 = vld [vmem:[%s895 + $0x348] sm:$0xff]
        %v4477 = vld [vmem:[%s895 + $0x350] sm:$0xff]
        %v4478 = vld [vmem:[%s895 + $0x358] sm:$0xff]
        %v4479 = vld [vmem:[%s895 + $0x360] sm:$0xff]
        %v4480 = vld [vmem:[%s895 + $0x368] sm:$0xff]
        %v4481 = vld [vmem:[%s895 + $0x370] sm:$0xff]
        %v4482 = vld [vmem:[%s895 + $0x378] sm:$0xff]
        %v4483 = vld [vmem:[%s895 + $0x380] sm:$0xff]
        %v4484 = vld [vmem:[%s895 + $0x388] sm:$0xff]
        %v4485 = vld [vmem:[%s895 + $0x390] sm:$0xff]
        %v4486 = vld [vmem:[%s895 + $0x398] sm:$0xff]
        %v4487 = vld [vmem:[%s895 + $0x3a0] sm:$0xff]
        %v4488 = vld [vmem:[%s895 + $0x3a8] sm:$0xff]
        %v4489 = vld [vmem:[%s895 + $0x3b0] sm:$0xff]
        %v4490 = vld [vmem:[%s895 + $0x3b8] sm:$0xff]
        %v4491 = vld [vmem:[%s895 + $0x3c0] sm:$0xff]
        %v4492 = vld [vmem:[%s895 + $0x3c8] sm:$0xff]
        %v4493 = vld [vmem:[%s895 + $0x3d0] sm:$0xff]
        %v4494 = vld [vmem:[%s895 + $0x3d8] sm:$0xff]
        %v4495 = vld [vmem:[%s895 + $0x3e0] sm:$0xff]
        %v4496 = vld [vmem:[%s895 + $0x3e8] sm:$0xff]
        %v4497 = vld [vmem:[%s895 + $0x3f0] sm:$0xff]
        %v4498 = vld [vmem:[%s895 + $0x3f8] sm:$0xff]
        %v4499 = vld [vmem:[%s903] sm:$0xf]
        %v4501 = vlaneseq
        %v4502 = vshrl.u32 %v4501, 7
        %v4503 = vsub.s32 0, %v4502
        %v4504 = vrot.slane %v4499, %v4503
        %v4505 = vlaneseq
        %v4506 = vshrl.u32 %v4505, 7
        %v4507 = vsub.s32 1, %v4506
        %v4508 = vrot.slane %v4499, %v4507
        %v4509 = vlaneseq
        %v4510 = vshrl.u32 %v4509, 7
        %v4511 = vsub.s32 2, %v4510
        %v4512 = vrot.slane %v4499, %v4511
        %v4513 = vlaneseq
        %v4514 = vshrl.u32 %v4513, 7
        %v4515 = vsub.s32 3, %v4514
        %v4516 = vrot.slane %v4499, %v4515
        %v4649 = vunpack.c.l.b16 %v4371
        %v4650 = vunpack.c.h.b16 %v4371
        %v4651 = vunpack.c.l.b16 %v4372
        %v4652 = vunpack.c.h.b16 %v4372
        %v4653 = vunpack.c.l.b16 %v4373
        %v4654 = vunpack.c.h.b16 %v4373
        %v4655 = vunpack.c.l.b16 %v4374
        %v4656 = vunpack.c.h.b16 %v4374
        %v4657 = vunpack.c.l.b16 %v4375
        %v4658 = vunpack.c.h.b16 %v4375
        %v4659 = vunpack.c.l.b16 %v4376
        %v4660 = vunpack.c.h.b16 %v4376
        %v4661 = vunpack.c.l.b16 %v4377
        %v4662 = vunpack.c.h.b16 %v4377
        %v4663 = vunpack.c.l.b16 %v4378
        %v4664 = vunpack.c.h.b16 %v4378
        %v4665 = vunpack.c.l.b16 %v4379
        %v4666 = vunpack.c.h.b16 %v4379
        %v4667 = vunpack.c.l.b16 %v4380
        %v4668 = vunpack.c.h.b16 %v4380
        %v4669 = vunpack.c.l.b16 %v4381
        %v4670 = vunpack.c.h.b16 %v4381
        %v4671 = vunpack.c.l.b16 %v4382
        %v4672 = vunpack.c.h.b16 %v4382
        %v4673 = vunpack.c.l.b16 %v4383
        %v4674 = vunpack.c.h.b16 %v4383
        %v4675 = vunpack.c.l.b16 %v4384
        %v4676 = vunpack.c.h.b16 %v4384
        %v4677 = vunpack.c.l.b16 %v4385
        %v4678 = vunpack.c.h.b16 %v4385
        %v4679 = vunpack.c.l.b16 %v4386
        %v4680 = vunpack.c.h.b16 %v4386
        %v4681 = vunpack.c.l.b16 %v4387
        %v4682 = vunpack.c.h.b16 %v4387
        %v4683 = vunpack.c.l.b16 %v4388
        %v4684 = vunpack.c.h.b16 %v4388
        %v4685 = vunpack.c.l.b16 %v4389
        %v4686 = vunpack.c.h.b16 %v4389
        %v4687 = vunpack.c.l.b16 %v4390
        %v4688 = vunpack.c.h.b16 %v4390
        %v4689 = vunpack.c.l.b16 %v4391
        %v4690 = vunpack.c.h.b16 %v4391
        %v4691 = vunpack.c.l.b16 %v4392
        %v4692 = vunpack.c.h.b16 %v4392
        %v4693 = vunpack.c.l.b16 %v4393
        %v4694 = vunpack.c.h.b16 %v4393
        %v4695 = vunpack.c.l.b16 %v4394
        %v4696 = vunpack.c.h.b16 %v4394
        %v4697 = vunpack.c.l.b16 %v4395
        %v4698 = vunpack.c.h.b16 %v4395
        %v4699 = vunpack.c.l.b16 %v4396
        %v4700 = vunpack.c.h.b16 %v4396
        %v4701 = vunpack.c.l.b16 %v4397
        %v4702 = vunpack.c.h.b16 %v4397
        %v4703 = vunpack.c.l.b16 %v4398
        %v4704 = vunpack.c.h.b16 %v4398
        %v4705 = vunpack.c.l.b16 %v4399
        %v4706 = vunpack.c.h.b16 %v4399
        %v4707 = vunpack.c.l.b16 %v4400
        %v4708 = vunpack.c.h.b16 %v4400
        %v4709 = vunpack.c.l.b16 %v4401
        %v4710 = vunpack.c.h.b16 %v4401
        %v4711 = vunpack.c.l.b16 %v4402
        %v4712 = vunpack.c.h.b16 %v4402
        %v4713 = vunpack.c.l.b16 %v4403
        %v4714 = vunpack.c.h.b16 %v4403
        %v4715 = vunpack.c.l.b16 %v4404
        %v4716 = vunpack.c.h.b16 %v4404
        %v4717 = vunpack.c.l.b16 %v4405
        %v4718 = vunpack.c.h.b16 %v4405
        %v4719 = vunpack.c.l.b16 %v4406
        %v4720 = vunpack.c.h.b16 %v4406
        %v4721 = vunpack.c.l.b16 %v4407
        %v4722 = vunpack.c.h.b16 %v4407
        %v4723 = vunpack.c.l.b16 %v4408
        %v4724 = vunpack.c.h.b16 %v4408
        %v4725 = vunpack.c.l.b16 %v4409
        %v4726 = vunpack.c.h.b16 %v4409
        %v4727 = vunpack.c.l.b16 %v4410
        %v4728 = vunpack.c.h.b16 %v4410
        %v4729 = vunpack.c.l.b16 %v4411
        %v4730 = vunpack.c.h.b16 %v4411
        %v4731 = vunpack.c.l.b16 %v4412
        %v4732 = vunpack.c.h.b16 %v4412
        %v4733 = vunpack.c.l.b16 %v4413
        %v4734 = vunpack.c.h.b16 %v4413
        %v4735 = vunpack.c.l.b16 %v4414
        %v4736 = vunpack.c.h.b16 %v4414
        %v4737 = vunpack.c.l.b16 %v4415
        %v4738 = vunpack.c.h.b16 %v4415
        %v4739 = vunpack.c.l.b16 %v4416
        %v4740 = vunpack.c.h.b16 %v4416
        %v4741 = vunpack.c.l.b16 %v4417
        %v4742 = vunpack.c.h.b16 %v4417
        %v4743 = vunpack.c.l.b16 %v4418
        %v4744 = vunpack.c.h.b16 %v4418
        %v4745 = vunpack.c.l.b16 %v4419
        %v4746 = vunpack.c.h.b16 %v4419
        %v4747 = vunpack.c.l.b16 %v4420
        %v4748 = vunpack.c.h.b16 %v4420
        %v4749 = vunpack.c.l.b16 %v4421
        %v4750 = vunpack.c.h.b16 %v4421
        %v4751 = vunpack.c.l.b16 %v4422
        %v4752 = vunpack.c.h.b16 %v4422
        %v4753 = vunpack.c.l.b16 %v4423
        %v4754 = vunpack.c.h.b16 %v4423
        %v4755 = vunpack.c.l.b16 %v4424
        %v4756 = vunpack.c.h.b16 %v4424
        %v4757 = vunpack.c.l.b16 %v4425
        %v4758 = vunpack.c.h.b16 %v4425
        %v4759 = vunpack.c.l.b16 %v4426
        %v4760 = vunpack.c.h.b16 %v4426
        %v4761 = vunpack.c.l.b16 %v4427
        %v4762 = vunpack.c.h.b16 %v4427
        %v4763 = vunpack.c.l.b16 %v4428
        %v4764 = vunpack.c.h.b16 %v4428
        %v4765 = vunpack.c.l.b16 %v4429
        %v4766 = vunpack.c.h.b16 %v4429
        %v4767 = vunpack.c.l.b16 %v4430
        %v4768 = vunpack.c.h.b16 %v4430
        %v4769 = vunpack.c.l.b16 %v4431
        %v4770 = vunpack.c.h.b16 %v4431
        %v4771 = vunpack.c.l.b16 %v4432
        %v4772 = vunpack.c.h.b16 %v4432
        %v4773 = vunpack.c.l.b16 %v4433
        %v4774 = vunpack.c.h.b16 %v4433
        %v4775 = vunpack.c.l.b16 %v4434
        %v4776 = vunpack.c.h.b16 %v4434
        %v4777 = vunpack.c.l.b16 %v4435
        %v4778 = vunpack.c.h.b16 %v4435
        %v4779 = vunpack.c.l.b16 %v4436
        %v4780 = vunpack.c.h.b16 %v4436
        %v4781 = vunpack.c.l.b16 %v4437
        %v4782 = vunpack.c.h.b16 %v4437
        %v4783 = vunpack.c.l.b16 %v4438
        %v4784 = vunpack.c.h.b16 %v4438
        %v4785 = vunpack.c.l.b16 %v4439
        %v4786 = vunpack.c.h.b16 %v4439
        %v4787 = vunpack.c.l.b16 %v4440
        %v4788 = vunpack.c.h.b16 %v4440
        %v4789 = vunpack.c.l.b16 %v4441
        %v4790 = vunpack.c.h.b16 %v4441
        %v4791 = vunpack.c.l.b16 %v4442
        %v4792 = vunpack.c.h.b16 %v4442
        %v4793 = vunpack.c.l.b16 %v4443
        %v4794 = vunpack.c.h.b16 %v4443
        %v4795 = vunpack.c.l.b16 %v4444
        %v4796 = vunpack.c.h.b16 %v4444
        %v4797 = vunpack.c.l.b16 %v4445
        %v4798 = vunpack.c.h.b16 %v4445
        %v4799 = vunpack.c.l.b16 %v4446
        %v4800 = vunpack.c.h.b16 %v4446
        %v4801 = vunpack.c.l.b16 %v4447
        %v4802 = vunpack.c.h.b16 %v4447
        %v4803 = vunpack.c.l.b16 %v4448
        %v4804 = vunpack.c.h.b16 %v4448
        %v4805 = vunpack.c.l.b16 %v4449
        %v4806 = vunpack.c.h.b16 %v4449
        %v4807 = vunpack.c.l.b16 %v4450
        %v4808 = vunpack.c.h.b16 %v4450
        %v4809 = vunpack.c.l.b16 %v4451
        %v4810 = vunpack.c.h.b16 %v4451
        %v4811 = vunpack.c.l.b16 %v4452
        %v4812 = vunpack.c.h.b16 %v4452
        %v4813 = vunpack.c.l.b16 %v4453
        %v4814 = vunpack.c.h.b16 %v4453
        %v4815 = vunpack.c.l.b16 %v4454
        %v4816 = vunpack.c.h.b16 %v4454
        %v4817 = vunpack.c.l.b16 %v4455
        %v4818 = vunpack.c.h.b16 %v4455
        %v4819 = vunpack.c.l.b16 %v4456
        %v4820 = vunpack.c.h.b16 %v4456
        %v4821 = vunpack.c.l.b16 %v4457
        %v4822 = vunpack.c.h.b16 %v4457
        %v4823 = vunpack.c.l.b16 %v4458
        %v4824 = vunpack.c.h.b16 %v4458
        %v4825 = vunpack.c.l.b16 %v4459
        %v4826 = vunpack.c.h.b16 %v4459
        %v4827 = vunpack.c.l.b16 %v4460
        %v4828 = vunpack.c.h.b16 %v4460
        %v4829 = vunpack.c.l.b16 %v4461
        %v4830 = vunpack.c.h.b16 %v4461
        %v4831 = vunpack.c.l.b16 %v4462
        %v4832 = vunpack.c.h.b16 %v4462
        %v4833 = vunpack.c.l.b16 %v4463
        %v4834 = vunpack.c.h.b16 %v4463
        %v4835 = vunpack.c.l.b16 %v4464
        %v4836 = vunpack.c.h.b16 %v4464
        %v4837 = vunpack.c.l.b16 %v4465
        %v4838 = vunpack.c.h.b16 %v4465
        %v4839 = vunpack.c.l.b16 %v4466
        %v4840 = vunpack.c.h.b16 %v4466
        %v4841 = vunpack.c.l.b16 %v4467
        %v4842 = vunpack.c.h.b16 %v4467
        %v4843 = vunpack.c.l.b16 %v4468
        %v4844 = vunpack.c.h.b16 %v4468
        %v4845 = vunpack.c.l.b16 %v4469
        %v4846 = vunpack.c.h.b16 %v4469
        %v4847 = vunpack.c.l.b16 %v4470
        %v4848 = vunpack.c.h.b16 %v4470
        %v4849 = vunpack.c.l.b16 %v4471
        %v4850 = vunpack.c.h.b16 %v4471
        %v4851 = vunpack.c.l.b16 %v4472
        %v4852 = vunpack.c.h.b16 %v4472
        %v4853 = vunpack.c.l.b16 %v4473
        %v4854 = vunpack.c.h.b16 %v4473
        %v4855 = vunpack.c.l.b16 %v4474
        %v4856 = vunpack.c.h.b16 %v4474
        %v4857 = vunpack.c.l.b16 %v4475
        %v4858 = vunpack.c.h.b16 %v4475
        %v4859 = vunpack.c.l.b16 %v4476
        %v4860 = vunpack.c.h.b16 %v4476
        %v4861 = vunpack.c.l.b16 %v4477
        %v4862 = vunpack.c.h.b16 %v4477
        %v4863 = vunpack.c.l.b16 %v4478
        %v4864 = vunpack.c.h.b16 %v4478
        %v4865 = vunpack.c.l.b16 %v4479
        %v4866 = vunpack.c.h.b16 %v4479
        %v4867 = vunpack.c.l.b16 %v4480
        %v4868 = vunpack.c.h.b16 %v4480
        %v4869 = vunpack.c.l.b16 %v4481
        %v4870 = vunpack.c.h.b16 %v4481
        %v4871 = vunpack.c.l.b16 %v4482
        %v4872 = vunpack.c.h.b16 %v4482
        %v4873 = vunpack.c.l.b16 %v4483
        %v4874 = vunpack.c.h.b16 %v4483
        %v4875 = vunpack.c.l.b16 %v4484
        %v4876 = vunpack.c.h.b16 %v4484
        %v4877 = vunpack.c.l.b16 %v4485
        %v4878 = vunpack.c.h.b16 %v4485
        %v4879 = vunpack.c.l.b16 %v4486
        %v4880 = vunpack.c.h.b16 %v4486
        %v4881 = vunpack.c.l.b16 %v4487
        %v4882 = vunpack.c.h.b16 %v4487
        %v4883 = vunpack.c.l.b16 %v4488
        %v4884 = vunpack.c.h.b16 %v4488
        %v4885 = vunpack.c.l.b16 %v4489
        %v4886 = vunpack.c.h.b16 %v4489
        %v4887 = vunpack.c.l.b16 %v4490
        %v4888 = vunpack.c.h.b16 %v4490
        %v4889 = vunpack.c.l.b16 %v4491
        %v4890 = vunpack.c.h.b16 %v4491
        %v4891 = vunpack.c.l.b16 %v4492
        %v4892 = vunpack.c.h.b16 %v4492
        %v4893 = vunpack.c.l.b16 %v4493
        %v4894 = vunpack.c.h.b16 %v4493
        %v4895 = vunpack.c.l.b16 %v4494
        %v4896 = vunpack.c.h.b16 %v4494
        %v4897 = vunpack.c.l.b16 %v4495
        %v4898 = vunpack.c.h.b16 %v4495
        %v4899 = vunpack.c.l.b16 %v4496
        %v4900 = vunpack.c.h.b16 %v4496
        %v4901 = vunpack.c.l.b16 %v4497
        %v4902 = vunpack.c.h.b16 %v4497
        %v4903 = vunpack.c.l.b16 %v4498
        %v4904 = vunpack.c.h.b16 %v4498
        %v4905 = vpack.c.b16 %v4653, %v4649
        %v4906 = vpack.c.b16 %v4654, %v4650
        %v4907 = vpack.c.b16 %v4655, %v4651
        %v4908 = vpack.c.b16 %v4656, %v4652
        %v4909 = vpack.c.b16 %v4661, %v4657
        %v4910 = vpack.c.b16 %v4662, %v4658
        %v4911 = vpack.c.b16 %v4663, %v4659
        %v4912 = vpack.c.b16 %v4664, %v4660
        %v4913 = vpack.c.b16 %v4669, %v4665
        %v4914 = vpack.c.b16 %v4670, %v4666
        %v4915 = vpack.c.b16 %v4671, %v4667
        %v4916 = vpack.c.b16 %v4672, %v4668
        %v4917 = vpack.c.b16 %v4677, %v4673
        %v4918 = vpack.c.b16 %v4678, %v4674
        %v4919 = vpack.c.b16 %v4679, %v4675
        %v4920 = vpack.c.b16 %v4680, %v4676
        %v4921 = vpack.c.b16 %v4685, %v4681
        %v4922 = vpack.c.b16 %v4686, %v4682
        %v4923 = vpack.c.b16 %v4687, %v4683
        %v4924 = vpack.c.b16 %v4688, %v4684
        %v4925 = vpack.c.b16 %v4693, %v4689
        %v4926 = vpack.c.b16 %v4694, %v4690
        %v4927 = vpack.c.b16 %v4695, %v4691
        %v4928 = vpack.c.b16 %v4696, %v4692
        %v4929 = vpack.c.b16 %v4701, %v4697
        %v4930 = vpack.c.b16 %v4702, %v4698
        %v4931 = vpack.c.b16 %v4703, %v4699
        %v4932 = vpack.c.b16 %v4704, %v4700
        %v4933 = vpack.c.b16 %v4709, %v4705
        %v4934 = vpack.c.b16 %v4710, %v4706
        %v4935 = vpack.c.b16 %v4711, %v4707
        %v4936 = vpack.c.b16 %v4712, %v4708
        %v4937 = vpack.c.b16 %v4717, %v4713
        %v4938 = vpack.c.b16 %v4718, %v4714
        %v4939 = vpack.c.b16 %v4719, %v4715
        %v4940 = vpack.c.b16 %v4720, %v4716
        %v4941 = vpack.c.b16 %v4725, %v4721
        %v4942 = vpack.c.b16 %v4726, %v4722
        %v4943 = vpack.c.b16 %v4727, %v4723
        %v4944 = vpack.c.b16 %v4728, %v4724
        %v4945 = vpack.c.b16 %v4733, %v4729
        %v4946 = vpack.c.b16 %v4734, %v4730
        %v4947 = vpack.c.b16 %v4735, %v4731
        %v4948 = vpack.c.b16 %v4736, %v4732
        %v4949 = vpack.c.b16 %v4741, %v4737
        %v4950 = vpack.c.b16 %v4742, %v4738
        %v4951 = vpack.c.b16 %v4743, %v4739
        %v4952 = vpack.c.b16 %v4744, %v4740
        %v4953 = vpack.c.b16 %v4749, %v4745
        %v4954 = vpack.c.b16 %v4750, %v4746
        %v4955 = vpack.c.b16 %v4751, %v4747
        %v4956 = vpack.c.b16 %v4752, %v4748
        %v4957 = vpack.c.b16 %v4757, %v4753
        %v4958 = vpack.c.b16 %v4758, %v4754
        %v4959 = vpack.c.b16 %v4759, %v4755
        %v4960 = vpack.c.b16 %v4760, %v4756
        %v4961 = vpack.c.b16 %v4765, %v4761
        %v4962 = vpack.c.b16 %v4766, %v4762
        %v4963 = vpack.c.b16 %v4767, %v4763
        %v4964 = vpack.c.b16 %v4768, %v4764
        %v4965 = vpack.c.b16 %v4773, %v4769
        %v4966 = vpack.c.b16 %v4774, %v4770
        %v4967 = vpack.c.b16 %v4775, %v4771
        %v4968 = vpack.c.b16 %v4776, %v4772
        %v4969 = vpack.c.b16 %v4781, %v4777
        %v4970 = vpack.c.b16 %v4782, %v4778
        %v4971 = vpack.c.b16 %v4783, %v4779
        %v4972 = vpack.c.b16 %v4784, %v4780
        %v4973 = vpack.c.b16 %v4789, %v4785
        %v4974 = vpack.c.b16 %v4790, %v4786
        %v4975 = vpack.c.b16 %v4791, %v4787
        %v4976 = vpack.c.b16 %v4792, %v4788
        %v4977 = vpack.c.b16 %v4797, %v4793
        %v4978 = vpack.c.b16 %v4798, %v4794
        %v4979 = vpack.c.b16 %v4799, %v4795
        %v4980 = vpack.c.b16 %v4800, %v4796
        %v4981 = vpack.c.b16 %v4805, %v4801
        %v4982 = vpack.c.b16 %v4806, %v4802
        %v4983 = vpack.c.b16 %v4807, %v4803
        %v4984 = vpack.c.b16 %v4808, %v4804
        %v4985 = vpack.c.b16 %v4813, %v4809
        %v4986 = vpack.c.b16 %v4814, %v4810
        %v4987 = vpack.c.b16 %v4815, %v4811
        %v4988 = vpack.c.b16 %v4816, %v4812
        %v4989 = vpack.c.b16 %v4821, %v4817
        %v4990 = vpack.c.b16 %v4822, %v4818
        %v4991 = vpack.c.b16 %v4823, %v4819
        %v4992 = vpack.c.b16 %v4824, %v4820
        %v4993 = vpack.c.b16 %v4829, %v4825
        %v4994 = vpack.c.b16 %v4830, %v4826
        %v4995 = vpack.c.b16 %v4831, %v4827
        %v4996 = vpack.c.b16 %v4832, %v4828
        %v4997 = vpack.c.b16 %v4837, %v4833
        %v4998 = vpack.c.b16 %v4838, %v4834
        %v4999 = vpack.c.b16 %v4839, %v4835
        %v5000 = vpack.c.b16 %v4840, %v4836
        %v5001 = vpack.c.b16 %v4845, %v4841
        %v5002 = vpack.c.b16 %v4846, %v4842
        %v5003 = vpack.c.b16 %v4847, %v4843
        %v5004 = vpack.c.b16 %v4848, %v4844
        %v5005 = vpack.c.b16 %v4853, %v4849
        %v5006 = vpack.c.b16 %v4854, %v4850
        %v5007 = vpack.c.b16 %v4855, %v4851
        %v5008 = vpack.c.b16 %v4856, %v4852
        %v5009 = vpack.c.b16 %v4861, %v4857
        %v5010 = vpack.c.b16 %v4862, %v4858
        %v5011 = vpack.c.b16 %v4863, %v4859
        %v5012 = vpack.c.b16 %v4864, %v4860
        %v5013 = vpack.c.b16 %v4869, %v4865
        %v5014 = vpack.c.b16 %v4870, %v4866
        %v5015 = vpack.c.b16 %v4871, %v4867
        %v5016 = vpack.c.b16 %v4872, %v4868
        %v5017 = vpack.c.b16 %v4877, %v4873
        %v5018 = vpack.c.b16 %v4878, %v4874
        %v5019 = vpack.c.b16 %v4879, %v4875
        %v5020 = vpack.c.b16 %v4880, %v4876
        %v5021 = vpack.c.b16 %v4885, %v4881
        %v5022 = vpack.c.b16 %v4886, %v4882
        %v5023 = vpack.c.b16 %v4887, %v4883
        %v5024 = vpack.c.b16 %v4888, %v4884
        %v5025 = vpack.c.b16 %v4893, %v4889
        %v5026 = vpack.c.b16 %v4894, %v4890
        %v5027 = vpack.c.b16 %v4895, %v4891
        %v5028 = vpack.c.b16 %v4896, %v4892
        %v5029 = vpack.c.b16 %v4901, %v4897
        %v5030 = vpack.c.b16 %v4902, %v4898
        %v5031 = vpack.c.b16 %v4903, %v4899
        %v5032 = vpack.c.b16 %v4904, %v4900
        %5161 = vmatprep.subr.bf16.mxu0 %v4934
        %5162 = vmatpush1.bf16.msra.mxu0 %v4933
        %5163 = vmatprep.subr.bf16.mxu0 %v4930
        %5164 = vmatpush1.bf16.msra.mxu0 %v4929
        %5165 = vmatprep.subr.bf16.mxu0 %v4926
        %5166 = vmatpush1.bf16.msra.mxu0 %v4925
        %5167 = vmatprep.subr.bf16.mxu0 %v4922
        %5168 = vmatpush1.bf16.msra.mxu0 %v4921
        %5169 = vmatprep.subr.bf16.mxu0 %v4918
        %5170 = vmatpush1.bf16.msra.mxu0 %v4917
        %5171 = vmatprep.subr.bf16.mxu0 %v4914
        %5172 = vmatpush1.bf16.msra.mxu0 %v4913
        %5173 = vmatprep.subr.bf16.mxu0 %v4910
        %5174 = vmatpush1.bf16.msra.mxu0 %v4909
        %5175 = vmatprep.subr.bf16.mxu0 %v4906
        %5176 = vmatpush1.bf16.msra.mxu0 %v4905
        %5177 = vmatprep.subr.bf16.mxu0 %v4966
        %5178 = vmatpush2.bf16.msra.mxu0 %v4965
        %5179 = vmatprep.subr.bf16.mxu0 %v4962
        %5180 = vmatpush2.bf16.msra.mxu0 %v4961
        %5181 = vmatprep.subr.bf16.mxu0 %v4958
        %5182 = vmatpush2.bf16.msra.mxu0 %v4957
        %5183 = vmatprep.subr.bf16.mxu0 %v4954
        %5184 = vmatpush2.bf16.msra.mxu0 %v4953
        %5185 = vmatprep.subr.bf16.mxu0 %v4950
        %5186 = vmatpush2.bf16.msra.mxu0 %v4949
        %5187 = vmatprep.subr.bf16.mxu0 %v4946
        %5188 = vmatpush2.bf16.msra.mxu0 %v4945
        %5189 = vmatprep.subr.bf16.mxu0 %v4942
        %5190 = vmatpush2.bf16.msra.mxu0 %v4941
        %5191 = vmatprep.subr.bf16.mxu0 %v4938
        %5192 = vmatpush2.bf16.msra.mxu0 %v4937
        %5193 = vmatprep.mubr.bf16.mxu0 %v4368
        %5194 = vmatmul.mubr.bf16.gmra.mxu0 %v4367
        %v5195 = vpop.f32.mrf.mxu0
        %v5196 = vadd.f32 %v4504, %v5195
        %v5197 = vpop.f32.mrf.mxu0
        %v5198 = vadd.f32 %v4508, %v5197
        %v5199 = vpop.f32.mrf.mxu0
        %v5200 = vpop.f32.mrf.mxu0
        %5201 = vdwg.mxu0
        %5202 = vmatprep.subr.bf16.mxu0 %v4998
        %5203 = vmatpush1.bf16.msra.mxu0 %v4997
        %5204 = vmatprep.subr.bf16.mxu0 %v4994
        %5205 = vmatpush1.bf16.msra.mxu0 %v4993
        %5206 = vmatprep.subr.bf16.mxu0 %v4990
        %5207 = vmatpush1.bf16.msra.mxu0 %v4989
        %5208 = vmatprep.subr.bf16.mxu0 %v4986
        %5209 = vmatpush1.bf16.msra.mxu0 %v4985
        %5210 = vmatprep.subr.bf16.mxu0 %v4982
        %5211 = vmatpush1.bf16.msra.mxu0 %v4981
        %5212 = vmatprep.subr.bf16.mxu0 %v4978
        %5213 = vmatpush1.bf16.msra.mxu0 %v4977
        %5214 = vmatprep.subr.bf16.mxu0 %v4974
        %5215 = vmatpush1.bf16.msra.mxu0 %v4973
        %5216 = vmatprep.subr.bf16.mxu0 %v4970
        %5217 = vmatpush1.bf16.msra.mxu0 %v4969
        %5218 = vmatprep.subr.bf16.mxu0 %v5030
        %5219 = vmatpush2.bf16.msra.mxu0 %v5029
        %5220 = vmatprep.subr.bf16.mxu0 %v5026
        %5221 = vmatpush2.bf16.msra.mxu0 %v5025
        %5222 = vmatprep.subr.bf16.mxu0 %v5022
        %5223 = vmatpush2.bf16.msra.mxu0 %v5021
        %5224 = vmatprep.subr.bf16.mxu0 %v5018
        %5225 = vmatpush2.bf16.msra.mxu0 %v5017
        %5226 = vmatprep.subr.bf16.mxu0 %v5014
        %5227 = vmatpush2.bf16.msra.mxu0 %v5013
        %5228 = vmatprep.subr.bf16.mxu0 %v5010
        %5229 = vmatpush2.bf16.msra.mxu0 %v5009
        %5230 = vmatprep.subr.bf16.mxu0 %v5006
        %5231 = vmatpush2.bf16.msra.mxu0 %v5005
        %5232 = vmatprep.subr.bf16.mxu0 %v5002
        %5233 = vmatpush2.bf16.msra.mxu0 %v5001
        %5234 = vmatprep.mubr.bf16.mxu0 %v4370
        %5235 = vmatmul.mubr.bf16.gmra.mxu0 %v4369
        %v5236 = vpop.f32.mrf.mxu0
        %v5237 = vadd.f32 %v5196, %v5236
        %v5238 = vpop.f32.mrf.mxu0
        %v5239 = vadd.f32 %v5198, %v5238
        %v5240 = vpop.f32.mrf.mxu0
        %v5241 = vpop.f32.mrf.mxu0
        %5242 = vdwg.mxu0
        %5243 = vmatprep.subr.bf16.mxu0 %v4936
        %5244 = vmatpush1.bf16.msra.mxu0 %v4935
        %5245 = vmatprep.subr.bf16.mxu0 %v4932
        %5246 = vmatpush1.bf16.msra.mxu0 %v4931
        %5247 = vmatprep.subr.bf16.mxu0 %v4928
        %5248 = vmatpush1.bf16.msra.mxu0 %v4927
        %5249 = vmatprep.subr.bf16.mxu0 %v4924
        %5250 = vmatpush1.bf16.msra.mxu0 %v4923
        %5251 = vmatprep.subr.bf16.mxu0 %v4920
        %5252 = vmatpush1.bf16.msra.mxu0 %v4919
        %5253 = vmatprep.subr.bf16.mxu0 %v4916
        %5254 = vmatpush1.bf16.msra.mxu0 %v4915
        %5255 = vmatprep.subr.bf16.mxu0 %v4912
        %5256 = vmatpush1.bf16.msra.mxu0 %v4911
        %5257 = vmatprep.subr.bf16.mxu0 %v4908
        %5258 = vmatpush1.bf16.msra.mxu0 %v4907
        %5259 = vmatprep.subr.bf16.mxu0 %v4968
        %5260 = vmatpush2.bf16.msra.mxu0 %v4967
        %5261 = vmatprep.subr.bf16.mxu0 %v4964
        %5262 = vmatpush2.bf16.msra.mxu0 %v4963
        %5263 = vmatprep.subr.bf16.mxu0 %v4960
        %5264 = vmatpush2.bf16.msra.mxu0 %v4959
        %5265 = vmatprep.subr.bf16.mxu0 %v4956
        %5266 = vmatpush2.bf16.msra.mxu0 %v4955
        %5267 = vmatprep.subr.bf16.mxu0 %v4952
        %5268 = vmatpush2.bf16.msra.mxu0 %v4951
        %5269 = vmatprep.subr.bf16.mxu0 %v4948
        %5270 = vmatpush2.bf16.msra.mxu0 %v4947
        %5271 = vmatprep.subr.bf16.mxu0 %v4944
        %5272 = vmatpush2.bf16.msra.mxu0 %v4943
        %5273 = vmatprep.subr.bf16.mxu0 %v4940
        %5274 = vmatpush2.bf16.msra.mxu0 %v4939
        %5275 = vmatprep.mubr.bf16.mxu0 %v4368
        %5276 = vmatmul.mubr.bf16.gmra.mxu0 %v4367
        %v5277 = vpop.f32.mrf.mxu0
        %v5278 = vadd.f32 %v4512, %v5277
        %v5279 = vpop.f32.mrf.mxu0
        %v5280 = vadd.f32 %v4516, %v5279
        %v5281 = vpop.f32.mrf.mxu0
        %v5282 = vpop.f32.mrf.mxu0
        %5283 = vdwg.mxu0
        %5284 = vmatprep.subr.bf16.mxu0 %v5000
        %5285 = vmatpush1.bf16.msra.mxu0 %v4999
        %5286 = vmatprep.subr.bf16.mxu0 %v4996
        %5287 = vmatpush1.bf16.msra.mxu0 %v4995
        %5288 = vmatprep.subr.bf16.mxu0 %v4992
        %5289 = vmatpush1.bf16.msra.mxu0 %v4991
        %5290 = vmatprep.subr.bf16.mxu0 %v4988
        %5291 = vmatpush1.bf16.msra.mxu0 %v4987
        %5292 = vmatprep.subr.bf16.mxu0 %v4984
        %5293 = vmatpush1.bf16.msra.mxu0 %v4983
        %5294 = vmatprep.subr.bf16.mxu0 %v4980
        %5295 = vmatpush1.bf16.msra.mxu0 %v4979
        %5296 = vmatprep.subr.bf16.mxu0 %v4976
        %5297 = vmatpush1.bf16.msra.mxu0 %v4975
        %5298 = vmatprep.subr.bf16.mxu0 %v4972
        %5299 = vmatpush1.bf16.msra.mxu0 %v4971
        %5300 = vmatprep.subr.bf16.mxu0 %v5032
        %5301 = vmatpush2.bf16.msra.mxu0 %v5031
        %5302 = vmatprep.subr.bf16.mxu0 %v5028
        %5303 = vmatpush2.bf16.msra.mxu0 %v5027
        %5304 = vmatprep.subr.bf16.mxu0 %v5024
        %5305 = vmatpush2.bf16.msra.mxu0 %v5023
        %5306 = vmatprep.subr.bf16.mxu0 %v5020
        %5307 = vmatpush2.bf16.msra.mxu0 %v5019
        %5308 = vmatprep.subr.bf16.mxu0 %v5016
        %5309 = vmatpush2.bf16.msra.mxu0 %v5015
        %5310 = vmatprep.subr.bf16.mxu0 %v5012
        %5311 = vmatpush2.bf16.msra.mxu0 %v5011
        %5312 = vmatprep.subr.bf16.mxu0 %v5008
        %5313 = vmatpush2.bf16.msra.mxu0 %v5007
        %5314 = vmatprep.subr.bf16.mxu0 %v5004
        %5315 = vmatpush2.bf16.msra.mxu0 %v5003
        %5316 = vmatprep.mubr.bf16.mxu0 %v4370
        %5317 = vmatmul.mubr.bf16.gmra.mxu0 %v4369
        %v5318 = vpop.f32.mrf.mxu0
        %v5319 = vadd.f32 %v5278, %v5318
        %v5320 = vpop.f32.mrf.mxu0
        %v5321 = vadd.f32 %v5280, %v5320
        %v5322 = vpop.f32.mrf.mxu0
        %v5323 = vpop.f32.mrf.mxu0
        %5324 = vdwg.mxu0
        %v5325 = vmax.f32 %v5237, 0.0
        %v5326 = vmax.f32 %v5239, 0.0
        %v5327 = vmax.f32 %v5319, 0.0
        %v5328 = vmax.f32 %v5321, 0.0
        %v5329 = vpack.c.bf16 %v5325, %v5325
        %v5330 = vpack.c.bf16 %v5326, %v5326
        %v5331 = vpack.c.bf16 %v5327, %v5327
        %v5332 = vpack.c.bf16 %v5328, %v5328
        %v5333 = vld [vmem:[%s912] sm:$0xff]
        %v5334 = vld [vmem:[%s912 + $0x8] sm:$0xff]
        %v5335 = vld [vmem:[%s912 + $0x10] sm:$0xff]
        %v5336 = vld [vmem:[%s912 + $0x18] sm:$0xff]
        %v5337 = vld [vmem:[%s912 + $0x20] sm:$0xff]
        %v5338 = vld [vmem:[%s912 + $0x28] sm:$0xff]
        %v5339 = vld [vmem:[%s912 + $0x30] sm:$0xff]
        %v5340 = vld [vmem:[%s912 + $0x38] sm:$0xff]
        %v5341 = vld [vmem:[%s912 + $0x40] sm:$0xff]
        %v5342 = vld [vmem:[%s912 + $0x48] sm:$0xff]
        %v5343 = vld [vmem:[%s912 + $0x50] sm:$0xff]
        %v5344 = vld [vmem:[%s912 + $0x58] sm:$0xff]
        %v5345 = vld [vmem:[%s912 + $0x60] sm:$0xff]
        %v5346 = vld [vmem:[%s912 + $0x68] sm:$0xff]
        %v5347 = vld [vmem:[%s912 + $0x70] sm:$0xff]
        %v5348 = vld [vmem:[%s912 + $0x78] sm:$0xff]
        %v5349 = vld [vmem:[%s912 + $0x80] sm:$0xff]
        %v5350 = vld [vmem:[%s912 + $0x88] sm:$0xff]
        %v5351 = vld [vmem:[%s912 + $0x90] sm:$0xff]
        %v5352 = vld [vmem:[%s912 + $0x98] sm:$0xff]
        %v5353 = vld [vmem:[%s912 + $0xa0] sm:$0xff]
        %v5354 = vld [vmem:[%s912 + $0xa8] sm:$0xff]
        %v5355 = vld [vmem:[%s912 + $0xb0] sm:$0xff]
        %v5356 = vld [vmem:[%s912 + $0xb8] sm:$0xff]
        %v5357 = vld [vmem:[%s912 + $0xc0] sm:$0xff]
        %v5358 = vld [vmem:[%s912 + $0xc8] sm:$0xff]
        %v5359 = vld [vmem:[%s912 + $0xd0] sm:$0xff]
        %v5360 = vld [vmem:[%s912 + $0xd8] sm:$0xff]
        %v5361 = vld [vmem:[%s912 + $0xe0] sm:$0xff]
        %v5362 = vld [vmem:[%s912 + $0xe8] sm:$0xff]
        %v5363 = vld [vmem:[%s912 + $0xf0] sm:$0xff]
        %v5364 = vld [vmem:[%s912 + $0xf8] sm:$0xff]
        %v5365 = vld [vmem:[%s912 + $0x100] sm:$0xff]
        %v5366 = vld [vmem:[%s912 + $0x108] sm:$0xff]
        %v5367 = vld [vmem:[%s912 + $0x110] sm:$0xff]
        %v5368 = vld [vmem:[%s912 + $0x118] sm:$0xff]
        %v5369 = vld [vmem:[%s912 + $0x120] sm:$0xff]
        %v5370 = vld [vmem:[%s912 + $0x128] sm:$0xff]
        %v5371 = vld [vmem:[%s912 + $0x130] sm:$0xff]
        %v5372 = vld [vmem:[%s912 + $0x138] sm:$0xff]
        %v5373 = vld [vmem:[%s912 + $0x140] sm:$0xff]
        %v5374 = vld [vmem:[%s912 + $0x148] sm:$0xff]
        %v5375 = vld [vmem:[%s912 + $0x150] sm:$0xff]
        %v5376 = vld [vmem:[%s912 + $0x158] sm:$0xff]
        %v5377 = vld [vmem:[%s912 + $0x160] sm:$0xff]
        %v5378 = vld [vmem:[%s912 + $0x168] sm:$0xff]
        %v5379 = vld [vmem:[%s912 + $0x170] sm:$0xff]
        %v5380 = vld [vmem:[%s912 + $0x178] sm:$0xff]
        %v5381 = vld [vmem:[%s912 + $0x180] sm:$0xff]
        %v5382 = vld [vmem:[%s912 + $0x188] sm:$0xff]
        %v5383 = vld [vmem:[%s912 + $0x190] sm:$0xff]
        %v5384 = vld [vmem:[%s912 + $0x198] sm:$0xff]
        %v5385 = vld [vmem:[%s912 + $0x1a0] sm:$0xff]
        %v5386 = vld [vmem:[%s912 + $0x1a8] sm:$0xff]
        %v5387 = vld [vmem:[%s912 + $0x1b0] sm:$0xff]
        %v5388 = vld [vmem:[%s912 + $0x1b8] sm:$0xff]
        %v5389 = vld [vmem:[%s912 + $0x1c0] sm:$0xff]
        %v5390 = vld [vmem:[%s912 + $0x1c8] sm:$0xff]
        %v5391 = vld [vmem:[%s912 + $0x1d0] sm:$0xff]
        %v5392 = vld [vmem:[%s912 + $0x1d8] sm:$0xff]
        %v5393 = vld [vmem:[%s912 + $0x1e0] sm:$0xff]
        %v5394 = vld [vmem:[%s912 + $0x1e8] sm:$0xff]
        %v5395 = vld [vmem:[%s912 + $0x1f0] sm:$0xff]
        %v5396 = vld [vmem:[%s912 + $0x1f8] sm:$0xff]
        %v5397 = vld [vmem:[%s912 + $0x200] sm:$0xff]
        %v5398 = vld [vmem:[%s912 + $0x208] sm:$0xff]
        %v5399 = vld [vmem:[%s912 + $0x210] sm:$0xff]
        %v5400 = vld [vmem:[%s912 + $0x218] sm:$0xff]
        %v5401 = vld [vmem:[%s912 + $0x220] sm:$0xff]
        %v5402 = vld [vmem:[%s912 + $0x228] sm:$0xff]
        %v5403 = vld [vmem:[%s912 + $0x230] sm:$0xff]
        %v5404 = vld [vmem:[%s912 + $0x238] sm:$0xff]
        %v5405 = vld [vmem:[%s912 + $0x240] sm:$0xff]
        %v5406 = vld [vmem:[%s912 + $0x248] sm:$0xff]
        %v5407 = vld [vmem:[%s912 + $0x250] sm:$0xff]
        %v5408 = vld [vmem:[%s912 + $0x258] sm:$0xff]
        %v5409 = vld [vmem:[%s912 + $0x260] sm:$0xff]
        %v5410 = vld [vmem:[%s912 + $0x268] sm:$0xff]
        %v5411 = vld [vmem:[%s912 + $0x270] sm:$0xff]
        %v5412 = vld [vmem:[%s912 + $0x278] sm:$0xff]
        %v5413 = vld [vmem:[%s912 + $0x280] sm:$0xff]
        %v5414 = vld [vmem:[%s912 + $0x288] sm:$0xff]
        %v5415 = vld [vmem:[%s912 + $0x290] sm:$0xff]
        %v5416 = vld [vmem:[%s912 + $0x298] sm:$0xff]
        %v5417 = vld [vmem:[%s912 + $0x2a0] sm:$0xff]
        %v5418 = vld [vmem:[%s912 + $0x2a8] sm:$0xff]
        %v5419 = vld [vmem:[%s912 + $0x2b0] sm:$0xff]
        %v5420 = vld [vmem:[%s912 + $0x2b8] sm:$0xff]
        %v5421 = vld [vmem:[%s912 + $0x2c0] sm:$0xff]
        %v5422 = vld [vmem:[%s912 + $0x2c8] sm:$0xff]
        %v5423 = vld [vmem:[%s912 + $0x2d0] sm:$0xff]
        %v5424 = vld [vmem:[%s912 + $0x2d8] sm:$0xff]
        %v5425 = vld [vmem:[%s912 + $0x2e0] sm:$0xff]
        %v5426 = vld [vmem:[%s912 + $0x2e8] sm:$0xff]
        %v5427 = vld [vmem:[%s912 + $0x2f0] sm:$0xff]
        %v5428 = vld [vmem:[%s912 + $0x2f8] sm:$0xff]
        %v5429 = vld [vmem:[%s912 + $0x300] sm:$0xff]
        %v5430 = vld [vmem:[%s912 + $0x308] sm:$0xff]
        %v5431 = vld [vmem:[%s912 + $0x310] sm:$0xff]
        %v5432 = vld [vmem:[%s912 + $0x318] sm:$0xff]
        %v5433 = vld [vmem:[%s912 + $0x320] sm:$0xff]
        %v5434 = vld [vmem:[%s912 + $0x328] sm:$0xff]
        %v5435 = vld [vmem:[%s912 + $0x330] sm:$0xff]
        %v5436 = vld [vmem:[%s912 + $0x338] sm:$0xff]
        %v5437 = vld [vmem:[%s912 + $0x340] sm:$0xff]
        %v5438 = vld [vmem:[%s912 + $0x348] sm:$0xff]
        %v5439 = vld [vmem:[%s912 + $0x350] sm:$0xff]
        %v5440 = vld [vmem:[%s912 + $0x358] sm:$0xff]
        %v5441 = vld [vmem:[%s912 + $0x360] sm:$0xff]
        %v5442 = vld [vmem:[%s912 + $0x368] sm:$0xff]
        %v5443 = vld [vmem:[%s912 + $0x370] sm:$0xff]
        %v5444 = vld [vmem:[%s912 + $0x378] sm:$0xff]
        %v5445 = vld [vmem:[%s912 + $0x380] sm:$0xff]
        %v5446 = vld [vmem:[%s912 + $0x388] sm:$0xff]
        %v5447 = vld [vmem:[%s912 + $0x390] sm:$0xff]
        %v5448 = vld [vmem:[%s912 + $0x398] sm:$0xff]
        %v5449 = vld [vmem:[%s912 + $0x3a0] sm:$0xff]
        %v5450 = vld [vmem:[%s912 + $0x3a8] sm:$0xff]
        %v5451 = vld [vmem:[%s912 + $0x3b0] sm:$0xff]
        %v5452 = vld [vmem:[%s912 + $0x3b8] sm:$0xff]
        %v5453 = vld [vmem:[%s912 + $0x3c0] sm:$0xff]
        %v5454 = vld [vmem:[%s912 + $0x3c8] sm:$0xff]
        %v5455 = vld [vmem:[%s912 + $0x3d0] sm:$0xff]
        %v5456 = vld [vmem:[%s912 + $0x3d8] sm:$0xff]
        %v5457 = vld [vmem:[%s912 + $0x3e0] sm:$0xff]
        %v5458 = vld [vmem:[%s912 + $0x3e8] sm:$0xff]
        %v5459 = vld [vmem:[%s912 + $0x3f0] sm:$0xff]
        %v5460 = vld [vmem:[%s912 + $0x3f8] sm:$0xff]
        %v5461 = vld [vmem:[%s920] sm:$0xf]
        %v5463 = vlaneseq
        %v5464 = vshrl.u32 %v5463, 7
        %v5465 = vsub.s32 0, %v5464
        %v5466 = vrot.slane %v5461, %v5465
        %v5467 = vlaneseq
        %v5468 = vshrl.u32 %v5467, 7
        %v5469 = vsub.s32 1, %v5468
        %v5470 = vrot.slane %v5461, %v5469
        %v5471 = vlaneseq
        %v5472 = vshrl.u32 %v5471, 7
        %v5473 = vsub.s32 2, %v5472
        %v5474 = vrot.slane %v5461, %v5473
        %v5475 = vlaneseq
        %v5476 = vshrl.u32 %v5475, 7
        %v5477 = vsub.s32 3, %v5476
        %v5478 = vrot.slane %v5461, %v5477
        %v5611 = vunpack.c.l.b16 %v5333
        %v5612 = vunpack.c.h.b16 %v5333
        %v5613 = vunpack.c.l.b16 %v5334
        %v5614 = vunpack.c.h.b16 %v5334
        %v5615 = vunpack.c.l.b16 %v5335
        %v5616 = vunpack.c.h.b16 %v5335
        %v5617 = vunpack.c.l.b16 %v5336
        %v5618 = vunpack.c.h.b16 %v5336
        %v5619 = vunpack.c.l.b16 %v5337
        %v5620 = vunpack.c.h.b16 %v5337
        %v5621 = vunpack.c.l.b16 %v5338
        %v5622 = vunpack.c.h.b16 %v5338
        %v5623 = vunpack.c.l.b16 %v5339
        %v5624 = vunpack.c.h.b16 %v5339
        %v5625 = vunpack.c.l.b16 %v5340
        %v5626 = vunpack.c.h.b16 %v5340
        %v5627 = vunpack.c.l.b16 %v5341
        %v5628 = vunpack.c.h.b16 %v5341
        %v5629 = vunpack.c.l.b16 %v5342
        %v5630 = vunpack.c.h.b16 %v5342
        %v5631 = vunpack.c.l.b16 %v5343
        %v5632 = vunpack.c.h.b16 %v5343
        %v5633 = vunpack.c.l.b16 %v5344
        %v5634 = vunpack.c.h.b16 %v5344
        %v5635 = vunpack.c.l.b16 %v5345
        %v5636 = vunpack.c.h.b16 %v5345
        %v5637 = vunpack.c.l.b16 %v5346
        %v5638 = vunpack.c.h.b16 %v5346
        %v5639 = vunpack.c.l.b16 %v5347
        %v5640 = vunpack.c.h.b16 %v5347
        %v5641 = vunpack.c.l.b16 %v5348
        %v5642 = vunpack.c.h.b16 %v5348
        %v5643 = vunpack.c.l.b16 %v5349
        %v5644 = vunpack.c.h.b16 %v5349
        %v5645 = vunpack.c.l.b16 %v5350
        %v5646 = vunpack.c.h.b16 %v5350
        %v5647 = vunpack.c.l.b16 %v5351
        %v5648 = vunpack.c.h.b16 %v5351
        %v5649 = vunpack.c.l.b16 %v5352
        %v5650 = vunpack.c.h.b16 %v5352
        %v5651 = vunpack.c.l.b16 %v5353
        %v5652 = vunpack.c.h.b16 %v5353
        %v5653 = vunpack.c.l.b16 %v5354
        %v5654 = vunpack.c.h.b16 %v5354
        %v5655 = vunpack.c.l.b16 %v5355
        %v5656 = vunpack.c.h.b16 %v5355
        %v5657 = vunpack.c.l.b16 %v5356
        %v5658 = vunpack.c.h.b16 %v5356
        %v5659 = vunpack.c.l.b16 %v5357
        %v5660 = vunpack.c.h.b16 %v5357
        %v5661 = vunpack.c.l.b16 %v5358
        %v5662 = vunpack.c.h.b16 %v5358
        %v5663 = vunpack.c.l.b16 %v5359
        %v5664 = vunpack.c.h.b16 %v5359
        %v5665 = vunpack.c.l.b16 %v5360
        %v5666 = vunpack.c.h.b16 %v5360
        %v5667 = vunpack.c.l.b16 %v5361
        %v5668 = vunpack.c.h.b16 %v5361
        %v5669 = vunpack.c.l.b16 %v5362
        %v5670 = vunpack.c.h.b16 %v5362
        %v5671 = vunpack.c.l.b16 %v5363
        %v5672 = vunpack.c.h.b16 %v5363
        %v5673 = vunpack.c.l.b16 %v5364
        %v5674 = vunpack.c.h.b16 %v5364
        %v5675 = vunpack.c.l.b16 %v5365
        %v5676 = vunpack.c.h.b16 %v5365
        %v5677 = vunpack.c.l.b16 %v5366
        %v5678 = vunpack.c.h.b16 %v5366
        %v5679 = vunpack.c.l.b16 %v5367
        %v5680 = vunpack.c.h.b16 %v5367
        %v5681 = vunpack.c.l.b16 %v5368
        %v5682 = vunpack.c.h.b16 %v5368
        %v5683 = vunpack.c.l.b16 %v5369
        %v5684 = vunpack.c.h.b16 %v5369
        %v5685 = vunpack.c.l.b16 %v5370
        %v5686 = vunpack.c.h.b16 %v5370
        %v5687 = vunpack.c.l.b16 %v5371
        %v5688 = vunpack.c.h.b16 %v5371
        %v5689 = vunpack.c.l.b16 %v5372
        %v5690 = vunpack.c.h.b16 %v5372
        %v5691 = vunpack.c.l.b16 %v5373
        %v5692 = vunpack.c.h.b16 %v5373
        %v5693 = vunpack.c.l.b16 %v5374
        %v5694 = vunpack.c.h.b16 %v5374
        %v5695 = vunpack.c.l.b16 %v5375
        %v5696 = vunpack.c.h.b16 %v5375
        %v5697 = vunpack.c.l.b16 %v5376
        %v5698 = vunpack.c.h.b16 %v5376
        %v5699 = vunpack.c.l.b16 %v5377
        %v5700 = vunpack.c.h.b16 %v5377
        %v5701 = vunpack.c.l.b16 %v5378
        %v5702 = vunpack.c.h.b16 %v5378
        %v5703 = vunpack.c.l.b16 %v5379
        %v5704 = vunpack.c.h.b16 %v5379
        %v5705 = vunpack.c.l.b16 %v5380
        %v5706 = vunpack.c.h.b16 %v5380
        %v5707 = vunpack.c.l.b16 %v5381
        %v5708 = vunpack.c.h.b16 %v5381
        %v5709 = vunpack.c.l.b16 %v5382
        %v5710 = vunpack.c.h.b16 %v5382
        %v5711 = vunpack.c.l.b16 %v5383
        %v5712 = vunpack.c.h.b16 %v5383
        %v5713 = vunpack.c.l.b16 %v5384
        %v5714 = vunpack.c.h.b16 %v5384
        %v5715 = vunpack.c.l.b16 %v5385
        %v5716 = vunpack.c.h.b16 %v5385
        %v5717 = vunpack.c.l.b16 %v5386
        %v5718 = vunpack.c.h.b16 %v5386
        %v5719 = vunpack.c.l.b16 %v5387
        %v5720 = vunpack.c.h.b16 %v5387
        %v5721 = vunpack.c.l.b16 %v5388
        %v5722 = vunpack.c.h.b16 %v5388
        %v5723 = vunpack.c.l.b16 %v5389
        %v5724 = vunpack.c.h.b16 %v5389
        %v5725 = vunpack.c.l.b16 %v5390
        %v5726 = vunpack.c.h.b16 %v5390
        %v5727 = vunpack.c.l.b16 %v5391
        %v5728 = vunpack.c.h.b16 %v5391
        %v5729 = vunpack.c.l.b16 %v5392
        %v5730 = vunpack.c.h.b16 %v5392
        %v5731 = vunpack.c.l.b16 %v5393
        %v5732 = vunpack.c.h.b16 %v5393
        %v5733 = vunpack.c.l.b16 %v5394
        %v5734 = vunpack.c.h.b16 %v5394
        %v5735 = vunpack.c.l.b16 %v5395
        %v5736 = vunpack.c.h.b16 %v5395
        %v5737 = vunpack.c.l.b16 %v5396
        %v5738 = vunpack.c.h.b16 %v5396
        %v5739 = vunpack.c.l.b16 %v5397
        %v5740 = vunpack.c.h.b16 %v5397
        %v5741 = vunpack.c.l.b16 %v5398
        %v5742 = vunpack.c.h.b16 %v5398
        %v5743 = vunpack.c.l.b16 %v5399
        %v5744 = vunpack.c.h.b16 %v5399
        %v5745 = vunpack.c.l.b16 %v5400
        %v5746 = vunpack.c.h.b16 %v5400
        %v5747 = vunpack.c.l.b16 %v5401
        %v5748 = vunpack.c.h.b16 %v5401
        %v5749 = vunpack.c.l.b16 %v5402
        %v5750 = vunpack.c.h.b16 %v5402
        %v5751 = vunpack.c.l.b16 %v5403
        %v5752 = vunpack.c.h.b16 %v5403
        %v5753 = vunpack.c.l.b16 %v5404
        %v5754 = vunpack.c.h.b16 %v5404
        %v5755 = vunpack.c.l.b16 %v5405
        %v5756 = vunpack.c.h.b16 %v5405
        %v5757 = vunpack.c.l.b16 %v5406
        %v5758 = vunpack.c.h.b16 %v5406
        %v5759 = vunpack.c.l.b16 %v5407
        %v5760 = vunpack.c.h.b16 %v5407
        %v5761 = vunpack.c.l.b16 %v5408
        %v5762 = vunpack.c.h.b16 %v5408
        %v5763 = vunpack.c.l.b16 %v5409
        %v5764 = vunpack.c.h.b16 %v5409
        %v5765 = vunpack.c.l.b16 %v5410
        %v5766 = vunpack.c.h.b16 %v5410
        %v5767 = vunpack.c.l.b16 %v5411
        %v5768 = vunpack.c.h.b16 %v5411
        %v5769 = vunpack.c.l.b16 %v5412
        %v5770 = vunpack.c.h.b16 %v5412
        %v5771 = vunpack.c.l.b16 %v5413
        %v5772 = vunpack.c.h.b16 %v5413
        %v5773 = vunpack.c.l.b16 %v5414
        %v5774 = vunpack.c.h.b16 %v5414
        %v5775 = vunpack.c.l.b16 %v5415
        %v5776 = vunpack.c.h.b16 %v5415
        %v5777 = vunpack.c.l.b16 %v5416
        %v5778 = vunpack.c.h.b16 %v5416
        %v5779 = vunpack.c.l.b16 %v5417
        %v5780 = vunpack.c.h.b16 %v5417
        %v5781 = vunpack.c.l.b16 %v5418
        %v5782 = vunpack.c.h.b16 %v5418
        %v5783 = vunpack.c.l.b16 %v5419
        %v5784 = vunpack.c.h.b16 %v5419
        %v5785 = vunpack.c.l.b16 %v5420
        %v5786 = vunpack.c.h.b16 %v5420
        %v5787 = vunpack.c.l.b16 %v5421
        %v5788 = vunpack.c.h.b16 %v5421
        %v5789 = vunpack.c.l.b16 %v5422
        %v5790 = vunpack.c.h.b16 %v5422
        %v5791 = vunpack.c.l.b16 %v5423
        %v5792 = vunpack.c.h.b16 %v5423
        %v5793 = vunpack.c.l.b16 %v5424
        %v5794 = vunpack.c.h.b16 %v5424
        %v5795 = vunpack.c.l.b16 %v5425
        %v5796 = vunpack.c.h.b16 %v5425
        %v5797 = vunpack.c.l.b16 %v5426
        %v5798 = vunpack.c.h.b16 %v5426
        %v5799 = vunpack.c.l.b16 %v5427
        %v5800 = vunpack.c.h.b16 %v5427
        %v5801 = vunpack.c.l.b16 %v5428
        %v5802 = vunpack.c.h.b16 %v5428
        %v5803 = vunpack.c.l.b16 %v5429
        %v5804 = vunpack.c.h.b16 %v5429
        %v5805 = vunpack.c.l.b16 %v5430
        %v5806 = vunpack.c.h.b16 %v5430
        %v5807 = vunpack.c.l.b16 %v5431
        %v5808 = vunpack.c.h.b16 %v5431
        %v5809 = vunpack.c.l.b16 %v5432
        %v5810 = vunpack.c.h.b16 %v5432
        %v5811 = vunpack.c.l.b16 %v5433
        %v5812 = vunpack.c.h.b16 %v5433
        %v5813 = vunpack.c.l.b16 %v5434
        %v5814 = vunpack.c.h.b16 %v5434
        %v5815 = vunpack.c.l.b16 %v5435
        %v5816 = vunpack.c.h.b16 %v5435
        %v5817 = vunpack.c.l.b16 %v5436
        %v5818 = vunpack.c.h.b16 %v5436
        %v5819 = vunpack.c.l.b16 %v5437
        %v5820 = vunpack.c.h.b16 %v5437
        %v5821 = vunpack.c.l.b16 %v5438
        %v5822 = vunpack.c.h.b16 %v5438
        %v5823 = vunpack.c.l.b16 %v5439
        %v5824 = vunpack.c.h.b16 %v5439
        %v5825 = vunpack.c.l.b16 %v5440
        %v5826 = vunpack.c.h.b16 %v5440
        %v5827 = vunpack.c.l.b16 %v5441
        %v5828 = vunpack.c.h.b16 %v5441
        %v5829 = vunpack.c.l.b16 %v5442
        %v5830 = vunpack.c.h.b16 %v5442
        %v5831 = vunpack.c.l.b16 %v5443
        %v5832 = vunpack.c.h.b16 %v5443
        %v5833 = vunpack.c.l.b16 %v5444
        %v5834 = vunpack.c.h.b16 %v5444
        %v5835 = vunpack.c.l.b16 %v5445
        %v5836 = vunpack.c.h.b16 %v5445
        %v5837 = vunpack.c.l.b16 %v5446
        %v5838 = vunpack.c.h.b16 %v5446
        %v5839 = vunpack.c.l.b16 %v5447
        %v5840 = vunpack.c.h.b16 %v5447
        %v5841 = vunpack.c.l.b16 %v5448
        %v5842 = vunpack.c.h.b16 %v5448
        %v5843 = vunpack.c.l.b16 %v5449
        %v5844 = vunpack.c.h.b16 %v5449
        %v5845 = vunpack.c.l.b16 %v5450
        %v5846 = vunpack.c.h.b16 %v5450
        %v5847 = vunpack.c.l.b16 %v5451
        %v5848 = vunpack.c.h.b16 %v5451
        %v5849 = vunpack.c.l.b16 %v5452
        %v5850 = vunpack.c.h.b16 %v5452
        %v5851 = vunpack.c.l.b16 %v5453
        %v5852 = vunpack.c.h.b16 %v5453
        %v5853 = vunpack.c.l.b16 %v5454
        %v5854 = vunpack.c.h.b16 %v5454
        %v5855 = vunpack.c.l.b16 %v5455
        %v5856 = vunpack.c.h.b16 %v5455
        %v5857 = vunpack.c.l.b16 %v5456
        %v5858 = vunpack.c.h.b16 %v5456
        %v5859 = vunpack.c.l.b16 %v5457
        %v5860 = vunpack.c.h.b16 %v5457
        %v5861 = vunpack.c.l.b16 %v5458
        %v5862 = vunpack.c.h.b16 %v5458
        %v5863 = vunpack.c.l.b16 %v5459
        %v5864 = vunpack.c.h.b16 %v5459
        %v5865 = vunpack.c.l.b16 %v5460
        %v5866 = vunpack.c.h.b16 %v5460
        %v5867 = vpack.c.b16 %v5615, %v5611
        %v5868 = vpack.c.b16 %v5616, %v5612
        %v5869 = vpack.c.b16 %v5617, %v5613
        %v5870 = vpack.c.b16 %v5618, %v5614
        %v5871 = vpack.c.b16 %v5623, %v5619
        %v5872 = vpack.c.b16 %v5624, %v5620
        %v5873 = vpack.c.b16 %v5625, %v5621
        %v5874 = vpack.c.b16 %v5626, %v5622
        %v5875 = vpack.c.b16 %v5631, %v5627
        %v5876 = vpack.c.b16 %v5632, %v5628
        %v5877 = vpack.c.b16 %v5633, %v5629
        %v5878 = vpack.c.b16 %v5634, %v5630
        %v5879 = vpack.c.b16 %v5639, %v5635
        %v5880 = vpack.c.b16 %v5640, %v5636
        %v5881 = vpack.c.b16 %v5641, %v5637
        %v5882 = vpack.c.b16 %v5642, %v5638
        %v5883 = vpack.c.b16 %v5647, %v5643
        %v5884 = vpack.c.b16 %v5648, %v5644
        %v5885 = vpack.c.b16 %v5649, %v5645
        %v5886 = vpack.c.b16 %v5650, %v5646
        %v5887 = vpack.c.b16 %v5655, %v5651
        %v5888 = vpack.c.b16 %v5656, %v5652
        %v5889 = vpack.c.b16 %v5657, %v5653
        %v5890 = vpack.c.b16 %v5658, %v5654
        %v5891 = vpack.c.b16 %v5663, %v5659
        %v5892 = vpack.c.b16 %v5664, %v5660
        %v5893 = vpack.c.b16 %v5665, %v5661
        %v5894 = vpack.c.b16 %v5666, %v5662
        %v5895 = vpack.c.b16 %v5671, %v5667
        %v5896 = vpack.c.b16 %v5672, %v5668
        %v5897 = vpack.c.b16 %v5673, %v5669
        %v5898 = vpack.c.b16 %v5674, %v5670
        %v5899 = vpack.c.b16 %v5679, %v5675
        %v5900 = vpack.c.b16 %v5680, %v5676
        %v5901 = vpack.c.b16 %v5681, %v5677
        %v5902 = vpack.c.b16 %v5682, %v5678
        %v5903 = vpack.c.b16 %v5687, %v5683
        %v5904 = vpack.c.b16 %v5688, %v5684
        %v5905 = vpack.c.b16 %v5689, %v5685
        %v5906 = vpack.c.b16 %v5690, %v5686
        %v5907 = vpack.c.b16 %v5695, %v5691
        %v5908 = vpack.c.b16 %v5696, %v5692
        %v5909 = vpack.c.b16 %v5697, %v5693
        %v5910 = vpack.c.b16 %v5698, %v5694
        %v5911 = vpack.c.b16 %v5703, %v5699
        %v5912 = vpack.c.b16 %v5704, %v5700
        %v5913 = vpack.c.b16 %v5705, %v5701
        %v5914 = vpack.c.b16 %v5706, %v5702
        %v5915 = vpack.c.b16 %v5711, %v5707
        %v5916 = vpack.c.b16 %v5712, %v5708
        %v5917 = vpack.c.b16 %v5713, %v5709
        %v5918 = vpack.c.b16 %v5714, %v5710
        %v5919 = vpack.c.b16 %v5719, %v5715
        %v5920 = vpack.c.b16 %v5720, %v5716
        %v5921 = vpack.c.b16 %v5721, %v5717
        %v5922 = vpack.c.b16 %v5722, %v5718
        %v5923 = vpack.c.b16 %v5727, %v5723
        %v5924 = vpack.c.b16 %v5728, %v5724
        %v5925 = vpack.c.b16 %v5729, %v5725
        %v5926 = vpack.c.b16 %v5730, %v5726
        %v5927 = vpack.c.b16 %v5735, %v5731
        %v5928 = vpack.c.b16 %v5736, %v5732
        %v5929 = vpack.c.b16 %v5737, %v5733
        %v5930 = vpack.c.b16 %v5738, %v5734
        %v5931 = vpack.c.b16 %v5743, %v5739
        %v5932 = vpack.c.b16 %v5744, %v5740
        %v5933 = vpack.c.b16 %v5745, %v5741
        %v5934 = vpack.c.b16 %v5746, %v5742
        %v5935 = vpack.c.b16 %v5751, %v5747
        %v5936 = vpack.c.b16 %v5752, %v5748
        %v5937 = vpack.c.b16 %v5753, %v5749
        %v5938 = vpack.c.b16 %v5754, %v5750
        %v5939 = vpack.c.b16 %v5759, %v5755
        %v5940 = vpack.c.b16 %v5760, %v5756
        %v5941 = vpack.c.b16 %v5761, %v5757
        %v5942 = vpack.c.b16 %v5762, %v5758
        %v5943 = vpack.c.b16 %v5767, %v5763
        %v5944 = vpack.c.b16 %v5768, %v5764
        %v5945 = vpack.c.b16 %v5769, %v5765
        %v5946 = vpack.c.b16 %v5770, %v5766
        %v5947 = vpack.c.b16 %v5775, %v5771
        %v5948 = vpack.c.b16 %v5776, %v5772
        %v5949 = vpack.c.b16 %v5777, %v5773
        %v5950 = vpack.c.b16 %v5778, %v5774
        %v5951 = vpack.c.b16 %v5783, %v5779
        %v5952 = vpack.c.b16 %v5784, %v5780
        %v5953 = vpack.c.b16 %v5785, %v5781
        %v5954 = vpack.c.b16 %v5786, %v5782
        %v5955 = vpack.c.b16 %v5791, %v5787
        %v5956 = vpack.c.b16 %v5792, %v5788
        %v5957 = vpack.c.b16 %v5793, %v5789
        %v5958 = vpack.c.b16 %v5794, %v5790
        %v5959 = vpack.c.b16 %v5799, %v5795
        %v5960 = vpack.c.b16 %v5800, %v5796
        %v5961 = vpack.c.b16 %v5801, %v5797
        %v5962 = vpack.c.b16 %v5802, %v5798
        %v5963 = vpack.c.b16 %v5807, %v5803
        %v5964 = vpack.c.b16 %v5808, %v5804
        %v5965 = vpack.c.b16 %v5809, %v5805
        %v5966 = vpack.c.b16 %v5810, %v5806
        %v5967 = vpack.c.b16 %v5815, %v5811
        %v5968 = vpack.c.b16 %v5816, %v5812
        %v5969 = vpack.c.b16 %v5817, %v5813
        %v5970 = vpack.c.b16 %v5818, %v5814
        %v5971 = vpack.c.b16 %v5823, %v5819
        %v5972 = vpack.c.b16 %v5824, %v5820
        %v5973 = vpack.c.b16 %v5825, %v5821
        %v5974 = vpack.c.b16 %v5826, %v5822
        %v5975 = vpack.c.b16 %v5831, %v5827
        %v5976 = vpack.c.b16 %v5832, %v5828
        %v5977 = vpack.c.b16 %v5833, %v5829
        %v5978 = vpack.c.b16 %v5834, %v5830
        %v5979 = vpack.c.b16 %v5839, %v5835
        %v5980 = vpack.c.b16 %v5840, %v5836
        %v5981 = vpack.c.b16 %v5841, %v5837
        %v5982 = vpack.c.b16 %v5842, %v5838
        %v5983 = vpack.c.b16 %v5847, %v5843
        %v5984 = vpack.c.b16 %v5848, %v5844
        %v5985 = vpack.c.b16 %v5849, %v5845
        %v5986 = vpack.c.b16 %v5850, %v5846
        %v5987 = vpack.c.b16 %v5855, %v5851
        %v5988 = vpack.c.b16 %v5856, %v5852
        %v5989 = vpack.c.b16 %v5857, %v5853
        %v5990 = vpack.c.b16 %v5858, %v5854
        %v5991 = vpack.c.b16 %v5863, %v5859
        %v5992 = vpack.c.b16 %v5864, %v5860
        %v5993 = vpack.c.b16 %v5865, %v5861
        %v5994 = vpack.c.b16 %v5866, %v5862
        %6123 = vmatprep.subr.bf16.mxu0 %v5896
        %6124 = vmatpush1.bf16.msra.mxu0 %v5895
        %6125 = vmatprep.subr.bf16.mxu0 %v5892
        %6126 = vmatpush1.bf16.msra.mxu0 %v5891
        %6127 = vmatprep.subr.bf16.mxu0 %v5888
        %6128 = vmatpush1.bf16.msra.mxu0 %v5887
        %6129 = vmatprep.subr.bf16.mxu0 %v5884
        %6130 = vmatpush1.bf16.msra.mxu0 %v5883
        %6131 = vmatprep.subr.bf16.mxu0 %v5880
        %6132 = vmatpush1.bf16.msra.mxu0 %v5879
        %6133 = vmatprep.subr.bf16.mxu0 %v5876
        %6134 = vmatpush1.bf16.msra.mxu0 %v5875
        %6135 = vmatprep.subr.bf16.mxu0 %v5872
        %6136 = vmatpush1.bf16.msra.mxu0 %v5871
        %6137 = vmatprep.subr.bf16.mxu0 %v5868
        %6138 = vmatpush1.bf16.msra.mxu0 %v5867
        %6139 = vmatprep.subr.bf16.mxu0 %v5928
        %6140 = vmatpush2.bf16.msra.mxu0 %v5927
        %6141 = vmatprep.subr.bf16.mxu0 %v5924
        %6142 = vmatpush2.bf16.msra.mxu0 %v5923
        %6143 = vmatprep.subr.bf16.mxu0 %v5920
        %6144 = vmatpush2.bf16.msra.mxu0 %v5919
        %6145 = vmatprep.subr.bf16.mxu0 %v5916
        %6146 = vmatpush2.bf16.msra.mxu0 %v5915
        %6147 = vmatprep.subr.bf16.mxu0 %v5912
        %6148 = vmatpush2.bf16.msra.mxu0 %v5911
        %6149 = vmatprep.subr.bf16.mxu0 %v5908
        %6150 = vmatpush2.bf16.msra.mxu0 %v5907
        %6151 = vmatprep.subr.bf16.mxu0 %v5904
        %6152 = vmatpush2.bf16.msra.mxu0 %v5903
        %6153 = vmatprep.subr.bf16.mxu0 %v5900
        %6154 = vmatpush2.bf16.msra.mxu0 %v5899
        %6155 = vmatprep.mubr.bf16.mxu0 %v5330
        %6156 = vmatmul.mubr.bf16.gmra.mxu0 %v5329
        %v6157 = vpop.f32.mrf.mxu0
        %v6158 = vadd.f32 %v5466, %v6157
        %v6159 = vpop.f32.mrf.mxu0
        %v6160 = vadd.f32 %v5470, %v6159
        %v6161 = vpop.f32.mrf.mxu0
        %v6162 = vpop.f32.mrf.mxu0
        %6163 = vdwg.mxu0
        %6164 = vmatprep.subr.bf16.mxu0 %v5960
        %6165 = vmatpush1.bf16.msra.mxu0 %v5959
        %6166 = vmatprep.subr.bf16.mxu0 %v5956
        %6167 = vmatpush1.bf16.msra.mxu0 %v5955
        %6168 = vmatprep.subr.bf16.mxu0 %v5952
        %6169 = vmatpush1.bf16.msra.mxu0 %v5951
        %6170 = vmatprep.subr.bf16.mxu0 %v5948
        %6171 = vmatpush1.bf16.msra.mxu0 %v5947
        %6172 = vmatprep.subr.bf16.mxu0 %v5944
        %6173 = vmatpush1.bf16.msra.mxu0 %v5943
        %6174 = vmatprep.subr.bf16.mxu0 %v5940
        %6175 = vmatpush1.bf16.msra.mxu0 %v5939
        %6176 = vmatprep.subr.bf16.mxu0 %v5936
        %6177 = vmatpush1.bf16.msra.mxu0 %v5935
        %6178 = vmatprep.subr.bf16.mxu0 %v5932
        %6179 = vmatpush1.bf16.msra.mxu0 %v5931
        %6180 = vmatprep.subr.bf16.mxu0 %v5992
        %6181 = vmatpush2.bf16.msra.mxu0 %v5991
        %6182 = vmatprep.subr.bf16.mxu0 %v5988
        %6183 = vmatpush2.bf16.msra.mxu0 %v5987
        %6184 = vmatprep.subr.bf16.mxu0 %v5984
        %6185 = vmatpush2.bf16.msra.mxu0 %v5983
        %6186 = vmatprep.subr.bf16.mxu0 %v5980
        %6187 = vmatpush2.bf16.msra.mxu0 %v5979
        %6188 = vmatprep.subr.bf16.mxu0 %v5976
        %6189 = vmatpush2.bf16.msra.mxu0 %v5975
        %6190 = vmatprep.subr.bf16.mxu0 %v5972
        %6191 = vmatpush2.bf16.msra.mxu0 %v5971
        %6192 = vmatprep.subr.bf16.mxu0 %v5968
        %6193 = vmatpush2.bf16.msra.mxu0 %v5967
        %6194 = vmatprep.subr.bf16.mxu0 %v5964
        %6195 = vmatpush2.bf16.msra.mxu0 %v5963
        %6196 = vmatprep.mubr.bf16.mxu0 %v5332
        %6197 = vmatmul.mubr.bf16.gmra.mxu0 %v5331
        %v6198 = vpop.f32.mrf.mxu0
        %v6199 = vadd.f32 %v6158, %v6198
        %v6200 = vpop.f32.mrf.mxu0
        %v6201 = vadd.f32 %v6160, %v6200
        %v6202 = vpop.f32.mrf.mxu0
        %v6203 = vpop.f32.mrf.mxu0
        %6204 = vdwg.mxu0
        %6205 = vmatprep.subr.bf16.mxu0 %v5898
        %6206 = vmatpush1.bf16.msra.mxu0 %v5897
        %6207 = vmatprep.subr.bf16.mxu0 %v5894
        %6208 = vmatpush1.bf16.msra.mxu0 %v5893
        %6209 = vmatprep.subr.bf16.mxu0 %v5890
        %6210 = vmatpush1.bf16.msra.mxu0 %v5889
        %6211 = vmatprep.subr.bf16.mxu0 %v5886
        %6212 = vmatpush1.bf16.msra.mxu0 %v5885
        %6213 = vmatprep.subr.bf16.mxu0 %v5882
        %6214 = vmatpush1.bf16.msra.mxu0 %v5881
        %6215 = vmatprep.subr.bf16.mxu0 %v5878
        %6216 = vmatpush1.bf16.msra.mxu0 %v5877
        %6217 = vmatprep.subr.bf16.mxu0 %v5874
        %6218 = vmatpush1.bf16.msra.mxu0 %v5873
        %6219 = vmatprep.subr.bf16.mxu0 %v5870
        %6220 = vmatpush1.bf16.msra.mxu0 %v5869
        %6221 = vmatprep.subr.bf16.mxu0 %v5930
        %6222 = vmatpush2.bf16.msra.mxu0 %v5929
        %6223 = vmatprep.subr.bf16.mxu0 %v5926
        %6224 = vmatpush2.bf16.msra.mxu0 %v5925
        %6225 = vmatprep.subr.bf16.mxu0 %v5922
        %6226 = vmatpush2.bf16.msra.mxu0 %v5921
        %6227 = vmatprep.subr.bf16.mxu0 %v5918
        %6228 = vmatpush2.bf16.msra.mxu0 %v5917
        %6229 = vmatprep.subr.bf16.mxu0 %v5914
        %6230 = vmatpush2.bf16.msra.mxu0 %v5913
        %6231 = vmatprep.subr.bf16.mxu0 %v5910
        %6232 = vmatpush2.bf16.msra.mxu0 %v5909
        %6233 = vmatprep.subr.bf16.mxu0 %v5906
        %6234 = vmatpush2.bf16.msra.mxu0 %v5905
        %6235 = vmatprep.subr.bf16.mxu0 %v5902
        %6236 = vmatpush2.bf16.msra.mxu0 %v5901
        %6237 = vmatprep.mubr.bf16.mxu0 %v5330
        %6238 = vmatmul.mubr.bf16.gmra.mxu0 %v5329
        %v6239 = vpop.f32.mrf.mxu0
        %v6240 = vadd.f32 %v5474, %v6239
        %v6241 = vpop.f32.mrf.mxu0
        %v6242 = vadd.f32 %v5478, %v6241
        %v6243 = vpop.f32.mrf.mxu0
        %v6244 = vpop.f32.mrf.mxu0
        %6245 = vdwg.mxu0
        %6246 = vmatprep.subr.bf16.mxu0 %v5962
        %6247 = vmatpush1.bf16.msra.mxu0 %v5961
        %6248 = vmatprep.subr.bf16.mxu0 %v5958
        %6249 = vmatpush1.bf16.msra.mxu0 %v5957
        %6250 = vmatprep.subr.bf16.mxu0 %v5954
        %6251 = vmatpush1.bf16.msra.mxu0 %v5953
        %6252 = vmatprep.subr.bf16.mxu0 %v5950
        %6253 = vmatpush1.bf16.msra.mxu0 %v5949
        %6254 = vmatprep.subr.bf16.mxu0 %v5946
        %6255 = vmatpush1.bf16.msra.mxu0 %v5945
        %6256 = vmatprep.subr.bf16.mxu0 %v5942
        %6257 = vmatpush1.bf16.msra.mxu0 %v5941
        %6258 = vmatprep.subr.bf16.mxu0 %v5938
        %6259 = vmatpush1.bf16.msra.mxu0 %v5937
        %6260 = vmatprep.subr.bf16.mxu0 %v5934
        %6261 = vmatpush1.bf16.msra.mxu0 %v5933
        %6262 = vmatprep.subr.bf16.mxu0 %v5994
        %6263 = vmatpush2.bf16.msra.mxu0 %v5993
        %6264 = vmatprep.subr.bf16.mxu0 %v5990
        %6265 = vmatpush2.bf16.msra.mxu0 %v5989
        %6266 = vmatprep.subr.bf16.mxu0 %v5986
        %6267 = vmatpush2.bf16.msra.mxu0 %v5985
        %6268 = vmatprep.subr.bf16.mxu0 %v5982
        %6269 = vmatpush2.bf16.msra.mxu0 %v5981
        %6270 = vmatprep.subr.bf16.mxu0 %v5978
        %6271 = vmatpush2.bf16.msra.mxu0 %v5977
        %6272 = vmatprep.subr.bf16.mxu0 %v5974
        %6273 = vmatpush2.bf16.msra.mxu0 %v5973
        %6274 = vmatprep.subr.bf16.mxu0 %v5970
        %6275 = vmatpush2.bf16.msra.mxu0 %v5969
        %6276 = vmatprep.subr.bf16.mxu0 %v5966
        %6277 = vmatpush2.bf16.msra.mxu0 %v5965
        %6278 = vmatprep.mubr.bf16.mxu0 %v5332
        %6279 = vmatmul.mubr.bf16.gmra.mxu0 %v5331
        %v6280 = vpop.f32.mrf.mxu0
        %v6281 = vadd.f32 %v6240, %v6280
        %v6282 = vpop.f32.mrf.mxu0
        %v6283 = vadd.f32 %v6242, %v6282
        %v6284 = vpop.f32.mrf.mxu0
        %v6285 = vpop.f32.mrf.mxu0
        %6286 = vdwg.mxu0
        %v6287 = vmax.f32 %v6199, 0.0
        %v6288 = vmax.f32 %v6201, 0.0
        %v6289 = vmax.f32 %v6281, 0.0
        %v6290 = vmax.f32 %v6283, 0.0
        %v6291 = vpack.c.bf16 %v6287, %v6287
        %v6292 = vpack.c.bf16 %v6288, %v6288
        %v6293 = vpack.c.bf16 %v6289, %v6289
        %v6294 = vpack.c.bf16 %v6290, %v6290
        %v6295 = vld [vmem:[%s929] sm:$0xff]
        %v6296 = vld [vmem:[%s929 + $0x8] sm:$0xff]
        %v6297 = vld [vmem:[%s929 + $0x10] sm:$0xff]
        %v6298 = vld [vmem:[%s929 + $0x18] sm:$0xff]
        %v6299 = vld [vmem:[%s929 + $0x20] sm:$0xff]
        %v6300 = vld [vmem:[%s929 + $0x28] sm:$0xff]
        %v6301 = vld [vmem:[%s929 + $0x30] sm:$0xff]
        %v6302 = vld [vmem:[%s929 + $0x38] sm:$0xff]
        %v6303 = vld [vmem:[%s929 + $0x40] sm:$0xff]
        %v6304 = vld [vmem:[%s929 + $0x48] sm:$0xff]
        %v6305 = vld [vmem:[%s929 + $0x50] sm:$0xff]
        %v6306 = vld [vmem:[%s929 + $0x58] sm:$0xff]
        %v6307 = vld [vmem:[%s929 + $0x60] sm:$0xff]
        %v6308 = vld [vmem:[%s929 + $0x68] sm:$0xff]
        %v6309 = vld [vmem:[%s929 + $0x70] sm:$0xff]
        %v6310 = vld [vmem:[%s929 + $0x78] sm:$0xff]
        %v6311 = vld [vmem:[%s929 + $0x80] sm:$0xff]
        %v6312 = vld [vmem:[%s929 + $0x88] sm:$0xff]
        %v6313 = vld [vmem:[%s929 + $0x90] sm:$0xff]
        %v6314 = vld [vmem:[%s929 + $0x98] sm:$0xff]
        %v6315 = vld [vmem:[%s929 + $0xa0] sm:$0xff]
        %v6316 = vld [vmem:[%s929 + $0xa8] sm:$0xff]
        %v6317 = vld [vmem:[%s929 + $0xb0] sm:$0xff]
        %v6318 = vld [vmem:[%s929 + $0xb8] sm:$0xff]
        %v6319 = vld [vmem:[%s929 + $0xc0] sm:$0xff]
        %v6320 = vld [vmem:[%s929 + $0xc8] sm:$0xff]
        %v6321 = vld [vmem:[%s929 + $0xd0] sm:$0xff]
        %v6322 = vld [vmem:[%s929 + $0xd8] sm:$0xff]
        %v6323 = vld [vmem:[%s929 + $0xe0] sm:$0xff]
        %v6324 = vld [vmem:[%s929 + $0xe8] sm:$0xff]
        %v6325 = vld [vmem:[%s929 + $0xf0] sm:$0xff]
        %v6326 = vld [vmem:[%s929 + $0xf8] sm:$0xff]
        %v6327 = vld [vmem:[%s929 + $0x100] sm:$0xff]
        %v6328 = vld [vmem:[%s929 + $0x108] sm:$0xff]
        %v6329 = vld [vmem:[%s929 + $0x110] sm:$0xff]
        %v6330 = vld [vmem:[%s929 + $0x118] sm:$0xff]
        %v6331 = vld [vmem:[%s929 + $0x120] sm:$0xff]
        %v6332 = vld [vmem:[%s929 + $0x128] sm:$0xff]
        %v6333 = vld [vmem:[%s929 + $0x130] sm:$0xff]
        %v6334 = vld [vmem:[%s929 + $0x138] sm:$0xff]
        %v6335 = vld [vmem:[%s929 + $0x140] sm:$0xff]
        %v6336 = vld [vmem:[%s929 + $0x148] sm:$0xff]
        %v6337 = vld [vmem:[%s929 + $0x150] sm:$0xff]
        %v6338 = vld [vmem:[%s929 + $0x158] sm:$0xff]
        %v6339 = vld [vmem:[%s929 + $0x160] sm:$0xff]
        %v6340 = vld [vmem:[%s929 + $0x168] sm:$0xff]
        %v6341 = vld [vmem:[%s929 + $0x170] sm:$0xff]
        %v6342 = vld [vmem:[%s929 + $0x178] sm:$0xff]
        %v6343 = vld [vmem:[%s929 + $0x180] sm:$0xff]
        %v6344 = vld [vmem:[%s929 + $0x188] sm:$0xff]
        %v6345 = vld [vmem:[%s929 + $0x190] sm:$0xff]
        %v6346 = vld [vmem:[%s929 + $0x198] sm:$0xff]
        %v6347 = vld [vmem:[%s929 + $0x1a0] sm:$0xff]
        %v6348 = vld [vmem:[%s929 + $0x1a8] sm:$0xff]
        %v6349 = vld [vmem:[%s929 + $0x1b0] sm:$0xff]
        %v6350 = vld [vmem:[%s929 + $0x1b8] sm:$0xff]
        %v6351 = vld [vmem:[%s929 + $0x1c0] sm:$0xff]
        %v6352 = vld [vmem:[%s929 + $0x1c8] sm:$0xff]
        %v6353 = vld [vmem:[%s929 + $0x1d0] sm:$0xff]
        %v6354 = vld [vmem:[%s929 + $0x1d8] sm:$0xff]
        %v6355 = vld [vmem:[%s929 + $0x1e0] sm:$0xff]
        %v6356 = vld [vmem:[%s929 + $0x1e8] sm:$0xff]
        %v6357 = vld [vmem:[%s929 + $0x1f0] sm:$0xff]
        %v6358 = vld [vmem:[%s929 + $0x1f8] sm:$0xff]
        %v6359 = vld [vmem:[%s929 + $0x200] sm:$0xff]
        %v6360 = vld [vmem:[%s929 + $0x208] sm:$0xff]
        %v6361 = vld [vmem:[%s929 + $0x210] sm:$0xff]
        %v6362 = vld [vmem:[%s929 + $0x218] sm:$0xff]
        %v6363 = vld [vmem:[%s929 + $0x220] sm:$0xff]
        %v6364 = vld [vmem:[%s929 + $0x228] sm:$0xff]
        %v6365 = vld [vmem:[%s929 + $0x230] sm:$0xff]
        %v6366 = vld [vmem:[%s929 + $0x238] sm:$0xff]
        %v6367 = vld [vmem:[%s929 + $0x240] sm:$0xff]
        %v6368 = vld [vmem:[%s929 + $0x248] sm:$0xff]
        %v6369 = vld [vmem:[%s929 + $0x250] sm:$0xff]
        %v6370 = vld [vmem:[%s929 + $0x258] sm:$0xff]
        %v6371 = vld [vmem:[%s929 + $0x260] sm:$0xff]
        %v6372 = vld [vmem:[%s929 + $0x268] sm:$0xff]
        %v6373 = vld [vmem:[%s929 + $0x270] sm:$0xff]
        %v6374 = vld [vmem:[%s929 + $0x278] sm:$0xff]
        %v6375 = vld [vmem:[%s929 + $0x280] sm:$0xff]
        %v6376 = vld [vmem:[%s929 + $0x288] sm:$0xff]
        %v6377 = vld [vmem:[%s929 + $0x290] sm:$0xff]
        %v6378 = vld [vmem:[%s929 + $0x298] sm:$0xff]
        %v6379 = vld [vmem:[%s929 + $0x2a0] sm:$0xff]
        %v6380 = vld [vmem:[%s929 + $0x2a8] sm:$0xff]
        %v6381 = vld [vmem:[%s929 + $0x2b0] sm:$0xff]
        %v6382 = vld [vmem:[%s929 + $0x2b8] sm:$0xff]
        %v6383 = vld [vmem:[%s929 + $0x2c0] sm:$0xff]
        %v6384 = vld [vmem:[%s929 + $0x2c8] sm:$0xff]
        %v6385 = vld [vmem:[%s929 + $0x2d0] sm:$0xff]
        %v6386 = vld [vmem:[%s929 + $0x2d8] sm:$0xff]
        %v6387 = vld [vmem:[%s929 + $0x2e0] sm:$0xff]
        %v6388 = vld [vmem:[%s929 + $0x2e8] sm:$0xff]
        %v6389 = vld [vmem:[%s929 + $0x2f0] sm:$0xff]
        %v6390 = vld [vmem:[%s929 + $0x2f8] sm:$0xff]
        %v6391 = vld [vmem:[%s929 + $0x300] sm:$0xff]
        %v6392 = vld [vmem:[%s929 + $0x308] sm:$0xff]
        %v6393 = vld [vmem:[%s929 + $0x310] sm:$0xff]
        %v6394 = vld [vmem:[%s929 + $0x318] sm:$0xff]
        %v6395 = vld [vmem:[%s929 + $0x320] sm:$0xff]
        %v6396 = vld [vmem:[%s929 + $0x328] sm:$0xff]
        %v6397 = vld [vmem:[%s929 + $0x330] sm:$0xff]
        %v6398 = vld [vmem:[%s929 + $0x338] sm:$0xff]
        %v6399 = vld [vmem:[%s929 + $0x340] sm:$0xff]
        %v6400 = vld [vmem:[%s929 + $0x348] sm:$0xff]
        %v6401 = vld [vmem:[%s929 + $0x350] sm:$0xff]
        %v6402 = vld [vmem:[%s929 + $0x358] sm:$0xff]
        %v6403 = vld [vmem:[%s929 + $0x360] sm:$0xff]
        %v6404 = vld [vmem:[%s929 + $0x368] sm:$0xff]
        %v6405 = vld [vmem:[%s929 + $0x370] sm:$0xff]
        %v6406 = vld [vmem:[%s929 + $0x378] sm:$0xff]
        %v6407 = vld [vmem:[%s929 + $0x380] sm:$0xff]
        %v6408 = vld [vmem:[%s929 + $0x388] sm:$0xff]
        %v6409 = vld [vmem:[%s929 + $0x390] sm:$0xff]
        %v6410 = vld [vmem:[%s929 + $0x398] sm:$0xff]
        %v6411 = vld [vmem:[%s929 + $0x3a0] sm:$0xff]
        %v6412 = vld [vmem:[%s929 + $0x3a8] sm:$0xff]
        %v6413 = vld [vmem:[%s929 + $0x3b0] sm:$0xff]
        %v6414 = vld [vmem:[%s929 + $0x3b8] sm:$0xff]
        %v6415 = vld [vmem:[%s929 + $0x3c0] sm:$0xff]
        %v6416 = vld [vmem:[%s929 + $0x3c8] sm:$0xff]
        %v6417 = vld [vmem:[%s929 + $0x3d0] sm:$0xff]
        %v6418 = vld [vmem:[%s929 + $0x3d8] sm:$0xff]
        %v6419 = vld [vmem:[%s929 + $0x3e0] sm:$0xff]
        %v6420 = vld [vmem:[%s929 + $0x3e8] sm:$0xff]
        %v6421 = vld [vmem:[%s929 + $0x3f0] sm:$0xff]
        %v6422 = vld [vmem:[%s929 + $0x3f8] sm:$0xff]
        %v6423 = vld [vmem:[%s937] sm:$0xf]
        %v6425 = vlaneseq
        %v6426 = vshrl.u32 %v6425, 7
        %v6427 = vsub.s32 0, %v6426
        %v6428 = vrot.slane %v6423, %v6427
        %v6429 = vlaneseq
        %v6430 = vshrl.u32 %v6429, 7
        %v6431 = vsub.s32 1, %v6430
        %v6432 = vrot.slane %v6423, %v6431
        %v6433 = vlaneseq
        %v6434 = vshrl.u32 %v6433, 7
        %v6435 = vsub.s32 2, %v6434
        %v6436 = vrot.slane %v6423, %v6435
        %v6437 = vlaneseq
        %v6438 = vshrl.u32 %v6437, 7
        %v6439 = vsub.s32 3, %v6438
        %v6440 = vrot.slane %v6423, %v6439
        %v6573 = vunpack.c.l.b16 %v6295
        %v6574 = vunpack.c.h.b16 %v6295
        %v6575 = vunpack.c.l.b16 %v6296
        %v6576 = vunpack.c.h.b16 %v6296
        %v6577 = vunpack.c.l.b16 %v6297
        %v6578 = vunpack.c.h.b16 %v6297
        %v6579 = vunpack.c.l.b16 %v6298
        %v6580 = vunpack.c.h.b16 %v6298
        %v6581 = vunpack.c.l.b16 %v6299
        %v6582 = vunpack.c.h.b16 %v6299
        %v6583 = vunpack.c.l.b16 %v6300
        %v6584 = vunpack.c.h.b16 %v6300
        %v6585 = vunpack.c.l.b16 %v6301
        %v6586 = vunpack.c.h.b16 %v6301
        %v6587 = vunpack.c.l.b16 %v6302
        %v6588 = vunpack.c.h.b16 %v6302
        %v6589 = vunpack.c.l.b16 %v6303
        %v6590 = vunpack.c.h.b16 %v6303
        %v6591 = vunpack.c.l.b16 %v6304
        %v6592 = vunpack.c.h.b16 %v6304
        %v6593 = vunpack.c.l.b16 %v6305
        %v6594 = vunpack.c.h.b16 %v6305
        %v6595 = vunpack.c.l.b16 %v6306
        %v6596 = vunpack.c.h.b16 %v6306
        %v6597 = vunpack.c.l.b16 %v6307
        %v6598 = vunpack.c.h.b16 %v6307
        %v6599 = vunpack.c.l.b16 %v6308
        %v6600 = vunpack.c.h.b16 %v6308
        %v6601 = vunpack.c.l.b16 %v6309
        %v6602 = vunpack.c.h.b16 %v6309
        %v6603 = vunpack.c.l.b16 %v6310
        %v6604 = vunpack.c.h.b16 %v6310
        %v6605 = vunpack.c.l.b16 %v6311
        %v6606 = vunpack.c.h.b16 %v6311
        %v6607 = vunpack.c.l.b16 %v6312
        %v6608 = vunpack.c.h.b16 %v6312
        %v6609 = vunpack.c.l.b16 %v6313
        %v6610 = vunpack.c.h.b16 %v6313
        %v6611 = vunpack.c.l.b16 %v6314
        %v6612 = vunpack.c.h.b16 %v6314
        %v6613 = vunpack.c.l.b16 %v6315
        %v6614 = vunpack.c.h.b16 %v6315
        %v6615 = vunpack.c.l.b16 %v6316
        %v6616 = vunpack.c.h.b16 %v6316
        %v6617 = vunpack.c.l.b16 %v6317
        %v6618 = vunpack.c.h.b16 %v6317
        %v6619 = vunpack.c.l.b16 %v6318
        %v6620 = vunpack.c.h.b16 %v6318
        %v6621 = vunpack.c.l.b16 %v6319
        %v6622 = vunpack.c.h.b16 %v6319
        %v6623 = vunpack.c.l.b16 %v6320
        %v6624 = vunpack.c.h.b16 %v6320
        %v6625 = vunpack.c.l.b16 %v6321
        %v6626 = vunpack.c.h.b16 %v6321
        %v6627 = vunpack.c.l.b16 %v6322
        %v6628 = vunpack.c.h.b16 %v6322
        %v6629 = vunpack.c.l.b16 %v6323
        %v6630 = vunpack.c.h.b16 %v6323
        %v6631 = vunpack.c.l.b16 %v6324
        %v6632 = vunpack.c.h.b16 %v6324
        %v6633 = vunpack.c.l.b16 %v6325
        %v6634 = vunpack.c.h.b16 %v6325
        %v6635 = vunpack.c.l.b16 %v6326
        %v6636 = vunpack.c.h.b16 %v6326
        %v6637 = vunpack.c.l.b16 %v6327
        %v6638 = vunpack.c.h.b16 %v6327
        %v6639 = vunpack.c.l.b16 %v6328
        %v6640 = vunpack.c.h.b16 %v6328
        %v6641 = vunpack.c.l.b16 %v6329
        %v6642 = vunpack.c.h.b16 %v6329
        %v6643 = vunpack.c.l.b16 %v6330
        %v6644 = vunpack.c.h.b16 %v6330
        %v6645 = vunpack.c.l.b16 %v6331
        %v6646 = vunpack.c.h.b16 %v6331
        %v6647 = vunpack.c.l.b16 %v6332
        %v6648 = vunpack.c.h.b16 %v6332
        %v6649 = vunpack.c.l.b16 %v6333
        %v6650 = vunpack.c.h.b16 %v6333
        %v6651 = vunpack.c.l.b16 %v6334
        %v6652 = vunpack.c.h.b16 %v6334
        %v6653 = vunpack.c.l.b16 %v6335
        %v6654 = vunpack.c.h.b16 %v6335
        %v6655 = vunpack.c.l.b16 %v6336
        %v6656 = vunpack.c.h.b16 %v6336
        %v6657 = vunpack.c.l.b16 %v6337
        %v6658 = vunpack.c.h.b16 %v6337
        %v6659 = vunpack.c.l.b16 %v6338
        %v6660 = vunpack.c.h.b16 %v6338
        %v6661 = vunpack.c.l.b16 %v6339
        %v6662 = vunpack.c.h.b16 %v6339
        %v6663 = vunpack.c.l.b16 %v6340
        %v6664 = vunpack.c.h.b16 %v6340
        %v6665 = vunpack.c.l.b16 %v6341
        %v6666 = vunpack.c.h.b16 %v6341
        %v6667 = vunpack.c.l.b16 %v6342
        %v6668 = vunpack.c.h.b16 %v6342
        %v6669 = vunpack.c.l.b16 %v6343
        %v6670 = vunpack.c.h.b16 %v6343
        %v6671 = vunpack.c.l.b16 %v6344
        %v6672 = vunpack.c.h.b16 %v6344
        %v6673 = vunpack.c.l.b16 %v6345
        %v6674 = vunpack.c.h.b16 %v6345
        %v6675 = vunpack.c.l.b16 %v6346
        %v6676 = vunpack.c.h.b16 %v6346
        %v6677 = vunpack.c.l.b16 %v6347
        %v6678 = vunpack.c.h.b16 %v6347
        %v6679 = vunpack.c.l.b16 %v6348
        %v6680 = vunpack.c.h.b16 %v6348
        %v6681 = vunpack.c.l.b16 %v6349
        %v6682 = vunpack.c.h.b16 %v6349
        %v6683 = vunpack.c.l.b16 %v6350
        %v6684 = vunpack.c.h.b16 %v6350
        %v6685 = vunpack.c.l.b16 %v6351
        %v6686 = vunpack.c.h.b16 %v6351
        %v6687 = vunpack.c.l.b16 %v6352
        %v6688 = vunpack.c.h.b16 %v6352
        %v6689 = vunpack.c.l.b16 %v6353
        %v6690 = vunpack.c.h.b16 %v6353
        %v6691 = vunpack.c.l.b16 %v6354
        %v6692 = vunpack.c.h.b16 %v6354
        %v6693 = vunpack.c.l.b16 %v6355
        %v6694 = vunpack.c.h.b16 %v6355
        %v6695 = vunpack.c.l.b16 %v6356
        %v6696 = vunpack.c.h.b16 %v6356
        %v6697 = vunpack.c.l.b16 %v6357
        %v6698 = vunpack.c.h.b16 %v6357
        %v6699 = vunpack.c.l.b16 %v6358
        %v6700 = vunpack.c.h.b16 %v6358
        %v6701 = vunpack.c.l.b16 %v6359
        %v6702 = vunpack.c.h.b16 %v6359
        %v6703 = vunpack.c.l.b16 %v6360
        %v6704 = vunpack.c.h.b16 %v6360
        %v6705 = vunpack.c.l.b16 %v6361
        %v6706 = vunpack.c.h.b16 %v6361
        %v6707 = vunpack.c.l.b16 %v6362
        %v6708 = vunpack.c.h.b16 %v6362
        %v6709 = vunpack.c.l.b16 %v6363
        %v6710 = vunpack.c.h.b16 %v6363
        %v6711 = vunpack.c.l.b16 %v6364
        %v6712 = vunpack.c.h.b16 %v6364
        %v6713 = vunpack.c.l.b16 %v6365
        %v6714 = vunpack.c.h.b16 %v6365
        %v6715 = vunpack.c.l.b16 %v6366
        %v6716 = vunpack.c.h.b16 %v6366
        %v6717 = vunpack.c.l.b16 %v6367
        %v6718 = vunpack.c.h.b16 %v6367
        %v6719 = vunpack.c.l.b16 %v6368
        %v6720 = vunpack.c.h.b16 %v6368
        %v6721 = vunpack.c.l.b16 %v6369
        %v6722 = vunpack.c.h.b16 %v6369
        %v6723 = vunpack.c.l.b16 %v6370
        %v6724 = vunpack.c.h.b16 %v6370
        %v6725 = vunpack.c.l.b16 %v6371
        %v6726 = vunpack.c.h.b16 %v6371
        %v6727 = vunpack.c.l.b16 %v6372
        %v6728 = vunpack.c.h.b16 %v6372
        %v6729 = vunpack.c.l.b16 %v6373
        %v6730 = vunpack.c.h.b16 %v6373
        %v6731 = vunpack.c.l.b16 %v6374
        %v6732 = vunpack.c.h.b16 %v6374
        %v6733 = vunpack.c.l.b16 %v6375
        %v6734 = vunpack.c.h.b16 %v6375
        %v6735 = vunpack.c.l.b16 %v6376
        %v6736 = vunpack.c.h.b16 %v6376
        %v6737 = vunpack.c.l.b16 %v6377
        %v6738 = vunpack.c.h.b16 %v6377
        %v6739 = vunpack.c.l.b16 %v6378
        %v6740 = vunpack.c.h.b16 %v6378
        %v6741 = vunpack.c.l.b16 %v6379
        %v6742 = vunpack.c.h.b16 %v6379
        %v6743 = vunpack.c.l.b16 %v6380
        %v6744 = vunpack.c.h.b16 %v6380
        %v6745 = vunpack.c.l.b16 %v6381
        %v6746 = vunpack.c.h.b16 %v6381
        %v6747 = vunpack.c.l.b16 %v6382
        %v6748 = vunpack.c.h.b16 %v6382
        %v6749 = vunpack.c.l.b16 %v6383
        %v6750 = vunpack.c.h.b16 %v6383
        %v6751 = vunpack.c.l.b16 %v6384
        %v6752 = vunpack.c.h.b16 %v6384
        %v6753 = vunpack.c.l.b16 %v6385
        %v6754 = vunpack.c.h.b16 %v6385
        %v6755 = vunpack.c.l.b16 %v6386
        %v6756 = vunpack.c.h.b16 %v6386
        %v6757 = vunpack.c.l.b16 %v6387
        %v6758 = vunpack.c.h.b16 %v6387
        %v6759 = vunpack.c.l.b16 %v6388
        %v6760 = vunpack.c.h.b16 %v6388
        %v6761 = vunpack.c.l.b16 %v6389
        %v6762 = vunpack.c.h.b16 %v6389
        %v6763 = vunpack.c.l.b16 %v6390
        %v6764 = vunpack.c.h.b16 %v6390
        %v6765 = vunpack.c.l.b16 %v6391
        %v6766 = vunpack.c.h.b16 %v6391
        %v6767 = vunpack.c.l.b16 %v6392
        %v6768 = vunpack.c.h.b16 %v6392
        %v6769 = vunpack.c.l.b16 %v6393
        %v6770 = vunpack.c.h.b16 %v6393
        %v6771 = vunpack.c.l.b16 %v6394
        %v6772 = vunpack.c.h.b16 %v6394
        %v6773 = vunpack.c.l.b16 %v6395
        %v6774 = vunpack.c.h.b16 %v6395
        %v6775 = vunpack.c.l.b16 %v6396
        %v6776 = vunpack.c.h.b16 %v6396
        %v6777 = vunpack.c.l.b16 %v6397
        %v6778 = vunpack.c.h.b16 %v6397
        %v6779 = vunpack.c.l.b16 %v6398
        %v6780 = vunpack.c.h.b16 %v6398
        %v6781 = vunpack.c.l.b16 %v6399
        %v6782 = vunpack.c.h.b16 %v6399
        %v6783 = vunpack.c.l.b16 %v6400
        %v6784 = vunpack.c.h.b16 %v6400
        %v6785 = vunpack.c.l.b16 %v6401
        %v6786 = vunpack.c.h.b16 %v6401
        %v6787 = vunpack.c.l.b16 %v6402
        %v6788 = vunpack.c.h.b16 %v6402
        %v6789 = vunpack.c.l.b16 %v6403
        %v6790 = vunpack.c.h.b16 %v6403
        %v6791 = vunpack.c.l.b16 %v6404
        %v6792 = vunpack.c.h.b16 %v6404
        %v6793 = vunpack.c.l.b16 %v6405
        %v6794 = vunpack.c.h.b16 %v6405
        %v6795 = vunpack.c.l.b16 %v6406
        %v6796 = vunpack.c.h.b16 %v6406
        %v6797 = vunpack.c.l.b16 %v6407
        %v6798 = vunpack.c.h.b16 %v6407
        %v6799 = vunpack.c.l.b16 %v6408
        %v6800 = vunpack.c.h.b16 %v6408
        %v6801 = vunpack.c.l.b16 %v6409
        %v6802 = vunpack.c.h.b16 %v6409
        %v6803 = vunpack.c.l.b16 %v6410
        %v6804 = vunpack.c.h.b16 %v6410
        %v6805 = vunpack.c.l.b16 %v6411
        %v6806 = vunpack.c.h.b16 %v6411
        %v6807 = vunpack.c.l.b16 %v6412
        %v6808 = vunpack.c.h.b16 %v6412
        %v6809 = vunpack.c.l.b16 %v6413
        %v6810 = vunpack.c.h.b16 %v6413
        %v6811 = vunpack.c.l.b16 %v6414
        %v6812 = vunpack.c.h.b16 %v6414
        %v6813 = vunpack.c.l.b16 %v6415
        %v6814 = vunpack.c.h.b16 %v6415
        %v6815 = vunpack.c.l.b16 %v6416
        %v6816 = vunpack.c.h.b16 %v6416
        %v6817 = vunpack.c.l.b16 %v6417
        %v6818 = vunpack.c.h.b16 %v6417
        %v6819 = vunpack.c.l.b16 %v6418
        %v6820 = vunpack.c.h.b16 %v6418
        %v6821 = vunpack.c.l.b16 %v6419
        %v6822 = vunpack.c.h.b16 %v6419
        %v6823 = vunpack.c.l.b16 %v6420
        %v6824 = vunpack.c.h.b16 %v6420
        %v6825 = vunpack.c.l.b16 %v6421
        %v6826 = vunpack.c.h.b16 %v6421
        %v6827 = vunpack.c.l.b16 %v6422
        %v6828 = vunpack.c.h.b16 %v6422
        %v6829 = vpack.c.b16 %v6577, %v6573
        %v6830 = vpack.c.b16 %v6578, %v6574
        %v6831 = vpack.c.b16 %v6579, %v6575
        %v6832 = vpack.c.b16 %v6580, %v6576
        %v6833 = vpack.c.b16 %v6585, %v6581
        %v6834 = vpack.c.b16 %v6586, %v6582
        %v6835 = vpack.c.b16 %v6587, %v6583
        %v6836 = vpack.c.b16 %v6588, %v6584
        %v6837 = vpack.c.b16 %v6593, %v6589
        %v6838 = vpack.c.b16 %v6594, %v6590
        %v6839 = vpack.c.b16 %v6595, %v6591
        %v6840 = vpack.c.b16 %v6596, %v6592
        %v6841 = vpack.c.b16 %v6601, %v6597
        %v6842 = vpack.c.b16 %v6602, %v6598
        %v6843 = vpack.c.b16 %v6603, %v6599
        %v6844 = vpack.c.b16 %v6604, %v6600
        %v6845 = vpack.c.b16 %v6609, %v6605
        %v6846 = vpack.c.b16 %v6610, %v6606
        %v6847 = vpack.c.b16 %v6611, %v6607
        %v6848 = vpack.c.b16 %v6612, %v6608
        %v6849 = vpack.c.b16 %v6617, %v6613
        %v6850 = vpack.c.b16 %v6618, %v6614
        %v6851 = vpack.c.b16 %v6619, %v6615
        %v6852 = vpack.c.b16 %v6620, %v6616
        %v6853 = vpack.c.b16 %v6625, %v6621
        %v6854 = vpack.c.b16 %v6626, %v6622
        %v6855 = vpack.c.b16 %v6627, %v6623
        %v6856 = vpack.c.b16 %v6628, %v6624
        %v6857 = vpack.c.b16 %v6633, %v6629
        %v6858 = vpack.c.b16 %v6634, %v6630
        %v6859 = vpack.c.b16 %v6635, %v6631
        %v6860 = vpack.c.b16 %v6636, %v6632
        %v6861 = vpack.c.b16 %v6641, %v6637
        %v6862 = vpack.c.b16 %v6642, %v6638
        %v6863 = vpack.c.b16 %v6643, %v6639
        %v6864 = vpack.c.b16 %v6644, %v6640
        %v6865 = vpack.c.b16 %v6649, %v6645
        %v6866 = vpack.c.b16 %v6650, %v6646
        %v6867 = vpack.c.b16 %v6651, %v6647
        %v6868 = vpack.c.b16 %v6652, %v6648
        %v6869 = vpack.c.b16 %v6657, %v6653
        %v6870 = vpack.c.b16 %v6658, %v6654
        %v6871 = vpack.c.b16 %v6659, %v6655
        %v6872 = vpack.c.b16 %v6660, %v6656
        %v6873 = vpack.c.b16 %v6665, %v6661
        %v6874 = vpack.c.b16 %v6666, %v6662
        %v6875 = vpack.c.b16 %v6667, %v6663
        %v6876 = vpack.c.b16 %v6668, %v6664
        %v6877 = vpack.c.b16 %v6673, %v6669
        %v6878 = vpack.c.b16 %v6674, %v6670
        %v6879 = vpack.c.b16 %v6675, %v6671
        %v6880 = vpack.c.b16 %v6676, %v6672
        %v6881 = vpack.c.b16 %v6681, %v6677
        %v6882 = vpack.c.b16 %v6682, %v6678
        %v6883 = vpack.c.b16 %v6683, %v6679
        %v6884 = vpack.c.b16 %v6684, %v6680
        %v6885 = vpack.c.b16 %v6689, %v6685
        %v6886 = vpack.c.b16 %v6690, %v6686
        %v6887 = vpack.c.b16 %v6691, %v6687
        %v6888 = vpack.c.b16 %v6692, %v6688
        %v6889 = vpack.c.b16 %v6697, %v6693
        %v6890 = vpack.c.b16 %v6698, %v6694
        %v6891 = vpack.c.b16 %v6699, %v6695
        %v6892 = vpack.c.b16 %v6700, %v6696
        %v6893 = vpack.c.b16 %v6705, %v6701
        %v6894 = vpack.c.b16 %v6706, %v6702
        %v6895 = vpack.c.b16 %v6707, %v6703
        %v6896 = vpack.c.b16 %v6708, %v6704
        %v6897 = vpack.c.b16 %v6713, %v6709
        %v6898 = vpack.c.b16 %v6714, %v6710
        %v6899 = vpack.c.b16 %v6715, %v6711
        %v6900 = vpack.c.b16 %v6716, %v6712
        %v6901 = vpack.c.b16 %v6721, %v6717
        %v6902 = vpack.c.b16 %v6722, %v6718
        %v6903 = vpack.c.b16 %v6723, %v6719
        %v6904 = vpack.c.b16 %v6724, %v6720
        %v6905 = vpack.c.b16 %v6729, %v6725
        %v6906 = vpack.c.b16 %v6730, %v6726
        %v6907 = vpack.c.b16 %v6731, %v6727
        %v6908 = vpack.c.b16 %v6732, %v6728
        %v6909 = vpack.c.b16 %v6737, %v6733
        %v6910 = vpack.c.b16 %v6738, %v6734
        %v6911 = vpack.c.b16 %v6739, %v6735
        %v6912 = vpack.c.b16 %v6740, %v6736
        %v6913 = vpack.c.b16 %v6745, %v6741
        %v6914 = vpack.c.b16 %v6746, %v6742
        %v6915 = vpack.c.b16 %v6747, %v6743
        %v6916 = vpack.c.b16 %v6748, %v6744
        %v6917 = vpack.c.b16 %v6753, %v6749
        %v6918 = vpack.c.b16 %v6754, %v6750
        %v6919 = vpack.c.b16 %v6755, %v6751
        %v6920 = vpack.c.b16 %v6756, %v6752
        %v6921 = vpack.c.b16 %v6761, %v6757
        %v6922 = vpack.c.b16 %v6762, %v6758
        %v6923 = vpack.c.b16 %v6763, %v6759
        %v6924 = vpack.c.b16 %v6764, %v6760
        %v6925 = vpack.c.b16 %v6769, %v6765
        %v6926 = vpack.c.b16 %v6770, %v6766
        %v6927 = vpack.c.b16 %v6771, %v6767
        %v6928 = vpack.c.b16 %v6772, %v6768
        %v6929 = vpack.c.b16 %v6777, %v6773
        %v6930 = vpack.c.b16 %v6778, %v6774
        %v6931 = vpack.c.b16 %v6779, %v6775
        %v6932 = vpack.c.b16 %v6780, %v6776
        %v6933 = vpack.c.b16 %v6785, %v6781
        %v6934 = vpack.c.b16 %v6786, %v6782
        %v6935 = vpack.c.b16 %v6787, %v6783
        %v6936 = vpack.c.b16 %v6788, %v6784
        %v6937 = vpack.c.b16 %v6793, %v6789
        %v6938 = vpack.c.b16 %v6794, %v6790
        %v6939 = vpack.c.b16 %v6795, %v6791
        %v6940 = vpack.c.b16 %v6796, %v6792
        %v6941 = vpack.c.b16 %v6801, %v6797
        %v6942 = vpack.c.b16 %v6802, %v6798
        %v6943 = vpack.c.b16 %v6803, %v6799
        %v6944 = vpack.c.b16 %v6804, %v6800
        %v6945 = vpack.c.b16 %v6809, %v6805
        %v6946 = vpack.c.b16 %v6810, %v6806
        %v6947 = vpack.c.b16 %v6811, %v6807
        %v6948 = vpack.c.b16 %v6812, %v6808
        %v6949 = vpack.c.b16 %v6817, %v6813
        %v6950 = vpack.c.b16 %v6818, %v6814
        %v6951 = vpack.c.b16 %v6819, %v6815
        %v6952 = vpack.c.b16 %v6820, %v6816
        %v6953 = vpack.c.b16 %v6825, %v6821
        %v6954 = vpack.c.b16 %v6826, %v6822
        %v6955 = vpack.c.b16 %v6827, %v6823
        %v6956 = vpack.c.b16 %v6828, %v6824
        %7085 = vmatprep.subr.bf16.mxu0 %v6858
        %7086 = vmatpush1.bf16.msra.mxu0 %v6857
        %7087 = vmatprep.subr.bf16.mxu0 %v6854
        %7088 = vmatpush1.bf16.msra.mxu0 %v6853
        %7089 = vmatprep.subr.bf16.mxu0 %v6850
        %7090 = vmatpush1.bf16.msra.mxu0 %v6849
        %7091 = vmatprep.subr.bf16.mxu0 %v6846
        %7092 = vmatpush1.bf16.msra.mxu0 %v6845
        %7093 = vmatprep.subr.bf16.mxu0 %v6842
        %7094 = vmatpush1.bf16.msra.mxu0 %v6841
        %7095 = vmatprep.subr.bf16.mxu0 %v6838
        %7096 = vmatpush1.bf16.msra.mxu0 %v6837
        %7097 = vmatprep.subr.bf16.mxu0 %v6834
        %7098 = vmatpush1.bf16.msra.mxu0 %v6833
        %7099 = vmatprep.subr.bf16.mxu0 %v6830
        %7100 = vmatpush1.bf16.msra.mxu0 %v6829
        %7101 = vmatprep.subr.bf16.mxu0 %v6890
        %7102 = vmatpush2.bf16.msra.mxu0 %v6889
        %7103 = vmatprep.subr.bf16.mxu0 %v6886
        %7104 = vmatpush2.bf16.msra.mxu0 %v6885
        %7105 = vmatprep.subr.bf16.mxu0 %v6882
        %7106 = vmatpush2.bf16.msra.mxu0 %v6881
        %7107 = vmatprep.subr.bf16.mxu0 %v6878
        %7108 = vmatpush2.bf16.msra.mxu0 %v6877
        %7109 = vmatprep.subr.bf16.mxu0 %v6874
        %7110 = vmatpush2.bf16.msra.mxu0 %v6873
        %7111 = vmatprep.subr.bf16.mxu0 %v6870
        %7112 = vmatpush2.bf16.msra.mxu0 %v6869
        %7113 = vmatprep.subr.bf16.mxu0 %v6866
        %7114 = vmatpush2.bf16.msra.mxu0 %v6865
        %7115 = vmatprep.subr.bf16.mxu0 %v6862
        %7116 = vmatpush2.bf16.msra.mxu0 %v6861
        %7117 = vmatprep.mubr.bf16.mxu0 %v6292
        %7118 = vmatmul.mubr.bf16.gmra.mxu0 %v6291
        %v7119 = vpop.f32.mrf.mxu0
        %v7120 = vadd.f32 %v6428, %v7119
        %v7121 = vpop.f32.mrf.mxu0
        %v7122 = vadd.f32 %v6432, %v7121
        %v7123 = vpop.f32.mrf.mxu0
        %v7124 = vpop.f32.mrf.mxu0
        %7125 = vdwg.mxu0
        %7126 = vmatprep.subr.bf16.mxu0 %v6922
        %7127 = vmatpush1.bf16.msra.mxu0 %v6921
        %7128 = vmatprep.subr.bf16.mxu0 %v6918
        %7129 = vmatpush1.bf16.msra.mxu0 %v6917
        %7130 = vmatprep.subr.bf16.mxu0 %v6914
        %7131 = vmatpush1.bf16.msra.mxu0 %v6913
        %7132 = vmatprep.subr.bf16.mxu0 %v6910
        %7133 = vmatpush1.bf16.msra.mxu0 %v6909
        %7134 = vmatprep.subr.bf16.mxu0 %v6906
        %7135 = vmatpush1.bf16.msra.mxu0 %v6905
        %7136 = vmatprep.subr.bf16.mxu0 %v6902
        %7137 = vmatpush1.bf16.msra.mxu0 %v6901
        %7138 = vmatprep.subr.bf16.mxu0 %v6898
        %7139 = vmatpush1.bf16.msra.mxu0 %v6897
        %7140 = vmatprep.subr.bf16.mxu0 %v6894
        %7141 = vmatpush1.bf16.msra.mxu0 %v6893
        %7142 = vmatprep.subr.bf16.mxu0 %v6954
        %7143 = vmatpush2.bf16.msra.mxu0 %v6953
        %7144 = vmatprep.subr.bf16.mxu0 %v6950
        %7145 = vmatpush2.bf16.msra.mxu0 %v6949
        %7146 = vmatprep.subr.bf16.mxu0 %v6946
        %7147 = vmatpush2.bf16.msra.mxu0 %v6945
        %7148 = vmatprep.subr.bf16.mxu0 %v6942
        %7149 = vmatpush2.bf16.msra.mxu0 %v6941
        %7150 = vmatprep.subr.bf16.mxu0 %v6938
        %7151 = vmatpush2.bf16.msra.mxu0 %v6937
        %7152 = vmatprep.subr.bf16.mxu0 %v6934
        %7153 = vmatpush2.bf16.msra.mxu0 %v6933
        %7154 = vmatprep.subr.bf16.mxu0 %v6930
        %7155 = vmatpush2.bf16.msra.mxu0 %v6929
        %7156 = vmatprep.subr.bf16.mxu0 %v6926
        %7157 = vmatpush2.bf16.msra.mxu0 %v6925
        %7158 = vmatprep.mubr.bf16.mxu0 %v6294
        %7159 = vmatmul.mubr.bf16.gmra.mxu0 %v6293
        %v7160 = vpop.f32.mrf.mxu0
        %v7161 = vadd.f32 %v7120, %v7160
        %v7162 = vpop.f32.mrf.mxu0
        %v7163 = vadd.f32 %v7122, %v7162
        %v7164 = vpop.f32.mrf.mxu0
        %v7165 = vpop.f32.mrf.mxu0
        %7166 = vdwg.mxu0
        %7167 = vmatprep.subr.bf16.mxu0 %v6860
        %7168 = vmatpush1.bf16.msra.mxu0 %v6859
        %7169 = vmatprep.subr.bf16.mxu0 %v6856
        %7170 = vmatpush1.bf16.msra.mxu0 %v6855
        %7171 = vmatprep.subr.bf16.mxu0 %v6852
        %7172 = vmatpush1.bf16.msra.mxu0 %v6851
        %7173 = vmatprep.subr.bf16.mxu0 %v6848
        %7174 = vmatpush1.bf16.msra.mxu0 %v6847
        %7175 = vmatprep.subr.bf16.mxu0 %v6844
        %7176 = vmatpush1.bf16.msra.mxu0 %v6843
        %7177 = vmatprep.subr.bf16.mxu0 %v6840
        %7178 = vmatpush1.bf16.msra.mxu0 %v6839
        %7179 = vmatprep.subr.bf16.mxu0 %v6836
        %7180 = vmatpush1.bf16.msra.mxu0 %v6835
        %7181 = vmatprep.subr.bf16.mxu0 %v6832
        %7182 = vmatpush1.bf16.msra.mxu0 %v6831
        %7183 = vmatprep.subr.bf16.mxu0 %v6892
        %7184 = vmatpush2.bf16.msra.mxu0 %v6891
        %7185 = vmatprep.subr.bf16.mxu0 %v6888
        %7186 = vmatpush2.bf16.msra.mxu0 %v6887
        %7187 = vmatprep.subr.bf16.mxu0 %v6884
        %7188 = vmatpush2.bf16.msra.mxu0 %v6883
        %7189 = vmatprep.subr.bf16.mxu0 %v6880
        %7190 = vmatpush2.bf16.msra.mxu0 %v6879
        %7191 = vmatprep.subr.bf16.mxu0 %v6876
        %7192 = vmatpush2.bf16.msra.mxu0 %v6875
        %7193 = vmatprep.subr.bf16.mxu0 %v6872
        %7194 = vmatpush2.bf16.msra.mxu0 %v6871
        %7195 = vmatprep.subr.bf16.mxu0 %v6868
        %7196 = vmatpush2.bf16.msra.mxu0 %v6867
        %7197 = vmatprep.subr.bf16.mxu0 %v6864
        %7198 = vmatpush2.bf16.msra.mxu0 %v6863
        %7199 = vmatprep.mubr.bf16.mxu0 %v6292
        %7200 = vmatmul.mubr.bf16.gmra.mxu0 %v6291
        %v7201 = vpop.f32.mrf.mxu0
        %v7202 = vadd.f32 %v6436, %v7201
        %v7203 = vpop.f32.mrf.mxu0
        %v7204 = vadd.f32 %v6440, %v7203
        %v7205 = vpop.f32.mrf.mxu0
        %v7206 = vpop.f32.mrf.mxu0
        %7207 = vdwg.mxu0
        %7208 = vmatprep.subr.bf16.mxu0 %v6924
        %7209 = vmatpush1.bf16.msra.mxu0 %v6923
        %7210 = vmatprep.subr.bf16.mxu0 %v6920
        %7211 = vmatpush1.bf16.msra.mxu0 %v6919
        %7212 = vmatprep.subr.bf16.mxu0 %v6916
        %7213 = vmatpush1.bf16.msra.mxu0 %v6915
        %7214 = vmatprep.subr.bf16.mxu0 %v6912
        %7215 = vmatpush1.bf16.msra.mxu0 %v6911
        %7216 = vmatprep.subr.bf16.mxu0 %v6908
        %7217 = vmatpush1.bf16.msra.mxu0 %v6907
        %7218 = vmatprep.subr.bf16.mxu0 %v6904
        %7219 = vmatpush1.bf16.msra.mxu0 %v6903
        %7220 = vmatprep.subr.bf16.mxu0 %v6900
        %7221 = vmatpush1.bf16.msra.mxu0 %v6899
        %7222 = vmatprep.subr.bf16.mxu0 %v6896
        %7223 = vmatpush1.bf16.msra.mxu0 %v6895
        %7224 = vmatprep.subr.bf16.mxu0 %v6956
        %7225 = vmatpush2.bf16.msra.mxu0 %v6955
        %7226 = vmatprep.subr.bf16.mxu0 %v6952
        %7227 = vmatpush2.bf16.msra.mxu0 %v6951
        %7228 = vmatprep.subr.bf16.mxu0 %v6948
        %7229 = vmatpush2.bf16.msra.mxu0 %v6947
        %7230 = vmatprep.subr.bf16.mxu0 %v6944
        %7231 = vmatpush2.bf16.msra.mxu0 %v6943
        %7232 = vmatprep.subr.bf16.mxu0 %v6940
        %7233 = vmatpush2.bf16.msra.mxu0 %v6939
        %7234 = vmatprep.subr.bf16.mxu0 %v6936
        %7235 = vmatpush2.bf16.msra.mxu0 %v6935
        %7236 = vmatprep.subr.bf16.mxu0 %v6932
        %7237 = vmatpush2.bf16.msra.mxu0 %v6931
        %7238 = vmatprep.subr.bf16.mxu0 %v6928
        %7239 = vmatpush2.bf16.msra.mxu0 %v6927
        %7240 = vmatprep.mubr.bf16.mxu0 %v6294
        %7241 = vmatmul.mubr.bf16.gmra.mxu0 %v6293
        %v7242 = vpop.f32.mrf.mxu0
        %v7243 = vadd.f32 %v7202, %v7242
        %v7244 = vpop.f32.mrf.mxu0
        %v7245 = vadd.f32 %v7204, %v7244
        %v7246 = vpop.f32.mrf.mxu0
        %v7247 = vpop.f32.mrf.mxu0
        %7248 = vdwg.mxu0
        %v7249 = vld [vmem:[%s946] sm:$0xff]
        %v7250 = vld [vmem:[%s946 + $0x8] sm:$0xff]
        %v7251 = vld [vmem:[%s946 + $0x10] sm:$0xff]
        %v7252 = vld [vmem:[%s946 + $0x18] sm:$0xff]
        %v7253 = vld [vmem:[%s946 + $0x20] sm:$0xff]
        %v7254 = vld [vmem:[%s946 + $0x28] sm:$0xff]
        %v7255 = vld [vmem:[%s946 + $0x30] sm:$0xff]
        %v7256 = vld [vmem:[%s946 + $0x38] sm:$0xff]
        %v7257 = vld [vmem:[%s946 + $0x40] sm:$0xff]
        %v7258 = vld [vmem:[%s946 + $0x48] sm:$0xff]
        %v7259 = vld [vmem:[%s946 + $0x50] sm:$0xff]
        %v7260 = vld [vmem:[%s946 + $0x58] sm:$0xff]
        %v7261 = vld [vmem:[%s946 + $0x60] sm:$0xff]
        %v7262 = vld [vmem:[%s946 + $0x68] sm:$0xff]
        %v7263 = vld [vmem:[%s946 + $0x70] sm:$0xff]
        %v7264 = vld [vmem:[%s946 + $0x78] sm:$0xff]
        %v7265 = vld [vmem:[%s946 + $0x80] sm:$0xff]
        %v7266 = vld [vmem:[%s946 + $0x88] sm:$0xff]
        %v7267 = vld [vmem:[%s946 + $0x90] sm:$0xff]
        %v7268 = vld [vmem:[%s946 + $0x98] sm:$0xff]
        %v7269 = vld [vmem:[%s946 + $0xa0] sm:$0xff]
        %v7270 = vld [vmem:[%s946 + $0xa8] sm:$0xff]
        %v7271 = vld [vmem:[%s946 + $0xb0] sm:$0xff]
        %v7272 = vld [vmem:[%s946 + $0xb8] sm:$0xff]
        %v7273 = vld [vmem:[%s946 + $0xc0] sm:$0xff]
        %v7274 = vld [vmem:[%s946 + $0xc8] sm:$0xff]
        %v7275 = vld [vmem:[%s946 + $0xd0] sm:$0xff]
        %v7276 = vld [vmem:[%s946 + $0xd8] sm:$0xff]
        %v7277 = vld [vmem:[%s946 + $0xe0] sm:$0xff]
        %v7278 = vld [vmem:[%s946 + $0xe8] sm:$0xff]
        %v7279 = vld [vmem:[%s946 + $0xf0] sm:$0xff]
        %v7280 = vld [vmem:[%s946 + $0xf8] sm:$0xff]
        %v7281 = vld [vmem:[%s946 + $0x100] sm:$0xff]
        %v7282 = vld [vmem:[%s946 + $0x108] sm:$0xff]
        %v7283 = vld [vmem:[%s946 + $0x110] sm:$0xff]
        %v7284 = vld [vmem:[%s946 + $0x118] sm:$0xff]
        %v7285 = vld [vmem:[%s946 + $0x120] sm:$0xff]
        %v7286 = vld [vmem:[%s946 + $0x128] sm:$0xff]
        %v7287 = vld [vmem:[%s946 + $0x130] sm:$0xff]
        %v7288 = vld [vmem:[%s946 + $0x138] sm:$0xff]
        %v7289 = vld [vmem:[%s946 + $0x140] sm:$0xff]
        %v7290 = vld [vmem:[%s946 + $0x148] sm:$0xff]
        %v7291 = vld [vmem:[%s946 + $0x150] sm:$0xff]
        %v7292 = vld [vmem:[%s946 + $0x158] sm:$0xff]
        %v7293 = vld [vmem:[%s946 + $0x160] sm:$0xff]
        %v7294 = vld [vmem:[%s946 + $0x168] sm:$0xff]
        %v7295 = vld [vmem:[%s946 + $0x170] sm:$0xff]
        %v7296 = vld [vmem:[%s946 + $0x178] sm:$0xff]
        %v7297 = vld [vmem:[%s946 + $0x180] sm:$0xff]
        %v7298 = vld [vmem:[%s946 + $0x188] sm:$0xff]
        %v7299 = vld [vmem:[%s946 + $0x190] sm:$0xff]
        %v7300 = vld [vmem:[%s946 + $0x198] sm:$0xff]
        %v7301 = vld [vmem:[%s946 + $0x1a0] sm:$0xff]
        %v7302 = vld [vmem:[%s946 + $0x1a8] sm:$0xff]
        %v7303 = vld [vmem:[%s946 + $0x1b0] sm:$0xff]
        %v7304 = vld [vmem:[%s946 + $0x1b8] sm:$0xff]
        %v7305 = vld [vmem:[%s946 + $0x1c0] sm:$0xff]
        %v7306 = vld [vmem:[%s946 + $0x1c8] sm:$0xff]
        %v7307 = vld [vmem:[%s946 + $0x1d0] sm:$0xff]
        %v7308 = vld [vmem:[%s946 + $0x1d8] sm:$0xff]
        %v7309 = vld [vmem:[%s946 + $0x1e0] sm:$0xff]
        %v7310 = vld [vmem:[%s946 + $0x1e8] sm:$0xff]
        %v7311 = vld [vmem:[%s946 + $0x1f0] sm:$0xff]
        %v7312 = vld [vmem:[%s946 + $0x1f8] sm:$0xff]
        %v7313 = vld [vmem:[%s946 + $0x200] sm:$0xff]
        %v7314 = vld [vmem:[%s946 + $0x208] sm:$0xff]
        %v7315 = vld [vmem:[%s946 + $0x210] sm:$0xff]
        %v7316 = vld [vmem:[%s946 + $0x218] sm:$0xff]
        %v7317 = vld [vmem:[%s946 + $0x220] sm:$0xff]
        %v7318 = vld [vmem:[%s946 + $0x228] sm:$0xff]
        %v7319 = vld [vmem:[%s946 + $0x230] sm:$0xff]
        %v7320 = vld [vmem:[%s946 + $0x238] sm:$0xff]
        %v7321 = vld [vmem:[%s946 + $0x240] sm:$0xff]
        %v7322 = vld [vmem:[%s946 + $0x248] sm:$0xff]
        %v7323 = vld [vmem:[%s946 + $0x250] sm:$0xff]
        %v7324 = vld [vmem:[%s946 + $0x258] sm:$0xff]
        %v7325 = vld [vmem:[%s946 + $0x260] sm:$0xff]
        %v7326 = vld [vmem:[%s946 + $0x268] sm:$0xff]
        %v7327 = vld [vmem:[%s946 + $0x270] sm:$0xff]
        %v7328 = vld [vmem:[%s946 + $0x278] sm:$0xff]
        %v7329 = vld [vmem:[%s946 + $0x280] sm:$0xff]
        %v7330 = vld [vmem:[%s946 + $0x288] sm:$0xff]
        %v7331 = vld [vmem:[%s946 + $0x290] sm:$0xff]
        %v7332 = vld [vmem:[%s946 + $0x298] sm:$0xff]
        %v7333 = vld [vmem:[%s946 + $0x2a0] sm:$0xff]
        %v7334 = vld [vmem:[%s946 + $0x2a8] sm:$0xff]
        %v7335 = vld [vmem:[%s946 + $0x2b0] sm:$0xff]
        %v7336 = vld [vmem:[%s946 + $0x2b8] sm:$0xff]
        %v7337 = vld [vmem:[%s946 + $0x2c0] sm:$0xff]
        %v7338 = vld [vmem:[%s946 + $0x2c8] sm:$0xff]
        %v7339 = vld [vmem:[%s946 + $0x2d0] sm:$0xff]
        %v7340 = vld [vmem:[%s946 + $0x2d8] sm:$0xff]
        %v7341 = vld [vmem:[%s946 + $0x2e0] sm:$0xff]
        %v7342 = vld [vmem:[%s946 + $0x2e8] sm:$0xff]
        %v7343 = vld [vmem:[%s946 + $0x2f0] sm:$0xff]
        %v7344 = vld [vmem:[%s946 + $0x2f8] sm:$0xff]
        %v7345 = vld [vmem:[%s946 + $0x300] sm:$0xff]
        %v7346 = vld [vmem:[%s946 + $0x308] sm:$0xff]
        %v7347 = vld [vmem:[%s946 + $0x310] sm:$0xff]
        %v7348 = vld [vmem:[%s946 + $0x318] sm:$0xff]
        %v7349 = vld [vmem:[%s946 + $0x320] sm:$0xff]
        %v7350 = vld [vmem:[%s946 + $0x328] sm:$0xff]
        %v7351 = vld [vmem:[%s946 + $0x330] sm:$0xff]
        %v7352 = vld [vmem:[%s946 + $0x338] sm:$0xff]
        %v7353 = vld [vmem:[%s946 + $0x340] sm:$0xff]
        %v7354 = vld [vmem:[%s946 + $0x348] sm:$0xff]
        %v7355 = vld [vmem:[%s946 + $0x350] sm:$0xff]
        %v7356 = vld [vmem:[%s946 + $0x358] sm:$0xff]
        %v7357 = vld [vmem:[%s946 + $0x360] sm:$0xff]
        %v7358 = vld [vmem:[%s946 + $0x368] sm:$0xff]
        %v7359 = vld [vmem:[%s946 + $0x370] sm:$0xff]
        %v7360 = vld [vmem:[%s946 + $0x378] sm:$0xff]
        %v7361 = vld [vmem:[%s946 + $0x380] sm:$0xff]
        %v7362 = vld [vmem:[%s946 + $0x388] sm:$0xff]
        %v7363 = vld [vmem:[%s946 + $0x390] sm:$0xff]
        %v7364 = vld [vmem:[%s946 + $0x398] sm:$0xff]
        %v7365 = vld [vmem:[%s946 + $0x3a0] sm:$0xff]
        %v7366 = vld [vmem:[%s946 + $0x3a8] sm:$0xff]
        %v7367 = vld [vmem:[%s946 + $0x3b0] sm:$0xff]
        %v7368 = vld [vmem:[%s946 + $0x3b8] sm:$0xff]
        %v7369 = vld [vmem:[%s946 + $0x3c0] sm:$0xff]
        %v7370 = vld [vmem:[%s946 + $0x3c8] sm:$0xff]
        %v7371 = vld [vmem:[%s946 + $0x3d0] sm:$0xff]
        %v7372 = vld [vmem:[%s946 + $0x3d8] sm:$0xff]
        %v7373 = vld [vmem:[%s946 + $0x3e0] sm:$0xff]
        %v7374 = vld [vmem:[%s946 + $0x3e8] sm:$0xff]
        %v7375 = vld [vmem:[%s946 + $0x3f0] sm:$0xff]
        %v7376 = vld [vmem:[%s946 + $0x3f8] sm:$0xff]
        %v7377 = vld [vmem:[%s954] sm:$0xf]
        %v7379 = vlaneseq
        %v7380 = vshrl.u32 %v7379, 7
        %v7381 = vsub.s32 0, %v7380
        %v7382 = vrot.slane %v7377, %v7381
        %v7383 = vlaneseq
        %v7384 = vshrl.u32 %v7383, 7
        %v7385 = vsub.s32 1, %v7384
        %v7386 = vrot.slane %v7377, %v7385
        %v7387 = vlaneseq
        %v7388 = vshrl.u32 %v7387, 7
        %v7389 = vsub.s32 2, %v7388
        %v7390 = vrot.slane %v7377, %v7389
        %v7391 = vlaneseq
        %v7392 = vshrl.u32 %v7391, 7
        %v7393 = vsub.s32 3, %v7392
        %v7394 = vrot.slane %v7377, %v7393
        %v7527 = vunpack.c.l.b16 %v7249
        %v7528 = vunpack.c.h.b16 %v7249
        %v7529 = vunpack.c.l.b16 %v7250
        %v7530 = vunpack.c.h.b16 %v7250
        %v7531 = vunpack.c.l.b16 %v7251
        %v7532 = vunpack.c.h.b16 %v7251
        %v7533 = vunpack.c.l.b16 %v7252
        %v7534 = vunpack.c.h.b16 %v7252
        %v7535 = vunpack.c.l.b16 %v7253
        %v7536 = vunpack.c.h.b16 %v7253
        %v7537 = vunpack.c.l.b16 %v7254
        %v7538 = vunpack.c.h.b16 %v7254
        %v7539 = vunpack.c.l.b16 %v7255
        %v7540 = vunpack.c.h.b16 %v7255
        %v7541 = vunpack.c.l.b16 %v7256
        %v7542 = vunpack.c.h.b16 %v7256
        %v7543 = vunpack.c.l.b16 %v7257
        %v7544 = vunpack.c.h.b16 %v7257
        %v7545 = vunpack.c.l.b16 %v7258
        %v7546 = vunpack.c.h.b16 %v7258
        %v7547 = vunpack.c.l.b16 %v7259
        %v7548 = vunpack.c.h.b16 %v7259
        %v7549 = vunpack.c.l.b16 %v7260
        %v7550 = vunpack.c.h.b16 %v7260
        %v7551 = vunpack.c.l.b16 %v7261
        %v7552 = vunpack.c.h.b16 %v7261
        %v7553 = vunpack.c.l.b16 %v7262
        %v7554 = vunpack.c.h.b16 %v7262
        %v7555 = vunpack.c.l.b16 %v7263
        %v7556 = vunpack.c.h.b16 %v7263
        %v7557 = vunpack.c.l.b16 %v7264
        %v7558 = vunpack.c.h.b16 %v7264
        %v7559 = vunpack.c.l.b16 %v7265
        %v7560 = vunpack.c.h.b16 %v7265
        %v7561 = vunpack.c.l.b16 %v7266
        %v7562 = vunpack.c.h.b16 %v7266
        %v7563 = vunpack.c.l.b16 %v7267
        %v7564 = vunpack.c.h.b16 %v7267
        %v7565 = vunpack.c.l.b16 %v7268
        %v7566 = vunpack.c.h.b16 %v7268
        %v7567 = vunpack.c.l.b16 %v7269
        %v7568 = vunpack.c.h.b16 %v7269
        %v7569 = vunpack.c.l.b16 %v7270
        %v7570 = vunpack.c.h.b16 %v7270
        %v7571 = vunpack.c.l.b16 %v7271
        %v7572 = vunpack.c.h.b16 %v7271
        %v7573 = vunpack.c.l.b16 %v7272
        %v7574 = vunpack.c.h.b16 %v7272
        %v7575 = vunpack.c.l.b16 %v7273
        %v7576 = vunpack.c.h.b16 %v7273
        %v7577 = vunpack.c.l.b16 %v7274
        %v7578 = vunpack.c.h.b16 %v7274
        %v7579 = vunpack.c.l.b16 %v7275
        %v7580 = vunpack.c.h.b16 %v7275
        %v7581 = vunpack.c.l.b16 %v7276
        %v7582 = vunpack.c.h.b16 %v7276
        %v7583 = vunpack.c.l.b16 %v7277
        %v7584 = vunpack.c.h.b16 %v7277
        %v7585 = vunpack.c.l.b16 %v7278
        %v7586 = vunpack.c.h.b16 %v7278
        %v7587 = vunpack.c.l.b16 %v7279
        %v7588 = vunpack.c.h.b16 %v7279
        %v7589 = vunpack.c.l.b16 %v7280
        %v7590 = vunpack.c.h.b16 %v7280
        %v7591 = vunpack.c.l.b16 %v7281
        %v7592 = vunpack.c.h.b16 %v7281
        %v7593 = vunpack.c.l.b16 %v7282
        %v7594 = vunpack.c.h.b16 %v7282
        %v7595 = vunpack.c.l.b16 %v7283
        %v7596 = vunpack.c.h.b16 %v7283
        %v7597 = vunpack.c.l.b16 %v7284
        %v7598 = vunpack.c.h.b16 %v7284
        %v7599 = vunpack.c.l.b16 %v7285
        %v7600 = vunpack.c.h.b16 %v7285
        %v7601 = vunpack.c.l.b16 %v7286
        %v7602 = vunpack.c.h.b16 %v7286
        %v7603 = vunpack.c.l.b16 %v7287
        %v7604 = vunpack.c.h.b16 %v7287
        %v7605 = vunpack.c.l.b16 %v7288
        %v7606 = vunpack.c.h.b16 %v7288
        %v7607 = vunpack.c.l.b16 %v7289
        %v7608 = vunpack.c.h.b16 %v7289
        %v7609 = vunpack.c.l.b16 %v7290
        %v7610 = vunpack.c.h.b16 %v7290
        %v7611 = vunpack.c.l.b16 %v7291
        %v7612 = vunpack.c.h.b16 %v7291
        %v7613 = vunpack.c.l.b16 %v7292
        %v7614 = vunpack.c.h.b16 %v7292
        %v7615 = vunpack.c.l.b16 %v7293
        %v7616 = vunpack.c.h.b16 %v7293
        %v7617 = vunpack.c.l.b16 %v7294
        %v7618 = vunpack.c.h.b16 %v7294
        %v7619 = vunpack.c.l.b16 %v7295
        %v7620 = vunpack.c.h.b16 %v7295
        %v7621 = vunpack.c.l.b16 %v7296
        %v7622 = vunpack.c.h.b16 %v7296
        %v7623 = vunpack.c.l.b16 %v7297
        %v7624 = vunpack.c.h.b16 %v7297
        %v7625 = vunpack.c.l.b16 %v7298
        %v7626 = vunpack.c.h.b16 %v7298
        %v7627 = vunpack.c.l.b16 %v7299
        %v7628 = vunpack.c.h.b16 %v7299
        %v7629 = vunpack.c.l.b16 %v7300
        %v7630 = vunpack.c.h.b16 %v7300
        %v7631 = vunpack.c.l.b16 %v7301
        %v7632 = vunpack.c.h.b16 %v7301
        %v7633 = vunpack.c.l.b16 %v7302
        %v7634 = vunpack.c.h.b16 %v7302
        %v7635 = vunpack.c.l.b16 %v7303
        %v7636 = vunpack.c.h.b16 %v7303
        %v7637 = vunpack.c.l.b16 %v7304
        %v7638 = vunpack.c.h.b16 %v7304
        %v7639 = vunpack.c.l.b16 %v7305
        %v7640 = vunpack.c.h.b16 %v7305
        %v7641 = vunpack.c.l.b16 %v7306
        %v7642 = vunpack.c.h.b16 %v7306
        %v7643 = vunpack.c.l.b16 %v7307
        %v7644 = vunpack.c.h.b16 %v7307
        %v7645 = vunpack.c.l.b16 %v7308
        %v7646 = vunpack.c.h.b16 %v7308
        %v7647 = vunpack.c.l.b16 %v7309
        %v7648 = vunpack.c.h.b16 %v7309
        %v7649 = vunpack.c.l.b16 %v7310
        %v7650 = vunpack.c.h.b16 %v7310
        %v7651 = vunpack.c.l.b16 %v7311
        %v7652 = vunpack.c.h.b16 %v7311
        %v7653 = vunpack.c.l.b16 %v7312
        %v7654 = vunpack.c.h.b16 %v7312
        %v7655 = vunpack.c.l.b16 %v7313
        %v7656 = vunpack.c.h.b16 %v7313
        %v7657 = vunpack.c.l.b16 %v7314
        %v7658 = vunpack.c.h.b16 %v7314
        %v7659 = vunpack.c.l.b16 %v7315
        %v7660 = vunpack.c.h.b16 %v7315
        %v7661 = vunpack.c.l.b16 %v7316
        %v7662 = vunpack.c.h.b16 %v7316
        %v7663 = vunpack.c.l.b16 %v7317
        %v7664 = vunpack.c.h.b16 %v7317
        %v7665 = vunpack.c.l.b16 %v7318
        %v7666 = vunpack.c.h.b16 %v7318
        %v7667 = vunpack.c.l.b16 %v7319
        %v7668 = vunpack.c.h.b16 %v7319
        %v7669 = vunpack.c.l.b16 %v7320
        %v7670 = vunpack.c.h.b16 %v7320
        %v7671 = vunpack.c.l.b16 %v7321
        %v7672 = vunpack.c.h.b16 %v7321
        %v7673 = vunpack.c.l.b16 %v7322
        %v7674 = vunpack.c.h.b16 %v7322
        %v7675 = vunpack.c.l.b16 %v7323
        %v7676 = vunpack.c.h.b16 %v7323
        %v7677 = vunpack.c.l.b16 %v7324
        %v7678 = vunpack.c.h.b16 %v7324
        %v7679 = vunpack.c.l.b16 %v7325
        %v7680 = vunpack.c.h.b16 %v7325
        %v7681 = vunpack.c.l.b16 %v7326
        %v7682 = vunpack.c.h.b16 %v7326
        %v7683 = vunpack.c.l.b16 %v7327
        %v7684 = vunpack.c.h.b16 %v7327
        %v7685 = vunpack.c.l.b16 %v7328
        %v7686 = vunpack.c.h.b16 %v7328
        %v7687 = vunpack.c.l.b16 %v7329
        %v7688 = vunpack.c.h.b16 %v7329
        %v7689 = vunpack.c.l.b16 %v7330
        %v7690 = vunpack.c.h.b16 %v7330
        %v7691 = vunpack.c.l.b16 %v7331
        %v7692 = vunpack.c.h.b16 %v7331
        %v7693 = vunpack.c.l.b16 %v7332
        %v7694 = vunpack.c.h.b16 %v7332
        %v7695 = vunpack.c.l.b16 %v7333
        %v7696 = vunpack.c.h.b16 %v7333
        %v7697 = vunpack.c.l.b16 %v7334
        %v7698 = vunpack.c.h.b16 %v7334
        %v7699 = vunpack.c.l.b16 %v7335
        %v7700 = vunpack.c.h.b16 %v7335
        %v7701 = vunpack.c.l.b16 %v7336
        %v7702 = vunpack.c.h.b16 %v7336
        %v7703 = vunpack.c.l.b16 %v7337
        %v7704 = vunpack.c.h.b16 %v7337
        %v7705 = vunpack.c.l.b16 %v7338
        %v7706 = vunpack.c.h.b16 %v7338
        %v7707 = vunpack.c.l.b16 %v7339
        %v7708 = vunpack.c.h.b16 %v7339
        %v7709 = vunpack.c.l.b16 %v7340
        %v7710 = vunpack.c.h.b16 %v7340
        %v7711 = vunpack.c.l.b16 %v7341
        %v7712 = vunpack.c.h.b16 %v7341
        %v7713 = vunpack.c.l.b16 %v7342
        %v7714 = vunpack.c.h.b16 %v7342
        %v7715 = vunpack.c.l.b16 %v7343
        %v7716 = vunpack.c.h.b16 %v7343
        %v7717 = vunpack.c.l.b16 %v7344
        %v7718 = vunpack.c.h.b16 %v7344
        %v7719 = vunpack.c.l.b16 %v7345
        %v7720 = vunpack.c.h.b16 %v7345
        %v7721 = vunpack.c.l.b16 %v7346
        %v7722 = vunpack.c.h.b16 %v7346
        %v7723 = vunpack.c.l.b16 %v7347
        %v7724 = vunpack.c.h.b16 %v7347
        %v7725 = vunpack.c.l.b16 %v7348
        %v7726 = vunpack.c.h.b16 %v7348
        %v7727 = vunpack.c.l.b16 %v7349
        %v7728 = vunpack.c.h.b16 %v7349
        %v7729 = vunpack.c.l.b16 %v7350
        %v7730 = vunpack.c.h.b16 %v7350
        %v7731 = vunpack.c.l.b16 %v7351
        %v7732 = vunpack.c.h.b16 %v7351
        %v7733 = vunpack.c.l.b16 %v7352
        %v7734 = vunpack.c.h.b16 %v7352
        %v7735 = vunpack.c.l.b16 %v7353
        %v7736 = vunpack.c.h.b16 %v7353
        %v7737 = vunpack.c.l.b16 %v7354
        %v7738 = vunpack.c.h.b16 %v7354
        %v7739 = vunpack.c.l.b16 %v7355
        %v7740 = vunpack.c.h.b16 %v7355
        %v7741 = vunpack.c.l.b16 %v7356
        %v7742 = vunpack.c.h.b16 %v7356
        %v7743 = vunpack.c.l.b16 %v7357
        %v7744 = vunpack.c.h.b16 %v7357
        %v7745 = vunpack.c.l.b16 %v7358
        %v7746 = vunpack.c.h.b16 %v7358
        %v7747 = vunpack.c.l.b16 %v7359
        %v7748 = vunpack.c.h.b16 %v7359
        %v7749 = vunpack.c.l.b16 %v7360
        %v7750 = vunpack.c.h.b16 %v7360
        %v7751 = vunpack.c.l.b16 %v7361
        %v7752 = vunpack.c.h.b16 %v7361
        %v7753 = vunpack.c.l.b16 %v7362
        %v7754 = vunpack.c.h.b16 %v7362
        %v7755 = vunpack.c.l.b16 %v7363
        %v7756 = vunpack.c.h.b16 %v7363
        %v7757 = vunpack.c.l.b16 %v7364
        %v7758 = vunpack.c.h.b16 %v7364
        %v7759 = vunpack.c.l.b16 %v7365
        %v7760 = vunpack.c.h.b16 %v7365
        %v7761 = vunpack.c.l.b16 %v7366
        %v7762 = vunpack.c.h.b16 %v7366
        %v7763 = vunpack.c.l.b16 %v7367
        %v7764 = vunpack.c.h.b16 %v7367
        %v7765 = vunpack.c.l.b16 %v7368
        %v7766 = vunpack.c.h.b16 %v7368
        %v7767 = vunpack.c.l.b16 %v7369
        %v7768 = vunpack.c.h.b16 %v7369
        %v7769 = vunpack.c.l.b16 %v7370
        %v7770 = vunpack.c.h.b16 %v7370
        %v7771 = vunpack.c.l.b16 %v7371
        %v7772 = vunpack.c.h.b16 %v7371
        %v7773 = vunpack.c.l.b16 %v7372
        %v7774 = vunpack.c.h.b16 %v7372
        %v7775 = vunpack.c.l.b16 %v7373
        %v7776 = vunpack.c.h.b16 %v7373
        %v7777 = vunpack.c.l.b16 %v7374
        %v7778 = vunpack.c.h.b16 %v7374
        %v7779 = vunpack.c.l.b16 %v7375
        %v7780 = vunpack.c.h.b16 %v7375
        %v7781 = vunpack.c.l.b16 %v7376
        %v7782 = vunpack.c.h.b16 %v7376
        %v7783 = vpack.c.b16 %v7531, %v7527
        %v7784 = vpack.c.b16 %v7532, %v7528
        %v7785 = vpack.c.b16 %v7533, %v7529
        %v7786 = vpack.c.b16 %v7534, %v7530
        %v7787 = vpack.c.b16 %v7539, %v7535
        %v7788 = vpack.c.b16 %v7540, %v7536
        %v7789 = vpack.c.b16 %v7541, %v7537
        %v7790 = vpack.c.b16 %v7542, %v7538
        %v7791 = vpack.c.b16 %v7547, %v7543
        %v7792 = vpack.c.b16 %v7548, %v7544
        %v7793 = vpack.c.b16 %v7549, %v7545
        %v7794 = vpack.c.b16 %v7550, %v7546
        %v7795 = vpack.c.b16 %v7555, %v7551
        %v7796 = vpack.c.b16 %v7556, %v7552
        %v7797 = vpack.c.b16 %v7557, %v7553
        %v7798 = vpack.c.b16 %v7558, %v7554
        %v7799 = vpack.c.b16 %v7563, %v7559
        %v7800 = vpack.c.b16 %v7564, %v7560
        %v7801 = vpack.c.b16 %v7565, %v7561
        %v7802 = vpack.c.b16 %v7566, %v7562
        %v7803 = vpack.c.b16 %v7571, %v7567
        %v7804 = vpack.c.b16 %v7572, %v7568
        %v7805 = vpack.c.b16 %v7573, %v7569
        %v7806 = vpack.c.b16 %v7574, %v7570
        %v7807 = vpack.c.b16 %v7579, %v7575
        %v7808 = vpack.c.b16 %v7580, %v7576
        %v7809 = vpack.c.b16 %v7581, %v7577
        %v7810 = vpack.c.b16 %v7582, %v7578
        %v7811 = vpack.c.b16 %v7587, %v7583
        %v7812 = vpack.c.b16 %v7588, %v7584
        %v7813 = vpack.c.b16 %v7589, %v7585
        %v7814 = vpack.c.b16 %v7590, %v7586
        %v7815 = vpack.c.b16 %v7595, %v7591
        %v7816 = vpack.c.b16 %v7596, %v7592
        %v7817 = vpack.c.b16 %v7597, %v7593
        %v7818 = vpack.c.b16 %v7598, %v7594
        %v7819 = vpack.c.b16 %v7603, %v7599
        %v7820 = vpack.c.b16 %v7604, %v7600
        %v7821 = vpack.c.b16 %v7605, %v7601
        %v7822 = vpack.c.b16 %v7606, %v7602
        %v7823 = vpack.c.b16 %v7611, %v7607
        %v7824 = vpack.c.b16 %v7612, %v7608
        %v7825 = vpack.c.b16 %v7613, %v7609
        %v7826 = vpack.c.b16 %v7614, %v7610
        %v7827 = vpack.c.b16 %v7619, %v7615
        %v7828 = vpack.c.b16 %v7620, %v7616
        %v7829 = vpack.c.b16 %v7621, %v7617
        %v7830 = vpack.c.b16 %v7622, %v7618
        %v7831 = vpack.c.b16 %v7627, %v7623
        %v7832 = vpack.c.b16 %v7628, %v7624
        %v7833 = vpack.c.b16 %v7629, %v7625
        %v7834 = vpack.c.b16 %v7630, %v7626
        %v7835 = vpack.c.b16 %v7635, %v7631
        %v7836 = vpack.c.b16 %v7636, %v7632
        %v7837 = vpack.c.b16 %v7637, %v7633
        %v7838 = vpack.c.b16 %v7638, %v7634
        %v7839 = vpack.c.b16 %v7643, %v7639
        %v7840 = vpack.c.b16 %v7644, %v7640
        %v7841 = vpack.c.b16 %v7645, %v7641
        %v7842 = vpack.c.b16 %v7646, %v7642
        %v7843 = vpack.c.b16 %v7651, %v7647
        %v7844 = vpack.c.b16 %v7652, %v7648
        %v7845 = vpack.c.b16 %v7653, %v7649
        %v7846 = vpack.c.b16 %v7654, %v7650
        %v7847 = vpack.c.b16 %v7659, %v7655
        %v7848 = vpack.c.b16 %v7660, %v7656
        %v7849 = vpack.c.b16 %v7661, %v7657
        %v7850 = vpack.c.b16 %v7662, %v7658
        %v7851 = vpack.c.b16 %v7667, %v7663
        %v7852 = vpack.c.b16 %v7668, %v7664
        %v7853 = vpack.c.b16 %v7669, %v7665
        %v7854 = vpack.c.b16 %v7670, %v7666
        %v7855 = vpack.c.b16 %v7675, %v7671
        %v7856 = vpack.c.b16 %v7676, %v7672
        %v7857 = vpack.c.b16 %v7677, %v7673
        %v7858 = vpack.c.b16 %v7678, %v7674
        %v7859 = vpack.c.b16 %v7683, %v7679
        %v7860 = vpack.c.b16 %v7684, %v7680
        %v7861 = vpack.c.b16 %v7685, %v7681
        %v7862 = vpack.c.b16 %v7686, %v7682
        %v7863 = vpack.c.b16 %v7691, %v7687
        %v7864 = vpack.c.b16 %v7692, %v7688
        %v7865 = vpack.c.b16 %v7693, %v7689
        %v7866 = vpack.c.b16 %v7694, %v7690
        %v7867 = vpack.c.b16 %v7699, %v7695
        %v7868 = vpack.c.b16 %v7700, %v7696
        %v7869 = vpack.c.b16 %v7701, %v7697
        %v7870 = vpack.c.b16 %v7702, %v7698
        %v7871 = vpack.c.b16 %v7707, %v7703
        %v7872 = vpack.c.b16 %v7708, %v7704
        %v7873 = vpack.c.b16 %v7709, %v7705
        %v7874 = vpack.c.b16 %v7710, %v7706
        %v7875 = vpack.c.b16 %v7715, %v7711
        %v7876 = vpack.c.b16 %v7716, %v7712
        %v7877 = vpack.c.b16 %v7717, %v7713
        %v7878 = vpack.c.b16 %v7718, %v7714
        %v7879 = vpack.c.b16 %v7723, %v7719
        %v7880 = vpack.c.b16 %v7724, %v7720
        %v7881 = vpack.c.b16 %v7725, %v7721
        %v7882 = vpack.c.b16 %v7726, %v7722
        %v7883 = vpack.c.b16 %v7731, %v7727
        %v7884 = vpack.c.b16 %v7732, %v7728
        %v7885 = vpack.c.b16 %v7733, %v7729
        %v7886 = vpack.c.b16 %v7734, %v7730
        %v7887 = vpack.c.b16 %v7739, %v7735
        %v7888 = vpack.c.b16 %v7740, %v7736
        %v7889 = vpack.c.b16 %v7741, %v7737
        %v7890 = vpack.c.b16 %v7742, %v7738
        %v7891 = vpack.c.b16 %v7747, %v7743
        %v7892 = vpack.c.b16 %v7748, %v7744
        %v7893 = vpack.c.b16 %v7749, %v7745
        %v7894 = vpack.c.b16 %v7750, %v7746
        %v7895 = vpack.c.b16 %v7755, %v7751
        %v7896 = vpack.c.b16 %v7756, %v7752
        %v7897 = vpack.c.b16 %v7757, %v7753
        %v7898 = vpack.c.b16 %v7758, %v7754
        %v7899 = vpack.c.b16 %v7763, %v7759
        %v7900 = vpack.c.b16 %v7764, %v7760
        %v7901 = vpack.c.b16 %v7765, %v7761
        %v7902 = vpack.c.b16 %v7766, %v7762
        %v7903 = vpack.c.b16 %v7771, %v7767
        %v7904 = vpack.c.b16 %v7772, %v7768
        %v7905 = vpack.c.b16 %v7773, %v7769
        %v7906 = vpack.c.b16 %v7774, %v7770
        %v7907 = vpack.c.b16 %v7779, %v7775
        %v7908 = vpack.c.b16 %v7780, %v7776
        %v7909 = vpack.c.b16 %v7781, %v7777
        %v7910 = vpack.c.b16 %v7782, %v7778
        %8039 = vmatprep.subr.bf16.mxu0 %v7812
        %8040 = vmatpush1.bf16.msra.mxu0 %v7811
        %8041 = vmatprep.subr.bf16.mxu0 %v7808
        %8042 = vmatpush1.bf16.msra.mxu0 %v7807
        %8043 = vmatprep.subr.bf16.mxu0 %v7804
        %8044 = vmatpush1.bf16.msra.mxu0 %v7803
        %8045 = vmatprep.subr.bf16.mxu0 %v7800
        %8046 = vmatpush1.bf16.msra.mxu0 %v7799
        %8047 = vmatprep.subr.bf16.mxu0 %v7796
        %8048 = vmatpush1.bf16.msra.mxu0 %v7795
        %8049 = vmatprep.subr.bf16.mxu0 %v7792
        %8050 = vmatpush1.bf16.msra.mxu0 %v7791
        %8051 = vmatprep.subr.bf16.mxu0 %v7788
        %8052 = vmatpush1.bf16.msra.mxu0 %v7787
        %8053 = vmatprep.subr.bf16.mxu0 %v7784
        %8054 = vmatpush1.bf16.msra.mxu0 %v7783
        %8055 = vmatprep.subr.bf16.mxu0 %v7844
        %8056 = vmatpush2.bf16.msra.mxu0 %v7843
        %8057 = vmatprep.subr.bf16.mxu0 %v7840
        %8058 = vmatpush2.bf16.msra.mxu0 %v7839
        %8059 = vmatprep.subr.bf16.mxu0 %v7836
        %8060 = vmatpush2.bf16.msra.mxu0 %v7835
        %8061 = vmatprep.subr.bf16.mxu0 %v7832
        %8062 = vmatpush2.bf16.msra.mxu0 %v7831
        %8063 = vmatprep.subr.bf16.mxu0 %v7828
        %8064 = vmatpush2.bf16.msra.mxu0 %v7827
        %8065 = vmatprep.subr.bf16.mxu0 %v7824
        %8066 = vmatpush2.bf16.msra.mxu0 %v7823
        %8067 = vmatprep.subr.bf16.mxu0 %v7820
        %8068 = vmatpush2.bf16.msra.mxu0 %v7819
        %8069 = vmatprep.subr.bf16.mxu0 %v7816
        %8070 = vmatpush2.bf16.msra.mxu0 %v7815
        %8071 = vmatprep.mubr.bf16.mxu0 %v6292
        %8072 = vmatmul.mubr.bf16.gmra.mxu0 %v6291
        %v8073 = vpop.f32.mrf.mxu0
        %v8074 = vadd.f32 %v7382, %v8073
        %v8075 = vpop.f32.mrf.mxu0
        %v8076 = vadd.f32 %v7386, %v8075
        %v8077 = vpop.f32.mrf.mxu0
        %v8078 = vpop.f32.mrf.mxu0
        %8079 = vdwg.mxu0
        %8080 = vmatprep.subr.bf16.mxu0 %v7876
        %8081 = vmatpush1.bf16.msra.mxu0 %v7875
        %8082 = vmatprep.subr.bf16.mxu0 %v7872
        %8083 = vmatpush1.bf16.msra.mxu0 %v7871
        %8084 = vmatprep.subr.bf16.mxu0 %v7868
        %8085 = vmatpush1.bf16.msra.mxu0 %v7867
        %8086 = vmatprep.subr.bf16.mxu0 %v7864
        %8087 = vmatpush1.bf16.msra.mxu0 %v7863
        %8088 = vmatprep.subr.bf16.mxu0 %v7860
        %8089 = vmatpush1.bf16.msra.mxu0 %v7859
        %8090 = vmatprep.subr.bf16.mxu0 %v7856
        %8091 = vmatpush1.bf16.msra.mxu0 %v7855
        %8092 = vmatprep.subr.bf16.mxu0 %v7852
        %8093 = vmatpush1.bf16.msra.mxu0 %v7851
        %8094 = vmatprep.subr.bf16.mxu0 %v7848
        %8095 = vmatpush1.bf16.msra.mxu0 %v7847
        %8096 = vmatprep.subr.bf16.mxu0 %v7908
        %8097 = vmatpush2.bf16.msra.mxu0 %v7907
        %8098 = vmatprep.subr.bf16.mxu0 %v7904
        %8099 = vmatpush2.bf16.msra.mxu0 %v7903
        %8100 = vmatprep.subr.bf16.mxu0 %v7900
        %8101 = vmatpush2.bf16.msra.mxu0 %v7899
        %8102 = vmatprep.subr.bf16.mxu0 %v7896
        %8103 = vmatpush2.bf16.msra.mxu0 %v7895
        %8104 = vmatprep.subr.bf16.mxu0 %v7892
        %8105 = vmatpush2.bf16.msra.mxu0 %v7891
        %8106 = vmatprep.subr.bf16.mxu0 %v7888
        %8107 = vmatpush2.bf16.msra.mxu0 %v7887
        %8108 = vmatprep.subr.bf16.mxu0 %v7884
        %8109 = vmatpush2.bf16.msra.mxu0 %v7883
        %8110 = vmatprep.subr.bf16.mxu0 %v7880
        %8111 = vmatpush2.bf16.msra.mxu0 %v7879
        %8112 = vmatprep.mubr.bf16.mxu0 %v6294
        %8113 = vmatmul.mubr.bf16.gmra.mxu0 %v6293
        %v8114 = vpop.f32.mrf.mxu0
        %v8115 = vadd.f32 %v8074, %v8114
        %v8116 = vpop.f32.mrf.mxu0
        %v8117 = vadd.f32 %v8076, %v8116
        %v8118 = vpop.f32.mrf.mxu0
        %v8119 = vpop.f32.mrf.mxu0
        %8120 = vdwg.mxu0
        %8121 = vmatprep.subr.bf16.mxu0 %v7814
        %8122 = vmatpush1.bf16.msra.mxu0 %v7813
        %8123 = vmatprep.subr.bf16.mxu0 %v7810
        %8124 = vmatpush1.bf16.msra.mxu0 %v7809
        %8125 = vmatprep.subr.bf16.mxu0 %v7806
        %8126 = vmatpush1.bf16.msra.mxu0 %v7805
        %8127 = vmatprep.subr.bf16.mxu0 %v7802
        %8128 = vmatpush1.bf16.msra.mxu0 %v7801
        %8129 = vmatprep.subr.bf16.mxu0 %v7798
        %8130 = vmatpush1.bf16.msra.mxu0 %v7797
        %8131 = vmatprep.subr.bf16.mxu0 %v7794
        %8132 = vmatpush1.bf16.msra.mxu0 %v7793
        %8133 = vmatprep.subr.bf16.mxu0 %v7790
        %8134 = vmatpush1.bf16.msra.mxu0 %v7789
        %8135 = vmatprep.subr.bf16.mxu0 %v7786
        %8136 = vmatpush1.bf16.msra.mxu0 %v7785
        %8137 = vmatprep.subr.bf16.mxu0 %v7846
        %8138 = vmatpush2.bf16.msra.mxu0 %v7845
        %8139 = vmatprep.subr.bf16.mxu0 %v7842
        %8140 = vmatpush2.bf16.msra.mxu0 %v7841
        %8141 = vmatprep.subr.bf16.mxu0 %v7838
        %8142 = vmatpush2.bf16.msra.mxu0 %v7837
        %8143 = vmatprep.subr.bf16.mxu0 %v7834
        %8144 = vmatpush2.bf16.msra.mxu0 %v7833
        %8145 = vmatprep.subr.bf16.mxu0 %v7830
        %8146 = vmatpush2.bf16.msra.mxu0 %v7829
        %8147 = vmatprep.subr.bf16.mxu0 %v7826
        %8148 = vmatpush2.bf16.msra.mxu0 %v7825
        %8149 = vmatprep.subr.bf16.mxu0 %v7822
        %8150 = vmatpush2.bf16.msra.mxu0 %v7821
        %8151 = vmatprep.subr.bf16.mxu0 %v7818
        %8152 = vmatpush2.bf16.msra.mxu0 %v7817
        %8153 = vmatprep.mubr.bf16.mxu0 %v6292
        %8154 = vmatmul.mubr.bf16.gmra.mxu0 %v6291
        %v8155 = vpop.f32.mrf.mxu0
        %v8156 = vadd.f32 %v7390, %v8155
        %v8157 = vpop.f32.mrf.mxu0
        %v8158 = vadd.f32 %v7394, %v8157
        %v8159 = vpop.f32.mrf.mxu0
        %v8160 = vpop.f32.mrf.mxu0
        %8161 = vdwg.mxu0
        %8162 = vmatprep.subr.bf16.mxu0 %v7878
        %8163 = vmatpush1.bf16.msra.mxu0 %v7877
        %8164 = vmatprep.subr.bf16.mxu0 %v7874
        %8165 = vmatpush1.bf16.msra.mxu0 %v7873
        %8166 = vmatprep.subr.bf16.mxu0 %v7870
        %8167 = vmatpush1.bf16.msra.mxu0 %v7869
        %8168 = vmatprep.subr.bf16.mxu0 %v7866
        %8169 = vmatpush1.bf16.msra.mxu0 %v7865
        %8170 = vmatprep.subr.bf16.mxu0 %v7862
        %8171 = vmatpush1.bf16.msra.mxu0 %v7861
        %8172 = vmatprep.subr.bf16.mxu0 %v7858
        %8173 = vmatpush1.bf16.msra.mxu0 %v7857
        %8174 = vmatprep.subr.bf16.mxu0 %v7854
        %8175 = vmatpush1.bf16.msra.mxu0 %v7853
        %8176 = vmatprep.subr.bf16.mxu0 %v7850
        %8177 = vmatpush1.bf16.msra.mxu0 %v7849
        %8178 = vmatprep.subr.bf16.mxu0 %v7910
        %8179 = vmatpush2.bf16.msra.mxu0 %v7909
        %8180 = vmatprep.subr.bf16.mxu0 %v7906
        %8181 = vmatpush2.bf16.msra.mxu0 %v7905
        %8182 = vmatprep.subr.bf16.mxu0 %v7902
        %8183 = vmatpush2.bf16.msra.mxu0 %v7901
        %8184 = vmatprep.subr.bf16.mxu0 %v7898
        %8185 = vmatpush2.bf16.msra.mxu0 %v7897
        %8186 = vmatprep.subr.bf16.mxu0 %v7894
        %8187 = vmatpush2.bf16.msra.mxu0 %v7893
        %8188 = vmatprep.subr.bf16.mxu0 %v7890
        %8189 = vmatpush2.bf16.msra.mxu0 %v7889
        %8190 = vmatprep.subr.bf16.mxu0 %v7886
        %8191 = vmatpush2.bf16.msra.mxu0 %v7885
        %8192 = vmatprep.subr.bf16.mxu0 %v7882
        %8193 = vmatpush2.bf16.msra.mxu0 %v7881
        %8194 = vmatprep.mubr.bf16.mxu0 %v6294
        %8195 = vmatmul.mubr.bf16.gmra.mxu0 %v6293
        %v8196 = vpop.f32.mrf.mxu0
        %v8197 = vadd.f32 %v8156, %v8196
        %v8198 = vpop.f32.mrf.mxu0
        %v8199 = vadd.f32 %v8158, %v8198
        %v8200 = vpop.f32.mrf.mxu0
        %v8201 = vpop.f32.mrf.mxu0
        %8202 = vdwg.mxu0
        %vm8203 = vcmp.lt.f32.partialorder %v7161, 0.0
        %vm8204 = vcmp.lt.f32.partialorder %v7163, 0.0
        %vm8205 = vcmp.lt.f32.partialorder %v7243, 0.0
        %vm8206 = vcmp.lt.f32.partialorder %v7245, 0.0
        %v8207 = vsel %vm8203, -1.0, 1.0
        %v8208 = vsel %vm8204, -1.0, 1.0
        %v8209 = vsel %vm8205, -1.0, 1.0
        %v8210 = vsel %vm8206, -1.0, 1.0
        %v8211 = vand.u32 2147483647, %v7161
        %v8212 = vand.u32 2147483647, %v7163
        %v8213 = vand.u32 2147483647, %v7243
        %v8214 = vand.u32 2147483647, %v7245
        %vm8215 = vcmp.gt.f32.partialorder %v8211, 2.4142137
        %vm8216 = vcmp.gt.f32.partialorder %v8212, 2.4142137
        %vm8217 = vcmp.gt.f32.partialorder %v8213, 2.4142137
        %vm8218 = vcmp.gt.f32.partialorder %v8214, 2.4142137
        %vm8219 = vcmp.gt.f32.partialorder %v8211, 0.41421357
        %vm8220 = vcmp.gt.f32.partialorder %v8212, 0.41421357
        %vm8221 = vcmp.gt.f32.partialorder %v8213, 0.41421357
        %vm8222 = vcmp.gt.f32.partialorder %v8214, 0.41421357
        %v8223 = vsel %vm8215, %v8211, 1.0
        %v8224 = vsel %vm8216, %v8212, 1.0
        %v8225 = vsel %vm8217, %v8213, 1.0
        %v8226 = vsel %vm8218, %v8214, 1.0
        %v8227 = vrcp.pop %v8223
        %v8228 = vrcp.pop %v8224
        %v8229 = vrcp.pop %v8225
        %v8230 = vrcp.pop %v8226
        %v8231 = vsub.f32 0.0, %v8227
        %v8232 = vsub.f32 0.0, %v8228
        %v8233 = vsub.f32 0.0, %v8229
        %v8234 = vsub.f32 0.0, %v8230
        %v8235 = vadd.f32 %v8211, 1.0
        %v8236 = vadd.f32 %v8212, 1.0
        %v8237 = vadd.f32 %v8213, 1.0
        %v8238 = vadd.f32 %v8214, 1.0
        %v8239 = vrcp.pop %v8235
        %v8240 = vrcp.pop %v8236
        %v8241 = vrcp.pop %v8237
        %v8242 = vrcp.pop %v8238
        %v8243 = vsub.f32 %v8211, 1.0
        %v8244 = vsub.f32 %v8212, 1.0
        %v8245 = vsub.f32 %v8213, 1.0
        %v8246 = vsub.f32 %v8214, 1.0
        %v8247 = vmul.f32 %v8243, %v8239
        %v8248 = vmul.f32 %v8244, %v8240
        %v8249 = vmul.f32 %v8245, %v8241
        %v8250 = vmul.f32 %v8246, %v8242
        %v8251 = vsel %vm8219, %v8247, %v8211
        %v8252 = vsel %vm8220, %v8248, %v8212
        %v8253 = vsel %vm8221, %v8249, %v8213
        %v8254 = vsel %vm8222, %v8250, %v8214
        %v8255 = vsel %vm8215, %v8231, %v8251
        %v8256 = vsel %vm8216, %v8232, %v8252
        %v8257 = vsel %vm8217, %v8233, %v8253
        %v8258 = vsel %vm8218, %v8234, %v8254
        %v8259 = vsel %vm8219, 0.7853982, 0.0
        %v8260 = vsel %vm8220, 0.7853982, 0.0
        %v8261 = vsel %vm8221, 0.7853982, 0.0
        %v8262 = vsel %vm8222, 0.7853982, 0.0
        %v8263 = vsel %vm8215, 1.5707964, %v8259
        %v8264 = vsel %vm8216, 1.5707964, %v8260
        %v8265 = vsel %vm8217, 1.5707964, %v8261
        %v8266 = vsel %vm8218, 1.5707964, %v8262
        %v8267 = vmul.f32 %v8255, %v8255
        %v8268 = vmul.f32 %v8256, %v8256
        %v8269 = vmul.f32 %v8257, %v8257
        %v8270 = vmul.f32 %v8258, %v8258
        %v8271 = vmul.f32 %v8267, 0.080537446
        %v8272 = vmul.f32 %v8268, 0.080537446
        %v8273 = vmul.f32 %v8269, 0.080537446
        %v8274 = vmul.f32 %v8270, 0.080537446
        %v8275 = vsub.f32 %v8271, 0.13877685
        %v8276 = vsub.f32 %v8272, 0.13877685
        %v8277 = vsub.f32 %v8273, 0.13877685
        %v8278 = vsub.f32 %v8274, 0.13877685
        %v8279 = vmul.f32 %v8275, %v8267
        %v8280 = vmul.f32 %v8276, %v8268
        %v8281 = vmul.f32 %v8277, %v8269
        %v8282 = vmul.f32 %v8278, %v8270
        %v8283 = vadd.f32 %v8279, 0.19977711
        %v8284 = vadd.f32 %v8280, 0.19977711
        %v8285 = vadd.f32 %v8281, 0.19977711
        %v8286 = vadd.f32 %v8282, 0.19977711
        %v8287 = vmul.f32 %v8283, %v8267
        %v8288 = vmul.f32 %v8284, %v8268
        %v8289 = vmul.f32 %v8285, %v8269
        %v8290 = vmul.f32 %v8286, %v8270
        %v8291 = vsub.f32 %v8287, 0.3333295
        %v8292 = vsub.f32 %v8288, 0.3333295
        %v8293 = vsub.f32 %v8289, 0.3333295
        %v8294 = vsub.f32 %v8290, 0.3333295
        %v8295 = vmul.f32 %v8291, %v8267
        %v8296 = vmul.f32 %v8292, %v8268
        %v8297 = vmul.f32 %v8293, %v8269
        %v8298 = vmul.f32 %v8294, %v8270
        %v8299 = vmul.f32 %v8295, %v8255
        %v8300 = vmul.f32 %v8296, %v8256
        %v8301 = vmul.f32 %v8297, %v8257
        %v8302 = vmul.f32 %v8298, %v8258
        %v8303 = vadd.f32 %v8299, %v8255
        %v8304 = vadd.f32 %v8300, %v8256
        %v8305 = vadd.f32 %v8301, %v8257
        %v8306 = vadd.f32 %v8302, %v8258
        %v8307 = vadd.f32 %v8263, %v8303
        %v8308 = vadd.f32 %v8264, %v8304
        %v8309 = vadd.f32 %v8265, %v8305
        %v8310 = vadd.f32 %v8266, %v8306
        %v8311 = vmul.f32 %v8207, %v8307
        %v8312 = vmul.f32 %v8208, %v8308
        %v8313 = vmul.f32 %v8209, %v8309
        %v8314 = vmul.f32 %v8210, %v8310
        %v8315 = vmul.f32 %v8311, 0.954
        %v8316 = vmul.f32 %v8312, 0.954
        %v8317 = vmul.f32 %v8313, 0.954
        %v8318 = vmul.f32 %v8314, 0.954
        %v8319 = vmul.f32 %v8315, 1.442695
        %v8320 = vpow.pop %v8319
        %v8321 = vmul.f32 %v8316, 1.442695
        %v8322 = vpow.pop %v8321
        %v8323 = vmul.f32 %v8317, 1.442695
        %v8324 = vpow.pop %v8323
        %v8325 = vmul.f32 %v8318, 1.442695
        %v8326 = vpow.pop %v8325
        %v8328 = vcombine.high %v3420, %v3420
        %v8330 = vunpack.c.l.s4 1983009808
        %v8331 = vunpack.c.0.s8 %v8330
        %v8332 = vlaneseq
        %v8333 = vshrl.u32 %v8332, 7
        %v8334 = vsub.s32 %v8331, %v8333
        %v8335 = vrot.slane %v3420, %v8334
        %v8337 = vunpack.c.l.s4 1983009808
        %v8338 = vunpack.c.0.s8 %v8337
        %v8339 = vlaneseq
        %v8340 = vshrl.u32 %v8339, 7
        %v8341 = vsub.s32 %v8338, %v8340
        %v8342 = vrot.slane %v8328, %v8341
        %v8343 = vcombine.high %v8335, %v8335
        %v8344 = vcombine.high %v8342, %v8342
        %v8349 = vmul.f32 %v8320, %v8335
        %v8350 = vmul.f32 %v8322, %v8343
        %v8351 = vmul.f32 %v8324, %v8342
        %v8352 = vmul.f32 %v8326, %v8344
        %v8353 = vadd.f32 %v8349, %v8115
        %v8354 = vadd.f32 %v8350, %v8117
        %v8355 = vadd.f32 %v8351, %v8197
        %v8356 = vadd.f32 %v8352, %v8199
        %v8357 = vld [vmem:[#allocation4] sm:$0x3]
        %vm8358 = vcmask 1041408
        %v8359 = vsel %vm8358, %v8315, 0.0
        %v8360 = vsel %vm8358, %v8316, 0.0
        %v8361 = vadd.f32 %v8359, %v8360
        %v8362 = vsel %vm8358, %v8317, 0.0
        %v8363 = vadd.f32 %v8361, %v8362
        %vm8364 = vcmask 58368
        %v8365 = vsel %vm8364, %v8318, 0.0
        %v8366 = vadd.f32 %v8363, %v8365
        %8367 = vadd.xlane.f32.xlu0 %v8366
        %v8368 = vpop.xlane.xlu0 %8367
        %v8369 = vadd.f32 %v8357, %v8368
        %vm8370 = vcmask 1024
        %8371 = vst.msk [vmem:[#allocation4] sm:$0x3] %vm8370, %v8369
        // Predicated region
        $region89: #{cinn_forward.1} parent=79 // pred_check
          %p8372 = pneg %p961
        $region90: #{cinn_forward.1} parent=79 // pred_check_branch
          %8374 = sbr.rel (%p8372) target = $region92
        $region91: #{cinn_forward.1} parent=79 // pred_region
          %v8379 = vcombine.low %v8353, %v8354
          %v8380 = vcombine.low %v8355, %v8356
          %v8382 = vunpack.c.l.s4 1983009808
          %v8383 = vunpack.c.0.s8 %v8382
          %v8384 = vlaneseq
          %v8385 = vshrl.u32 %v8384, 7
          %v8386 = vsub.s32 %v8383, %v8385
          %v8387 = vrot.slane %v8379, %v8386
          %v8389 = vunpack.c.l.s4 1983009808
          %v8390 = vunpack.c.0.s8 %v8389
          %v8391 = vlaneseq
          %v8392 = vshrl.u32 %v8391, 7
          %v8393 = vsub.s32 %v8390, %v8392
          %v8394 = vrot.slane %v8380, %v8393
          %v8395 = vcombine.low %v8387, %v8394
          %vm8397 = vcmask 1043458
          %vm8398 = vmor %vm8397, %vm8358
          %vm8399 = vcmask 1045508
          %vm8400 = vmor %vm8399, %vm8398
          %vm8401 = vcmask 64518
          %vm8402 = vmor %vm8401, %vm8400
          %8403 = vst.msk [vmem:[#allocation2] sm:$0xff] %vm8402, %v8395
        $region92: #{cinn_forward.1} parent=79 // pred_fallthru
          _
        %p8404 = scmp.eq.s32.totalorder %s36, 1
        // Predicated region
        $region93: #{cinn_forward.1} parent=79 // pred_check
          %p8405 = pneg %p8404
        $region94: #{cinn_forward.1} parent=79 // pred_check_branch
          %8407 = sbr.rel (%p8405) target = $region96
        $region95: #{cinn_forward.1} parent=79 // pred_region
          %v8412 = vcombine.low %v8353, %v8354
          %v8413 = vcombine.low %v8355, %v8356
          %v8415 = vunpack.c.l.s4 1983009808
          %v8416 = vunpack.c.0.s8 %v8415
          %v8417 = vlaneseq
          %v8418 = vshrl.u32 %v8417, 7
          %v8419 = vsub.s32 %v8416, %v8418
          %v8420 = vrot.slane %v8412, %v8419
          %v8422 = vunpack.c.l.s4 1983009808
          %v8423 = vunpack.c.0.s8 %v8422
          %v8424 = vlaneseq
          %v8425 = vshrl.u32 %v8424, 7
          %v8426 = vsub.s32 %v8423, %v8425
          %v8427 = vrot.slane %v8413, %v8426
          %v8428 = vcombine.low %v8420, %v8427
          %vm8430 = vcmask 1043458
          %vm8431 = vmor %vm8430, %vm8358
          %vm8432 = vcmask 1045508
          %vm8433 = vmor %vm8432, %vm8431
          %vm8434 = vcmask 64518
          %vm8435 = vmor %vm8434, %vm8433
          %8436 = vst.msk [vmem:[#allocation3] sm:$0xff] %vm8435, %v8428
        $region96: #{cinn_forward.1} parent=79 // pred_fallthru
          _
        %p8437 = scmp.eq.s32.totalorder %s35, 3
        %p8438 = pnand %p8437, %p8404
        %p8439 = pneg %p8438
        // Predicated region
        $region97: #{cinn_forward.1} parent=79 // pred_check
          _
        $region98: #{cinn_forward.1} parent=79 // pred_check_branch
          %8441 = sbr.rel (%p8438) target = $region100
        $region99: #{cinn_forward.1} parent=79 // pred_region
          %v8442 = vld [vmem:[#allocation2] sm:$0xff]
          %v8443 = vld [vmem:[#allocation3] sm:$0xff]
          %v8445 = vcombine.high %v8442, %v8442
          %v8447 = vunpack.c.l.s4 1983009808
          %v8448 = vunpack.c.0.s8 %v8447
          %v8449 = vlaneseq
          %v8450 = vshrl.u32 %v8449, 7
          %v8451 = vsub.s32 %v8448, %v8450
          %v8452 = vrot.slane %v8442, %v8451
          %v8454 = vunpack.c.l.s4 1983009808
          %v8455 = vunpack.c.0.s8 %v8454
          %v8456 = vlaneseq
          %v8457 = vshrl.u32 %v8456, 7
          %v8458 = vsub.s32 %v8455, %v8457
          %v8459 = vrot.slane %v8445, %v8458
          %v8460 = vcombine.high %v8452, %v8452
          %v8461 = vcombine.high %v8459, %v8459
          %v8464 = vcombine.high %v8443, %v8443
          %v8466 = vunpack.c.l.s4 1983009808
          %v8467 = vunpack.c.0.s8 %v8466
          %v8468 = vlaneseq
          %v8469 = vshrl.u32 %v8468, 7
          %v8470 = vsub.s32 %v8467, %v8469
          %v8471 = vrot.slane %v8443, %v8470
          %v8473 = vunpack.c.l.s4 1983009808
          %v8474 = vunpack.c.0.s8 %v8473
          %v8475 = vlaneseq
          %v8476 = vshrl.u32 %v8475, 7
          %v8477 = vsub.s32 %v8474, %v8476
          %v8478 = vrot.slane %v8464, %v8477
          %v8479 = vcombine.high %v8471, %v8471
          %v8480 = vcombine.high %v8478, %v8478
          %8481 = vrot.lane.b32.xlu0 %v8471, 8
          %v8482 = vpop.permute.xlu0 %8481
          %8483 = vrot.lane.b32.xlu0 %v8479, 8
          %v8484 = vpop.permute.xlu0 %8483
          %8485 = vrot.lane.b32.xlu0 %v8478, 8
          %v8486 = vpop.permute.xlu0 %8485
          %8487 = vrot.lane.b32.xlu0 %v8480, 8
          %v8488 = vpop.permute.xlu0 %8487
          %v8489 = vsel %vm4156, %v8482, %v8484
          %v8490 = vsel %vm4156, %v8484, %v8486
          %v8491 = vsel %vm4156, %v8486, %v8488
          %v8493 = vsel %vm4156, %v8461, %v8482
          %v8495 = vcombine.low %v8452, %v8460
          %v8496 = vcombine.low %v8459, %v8493
          %v8498 = vunpack.c.l.s4 1983009808
          %v8499 = vunpack.c.0.s8 %v8498
          %v8500 = vlaneseq
          %v8501 = vshrl.u32 %v8500, 7
          %v8502 = vsub.s32 %v8499, %v8501
          %v8503 = vrot.slane %v8495, %v8502
          %v8505 = vunpack.c.l.s4 1983009808
          %v8506 = vunpack.c.0.s8 %v8505
          %v8507 = vlaneseq
          %v8508 = vshrl.u32 %v8507, 7
          %v8509 = vsub.s32 %v8506, %v8508
          %v8510 = vrot.slane %v8496, %v8509
          %v8511 = vcombine.low %v8503, %v8510
          %v8512 = vcombine.low %v8489, %v8490
          %v8514 = vunpack.c.l.s4 1983009808
          %v8515 = vunpack.c.0.s8 %v8514
          %v8516 = vlaneseq
          %v8517 = vshrl.u32 %v8516, 7
          %v8518 = vsub.s32 %v8515, %v8517
          %v8519 = vrot.slane %v8512, %v8518
          %v8521 = vunpack.c.l.s4 1983009808
          %v8522 = vunpack.c.0.s8 %v8521
          %v8523 = vlaneseq
          %v8524 = vshrl.u32 %v8523, 7
          %v8525 = vsub.s32 %v8522, %v8524
          %v8526 = vrot.slane %v8491, %v8525
          %v8527 = vcombine.low %v8519, %v8526
          %8530 = vst [vmem:[#allocation5] sm:$0xff] %v8511
          %vm8531 = vcmask 1043458
          %vm8532 = vmor %vm8531, %vm8358
          %vm8533 = vcmask 128004
          %vm8534 = vmor %vm8533, %vm8532
          %8535 = vst.msk [vmem:[#allocation5 + $0x8] sm:$0x3f] %vm8534, %v8527
          %v8536 = vld [vmem:[#allocation4] sm:$0x3]
          %8537 = vst.msk [vmem:[%s958] sm:$0x3] %vm8370, %v8536
        $region100: #{cinn_forward.1} parent=79 // pred_fallthru
          _
        %p8538 = scmp.lt.s32.totalorder %s34, 0
        %s8539 = scalar_select %p8538, %s34, 0
        %s8540 = smul.addr %s8539, 2
        %s8541 = scalar_lea.vmem %s16, %s8540
        // Predicated region
        $region101: #{cinn_forward.1} parent=79 // pred_check
          %p8542 = pneg %p478
        $region102: #{cinn_forward.1} parent=79 // pred_check_branch
          %8544 = sbr.rel (%p8542) target = $region104
        $region103: #{cinn_forward.1} parent=79 // pred_region
          %s8546 = ssub.s32 224, 224
          %8547 = vsyncadd [#allocation6], %s8546
          %s8548 = smul.addr %s34, 7
          %s8549 = smul.addr %s8548, 32
          %s8550 = scalar_lea.hbm %s15, %s8549
          %s8552 = sshll.u32 [#allocation5], 4
          %s8553 = int_to_ptr.vmem [resolvable:$true] %s8552
          %8555 = dma.vmem_to_hbm [thread:$0]  %s8553, 224, %s8550, [#allocation6]
        $region104: #{cinn_forward.1} parent=79 // pred_fallthru
          _
        // Predicated region
        $region105: #{cinn_forward.1} parent=79 // pred_check
          %p8556 = pneg %p504
        $region106: #{cinn_forward.1} parent=79 // pred_check_branch
          %8558 = sbr.rel (%p8556) target = $region108
        $region107: #{cinn_forward.1} parent=79 // pred_region
          _
        $region108: #{cinn_forward.1} parent=79 // pred_fallthru
          _
        // Predicated region
        $region109: #{cinn_forward.1} parent=79 // pred_check
          %p8559 = pneg %p478
        $region110: #{cinn_forward.1} parent=79 // pred_check_branch
          %8561 = sbr.rel (%p8559) target = $region112
        $region111: #{cinn_forward.1} parent=79 // pred_region
          %8562 = dma.done [#allocation6], 224
        $region112: #{cinn_forward.1} parent=79 // pred_fallthru
          _
        // Predicated region
        $region113: #{cinn_forward.1} parent=79 // pred_check
          %p8563 = pneg %p504
        $region114: #{cinn_forward.1} parent=79 // pred_check_branch
          %8565 = sbr.rel (%p8563) target = $region116
        $region115: #{cinn_forward.1} parent=79 // pred_region
          %p8566 = scmp.lt.s32.totalorder %s34, 0
          %s8567 = scalar_select %p8566, %s34, 0
          %s8568 = smul.addr %s8567, 2
          %s8569 = scalar_lea.vmem %s16, %s8568
        $region116: #{cinn_forward.1} parent=79 // pred_fallthru
          _
      $region80: #{cinn_forward.1} parent=5 // pred_fallthru
        _
      %p8570 = scmp.le.s32.totalorder 2, %s24
      // Predicated region
      $region117: #{cinn_forward.1} parent=5 // pred_check
        %p8571 = pneg %p8570
      $region118: #{cinn_forward.1} parent=5 // pred_check_branch
        %8573 = sbr.rel (%p8571) target = $region120
      $region119: #{cinn_forward.1} parent=5 // pred_region
        %s8574 = ssub.s32 %s24, 2
      $region120: #{cinn_forward.1} parent=5 // pred_fallthru
        _
    $region6: #{cinn_forward.1} parent=1 // loop_footer
      %s28 = sadd.s32 1, %s24
    $region7: #{cinn_forward.1} parent=1 // loop_footer_branch
      %23 = sbr.rel target = $region3
    $region8: #{cinn_forward.1} parent=1 // loop_exit
      _
    %8575 = vsyncpa [#allocation6], 1
    %s8576 = scalar_lea.sflag [#allocation6], 1
    %8577 = vsyncpa %s8576, 1

</llo_original>
